<compile_context>
chip_gen: v7x
topology: tpu7x:2x2x1
jax: 0.10.0
libtpu: 0.0.40
codegen_flags: <defaults>
</compile_context>

<pallas_src>
import functools

import jax
import jax.numpy as jnp
from jax import lax
from jax.experimental import pallas as pl
from jax.experimental.pallas import tpu as pltpu
import numpy as np


# ----------------------------------------------------------------------------
# Pallas kernel
# ----------------------------------------------------------------------------
def dual_cnn_kernel(x_ref, w0_ref, b0_ref, wR_ref, bR_ref, wfin_ref, bfin_ref,
                    out_ref, *, seq_len):
    x = x_ref[0]                      # (Cin, NB*L) f32; lanes = NB*L
    nl = x.shape[1]

    # Boundary masks (f32): zero the wrapped column at sequence edges and at
    # every batch seam (NB sequences share the lane axis).
    lane = lax.broadcasted_iota(jnp.int32, (1, nl), 1)
    keep_left = (lane % seq_len != 0).astype(jnp.float32)             # kills h[l-1] at l == 0
    keep_right = (lane % seq_len != seq_len - 1).astype(jnp.float32)  # kills h[l+1] at l == L-1

    def conv3(h, w_m, w_c, w_p, b, relu=True):
        """3-tap conv as three accumulating dots (no stacked-operand build).

        w_m / w_c / w_p multiply h[l-1] / h[l] / h[l+1].  Operands are cast to
        the weight dtype (bf16 fast path); accumulation stays f32.
        """
        op_dt = w_c.dtype
        h_m = (pltpu.roll(h, 1, 1) * keep_left).astype(op_dt)        # col l -> h[l-1]
        h_p = (pltpu.roll(h, nl - 1, 1) * keep_right).astype(op_dt)  # col l -> h[l+1]
        y = jnp.dot(w_m, h_m, preferred_element_type=jnp.float32)
        y = y + jnp.dot(w_c, h.astype(op_dt), preferred_element_type=jnp.float32)
        y = y + jnp.dot(w_p, h_p, preferred_element_type=jnp.float32)
        y = y + b
        return jnp.maximum(y, 0.0) if relu else y

    # Layer 0, both branches fused along output rows: 3 x (128, Cin) x (Cin, NL)
    h = conv3(x, w0_ref[0], w0_ref[1], w0_ref[2], b0_ref[...])

    # Layers 1..3: block-diagonal fused weights, 3 dots per layer:
    # (128, 128) x (128, NL).  (On v5e a 2-batch dot_general over the two
    # branches would skip the structural zeros if the MXU ever binds.)
    for i in range(3):
        h = conv3(h, wR_ref[3 * i + 0], wR_ref[3 * i + 1], wR_ref[3 * i + 2],
                  bR_ref[i])

    # Final conv over the concatenated [t; f] channels (rows 0:64 | 64:128),
    # no ReLU, output channels padded to 8 sublanes: 3 x (8, 128) x (128, NL).
    out_ref[0] = conv3(h, wfin_ref[0], wfin_ref[1], wfin_ref[2], bfin_ref[...],
                       relu=False)


def _default_grid_steps(batch):
    """v7x has 2 TensorCores/chip -> keep an even 'parallel' grid there;
    single-TC v5e/v6e amortize fixed per-step costs best with one wide step."""
    try:
        kind = jax.devices()[0].device_kind.lower()
    except Exception:
        kind = ""
    if ("v7" in kind or "tpu7" in kind) and batch % 2 == 0:
        return 2
    return 1


def dual_cnn_forward(x, params, c_out, *, nb=None):
    """x: (N, Cin, L) float32 -> (N, c_out, L)."""
    n, c_in, length = x.shape
    w0, b0, wR, bR, wfin, bfin = params
    c_out_pad = wfin.shape[1]

    if nb is None:
        nb = n // _default_grid_steps(n)
    assert n % nb == 0, "batch must be divisible by nb"
    g = n // nb
    nl = nb * length
    assert nl % 128 == 0, "lane-packed width NB*L must be a multiple of 128"

    # Pack nb batch elements side-by-side along the lane axis (layout plumbing).
    xp = x.reshape(g, nb, c_in, length).transpose(0, 2, 1, 3).reshape(g, c_in, nl)

    def full_spec(a):
        nd = a.ndim
        return pl.BlockSpec(a.shape, lambda i, _nd=nd: (0,) * _nd)

    kernel = functools.partial(dual_cnn_kernel, seq_len=length)

    flops_per_step = 2 * nl * 3 * (128 * c_in + 3 * 128 * 128 + c_out_pad * 128)
    bytes_accessed = int(4 * xp.size + 4 * g * c_out_pad * nl
                         + sum(int(a.size) * a.dtype.itemsize for a in params))

    out = pl.pallas_call(
        kernel,
        out_shape=jax.ShapeDtypeStruct((g, c_out_pad, nl), jnp.float32),
        grid=(g,),
        in_specs=[
            pl.BlockSpec((1, c_in, nl), lambda i: (i, 0, 0)),   # activations
            full_spec(w0), full_spec(b0),                        # grid-invariant weights
            full_spec(wR), full_spec(bR),
            full_spec(wfin), full_spec(bfin),
        ],
        out_specs=pl.BlockSpec((1, c_out_pad, nl), lambda i: (i, 0, 0)),
        compiler_params=pltpu.CompilerParams(
            dimension_semantics=("parallel",)),                  # megacore shards batch on v7x
        cost_estimate=pl.CostEstimate(flops=int(g * flops_per_step),
                                      transcendentals=0,
                                      bytes_accessed=bytes_accessed),
    )(xp, w0, b0, wR, bR, wfin, bfin)

    # Unpack lane-packed batch and strip the output-channel padding.
    out = out.reshape(g, c_out_pad, nb, length).transpose(0, 2, 1, 3).reshape(
        n, c_out_pad, length)
    return out[:, :c_out, :]


# ----------------------------------------------------------------------------
# Parameter construction (deterministic) + BN fusion + weight repacking
# ----------------------------------------------------------------------------
def init_branch(key, c_in, hidden=64):
    """4 x [Conv1d(k3,p1) + BatchNorm1d], BN (eval mode) fused into (w, b)."""
    layers = []
    for i in range(4):
        ci = c_in if i == 0 else hidden
        key, k1, k2, k3, k4, k5, k6 = jax.random.split(key, 7)
        w = 0.1 * jax.random.normal(k1, (hidden, ci, 3), jnp.float32)
        b = 0.1 * jax.random.normal(k2, (hidden,), jnp.float32)
        gamma = 1.0 + 0.1 * jax.random.normal(k3, (hidden,), jnp.float32)
        beta = 0.1 * jax.random.normal(k4, (hidden,), jnp.float32)
        mean = 0.1 * jax.random.normal(k5, (hidden,), jnp.float32)
        var = jnp.abs(jax.random.normal(k6, (hidden,), jnp.float32)) + 0.5
        scale = gamma / jnp.sqrt(var + 1e-5)            # BN eval-mode fusion
        layers.append((w * scale[:, None, None], (b - mean) * scale + beta))
    # Dropout(0.1) is identity in eval mode -> nothing to fuse.
    return key, layers


def pack_params(layers_t, layers_f, wfin, bfin_vec, hidden=64,
                weight_dtype=jnp.bfloat16):
    """Repack into per-tap, branch-fused matmul tiles (t rows first).

    Weights go to `weight_dtype` (bf16 fast path); biases stay f32 since they
    are added to the f32 accumulator.
    """
    # Layer 0, tap k: (128, Cin); multiplies x[l-1+k].
    w0 = jnp.stack([jnp.concatenate([layers_t[0][0][:, :, k],
                                     layers_f[0][0][:, :, k]], axis=0)
                    for k in range(3)])                                   # (3, 128, Cin)
    b0 = jnp.concatenate([layers_t[0][1], layers_f[0][1]])[:, None]       # (128, 1)

    def block_diag_tap(wt, wf, k):
        zero = jnp.zeros((hidden, hidden), jnp.float32)
        top = jnp.concatenate([wt[:, :, k], zero], axis=1)
        bot = jnp.concatenate([zero, wf[:, :, k]], axis=1)
        return jnp.concatenate([top, bot], axis=0)                        # (128, 128)

    # Hidden layers 1..3, flattened (layer, tap) -> index 3*i + k.
    wR = jnp.stack([block_diag_tap(layers_t[i][0], layers_f[i][0], k)
                    for i in range(1, 4) for k in range(3)])              # (9, 128, 128)
    bR = jnp.stack([jnp.concatenate([layers_t[i][1], layers_f[i][1]])[:, None]
                    for i in range(1, 4)])                                # (3, 128, 1)

    # Final conv: pad output channels to a multiple of 8 sublanes.
    c_out = wfin.shape[0]
    c_out_pad = max(8, ((c_out + 7) // 8) * 8)
    wf_pad = jnp.zeros((c_out_pad, 2 * hidden, 3), jnp.float32).at[:c_out].set(wfin)
    bf_pad = jnp.zeros((c_out_pad,), jnp.float32).at[:c_out].set(bfin_vec)
    w_fin = jnp.stack([wf_pad[:, :, k] for k in range(3)])                # (3, 8, 128)
    b_fin = bf_pad[:, None]                                               # (8, 1)

    wd = weight_dtype
    return (w0.astype(wd), b0, wR.astype(wd), bR, w_fin.astype(wd), b_fin)


# ----------------------------------------------------------------------------
# Pure-JAX reference (lax.conv_general_dilated) for correctness checking
# ----------------------------------------------------------------------------
def ref_forward(x, layers_t, layers_f, wfin, bfin_vec):
    def conv1d(h, w, b):
        y = lax.conv_general_dilated(
            h, w, window_strides=(1,), padding=[(1, 1)],
            dimension_numbers=('NCH', 'OIH', 'NCH'))
        return y + b[None, :, None]

    def run_branch(h, layers):
        for (w, b) in layers:
            h = jnp.maximum(conv1d(h, w, b), 0.0)
        return h

    t = run_branch(x, layers_t)
    f = run_branch(x, layers_f)
    return conv1d(jnp.concatenate([t, f], axis=1), wfin, bfin_vec)


# ----------------------------------------------------------------------------
if __name__ == "__main__":
    batch = 4
    channel_num = 4
    data_num = 128       # sequence length (lane-aligned)
    hidden = 64          # fixed by the module (Conv1d -> 64 channels)

    key = jax.random.PRNGKey(0)
    key, kx = jax.random.split(key)
    x = jax.random.normal(kx, (batch, channel_num, data_num), jnp.float32)

    key, layers_t = init_branch(key, channel_num, hidden)
    key, layers_f = init_branch(key, channel_num, hidden)
    key, kwf, kbf = jax.random.split(key, 3)
    wfin_raw = 0.1 * jax.random.normal(kwf, (channel_num, 2 * hidden, 3), jnp.float32)
    bfin_raw = 0.1 * jax.random.normal(kbf, (channel_num,), jnp.float32)

    ref = jax.block_until_ready(ref_forward(x, layers_t, layers_f, wfin_raw, bfin_raw))

    # 1) f32-operand mode: tight check against the conv reference.
    params_f32 = pack_params(layers_t, layers_f, wfin_raw, bfin_raw, hidden,
                             weight_dtype=jnp.float32)
    out_f32 = jax.block_until_ready(
        dual_cnn_forward(x, params_f32, c_out=channel_num))
    np.testing.assert_allclose(np.asarray(out_f32), np.asarray(ref),
                               rtol=5e-4, atol=5e-4)

    # 2) bf16-operand fast path (f32 accumulation): bf16 rounding through five
    #    stacked matmuls (K up to 128) loosens the bound, so use a coarser
    #    tolerance here.
    params_bf16 = pack_params(layers_t, layers_f, wfin_raw, bfin_raw, hidden,
                              weight_dtype=jnp.bfloat16)
    out_bf16 = jax.block_until_ready(
        dual_cnn_forward(x, params_bf16, c_out=channel_num))
    np.testing.assert_allclose(np.asarray(out_bf16), np.asarray(ref),
                               rtol=1e-1, atol=1e-1)

    print("KERNEL_OK")
</pallas_src>

<mosaic_0001>
module attributes {stable_mosaic.version = 11 : i64} {
  func.func @dual_cnn_kernel(%arg0: i32, %arg1: memref<1x4x512xf32, #tpu.memory_space<vmem>>, %arg2: memref<3x128x4xf32, #tpu.memory_space<vmem>>, %arg3: memref<128x1xf32, #tpu.memory_space<vmem>>, %arg4: memref<9x128x128xf32, #tpu.memory_space<vmem>>, %arg5: memref<3x128x1xf32, #tpu.memory_space<vmem>>, %arg6: memref<3x8x128xf32, #tpu.memory_space<vmem>>, %arg7: memref<8x1xf32, #tpu.memory_space<vmem>>, %arg8: memref<1x8x512xf32, #tpu.memory_space<vmem>>) attributes {dimension_semantics = [#tpu.dimension_semantics<parallel>], iteration_bounds = array<i64: 1>, scalar_prefetch = 0 : i64, scratch_operands = 0 : i64, tpu.core_type = #tpu.core_type<tc>, window_params = [{transform_indices = @transform_0, window_bounds = array<i64: 1, 4, 512>}, {pipeline_mode = #tpu.pipeline_mode<synchronous>, transform_indices = @transform_1, window_bounds = array<i64: 3, 128, 4>}, {pipeline_mode = #tpu.pipeline_mode<synchronous>, transform_indices = @transform_2, window_bounds = array<i64: 128, 1>}, {pipeline_mode = #tpu.pipeline_mode<synchronous>, transform_indices = @transform_3, window_bounds = array<i64: 9, 128, 128>}, {pipeline_mode = #tpu.pipeline_mode<synchronous>, transform_indices = @transform_4, window_bounds = array<i64: 3, 128, 1>}, {pipeline_mode = #tpu.pipeline_mode<synchronous>, transform_indices = @transform_5, window_bounds = array<i64: 3, 8, 128>}, {pipeline_mode = #tpu.pipeline_mode<synchronous>, transform_indices = @transform_6, window_bounds = array<i64: 8, 1>}, {transform_indices = @transform_7, window_bounds = array<i64: 1, 8, 512>}]} {
    %c0 = arith.constant 0 : index
    %c0_0 = arith.constant 0 : index
    %c0_1 = arith.constant 0 : index
    %0 = vector.load %arg1[%c0, %c0_0, %c0_1] : memref<1x4x512xf32, #tpu.memory_space<vmem>>, vector<1x4x512xf32>
    %1 = vector.shape_cast %0 : vector<1x4x512xf32> to vector<4x512xf32>
    %2 = tpu.iota {dimensions = array<i32: 1>} : vector<1x512xi32>
    %c128_i32 = arith.constant 128 : i32
    %c0_i32 = arith.constant 0 : i32
    %3 = arith.cmpi eq, %c128_i32, %c0_i32 : i32
    %c1_i32 = arith.constant 1 : i32
    %4 = arith.select %3, %c1_i32, %c128_i32 : i32
    %5 = vector.broadcast %4 : i32 to vector<1x512xi32>
    %6 = arith.remsi %2, %5 : vector<1x512xi32>
    %c0_i32_2 = arith.constant 0 : i32
    %7 = vector.broadcast %c0_i32_2 : i32 to vector<1x512xi32>
    %8 = arith.cmpi ne, %6, %7 : vector<1x512xi32>
    %c0_i32_3 = arith.constant 0 : i32
    %9 = vector.broadcast %c0_i32_3 : i32 to vector<1x512xi32>
    %10 = arith.cmpi slt, %6, %9 : vector<1x512xi32>
    %c0_i32_4 = arith.constant 0 : i32
    %11 = arith.cmpi slt, %4, %c0_i32_4 : i32
    %12 = vector.broadcast %11 : i1 to vector<1x512xi1>
    %13 = vector.broadcast %12 : vector<1x512xi1> to vector<1x512xi1>
    %14 = arith.xori %10, %13 : vector<1x512xi1>
    %15 = arith.andi %14, %8 : vector<1x512xi1>
    %16 = vector.broadcast %4 : i32 to vector<1x512xi32>
    %17 = arith.addi %6, %16 : vector<1x512xi32>
    %18 = arith.select %15, %17, %6 : vector<1x512xi1>, vector<1x512xi32>
    %c0_i32_5 = arith.constant 0 : i32
    %19 = vector.broadcast %c0_i32_5 : i32 to vector<1x512xi32>
    %20 = arith.cmpi ne, %18, %19 : vector<1x512xi32>
    %21 = arith.extui %20 : vector<1x512xi1> to vector<1x512xi32>
    %22 = arith.sitofp %21 : vector<1x512xi32> to vector<1x512xf32>
    %c128_i32_6 = arith.constant 128 : i32
    %c0_i32_7 = arith.constant 0 : i32
    %23 = arith.cmpi eq, %c128_i32_6, %c0_i32_7 : i32
    %c1_i32_8 = arith.constant 1 : i32
    %24 = arith.select %23, %c1_i32_8, %c128_i32_6 : i32
    %25 = vector.broadcast %24 : i32 to vector<1x512xi32>
    %26 = arith.remsi %2, %25 : vector<1x512xi32>
    %c0_i32_9 = arith.constant 0 : i32
    %27 = vector.broadcast %c0_i32_9 : i32 to vector<1x512xi32>
    %28 = arith.cmpi ne, %26, %27 : vector<1x512xi32>
    %c0_i32_10 = arith.constant 0 : i32
    %29 = vector.broadcast %c0_i32_10 : i32 to vector<1x512xi32>
    %30 = arith.cmpi slt, %26, %29 : vector<1x512xi32>
    %c0_i32_11 = arith.constant 0 : i32
    %31 = arith.cmpi slt, %24, %c0_i32_11 : i32
    %32 = vector.broadcast %31 : i1 to vector<1x512xi1>
    %33 = vector.broadcast %32 : vector<1x512xi1> to vector<1x512xi1>
    %34 = arith.xori %30, %33 : vector<1x512xi1>
    %35 = arith.andi %34, %28 : vector<1x512xi1>
    %36 = vector.broadcast %24 : i32 to vector<1x512xi32>
    %37 = arith.addi %26, %36 : vector<1x512xi32>
    %38 = arith.select %35, %37, %26 : vector<1x512xi1>, vector<1x512xi32>
    %c127_i32 = arith.constant 127 : i32
    %39 = vector.broadcast %c127_i32 : i32 to vector<1x512xi32>
    %40 = arith.cmpi ne, %38, %39 : vector<1x512xi32>
    %41 = arith.extui %40 : vector<1x512xi1> to vector<1x512xi32>
    %42 = arith.sitofp %41 : vector<1x512xi32> to vector<1x512xf32>
    %c0_12 = arith.constant 0 : index
    %c0_13 = arith.constant 0 : index
    %c0_14 = arith.constant 0 : index
    %43 = vector.load %arg2[%c0_12, %c0_13, %c0_14] : memref<3x128x4xf32, #tpu.memory_space<vmem>>, vector<1x128x4xf32>
    %44 = vector.shape_cast %43 : vector<1x128x4xf32> to vector<128x4xf32>
    %c1 = arith.constant 1 : index
    %c0_15 = arith.constant 0 : index
    %c0_16 = arith.constant 0 : index
    %45 = vector.load %arg2[%c1, %c0_15, %c0_16] : memref<3x128x4xf32, #tpu.memory_space<vmem>>, vector<1x128x4xf32>
    %46 = vector.shape_cast %45 : vector<1x128x4xf32> to vector<128x4xf32>
    %c2 = arith.constant 2 : index
    %c0_17 = arith.constant 0 : index
    %c0_18 = arith.constant 0 : index
    %47 = vector.load %arg2[%c2, %c0_17, %c0_18] : memref<3x128x4xf32, #tpu.memory_space<vmem>>, vector<1x128x4xf32>
    %48 = vector.shape_cast %47 : vector<1x128x4xf32> to vector<128x4xf32>
    %c0_19 = arith.constant 0 : index
    %c0_20 = arith.constant 0 : index
    %49 = vector.load %arg3[%c0_19, %c0_20] : memref<128x1xf32, #tpu.memory_space<vmem>>, vector<128x1xf32>
    %c1_i32_21 = arith.constant 1 : i32
    %50 = tpu.dynamic_rotate %1 by %c1_i32_21 dim 1 : vector<4x512xf32>, i32 -> vector<4x512xf32>
    %51 = vector.broadcast %22 : vector<1x512xf32> to vector<4x512xf32>
    %52 = arith.mulf %50, %51 : vector<4x512xf32>
    %c511_i32 = arith.constant 511 : i32
    %53 = tpu.dynamic_rotate %1 by %c511_i32 dim 1 : vector<4x512xf32>, i32 -> vector<4x512xf32>
    %54 = vector.broadcast %42 : vector<1x512xf32> to vector<4x512xf32>
    %55 = arith.mulf %53, %54 : vector<4x512xf32>
    %cst = arith.constant dense<0.000000e+00> : vector<128x512xf32>
    %56 = tpu.matmul %44, %52, %cst {dimension_numbers = #tpu.dot_dimension_numbers<[1], [0], [0], [1], [0, 0, 1, 1], [], []>} : vector<128x4xf32>, vector<4x512xf32>, vector<128x512xf32> -> vector<128x512xf32>
    %cst_22 = arith.constant dense<0.000000e+00> : vector<128x512xf32>
    %57 = tpu.matmul %46, %1, %cst_22 {dimension_numbers = #tpu.dot_dimension_numbers<[1], [0], [0], [1], [0, 0, 1, 1], [], []>} : vector<128x4xf32>, vector<4x512xf32>, vector<128x512xf32> -> vector<128x512xf32>
    %58 = arith.addf %56, %57 : vector<128x512xf32>
    %cst_23 = arith.constant dense<0.000000e+00> : vector<128x512xf32>
    %59 = tpu.matmul %48, %55, %cst_23 {dimension_numbers = #tpu.dot_dimension_numbers<[1], [0], [0], [1], [0, 0, 1, 1], [], []>} : vector<128x4xf32>, vector<4x512xf32>, vector<128x512xf32> -> vector<128x512xf32>
    %60 = arith.addf %58, %59 : vector<128x512xf32>
    %61 = vector.broadcast %49 : vector<128x1xf32> to vector<128x512xf32>
    %62 = arith.addf %60, %61 : vector<128x512xf32>
    %cst_24 = arith.constant 0.000000e+00 : f32
    %63 = vector.broadcast %cst_24 : f32 to vector<128x512xf32>
    %64 = arith.maximumf %62, %63 : vector<128x512xf32>
    %c0_25 = arith.constant 0 : index
    %c0_26 = arith.constant 0 : index
    %c0_27 = arith.constant 0 : index
    %65 = vector.load %arg4[%c0_25, %c0_26, %c0_27] : memref<9x128x128xf32, #tpu.memory_space<vmem>>, vector<1x128x128xf32>
    %66 = vector.shape_cast %65 : vector<1x128x128xf32> to vector<128x128xf32>
    %c1_28 = arith.constant 1 : index
    %c0_29 = arith.constant 0 : index
    %c0_30 = arith.constant 0 : index
    %67 = vector.load %arg4[%c1_28, %c0_29, %c0_30] : memref<9x128x128xf32, #tpu.memory_space<vmem>>, vector<1x128x128xf32>
    %68 = vector.shape_cast %67 : vector<1x128x128xf32> to vector<128x128xf32>
    %c2_31 = arith.constant 2 : index
    %c0_32 = arith.constant 0 : index
    %c0_33 = arith.constant 0 : index
    %69 = vector.load %arg4[%c2_31, %c0_32, %c0_33] : memref<9x128x128xf32, #tpu.memory_space<vmem>>, vector<1x128x128xf32>
    %70 = vector.shape_cast %69 : vector<1x128x128xf32> to vector<128x128xf32>
    %c0_34 = arith.constant 0 : index
    %c0_35 = arith.constant 0 : index
    %c0_36 = arith.constant 0 : index
    %71 = vector.load %arg5[%c0_34, %c0_35, %c0_36] : memref<3x128x1xf32, #tpu.memory_space<vmem>>, vector<1x128x1xf32>
    %72 = vector.shape_cast %71 : vector<1x128x1xf32> to vector<128x1xf32>
    %c1_i32_37 = arith.constant 1 : i32
    %73 = tpu.dynamic_rotate %64 by %c1_i32_37 dim 1 : vector<128x512xf32>, i32 -> vector<128x512xf32>
    %74 = vector.broadcast %22 : vector<1x512xf32> to vector<128x512xf32>
    %75 = arith.mulf %73, %74 : vector<128x512xf32>
    %c511_i32_38 = arith.constant 511 : i32
    %76 = tpu.dynamic_rotate %64 by %c511_i32_38 dim 1 : vector<128x512xf32>, i32 -> vector<128x512xf32>
    %77 = vector.broadcast %42 : vector<1x512xf32> to vector<128x512xf32>
    %78 = arith.mulf %76, %77 : vector<128x512xf32>
    %cst_39 = arith.constant dense<0.000000e+00> : vector<128x512xf32>
    %79 = tpu.matmul %66, %75, %cst_39 {dimension_numbers = #tpu.dot_dimension_numbers<[1], [0], [0], [1], [0, 0, 1, 1], [], []>} : vector<128x128xf32>, vector<128x512xf32>, vector<128x512xf32> -> vector<128x512xf32>
    %cst_40 = arith.constant dense<0.000000e+00> : vector<128x512xf32>
    %80 = tpu.matmul %68, %64, %cst_40 {dimension_numbers = #tpu.dot_dimension_numbers<[1], [0], [0], [1], [0, 0, 1, 1], [], []>} : vector<128x128xf32>, vector<128x512xf32>, vector<128x512xf32> -> vector<128x512xf32>
    %81 = arith.addf %79, %80 : vector<128x512xf32>
    %cst_41 = arith.constant dense<0.000000e+00> : vector<128x512xf32>
    %82 = tpu.matmul %70, %78, %cst_41 {dimension_numbers = #tpu.dot_dimension_numbers<[1], [0], [0], [1], [0, 0, 1, 1], [], []>} : vector<128x128xf32>, vector<128x512xf32>, vector<128x512xf32> -> vector<128x512xf32>
    %83 = arith.addf %81, %82 : vector<128x512xf32>
    %84 = vector.broadcast %72 : vector<128x1xf32> to vector<128x512xf32>
    %85 = arith.addf %83, %84 : vector<128x512xf32>
    %cst_42 = arith.constant 0.000000e+00 : f32
    %86 = vector.broadcast %cst_42 : f32 to vector<128x512xf32>
    %87 = arith.maximumf %85, %86 : vector<128x512xf32>
    %c3 = arith.constant 3 : index
    %c0_43 = arith.constant 0 : index
    %c0_44 = arith.constant 0 : index
    %88 = vector.load %arg4[%c3, %c0_43, %c0_44] : memref<9x128x128xf32, #tpu.memory_space<vmem>>, vector<1x128x128xf32>
    %89 = vector.shape_cast %88 : vector<1x128x128xf32> to vector<128x128xf32>
    %c4 = arith.constant 4 : index
    %c0_45 = arith.constant 0 : index
    %c0_46 = arith.constant 0 : index
    %90 = vector.load %arg4[%c4, %c0_45, %c0_46] : memref<9x128x128xf32, #tpu.memory_space<vmem>>, vector<1x128x128xf32>
    %91 = vector.shape_cast %90 : vector<1x128x128xf32> to vector<128x128xf32>
    %c5 = arith.constant 5 : index
    %c0_47 = arith.constant 0 : index
    %c0_48 = arith.constant 0 : index
    %92 = vector.load %arg4[%c5, %c0_47, %c0_48] : memref<9x128x128xf32, #tpu.memory_space<vmem>>, vector<1x128x128xf32>
    %93 = vector.shape_cast %92 : vector<1x128x128xf32> to vector<128x128xf32>
    %c1_49 = arith.constant 1 : index
    %c0_50 = arith.constant 0 : index
    %c0_51 = arith.constant 0 : index
    %94 = vector.load %arg5[%c1_49, %c0_50, %c0_51] : memref<3x128x1xf32, #tpu.memory_space<vmem>>, vector<1x128x1xf32>
    %95 = vector.shape_cast %94 : vector<1x128x1xf32> to vector<128x1xf32>
    %c1_i32_52 = arith.constant 1 : i32
    %96 = tpu.dynamic_rotate %87 by %c1_i32_52 dim 1 : vector<128x512xf32>, i32 -> vector<128x512xf32>
    %97 = vector.broadcast %22 : vector<1x512xf32> to vector<128x512xf32>
    %98 = arith.mulf %96, %97 : vector<128x512xf32>
    %c511_i32_53 = arith.constant 511 : i32
    %99 = tpu.dynamic_rotate %87 by %c511_i32_53 dim 1 : vector<128x512xf32>, i32 -> vector<128x512xf32>
    %100 = vector.broadcast %42 : vector<1x512xf32> to vector<128x512xf32>
    %101 = arith.mulf %99, %100 : vector<128x512xf32>
    %cst_54 = arith.constant dense<0.000000e+00> : vector<128x512xf32>
    %102 = tpu.matmul %89, %98, %cst_54 {dimension_numbers = #tpu.dot_dimension_numbers<[1], [0], [0], [1], [0, 0, 1, 1], [], []>} : vector<128x128xf32>, vector<128x512xf32>, vector<128x512xf32> -> vector<128x512xf32>
    %cst_55 = arith.constant dense<0.000000e+00> : vector<128x512xf32>
    %103 = tpu.matmul %91, %87, %cst_55 {dimension_numbers = #tpu.dot_dimension_numbers<[1], [0], [0], [1], [0, 0, 1, 1], [], []>} : vector<128x128xf32>, vector<128x512xf32>, vector<128x512xf32> -> vector<128x512xf32>
    %104 = arith.addf %102, %103 : vector<128x512xf32>
    %cst_56 = arith.constant dense<0.000000e+00> : vector<128x512xf32>
    %105 = tpu.matmul %93, %101, %cst_56 {dimension_numbers = #tpu.dot_dimension_numbers<[1], [0], [0], [1], [0, 0, 1, 1], [], []>} : vector<128x128xf32>, vector<128x512xf32>, vector<128x512xf32> -> vector<128x512xf32>
    %106 = arith.addf %104, %105 : vector<128x512xf32>
    %107 = vector.broadcast %95 : vector<128x1xf32> to vector<128x512xf32>
    %108 = arith.addf %106, %107 : vector<128x512xf32>
    %cst_57 = arith.constant 0.000000e+00 : f32
    %109 = vector.broadcast %cst_57 : f32 to vector<128x512xf32>
    %110 = arith.maximumf %108, %109 : vector<128x512xf32>
    %c6 = arith.constant 6 : index
    %c0_58 = arith.constant 0 : index
    %c0_59 = arith.constant 0 : index
    %111 = vector.load %arg4[%c6, %c0_58, %c0_59] : memref<9x128x128xf32, #tpu.memory_space<vmem>>, vector<1x128x128xf32>
    %112 = vector.shape_cast %111 : vector<1x128x128xf32> to vector<128x128xf32>
    %c7 = arith.constant 7 : index
    %c0_60 = arith.constant 0 : index
    %c0_61 = arith.constant 0 : index
    %113 = vector.load %arg4[%c7, %c0_60, %c0_61] : memref<9x128x128xf32, #tpu.memory_space<vmem>>, vector<1x128x128xf32>
    %114 = vector.shape_cast %113 : vector<1x128x128xf32> to vector<128x128xf32>
    %c8 = arith.constant 8 : index
    %c0_62 = arith.constant 0 : index
    %c0_63 = arith.constant 0 : index
    %115 = vector.load %arg4[%c8, %c0_62, %c0_63] : memref<9x128x128xf32, #tpu.memory_space<vmem>>, vector<1x128x128xf32>
    %116 = vector.shape_cast %115 : vector<1x128x128xf32> to vector<128x128xf32>
    %c2_64 = arith.constant 2 : index
    %c0_65 = arith.constant 0 : index
    %c0_66 = arith.constant 0 : index
    %117 = vector.load %arg5[%c2_64, %c0_65, %c0_66] : memref<3x128x1xf32, #tpu.memory_space<vmem>>, vector<1x128x1xf32>
    %118 = vector.shape_cast %117 : vector<1x128x1xf32> to vector<128x1xf32>
    %c1_i32_67 = arith.constant 1 : i32
    %119 = tpu.dynamic_rotate %110 by %c1_i32_67 dim 1 : vector<128x512xf32>, i32 -> vector<128x512xf32>
    %120 = vector.broadcast %22 : vector<1x512xf32> to vector<128x512xf32>
    %121 = arith.mulf %119, %120 : vector<128x512xf32>
    %c511_i32_68 = arith.constant 511 : i32
    %122 = tpu.dynamic_rotate %110 by %c511_i32_68 dim 1 : vector<128x512xf32>, i32 -> vector<128x512xf32>
    %123 = vector.broadcast %42 : vector<1x512xf32> to vector<128x512xf32>
    %124 = arith.mulf %122, %123 : vector<128x512xf32>
    %cst_69 = arith.constant dense<0.000000e+00> : vector<128x512xf32>
    %125 = tpu.matmul %112, %121, %cst_69 {dimension_numbers = #tpu.dot_dimension_numbers<[1], [0], [0], [1], [0, 0, 1, 1], [], []>} : vector<128x128xf32>, vector<128x512xf32>, vector<128x512xf32> -> vector<128x512xf32>
    %cst_70 = arith.constant dense<0.000000e+00> : vector<128x512xf32>
    %126 = tpu.matmul %114, %110, %cst_70 {dimension_numbers = #tpu.dot_dimension_numbers<[1], [0], [0], [1], [0, 0, 1, 1], [], []>} : vector<128x128xf32>, vector<128x512xf32>, vector<128x512xf32> -> vector<128x512xf32>
    %127 = arith.addf %125, %126 : vector<128x512xf32>
    %cst_71 = arith.constant dense<0.000000e+00> : vector<128x512xf32>
    %128 = tpu.matmul %116, %124, %cst_71 {dimension_numbers = #tpu.dot_dimension_numbers<[1], [0], [0], [1], [0, 0, 1, 1], [], []>} : vector<128x128xf32>, vector<128x512xf32>, vector<128x512xf32> -> vector<128x512xf32>
    %129 = arith.addf %127, %128 : vector<128x512xf32>
    %130 = vector.broadcast %118 : vector<128x1xf32> to vector<128x512xf32>
    %131 = arith.addf %129, %130 : vector<128x512xf32>
    %cst_72 = arith.constant 0.000000e+00 : f32
    %132 = vector.broadcast %cst_72 : f32 to vector<128x512xf32>
    %133 = arith.maximumf %131, %132 : vector<128x512xf32>
    %c0_73 = arith.constant 0 : index
    %c0_74 = arith.constant 0 : index
    %c0_75 = arith.constant 0 : index
    %134 = vector.load %arg6[%c0_73, %c0_74, %c0_75] : memref<3x8x128xf32, #tpu.memory_space<vmem>>, vector<1x8x128xf32>
    %135 = vector.shape_cast %134 : vector<1x8x128xf32> to vector<8x128xf32>
    %c1_76 = arith.constant 1 : index
    %c0_77 = arith.constant 0 : index
    %c0_78 = arith.constant 0 : index
    %136 = vector.load %arg6[%c1_76, %c0_77, %c0_78] : memref<3x8x128xf32, #tpu.memory_space<vmem>>, vector<1x8x128xf32>
    %137 = vector.shape_cast %136 : vector<1x8x128xf32> to vector<8x128xf32>
    %c2_79 = arith.constant 2 : index
    %c0_80 = arith.constant 0 : index
    %c0_81 = arith.constant 0 : index
    %138 = vector.load %arg6[%c2_79, %c0_80, %c0_81] : memref<3x8x128xf32, #tpu.memory_space<vmem>>, vector<1x8x128xf32>
    %139 = vector.shape_cast %138 : vector<1x8x128xf32> to vector<8x128xf32>
    %c0_82 = arith.constant 0 : index
    %c0_83 = arith.constant 0 : index
    %140 = vector.load %arg7[%c0_82, %c0_83] : memref<8x1xf32, #tpu.memory_space<vmem>>, vector<8x1xf32>
    %c1_i32_84 = arith.constant 1 : i32
    %141 = tpu.dynamic_rotate %133 by %c1_i32_84 dim 1 : vector<128x512xf32>, i32 -> vector<128x512xf32>
    %142 = vector.broadcast %22 : vector<1x512xf32> to vector<128x512xf32>
    %143 = arith.mulf %141, %142 : vector<128x512xf32>
    %c511_i32_85 = arith.constant 511 : i32
    %144 = tpu.dynamic_rotate %133 by %c511_i32_85 dim 1 : vector<128x512xf32>, i32 -> vector<128x512xf32>
    %145 = vector.broadcast %42 : vector<1x512xf32> to vector<128x512xf32>
    %146 = arith.mulf %144, %145 : vector<128x512xf32>
    %cst_86 = arith.constant dense<0.000000e+00> : vector<8x512xf32>
    %147 = tpu.matmul %135, %143, %cst_86 {dimension_numbers = #tpu.dot_dimension_numbers<[1], [0], [0], [1], [0, 0, 1, 1], [], []>} : vector<8x128xf32>, vector<128x512xf32>, vector<8x512xf32> -> vector<8x512xf32>
    %cst_87 = arith.constant dense<0.000000e+00> : vector<8x512xf32>
    %148 = tpu.matmul %137, %133, %cst_87 {dimension_numbers = #tpu.dot_dimension_numbers<[1], [0], [0], [1], [0, 0, 1, 1], [], []>} : vector<8x128xf32>, vector<128x512xf32>, vector<8x512xf32> -> vector<8x512xf32>
    %149 = arith.addf %147, %148 : vector<8x512xf32>
    %cst_88 = arith.constant dense<0.000000e+00> : vector<8x512xf32>
    %150 = tpu.matmul %139, %146, %cst_88 {dimension_numbers = #tpu.dot_dimension_numbers<[1], [0], [0], [1], [0, 0, 1, 1], [], []>} : vector<8x128xf32>, vector<128x512xf32>, vector<8x512xf32> -> vector<8x512xf32>
    %151 = arith.addf %149, %150 : vector<8x512xf32>
    %152 = vector.broadcast %140 : vector<8x1xf32> to vector<8x512xf32>
    %153 = arith.addf %151, %152 : vector<8x512xf32>
    %c0_89 = arith.constant 0 : index
    %c0_90 = arith.constant 0 : index
    %c0_91 = arith.constant 0 : index
    %154 = vector.load %arg8[%c0_89, %c0_90, %c0_91] : memref<1x8x512xf32, #tpu.memory_space<vmem>>, vector<1x8x512xf32>
    %155 = vector.shape_cast %154 : vector<1x8x512xf32> to vector<8x512xf32>
    %156 = vector.shape_cast %153 : vector<8x512xf32> to vector<1x8x512xf32>
    tpu.vector_store %arg8[%c0_89, %c0_90, %c0_91], %156 {strides = array<i32>} : memref<1x8x512xf32, #tpu.memory_space<vmem>>, vector<1x8x512xf32>,
    return
  }
  func.func @transform_0(%arg0: i32) -> (i32, i32, i32) {
    %c0_i32 = arith.constant 0 : i32
    %c0_i32_0 = arith.constant 0 : i32
    %c0_i32_1 = arith.constant 0 : i32
    return %arg0, %c0_i32, %c0_i32_0 : i32, i32, i32
  }
  func.func @transform_1(%arg0: i32) -> (i32, i32, i32) {
    %c0_i32 = arith.constant 0 : i32
    %c0_i32_0 = arith.constant 0 : i32
    %c0_i32_1 = arith.constant 0 : i32
    %c0_i32_2 = arith.constant 0 : i32
    return %c0_i32, %c0_i32_0, %c0_i32_1 : i32, i32, i32
  }
  func.func @transform_2(%arg0: i32) -> (i32, i32) {
    %c0_i32 = arith.constant 0 : i32
    %c0_i32_0 = arith.constant 0 : i32
    %c0_i32_1 = arith.constant 0 : i32
    return %c0_i32, %c0_i32_0 : i32, i32
  }
  func.func @transform_3(%arg0: i32) -> (i32, i32, i32) {
    %c0_i32 = arith.constant 0 : i32
    %c0_i32_0 = arith.constant 0 : i32
    %c0_i32_1 = arith.constant 0 : i32
    %c0_i32_2 = arith.constant 0 : i32
    return %c0_i32, %c0_i32_0, %c0_i32_1 : i32, i32, i32
  }
  func.func @transform_4(%arg0: i32) -> (i32, i32, i32) {
    %c0_i32 = arith.constant 0 : i32
    %c0_i32_0 = arith.constant 0 : i32
    %c0_i32_1 = arith.constant 0 : i32
    %c0_i32_2 = arith.constant 0 : i32
    return %c0_i32, %c0_i32_0, %c0_i32_1 : i32, i32, i32
  }
  func.func @transform_5(%arg0: i32) -> (i32, i32, i32) {
    %c0_i32 = arith.constant 0 : i32
    %c0_i32_0 = arith.constant 0 : i32
    %c0_i32_1 = arith.constant 0 : i32
    %c0_i32_2 = arith.constant 0 : i32
    return %c0_i32, %c0_i32_0, %c0_i32_1 : i32, i32, i32
  }
  func.func @transform_6(%arg0: i32) -> (i32, i32) {
    %c0_i32 = arith.constant 0 : i32
    %c0_i32_0 = arith.constant 0 : i32
    %c0_i32_1 = arith.constant 0 : i32
    return %c0_i32, %c0_i32_0 : i32, i32
  }
  func.func @transform_7(%arg0: i32) -> (i32, i32, i32) {
    %c0_i32 = arith.constant 0 : i32
    %c0_i32_0 = arith.constant 0 : i32
    %c0_i32_1 = arith.constant 0 : i32
    return %arg0, %c0_i32, %c0_i32_0 : i32, i32, i32
  }
}

</mosaic_0001>

<llo_original>
// kernel: tpu_custom_call.1
$region0: #{tpu_custom_call.1}
  #allocation0 [shape = 'u32[]', space=smem, size = 0x4, offset = 0x4, fixed_abs, tag = 'smem constant byte address 0x4 - core index']
  #allocation1 [shape = 'u32[144,128]{1,0:T(1,128)}', space=vmem, size = 0x12000, scoped, tag = 'internal scratch']
  %s0 = inlined_call_operand.vmem [shape: f32[1,4,512], index: 0, kind: input, shape index: {}]
  %s1 = inlined_call_operand.vmem [shape: f32[3,128,4], index: 1, kind: input, shape index: {}]
  %s2 = inlined_call_operand.vmem [shape: f32[128,1], index: 2, kind: input, shape index: {}]
  %s3 = inlined_call_operand.hbm [shape: f32[9,128,128], index: 3, kind: input, shape index: {}]
  %s4 = inlined_call_operand.vmem [shape: f32[3,128,1], index: 4, kind: input, shape index: {}]
  %s5 = inlined_call_operand.vmem [shape: f32[3,8,128], index: 5, kind: input, shape index: {}]
  %s6 = inlined_call_operand.vmem [shape: f32[8,1], index: 6, kind: input, shape index: {}]
  %s7 = inlined_call_operand.hbm [shape: f32[1,8,512], index: 7, kind: output, shape index: {}]
  %s8 = sld [smem:[#allocation0]]
  $region42: #{tpu_custom_call.1} parent=0
    _
  %s10 = ssub.s32 1, %s8
  %s11 = scalar_select 0, %s10, %s8
  $region1: #{tpu_custom_call.1} parent=0
    #allocation2 [shape = 'u8[589824]{0}', space=vmem, size = 0x90000, scoped, tag = 'input window, operand 3, single buffered']
    #allocation3 [shape = 's32[1]{0}', space=sflag, size = 0x4, scoped, tag = 'scoped memory for tpu_custom_call.1']
    #allocation4 [shape = 's32[1]{0}', space=sflag, size = 0x4, scoped, tag = 'scoped memory for tpu_custom_call.1']
    #allocation5 [shape = 'u8[16384]{0}', space=vmem, size = 0x4000, scoped, tag = 'output window, operand 0, single buffered']
    %12 = vsyncpa [#allocation3], 0
    %13 = vsyncpa [#allocation4], 0
    // Predicated region
    $region2: #{tpu_custom_call.1} parent=1 // pred_check
      _
    $region3: #{tpu_custom_call.1} parent=1 // pred_check_branch
      %15 = sbr.rel (0) target = $region5
    $region4: #{tpu_custom_call.1} parent=1 // pred_region
      _
    $region5: #{tpu_custom_call.1} parent=1 // pred_fallthru
      _
    // Predicated region
    $region6: #{tpu_custom_call.1} parent=1 // pred_check
      _
    $region7: #{tpu_custom_call.1} parent=1 // pred_check_branch
      %17 = sbr.rel (0) target = $region9
    $region8: #{tpu_custom_call.1} parent=1 // pred_region
      _
    $region9: #{tpu_custom_call.1} parent=1 // pred_fallthru
      _
    // Predicated region
    $region10: #{tpu_custom_call.1} parent=1 // pred_check
      _
    $region11: #{tpu_custom_call.1} parent=1 // pred_check_branch
      %19 = sbr.rel (0) target = $region13
    $region12: #{tpu_custom_call.1} parent=1 // pred_region
      _
    $region13: #{tpu_custom_call.1} parent=1 // pred_fallthru
      _
    // Predicated region
    $region14: #{tpu_custom_call.1} parent=1 // pred_check
      _
    $region15: #{tpu_custom_call.1} parent=1 // pred_check_branch
      %21 = sbr.rel (0) target = $region17
    $region16: #{tpu_custom_call.1} parent=1 // pred_region
      %s23 = ssub.s32 18432, 18432
      %24 = vsyncadd [#allocation3], %s23
      %s25 = sshll.u32 [#allocation2], 4
      %s26 = int_to_ptr.vmem [resolvable:$true] %s25
      %31 = dma.hbm_to_vmem [thread:$0]  %s3, 18432, %s26, [#allocation3], 128, 128, 8
    $region17: #{tpu_custom_call.1} parent=1 // pred_fallthru
      _
    // Predicated region
    $region18: #{tpu_custom_call.1} parent=1 // pred_check
      _
    $region19: #{tpu_custom_call.1} parent=1 // pred_check_branch
      %33 = sbr.rel (0) target = $region21
    $region20: #{tpu_custom_call.1} parent=1 // pred_region
      _
    $region21: #{tpu_custom_call.1} parent=1 // pred_fallthru
      _
    // Predicated region
    $region22: #{tpu_custom_call.1} parent=1 // pred_check
      _
    $region23: #{tpu_custom_call.1} parent=1 // pred_check_branch
      %35 = sbr.rel (0) target = $region25
    $region24: #{tpu_custom_call.1} parent=1 // pred_region
      _
    $region25: #{tpu_custom_call.1} parent=1 // pred_fallthru
      _
    // Predicated region
    $region26: #{tpu_custom_call.1} parent=1 // pred_check
      _
    $region27: #{tpu_custom_call.1} parent=1 // pred_check_branch
      %37 = sbr.rel (0) target = $region29
    $region28: #{tpu_custom_call.1} parent=1 // pred_region
      _
    $region29: #{tpu_custom_call.1} parent=1 // pred_fallthru
      _
    // Predicated region
    $region30: #{tpu_custom_call.1} parent=1 // pred_check
      _
    $region31: #{tpu_custom_call.1} parent=1 // pred_check_branch
      %39 = sbr.rel (0) target = $region33
    $region32: #{tpu_custom_call.1} parent=1 // pred_region
      %40 = dma.done [#allocation3], 18432
    $region33: #{tpu_custom_call.1} parent=1 // pred_fallthru
      _
    %v41 = vld [vmem:[%s0] sm:$0xff]
    %v42 = vld [vmem:[%s0 + $0x8] sm:$0xff]
    %v43 = vlaneseq
    %v44 = vand.u32 %v43, 127
    %v45 = vadd.s32 %v44, 128
    %v46 = vadd.s32 %v44, 256
    %v47 = vadd.s32 %v44, 384
    %vm48 = vcmp.lt.s32.totalorder %v44, 0
    %v49 = vsub.s32 0, %v44
    %v50 = vsel %vm48, %v49, %v44
    %v51 = vshrl.u32 %v50, 7
    %v52 = vand.u32 %v50, 127
    %v53 = vsub.s32 0, %v52
    %v54 = vsel %vm48, %v53, %v52
    %vm55 = vcmp.lt.s32.totalorder %v45, 0
    %v56 = vsub.s32 0, %v45
    %v57 = vsel %vm55, %v56, %v45
    %v58 = vshrl.u32 %v57, 7
    %v59 = vand.u32 %v57, 127
    %v60 = vsub.s32 0, %v59
    %v61 = vsel %vm55, %v60, %v59
    %vm62 = vcmp.lt.s32.totalorder %v46, 0
    %v63 = vsub.s32 0, %v46
    %v64 = vsel %vm62, %v63, %v46
    %v65 = vshrl.u32 %v64, 7
    %v66 = vand.u32 %v64, 127
    %v67 = vsub.s32 0, %v66
    %v68 = vsel %vm62, %v67, %v66
    %vm69 = vcmp.lt.s32.totalorder %v47, 0
    %v70 = vsub.s32 0, %v47
    %v71 = vsel %vm69, %v70, %v47
    %v72 = vshrl.u32 %v71, 7
    %v73 = vand.u32 %v71, 127
    %v74 = vsub.s32 0, %v73
    %v75 = vsel %vm69, %v74, %v73
    %vm76 = vcmp.ne.s32.totalorder %v54, 0
    %vm77 = vcmp.ne.s32.totalorder %v61, 0
    %vm78 = vcmp.ne.s32.totalorder %v68, 0
    %vm79 = vcmp.ne.s32.totalorder %v75, 0
    %vm80 = vcmp.lt.s32.totalorder %v54, 0
    %vm81 = vcmp.lt.s32.totalorder %v61, 0
    %vm82 = vcmp.lt.s32.totalorder %v68, 0
    %vm83 = vcmp.lt.s32.totalorder %v75, 0
    %vm84 = vmand %vm80, %vm76
    %vm85 = vmand %vm81, %vm77
    %vm86 = vmand %vm82, %vm78
    %vm87 = vmand %vm83, %vm79
    %v88 = vadd.s32 %v54, 128
    %v89 = vadd.s32 %v61, 128
    %v90 = vadd.s32 %v68, 128
    %v91 = vadd.s32 %v75, 128
    %v92 = vsel %vm84, %v88, %v54
    %v93 = vsel %vm85, %v89, %v61
    %v94 = vsel %vm86, %v90, %v68
    %v95 = vsel %vm87, %v91, %v75
    %vm96 = vcmp.ne.s32.totalorder %v92, 0
    %vm97 = vcmp.ne.s32.totalorder %v93, 0
    %vm98 = vcmp.ne.s32.totalorder %v94, 0
    %vm99 = vcmp.ne.s32.totalorder %v95, 0
    %v100 = vsel %vm96, 1, 0
    %v101 = vsel %vm97, 1, 0
    %v102 = vsel %vm98, 1, 0
    %v103 = vsel %vm99, 1, 0
    %v104 = vcvt.s32.f32 %v100
    %v105 = vcvt.s32.f32 %v101
    %v106 = vcvt.s32.f32 %v102
    %v107 = vcvt.s32.f32 %v103
    %vm108 = vcmp.ne.s32.totalorder %v92, 127
    %vm109 = vcmp.ne.s32.totalorder %v93, 127
    %vm110 = vcmp.ne.s32.totalorder %v94, 127
    %vm111 = vcmp.ne.s32.totalorder %v95, 127
    %v112 = vsel %vm108, 1, 0
    %v113 = vsel %vm109, 1, 0
    %v114 = vsel %vm110, 1, 0
    %v115 = vsel %vm111, 1, 0
    %v116 = vcvt.s32.f32 %v112
    %v117 = vcvt.s32.f32 %v113
    %v118 = vcvt.s32.f32 %v114
    %v119 = vcvt.s32.f32 %v115
    %v120 = vld [vmem:[%s1] sm:$0xff]
    %v121 = vld [vmem:[%s1 + $0x8] sm:$0xff]
    %v122 = vld [vmem:[%s1 + $0x10] sm:$0xff]
    %v123 = vld [vmem:[%s1 + $0x18] sm:$0xff]
    %v124 = vld [vmem:[%s1 + $0x20] sm:$0xff]
    %v125 = vld [vmem:[%s1 + $0x28] sm:$0xff]
    %v126 = vld [vmem:[%s1 + $0x30] sm:$0xff]
    %v127 = vld [vmem:[%s1 + $0x38] sm:$0xff]
    %v128 = vld [vmem:[%s1 + $0x40] sm:$0xff]
    %v129 = vld [vmem:[%s1 + $0x48] sm:$0xff]
    %v130 = vld [vmem:[%s1 + $0x50] sm:$0xff]
    %v131 = vld [vmem:[%s1 + $0x58] sm:$0xff]
    %v132 = vld [vmem:[%s1 + $0x60] sm:$0xff]
    %v133 = vld [vmem:[%s1 + $0x68] sm:$0xff]
    %v134 = vld [vmem:[%s1 + $0x70] sm:$0xff]
    %v135 = vld [vmem:[%s1 + $0x78] sm:$0xff]
    %s136 = scalar_lea.vmem %s1, 128
    %v137 = vld [vmem:[%s136] sm:$0xff]
    %v138 = vld [vmem:[%s136 + $0x8] sm:$0xff]
    %v139 = vld [vmem:[%s136 + $0x10] sm:$0xff]
    %v140 = vld [vmem:[%s136 + $0x18] sm:$0xff]
    %v141 = vld [vmem:[%s136 + $0x20] sm:$0xff]
    %v142 = vld [vmem:[%s136 + $0x28] sm:$0xff]
    %v143 = vld [vmem:[%s136 + $0x30] sm:$0xff]
    %v144 = vld [vmem:[%s136 + $0x38] sm:$0xff]
    %v145 = vld [vmem:[%s136 + $0x40] sm:$0xff]
    %v146 = vld [vmem:[%s136 + $0x48] sm:$0xff]
    %v147 = vld [vmem:[%s136 + $0x50] sm:$0xff]
    %v148 = vld [vmem:[%s136 + $0x58] sm:$0xff]
    %v149 = vld [vmem:[%s136 + $0x60] sm:$0xff]
    %v150 = vld [vmem:[%s136 + $0x68] sm:$0xff]
    %v151 = vld [vmem:[%s136 + $0x70] sm:$0xff]
    %v152 = vld [vmem:[%s136 + $0x78] sm:$0xff]
    %s153 = scalar_lea.vmem %s1, 256
    %v154 = vld [vmem:[%s153] sm:$0xff]
    %v155 = vld [vmem:[%s153 + $0x8] sm:$0xff]
    %v156 = vld [vmem:[%s153 + $0x10] sm:$0xff]
    %v157 = vld [vmem:[%s153 + $0x18] sm:$0xff]
    %v158 = vld [vmem:[%s153 + $0x20] sm:$0xff]
    %v159 = vld [vmem:[%s153 + $0x28] sm:$0xff]
    %v160 = vld [vmem:[%s153 + $0x30] sm:$0xff]
    %v161 = vld [vmem:[%s153 + $0x38] sm:$0xff]
    %v162 = vld [vmem:[%s153 + $0x40] sm:$0xff]
    %v163 = vld [vmem:[%s153 + $0x48] sm:$0xff]
    %v164 = vld [vmem:[%s153 + $0x50] sm:$0xff]
    %v165 = vld [vmem:[%s153 + $0x58] sm:$0xff]
    %v166 = vld [vmem:[%s153 + $0x60] sm:$0xff]
    %v167 = vld [vmem:[%s153 + $0x68] sm:$0xff]
    %v168 = vld [vmem:[%s153 + $0x70] sm:$0xff]
    %v169 = vld [vmem:[%s153 + $0x78] sm:$0xff]
    %v170 = vld [vmem:[%s2] sm:$0xff]
    %v171 = vld [vmem:[%s2 + $0x8] sm:$0xff]
    %v172 = vld [vmem:[%s2 + $0x10] sm:$0xff]
    %v173 = vld [vmem:[%s2 + $0x18] sm:$0xff]
    %v174 = vld [vmem:[%s2 + $0x20] sm:$0xff]
    %v175 = vld [vmem:[%s2 + $0x28] sm:$0xff]
    %v176 = vld [vmem:[%s2 + $0x30] sm:$0xff]
    %v177 = vld [vmem:[%s2 + $0x38] sm:$0xff]
    %v178 = vld [vmem:[%s2 + $0x40] sm:$0xff]
    %v179 = vld [vmem:[%s2 + $0x48] sm:$0xff]
    %v180 = vld [vmem:[%s2 + $0x50] sm:$0xff]
    %v181 = vld [vmem:[%s2 + $0x58] sm:$0xff]
    %v182 = vld [vmem:[%s2 + $0x60] sm:$0xff]
    %v183 = vld [vmem:[%s2 + $0x68] sm:$0xff]
    %v184 = vld [vmem:[%s2 + $0x70] sm:$0xff]
    %v185 = vld [vmem:[%s2 + $0x78] sm:$0xff]
    %v188 = vcombine.high %v41, %v41
    %v189 = vcombine.high %v42, %v42
    %192 = vrot.lane.b32.xlu0 %v41, 1
    %v193 = vpop.permute.xlu0 %192
    %194 = vrot.lane.b32.xlu0 %v188, 1
    %v195 = vpop.permute.xlu0 %194
    %196 = vrot.lane.b32.xlu0 %v42, 1
    %v197 = vpop.permute.xlu0 %196
    %198 = vrot.lane.b32.xlu0 %v189, 1
    %v199 = vpop.permute.xlu0 %198
    %vm200 = vcmp.lt.s32.totalorder %v44, 1
    %v201 = vsel %vm200, %v197, %v199
    %v202 = vsel %vm200, %v195, %v197
    %v203 = vsel %vm200, %v193, %v195
    %v204 = vsel %vm200, %v199, %v193
    %v205 = vmul.f32 %v204, %v104
    %v206 = vmul.f32 %v203, %v105
    %v207 = vmul.f32 %v202, %v106
    %v208 = vmul.f32 %v201, %v107
    %209 = vrot.lane.b32.xlu0 %v41, 127
    %v210 = vpop.permute.xlu0 %209
    %211 = vrot.lane.b32.xlu0 %v188, 127
    %v212 = vpop.permute.xlu0 %211
    %213 = vrot.lane.b32.xlu0 %v42, 127
    %v214 = vpop.permute.xlu0 %213
    %215 = vrot.lane.b32.xlu0 %v189, 127
    %v216 = vpop.permute.xlu0 %215
    %vm217 = vcmp.lt.s32.totalorder %v44, 127
    %v218 = vsel %vm217, %v214, %v216
    %v219 = vsel %vm217, %v212, %v214
    %v220 = vsel %vm217, %v210, %v212
    %v221 = vsel %vm217, %v216, %v210
    %v222 = vmul.f32 %v220, %v116
    %v223 = vmul.f32 %v219, %v117
    %v224 = vmul.f32 %v218, %v118
    %v225 = vmul.f32 %v221, %v119
    %vm226 = vcmask 31744
    %v228 = vsel %vm226, %v137, 0
    %v231 = vsel %vm226, %v138, 0
    %v234 = vsel %vm226, %v139, 0
    %v237 = vsel %vm226, %v140, 0
    %v240 = vsel %vm226, %v141, 0
    %v243 = vsel %vm226, %v142, 0
    %v246 = vsel %vm226, %v143, 0
    %v249 = vsel %vm226, %v144, 0
    %v252 = vsel %vm226, %v145, 0
    %v255 = vsel %vm226, %v146, 0
    %v258 = vsel %vm226, %v147, 0
    %v261 = vsel %vm226, %v148, 0
    %v264 = vsel %vm226, %v149, 0
    %v267 = vsel %vm226, %v150, 0
    %v270 = vsel %vm226, %v151, 0
    %v273 = vsel %vm226, %v152, 0
    %vm275 = vcmask 1043456
    %v276 = vsel %vm275, %v41, 0
    %v278 = vsel %vm275, %v188, 0
    %v280 = vsel %vm275, %v42, 0
    %v282 = vsel %vm275, %v189, 0
    %284 = vmatprep.subr.mxu0 %v278
    %285 = vmatpush1.msra.mxu0 %v276
    %286 = vmatprep.subr.mxu0 0.0
    %287 = vmatpush1.msra.mxu0 0.0
    %288 = vmatprep.subr.mxu0 0.0
    %289 = vmatpush1.msra.mxu0 0.0
    %290 = vmatprep.subr.mxu0 0.0
    %291 = vmatpush1.msra.mxu0 0.0
    %292 = vmatprep.subr.mxu0 0.0
    %293 = vmatpush1.msra.mxu0 0.0
    %294 = vmatprep.subr.mxu0 0.0
    %295 = vmatpush1.msra.mxu0 0.0
    %296 = vmatprep.subr.mxu0 0.0
    %297 = vmatpush1.msra.mxu0 0.0
    %298 = vmatprep.subr.mxu0 0.0
    %299 = vmatpush1.msra.mxu0 0.0
    %300 = vmatprep.subr.mxu0 0.0
    %301 = vmatpush1.msra.mxu0 0.0
    %302 = vmatprep.subr.mxu0 0.0
    %303 = vmatpush1.msra.mxu0 0.0
    %304 = vmatprep.subr.mxu0 0.0
    %305 = vmatpush1.msra.mxu0 0.0
    %306 = vmatprep.subr.mxu0 0.0
    %307 = vmatpush1.msra.mxu0 0.0
    %308 = vmatprep.subr.mxu0 0.0
    %309 = vmatpush1.msra.mxu0 0.0
    %310 = vmatprep.subr.mxu0 0.0
    %311 = vmatpush1.msra.mxu0 0.0
    %312 = vmatprep.subr.mxu0 0.0
    %313 = vmatpush1.msra.mxu0 0.0
    %314 = vmatprep.subr.mxu0 0.0
    %315 = vmatpush1.msra.mxu0 0.0
    %316 = vmatprep.subr.mxu0 0.0
    %317 = vmatpush1.msra.mxu0 0.0
    %318 = vmatprep.subr.mxu0 0.0
    %319 = vmatpush1.msra.mxu0 0.0
    %320 = vmatprep.subr.mxu0 0.0
    %321 = vmatpush1.msra.mxu0 0.0
    %322 = vmatprep.subr.mxu0 0.0
    %323 = vmatpush1.msra.mxu0 0.0
    %324 = vmatprep.subr.mxu0 0.0
    %325 = vmatpush1.msra.mxu0 0.0
    %326 = vmatprep.subr.mxu0 0.0
    %327 = vmatpush1.msra.mxu0 0.0
    %328 = vmatprep.subr.mxu0 0.0
    %329 = vmatpush1.msra.mxu0 0.0
    %330 = vmatprep.subr.mxu0 0.0
    %331 = vmatpush1.msra.mxu0 0.0
    %332 = vmatprep.subr.mxu0 0.0
    %333 = vmatpush1.msra.mxu0 0.0
    %334 = vmatprep.subr.mxu0 0.0
    %335 = vmatpush1.msra.mxu0 0.0
    %336 = vmatprep.subr.mxu0 0.0
    %337 = vmatpush1.msra.mxu0 0.0
    %338 = vmatprep.subr.mxu0 0.0
    %339 = vmatpush1.msra.mxu0 0.0
    %340 = vmatprep.subr.mxu0 0.0
    %341 = vmatpush1.msra.mxu0 0.0
    %342 = vmatprep.subr.mxu0 0.0
    %343 = vmatpush1.msra.mxu0 0.0
    %344 = vmatprep.subr.mxu0 0.0
    %345 = vmatpush1.msra.mxu0 0.0
    %346 = vmatprep.subr.mxu0 0.0
    %347 = vmatpush1.msra.mxu0 0.0
    %348 = vmatprep.mubr.f32.mxu0 0.0
    %349 = vmatmul.mubr.f32.gmra.mrb[0].mxu0 %v228
    %v350 = vpop.f32.mrb[0].mxu0
    %v351 = vadd.f32 0.0, %v350
    %v352 = vpop.f32.mrb[0].mxu0
    %v353 = vadd.f32 0.0, %v352
    %354 = vmatprep.mubr.f32.mxu0 0.0
    %355 = vmatmul.mubr.f32.gmra.mrb[0].mxu0 %v231
    %v356 = vpop.f32.mrb[0].mxu0
    %v357 = vadd.f32 0.0, %v356
    %v358 = vpop.f32.mrb[0].mxu0
    %v359 = vadd.f32 0.0, %v358
    %360 = vmatprep.mubr.f32.mxu0 0.0
    %361 = vmatmul.mubr.f32.gmra.mrb[0].mxu0 %v234
    %v362 = vpop.f32.mrb[0].mxu0
    %v363 = vadd.f32 0.0, %v362
    %v364 = vpop.f32.mrb[0].mxu0
    %v365 = vadd.f32 0.0, %v364
    %366 = vmatprep.mubr.f32.mxu0 0.0
    %367 = vmatmul.mubr.f32.gmra.mrb[0].mxu0 %v237
    %v368 = vpop.f32.mrb[0].mxu0
    %v369 = vadd.f32 0.0, %v368
    %v370 = vpop.f32.mrb[0].mxu0
    %v371 = vadd.f32 0.0, %v370
    %372 = vmatprep.mubr.f32.mxu0 0.0
    %373 = vmatmul.mubr.f32.gmra.mrb[0].mxu0 %v240
    %v374 = vpop.f32.mrb[0].mxu0
    %v375 = vadd.f32 0.0, %v374
    %v376 = vpop.f32.mrb[0].mxu0
    %v377 = vadd.f32 0.0, %v376
    %378 = vmatprep.mubr.f32.mxu0 0.0
    %379 = vmatmul.mubr.f32.gmra.mrb[0].mxu0 %v243
    %v380 = vpop.f32.mrb[0].mxu0
    %v381 = vadd.f32 0.0, %v380
    %v382 = vpop.f32.mrb[0].mxu0
    %v383 = vadd.f32 0.0, %v382
    %384 = vmatprep.mubr.f32.mxu0 0.0
    %385 = vmatmul.mubr.f32.gmra.mrb[0].mxu0 %v246
    %v386 = vpop.f32.mrb[0].mxu0
    %v387 = vadd.f32 0.0, %v386
    %v388 = vpop.f32.mrb[0].mxu0
    %v389 = vadd.f32 0.0, %v388
    %390 = vmatprep.mubr.f32.mxu0 0.0
    %391 = vmatmul.mubr.f32.gmra.mrb[0].mxu0 %v249
    %v392 = vpop.f32.mrb[0].mxu0
    %v393 = vadd.f32 0.0, %v392
    %v394 = vpop.f32.mrb[0].mxu0
    %v395 = vadd.f32 0.0, %v394
    %396 = vmatprep.mubr.f32.mxu0 0.0
    %397 = vmatmul.mubr.f32.gmra.mrb[0].mxu0 %v252
    %v398 = vpop.f32.mrb[0].mxu0
    %v399 = vadd.f32 0.0, %v398
    %v400 = vpop.f32.mrb[0].mxu0
    %v401 = vadd.f32 0.0, %v400
    %402 = vmatprep.mubr.f32.mxu0 0.0
    %403 = vmatmul.mubr.f32.gmra.mrb[0].mxu0 %v255
    %v404 = vpop.f32.mrb[0].mxu0
    %v405 = vadd.f32 0.0, %v404
    %v406 = vpop.f32.mrb[0].mxu0
    %v407 = vadd.f32 0.0, %v406
    %408 = vmatprep.mubr.f32.mxu0 0.0
    %409 = vmatmul.mubr.f32.gmra.mrb[0].mxu0 %v258
    %v410 = vpop.f32.mrb[0].mxu0
    %v411 = vadd.f32 0.0, %v410
    %v412 = vpop.f32.mrb[0].mxu0
    %v413 = vadd.f32 0.0, %v412
    %414 = vmatprep.mubr.f32.mxu0 0.0
    %415 = vmatmul.mubr.f32.gmra.mrb[0].mxu0 %v261
    %v416 = vpop.f32.mrb[0].mxu0
    %v417 = vadd.f32 0.0, %v416
    %v418 = vpop.f32.mrb[0].mxu0
    %v419 = vadd.f32 0.0, %v418
    %420 = vmatprep.mubr.f32.mxu0 0.0
    %421 = vmatmul.mubr.f32.gmra.mrb[0].mxu0 %v264
    %v422 = vpop.f32.mrb[0].mxu0
    %v423 = vadd.f32 0.0, %v422
    %v424 = vpop.f32.mrb[0].mxu0
    %v425 = vadd.f32 0.0, %v424
    %426 = vmatprep.mubr.f32.mxu0 0.0
    %427 = vmatmul.mubr.f32.gmra.mrb[0].mxu0 %v267
    %v428 = vpop.f32.mrb[0].mxu0
    %v429 = vadd.f32 0.0, %v428
    %v430 = vpop.f32.mrb[0].mxu0
    %v431 = vadd.f32 0.0, %v430
    %432 = vmatprep.mubr.f32.mxu0 0.0
    %433 = vmatmul.mubr.f32.gmra.mrb[0].mxu0 %v270
    %v434 = vpop.f32.mrb[0].mxu0
    %v435 = vadd.f32 0.0, %v434
    %v436 = vpop.f32.mrb[0].mxu0
    %v437 = vadd.f32 0.0, %v436
    %438 = vmatprep.mubr.f32.mxu0 0.0
    %439 = vmatmul.mubr.f32.gmra.mrb[0].mxu0 %v273
    %v440 = vpop.f32.mrb[0].mxu0
    %v441 = vadd.f32 0.0, %v440
    %v442 = vpop.f32.mrb[0].mxu0
    %v443 = vadd.f32 0.0, %v442
    %444 = vdwg.mxu0
    %445 = vmatprep.subr.mxu0 %v282
    %446 = vmatpush1.msra.mxu0 %v280
    %447 = vmatprep.subr.mxu0 0.0
    %448 = vmatpush1.msra.mxu0 0.0
    %449 = vmatprep.subr.mxu0 0.0
    %450 = vmatpush1.msra.mxu0 0.0
    %451 = vmatprep.subr.mxu0 0.0
    %452 = vmatpush1.msra.mxu0 0.0
    %453 = vmatprep.subr.mxu0 0.0
    %454 = vmatpush1.msra.mxu0 0.0
    %455 = vmatprep.subr.mxu0 0.0
    %456 = vmatpush1.msra.mxu0 0.0
    %457 = vmatprep.subr.mxu0 0.0
    %458 = vmatpush1.msra.mxu0 0.0
    %459 = vmatprep.subr.mxu0 0.0
    %460 = vmatpush1.msra.mxu0 0.0
    %461 = vmatprep.subr.mxu0 0.0
    %462 = vmatpush1.msra.mxu0 0.0
    %463 = vmatprep.subr.mxu0 0.0
    %464 = vmatpush1.msra.mxu0 0.0
    %465 = vmatprep.subr.mxu0 0.0
    %466 = vmatpush1.msra.mxu0 0.0
    %467 = vmatprep.subr.mxu0 0.0
    %468 = vmatpush1.msra.mxu0 0.0
    %469 = vmatprep.subr.mxu0 0.0
    %470 = vmatpush1.msra.mxu0 0.0
    %471 = vmatprep.subr.mxu0 0.0
    %472 = vmatpush1.msra.mxu0 0.0
    %473 = vmatprep.subr.mxu0 0.0
    %474 = vmatpush1.msra.mxu0 0.0
    %475 = vmatprep.subr.mxu0 0.0
    %476 = vmatpush1.msra.mxu0 0.0
    %477 = vmatprep.subr.mxu0 0.0
    %478 = vmatpush1.msra.mxu0 0.0
    %479 = vmatprep.subr.mxu0 0.0
    %480 = vmatpush1.msra.mxu0 0.0
    %481 = vmatprep.subr.mxu0 0.0
    %482 = vmatpush1.msra.mxu0 0.0
    %483 = vmatprep.subr.mxu0 0.0
    %484 = vmatpush1.msra.mxu0 0.0
    %485 = vmatprep.subr.mxu0 0.0
    %486 = vmatpush1.msra.mxu0 0.0
    %487 = vmatprep.subr.mxu0 0.0
    %488 = vmatpush1.msra.mxu0 0.0
    %489 = vmatprep.subr.mxu0 0.0
    %490 = vmatpush1.msra.mxu0 0.0
    %491 = vmatprep.subr.mxu0 0.0
    %492 = vmatpush1.msra.mxu0 0.0
    %493 = vmatprep.subr.mxu0 0.0
    %494 = vmatpush1.msra.mxu0 0.0
    %495 = vmatprep.subr.mxu0 0.0
    %496 = vmatpush1.msra.mxu0 0.0
    %497 = vmatprep.subr.mxu0 0.0
    %498 = vmatpush1.msra.mxu0 0.0
    %499 = vmatprep.subr.mxu0 0.0
    %500 = vmatpush1.msra.mxu0 0.0
    %501 = vmatprep.subr.mxu0 0.0
    %502 = vmatpush1.msra.mxu0 0.0
    %503 = vmatprep.subr.mxu0 0.0
    %504 = vmatpush1.msra.mxu0 0.0
    %505 = vmatprep.subr.mxu0 0.0
    %506 = vmatpush1.msra.mxu0 0.0
    %507 = vmatprep.subr.mxu0 0.0
    %508 = vmatpush1.msra.mxu0 0.0
    %509 = vmatprep.mubr.f32.mxu0 0.0
    %510 = vmatmul.mubr.f32.gmra.mrb[0].mxu0 %v228
    %v511 = vpop.f32.mrb[0].mxu0
    %v512 = vadd.f32 0.0, %v511
    %v513 = vpop.f32.mrb[0].mxu0
    %v514 = vadd.f32 0.0, %v513
    %515 = vmatprep.mubr.f32.mxu0 0.0
    %516 = vmatmul.mubr.f32.gmra.mrb[0].mxu0 %v231
    %v517 = vpop.f32.mrb[0].mxu0
    %v518 = vadd.f32 0.0, %v517
    %v519 = vpop.f32.mrb[0].mxu0
    %v520 = vadd.f32 0.0, %v519
    %521 = vmatprep.mubr.f32.mxu0 0.0
    %522 = vmatmul.mubr.f32.gmra.mrb[0].mxu0 %v234
    %v523 = vpop.f32.mrb[0].mxu0
    %v524 = vadd.f32 0.0, %v523
    %v525 = vpop.f32.mrb[0].mxu0
    %v526 = vadd.f32 0.0, %v525
    %527 = vmatprep.mubr.f32.mxu0 0.0
    %528 = vmatmul.mubr.f32.gmra.mrb[0].mxu0 %v237
    %v529 = vpop.f32.mrb[0].mxu0
    %v530 = vadd.f32 0.0, %v529
    %v531 = vpop.f32.mrb[0].mxu0
    %v532 = vadd.f32 0.0, %v531
    %533 = vmatprep.mubr.f32.mxu0 0.0
    %534 = vmatmul.mubr.f32.gmra.mrb[0].mxu0 %v240
    %v535 = vpop.f32.mrb[0].mxu0
    %v536 = vadd.f32 0.0, %v535
    %v537 = vpop.f32.mrb[0].mxu0
    %v538 = vadd.f32 0.0, %v537
    %539 = vmatprep.mubr.f32.mxu0 0.0
    %540 = vmatmul.mubr.f32.gmra.mrb[0].mxu0 %v243
    %v541 = vpop.f32.mrb[0].mxu0
    %v542 = vadd.f32 0.0, %v541
    %v543 = vpop.f32.mrb[0].mxu0
    %v544 = vadd.f32 0.0, %v543
    %545 = vmatprep.mubr.f32.mxu0 0.0
    %546 = vmatmul.mubr.f32.gmra.mrb[0].mxu0 %v246
    %v547 = vpop.f32.mrb[0].mxu0
    %v548 = vadd.f32 0.0, %v547
    %v549 = vpop.f32.mrb[0].mxu0
    %v550 = vadd.f32 0.0, %v549
    %551 = vmatprep.mubr.f32.mxu0 0.0
    %552 = vmatmul.mubr.f32.gmra.mrb[0].mxu0 %v249
    %v553 = vpop.f32.mrb[0].mxu0
    %v554 = vadd.f32 0.0, %v553
    %v555 = vpop.f32.mrb[0].mxu0
    %v556 = vadd.f32 0.0, %v555
    %557 = vmatprep.mubr.f32.mxu0 0.0
    %558 = vmatmul.mubr.f32.gmra.mrb[0].mxu0 %v252
    %v559 = vpop.f32.mrb[0].mxu0
    %v560 = vadd.f32 0.0, %v559
    %v561 = vpop.f32.mrb[0].mxu0
    %v562 = vadd.f32 0.0, %v561
    %563 = vmatprep.mubr.f32.mxu0 0.0
    %564 = vmatmul.mubr.f32.gmra.mrb[0].mxu0 %v255
    %v565 = vpop.f32.mrb[0].mxu0
    %v566 = vadd.f32 0.0, %v565
    %v567 = vpop.f32.mrb[0].mxu0
    %v568 = vadd.f32 0.0, %v567
    %569 = vmatprep.mubr.f32.mxu0 0.0
    %570 = vmatmul.mubr.f32.gmra.mrb[0].mxu0 %v258
    %v571 = vpop.f32.mrb[0].mxu0
    %v572 = vadd.f32 0.0, %v571
    %v573 = vpop.f32.mrb[0].mxu0
    %v574 = vadd.f32 0.0, %v573
    %575 = vmatprep.mubr.f32.mxu0 0.0
    %576 = vmatmul.mubr.f32.gmra.mrb[0].mxu0 %v261
    %v577 = vpop.f32.mrb[0].mxu0
    %v578 = vadd.f32 0.0, %v577
    %v579 = vpop.f32.mrb[0].mxu0
    %v580 = vadd.f32 0.0, %v579
    %581 = vmatprep.mubr.f32.mxu0 0.0
    %582 = vmatmul.mubr.f32.gmra.mrb[0].mxu0 %v264
    %v583 = vpop.f32.mrb[0].mxu0
    %v584 = vadd.f32 0.0, %v583
    %v585 = vpop.f32.mrb[0].mxu0
    %v586 = vadd.f32 0.0, %v585
    %587 = vmatprep.mubr.f32.mxu0 0.0
    %588 = vmatmul.mubr.f32.gmra.mrb[0].mxu0 %v267
    %v589 = vpop.f32.mrb[0].mxu0
    %v590 = vadd.f32 0.0, %v589
    %v591 = vpop.f32.mrb[0].mxu0
    %v592 = vadd.f32 0.0, %v591
    %593 = vmatprep.mubr.f32.mxu0 0.0
    %594 = vmatmul.mubr.f32.gmra.mrb[0].mxu0 %v270
    %v595 = vpop.f32.mrb[0].mxu0
    %v596 = vadd.f32 0.0, %v595
    %v597 = vpop.f32.mrb[0].mxu0
    %v598 = vadd.f32 0.0, %v597
    %599 = vmatprep.mubr.f32.mxu0 0.0
    %600 = vmatmul.mubr.f32.gmra.mrb[0].mxu0 %v273
    %v601 = vpop.f32.mrb[0].mxu0
    %v602 = vadd.f32 0.0, %v601
    %v603 = vpop.f32.mrb[0].mxu0
    %v604 = vadd.f32 0.0, %v603
    %605 = vdwg.mxu0
    %v607 = vsel %vm226, %v120, 0
    %v610 = vsel %vm226, %v121, 0
    %v613 = vsel %vm226, %v122, 0
    %v616 = vsel %vm226, %v123, 0
    %v619 = vsel %vm226, %v124, 0
    %v622 = vsel %vm226, %v125, 0
    %v625 = vsel %vm226, %v126, 0
    %v628 = vsel %vm226, %v127, 0
    %v631 = vsel %vm226, %v128, 0
    %v634 = vsel %vm226, %v129, 0
    %v637 = vsel %vm226, %v130, 0
    %v640 = vsel %vm226, %v131, 0
    %v643 = vsel %vm226, %v132, 0
    %v646 = vsel %vm226, %v133, 0
    %v649 = vsel %vm226, %v134, 0
    %v652 = vsel %vm226, %v135, 0
    %v655 = vsel %vm275, %v205, 0
    %v658 = vsel %vm275, %v206, 0
    %v661 = vsel %vm275, %v207, 0
    %v664 = vsel %vm275, %v208, 0
    %666 = vmatprep.subr.mxu0 %v658
    %667 = vmatpush1.msra.mxu0 %v655
    %668 = vmatprep.subr.mxu0 0.0
    %669 = vmatpush1.msra.mxu0 0.0
    %670 = vmatprep.subr.mxu0 0.0
    %671 = vmatpush1.msra.mxu0 0.0
    %672 = vmatprep.subr.mxu0 0.0
    %673 = vmatpush1.msra.mxu0 0.0
    %674 = vmatprep.subr.mxu0 0.0
    %675 = vmatpush1.msra.mxu0 0.0
    %676 = vmatprep.subr.mxu0 0.0
    %677 = vmatpush1.msra.mxu0 0.0
    %678 = vmatprep.subr.mxu0 0.0
    %679 = vmatpush1.msra.mxu0 0.0
    %680 = vmatprep.subr.mxu0 0.0
    %681 = vmatpush1.msra.mxu0 0.0
    %682 = vmatprep.subr.mxu0 0.0
    %683 = vmatpush1.msra.mxu0 0.0
    %684 = vmatprep.subr.mxu0 0.0
    %685 = vmatpush1.msra.mxu0 0.0
    %686 = vmatprep.subr.mxu0 0.0
    %687 = vmatpush1.msra.mxu0 0.0
    %688 = vmatprep.subr.mxu0 0.0
    %689 = vmatpush1.msra.mxu0 0.0
    %690 = vmatprep.subr.mxu0 0.0
    %691 = vmatpush1.msra.mxu0 0.0
    %692 = vmatprep.subr.mxu0 0.0
    %693 = vmatpush1.msra.mxu0 0.0
    %694 = vmatprep.subr.mxu0 0.0
    %695 = vmatpush1.msra.mxu0 0.0
    %696 = vmatprep.subr.mxu0 0.0
    %697 = vmatpush1.msra.mxu0 0.0
    %698 = vmatprep.subr.mxu0 0.0
    %699 = vmatpush1.msra.mxu0 0.0
    %700 = vmatprep.subr.mxu0 0.0
    %701 = vmatpush1.msra.mxu0 0.0
    %702 = vmatprep.subr.mxu0 0.0
    %703 = vmatpush1.msra.mxu0 0.0
    %704 = vmatprep.subr.mxu0 0.0
    %705 = vmatpush1.msra.mxu0 0.0
    %706 = vmatprep.subr.mxu0 0.0
    %707 = vmatpush1.msra.mxu0 0.0
    %708 = vmatprep.subr.mxu0 0.0
    %709 = vmatpush1.msra.mxu0 0.0
    %710 = vmatprep.subr.mxu0 0.0
    %711 = vmatpush1.msra.mxu0 0.0
    %712 = vmatprep.subr.mxu0 0.0
    %713 = vmatpush1.msra.mxu0 0.0
    %714 = vmatprep.subr.mxu0 0.0
    %715 = vmatpush1.msra.mxu0 0.0
    %716 = vmatprep.subr.mxu0 0.0
    %717 = vmatpush1.msra.mxu0 0.0
    %718 = vmatprep.subr.mxu0 0.0
    %719 = vmatpush1.msra.mxu0 0.0
    %720 = vmatprep.subr.mxu0 0.0
    %721 = vmatpush1.msra.mxu0 0.0
    %722 = vmatprep.subr.mxu0 0.0
    %723 = vmatpush1.msra.mxu0 0.0
    %724 = vmatprep.subr.mxu0 0.0
    %725 = vmatpush1.msra.mxu0 0.0
    %726 = vmatprep.subr.mxu0 0.0
    %727 = vmatpush1.msra.mxu0 0.0
    %728 = vmatprep.subr.mxu0 0.0
    %729 = vmatpush1.msra.mxu0 0.0
    %730 = vmatprep.mubr.f32.mxu0 0.0
    %731 = vmatmul.mubr.f32.gmra.mrb[0].mxu0 %v607
    %v732 = vpop.f32.mrb[0].mxu0
    %v733 = vadd.f32 %v351, %v732
    %v734 = vpop.f32.mrb[0].mxu0
    %v735 = vadd.f32 %v353, %v734
    %736 = vmatprep.mubr.f32.mxu0 0.0
    %737 = vmatmul.mubr.f32.gmra.mrb[0].mxu0 %v610
    %v738 = vpop.f32.mrb[0].mxu0
    %v739 = vadd.f32 %v357, %v738
    %v740 = vpop.f32.mrb[0].mxu0
    %v741 = vadd.f32 %v359, %v740
    %742 = vmatprep.mubr.f32.mxu0 0.0
    %743 = vmatmul.mubr.f32.gmra.mrb[0].mxu0 %v613
    %v744 = vpop.f32.mrb[0].mxu0
    %v745 = vadd.f32 %v363, %v744
    %v746 = vpop.f32.mrb[0].mxu0
    %v747 = vadd.f32 %v365, %v746
    %748 = vmatprep.mubr.f32.mxu0 0.0
    %749 = vmatmul.mubr.f32.gmra.mrb[0].mxu0 %v616
    %v750 = vpop.f32.mrb[0].mxu0
    %v751 = vadd.f32 %v369, %v750
    %v752 = vpop.f32.mrb[0].mxu0
    %v753 = vadd.f32 %v371, %v752
    %754 = vmatprep.mubr.f32.mxu0 0.0
    %755 = vmatmul.mubr.f32.gmra.mrb[0].mxu0 %v619
    %v756 = vpop.f32.mrb[0].mxu0
    %v757 = vadd.f32 %v375, %v756
    %v758 = vpop.f32.mrb[0].mxu0
    %v759 = vadd.f32 %v377, %v758
    %760 = vmatprep.mubr.f32.mxu0 0.0
    %761 = vmatmul.mubr.f32.gmra.mrb[0].mxu0 %v622
    %v762 = vpop.f32.mrb[0].mxu0
    %v763 = vadd.f32 %v381, %v762
    %v764 = vpop.f32.mrb[0].mxu0
    %v765 = vadd.f32 %v383, %v764
    %766 = vmatprep.mubr.f32.mxu0 0.0
    %767 = vmatmul.mubr.f32.gmra.mrb[0].mxu0 %v625
    %v768 = vpop.f32.mrb[0].mxu0
    %v769 = vadd.f32 %v387, %v768
    %v770 = vpop.f32.mrb[0].mxu0
    %v771 = vadd.f32 %v389, %v770
    %772 = vmatprep.mubr.f32.mxu0 0.0
    %773 = vmatmul.mubr.f32.gmra.mrb[0].mxu0 %v628
    %v774 = vpop.f32.mrb[0].mxu0
    %v775 = vadd.f32 %v393, %v774
    %v776 = vpop.f32.mrb[0].mxu0
    %v777 = vadd.f32 %v395, %v776
    %778 = vmatprep.mubr.f32.mxu0 0.0
    %779 = vmatmul.mubr.f32.gmra.mrb[0].mxu0 %v631
    %v780 = vpop.f32.mrb[0].mxu0
    %v781 = vadd.f32 %v399, %v780
    %v782 = vpop.f32.mrb[0].mxu0
    %v783 = vadd.f32 %v401, %v782
    %784 = vmatprep.mubr.f32.mxu0 0.0
    %785 = vmatmul.mubr.f32.gmra.mrb[0].mxu0 %v634
    %v786 = vpop.f32.mrb[0].mxu0
    %v787 = vadd.f32 %v405, %v786
    %v788 = vpop.f32.mrb[0].mxu0
    %v789 = vadd.f32 %v407, %v788
    %790 = vmatprep.mubr.f32.mxu0 0.0
    %791 = vmatmul.mubr.f32.gmra.mrb[0].mxu0 %v637
    %v792 = vpop.f32.mrb[0].mxu0
    %v793 = vadd.f32 %v411, %v792
    %v794 = vpop.f32.mrb[0].mxu0
    %v795 = vadd.f32 %v413, %v794
    %796 = vmatprep.mubr.f32.mxu0 0.0
    %797 = vmatmul.mubr.f32.gmra.mrb[0].mxu0 %v640
    %v798 = vpop.f32.mrb[0].mxu0
    %v799 = vadd.f32 %v417, %v798
    %v800 = vpop.f32.mrb[0].mxu0
    %v801 = vadd.f32 %v419, %v800
    %802 = vmatprep.mubr.f32.mxu0 0.0
    %803 = vmatmul.mubr.f32.gmra.mrb[0].mxu0 %v643
    %v804 = vpop.f32.mrb[0].mxu0
    %v805 = vadd.f32 %v423, %v804
    %v806 = vpop.f32.mrb[0].mxu0
    %v807 = vadd.f32 %v425, %v806
    %808 = vmatprep.mubr.f32.mxu0 0.0
    %809 = vmatmul.mubr.f32.gmra.mrb[0].mxu0 %v646
    %v810 = vpop.f32.mrb[0].mxu0
    %v811 = vadd.f32 %v429, %v810
    %v812 = vpop.f32.mrb[0].mxu0
    %v813 = vadd.f32 %v431, %v812
    %814 = vmatprep.mubr.f32.mxu0 0.0
    %815 = vmatmul.mubr.f32.gmra.mrb[0].mxu0 %v649
    %v816 = vpop.f32.mrb[0].mxu0
    %v817 = vadd.f32 %v435, %v816
    %v818 = vpop.f32.mrb[0].mxu0
    %v819 = vadd.f32 %v437, %v818
    %820 = vmatprep.mubr.f32.mxu0 0.0
    %821 = vmatmul.mubr.f32.gmra.mrb[0].mxu0 %v652
    %v822 = vpop.f32.mrb[0].mxu0
    %v823 = vadd.f32 %v441, %v822
    %v824 = vpop.f32.mrb[0].mxu0
    %v825 = vadd.f32 %v443, %v824
    %826 = vdwg.mxu0
    %827 = vmatprep.subr.mxu0 %v664
    %828 = vmatpush1.msra.mxu0 %v661
    %829 = vmatprep.subr.mxu0 0.0
    %830 = vmatpush1.msra.mxu0 0.0
    %831 = vmatprep.subr.mxu0 0.0
    %832 = vmatpush1.msra.mxu0 0.0
    %833 = vmatprep.subr.mxu0 0.0
    %834 = vmatpush1.msra.mxu0 0.0
    %835 = vmatprep.subr.mxu0 0.0
    %836 = vmatpush1.msra.mxu0 0.0
    %837 = vmatprep.subr.mxu0 0.0
    %838 = vmatpush1.msra.mxu0 0.0
    %839 = vmatprep.subr.mxu0 0.0
    %840 = vmatpush1.msra.mxu0 0.0
    %841 = vmatprep.subr.mxu0 0.0
    %842 = vmatpush1.msra.mxu0 0.0
    %843 = vmatprep.subr.mxu0 0.0
    %844 = vmatpush1.msra.mxu0 0.0
    %845 = vmatprep.subr.mxu0 0.0
    %846 = vmatpush1.msra.mxu0 0.0
    %847 = vmatprep.subr.mxu0 0.0
    %848 = vmatpush1.msra.mxu0 0.0
    %849 = vmatprep.subr.mxu0 0.0
    %850 = vmatpush1.msra.mxu0 0.0
    %851 = vmatprep.subr.mxu0 0.0
    %852 = vmatpush1.msra.mxu0 0.0
    %853 = vmatprep.subr.mxu0 0.0
    %854 = vmatpush1.msra.mxu0 0.0
    %855 = vmatprep.subr.mxu0 0.0
    %856 = vmatpush1.msra.mxu0 0.0
    %857 = vmatprep.subr.mxu0 0.0
    %858 = vmatpush1.msra.mxu0 0.0
    %859 = vmatprep.subr.mxu0 0.0
    %860 = vmatpush1.msra.mxu0 0.0
    %861 = vmatprep.subr.mxu0 0.0
    %862 = vmatpush1.msra.mxu0 0.0
    %863 = vmatprep.subr.mxu0 0.0
    %864 = vmatpush1.msra.mxu0 0.0
    %865 = vmatprep.subr.mxu0 0.0
    %866 = vmatpush1.msra.mxu0 0.0
    %867 = vmatprep.subr.mxu0 0.0
    %868 = vmatpush1.msra.mxu0 0.0
    %869 = vmatprep.subr.mxu0 0.0
    %870 = vmatpush1.msra.mxu0 0.0
    %871 = vmatprep.subr.mxu0 0.0
    %872 = vmatpush1.msra.mxu0 0.0
    %873 = vmatprep.subr.mxu0 0.0
    %874 = vmatpush1.msra.mxu0 0.0
    %875 = vmatprep.subr.mxu0 0.0
    %876 = vmatpush1.msra.mxu0 0.0
    %877 = vmatprep.subr.mxu0 0.0
    %878 = vmatpush1.msra.mxu0 0.0
    %879 = vmatprep.subr.mxu0 0.0
    %880 = vmatpush1.msra.mxu0 0.0
    %881 = vmatprep.subr.mxu0 0.0
    %882 = vmatpush1.msra.mxu0 0.0
    %883 = vmatprep.subr.mxu0 0.0
    %884 = vmatpush1.msra.mxu0 0.0
    %885 = vmatprep.subr.mxu0 0.0
    %886 = vmatpush1.msra.mxu0 0.0
    %887 = vmatprep.subr.mxu0 0.0
    %888 = vmatpush1.msra.mxu0 0.0
    %889 = vmatprep.subr.mxu0 0.0
    %890 = vmatpush1.msra.mxu0 0.0
    %891 = vmatprep.mubr.f32.mxu0 0.0
    %892 = vmatmul.mubr.f32.gmra.mrb[0].mxu0 %v607
    %v893 = vpop.f32.mrb[0].mxu0
    %v894 = vadd.f32 %v512, %v893
    %v895 = vpop.f32.mrb[0].mxu0
    %v896 = vadd.f32 %v514, %v895
    %897 = vmatprep.mubr.f32.mxu0 0.0
    %898 = vmatmul.mubr.f32.gmra.mrb[0].mxu0 %v610
    %v899 = vpop.f32.mrb[0].mxu0
    %v900 = vadd.f32 %v518, %v899
    %v901 = vpop.f32.mrb[0].mxu0
    %v902 = vadd.f32 %v520, %v901
    %903 = vmatprep.mubr.f32.mxu0 0.0
    %904 = vmatmul.mubr.f32.gmra.mrb[0].mxu0 %v613
    %v905 = vpop.f32.mrb[0].mxu0
    %v906 = vadd.f32 %v524, %v905
    %v907 = vpop.f32.mrb[0].mxu0
    %v908 = vadd.f32 %v526, %v907
    %909 = vmatprep.mubr.f32.mxu0 0.0
    %910 = vmatmul.mubr.f32.gmra.mrb[0].mxu0 %v616
    %v911 = vpop.f32.mrb[0].mxu0
    %v912 = vadd.f32 %v530, %v911
    %v913 = vpop.f32.mrb[0].mxu0
    %v914 = vadd.f32 %v532, %v913
    %915 = vmatprep.mubr.f32.mxu0 0.0
    %916 = vmatmul.mubr.f32.gmra.mrb[0].mxu0 %v619
    %v917 = vpop.f32.mrb[0].mxu0
    %v918 = vadd.f32 %v536, %v917
    %v919 = vpop.f32.mrb[0].mxu0
    %v920 = vadd.f32 %v538, %v919
    %921 = vmatprep.mubr.f32.mxu0 0.0
    %922 = vmatmul.mubr.f32.gmra.mrb[0].mxu0 %v622
    %v923 = vpop.f32.mrb[0].mxu0
    %v924 = vadd.f32 %v542, %v923
    %v925 = vpop.f32.mrb[0].mxu0
    %v926 = vadd.f32 %v544, %v925
    %927 = vmatprep.mubr.f32.mxu0 0.0
    %928 = vmatmul.mubr.f32.gmra.mrb[0].mxu0 %v625
    %v929 = vpop.f32.mrb[0].mxu0
    %v930 = vadd.f32 %v548, %v929
    %v931 = vpop.f32.mrb[0].mxu0
    %v932 = vadd.f32 %v550, %v931
    %933 = vmatprep.mubr.f32.mxu0 0.0
    %934 = vmatmul.mubr.f32.gmra.mrb[0].mxu0 %v628
    %v935 = vpop.f32.mrb[0].mxu0
    %v936 = vadd.f32 %v554, %v935
    %v937 = vpop.f32.mrb[0].mxu0
    %v938 = vadd.f32 %v556, %v937
    %939 = vmatprep.mubr.f32.mxu0 0.0
    %940 = vmatmul.mubr.f32.gmra.mrb[0].mxu0 %v631
    %v941 = vpop.f32.mrb[0].mxu0
    %v942 = vadd.f32 %v560, %v941
    %v943 = vpop.f32.mrb[0].mxu0
    %v944 = vadd.f32 %v562, %v943
    %945 = vmatprep.mubr.f32.mxu0 0.0
    %946 = vmatmul.mubr.f32.gmra.mrb[0].mxu0 %v634
    %v947 = vpop.f32.mrb[0].mxu0
    %v948 = vadd.f32 %v566, %v947
    %v949 = vpop.f32.mrb[0].mxu0
    %v950 = vadd.f32 %v568, %v949
    %951 = vmatprep.mubr.f32.mxu0 0.0
    %952 = vmatmul.mubr.f32.gmra.mrb[0].mxu0 %v637
    %v953 = vpop.f32.mrb[0].mxu0
    %v954 = vadd.f32 %v572, %v953
    %v955 = vpop.f32.mrb[0].mxu0
    %v956 = vadd.f32 %v574, %v955
    %957 = vmatprep.mubr.f32.mxu0 0.0
    %958 = vmatmul.mubr.f32.gmra.mrb[0].mxu0 %v640
    %v959 = vpop.f32.mrb[0].mxu0
    %v960 = vadd.f32 %v578, %v959
    %v961 = vpop.f32.mrb[0].mxu0
    %v962 = vadd.f32 %v580, %v961
    %963 = vmatprep.mubr.f32.mxu0 0.0
    %964 = vmatmul.mubr.f32.gmra.mrb[0].mxu0 %v643
    %v965 = vpop.f32.mrb[0].mxu0
    %v966 = vadd.f32 %v584, %v965
    %v967 = vpop.f32.mrb[0].mxu0
    %v968 = vadd.f32 %v586, %v967
    %969 = vmatprep.mubr.f32.mxu0 0.0
    %970 = vmatmul.mubr.f32.gmra.mrb[0].mxu0 %v646
    %v971 = vpop.f32.mrb[0].mxu0
    %v972 = vadd.f32 %v590, %v971
    %v973 = vpop.f32.mrb[0].mxu0
    %v974 = vadd.f32 %v592, %v973
    %975 = vmatprep.mubr.f32.mxu0 0.0
    %976 = vmatmul.mubr.f32.gmra.mrb[0].mxu0 %v649
    %v977 = vpop.f32.mrb[0].mxu0
    %v978 = vadd.f32 %v596, %v977
    %v979 = vpop.f32.mrb[0].mxu0
    %v980 = vadd.f32 %v598, %v979
    %981 = vmatprep.mubr.f32.mxu0 0.0
    %982 = vmatmul.mubr.f32.gmra.mrb[0].mxu0 %v652
    %v983 = vpop.f32.mrb[0].mxu0
    %v984 = vadd.f32 %v602, %v983
    %v985 = vpop.f32.mrb[0].mxu0
    %v986 = vadd.f32 %v604, %v985
    %987 = vdwg.mxu0
    %v989 = vsel %vm226, %v154, 0
    %v992 = vsel %vm226, %v155, 0
    %v995 = vsel %vm226, %v156, 0
    %v998 = vsel %vm226, %v157, 0
    %v1001 = vsel %vm226, %v158, 0
    %v1004 = vsel %vm226, %v159, 0
    %v1007 = vsel %vm226, %v160, 0
    %v1010 = vsel %vm226, %v161, 0
    %v1013 = vsel %vm226, %v162, 0
    %v1016 = vsel %vm226, %v163, 0
    %v1019 = vsel %vm226, %v164, 0
    %v1022 = vsel %vm226, %v165, 0
    %v1025 = vsel %vm226, %v166, 0
    %v1028 = vsel %vm226, %v167, 0
    %v1031 = vsel %vm226, %v168, 0
    %v1034 = vsel %vm226, %v169, 0
    %v1037 = vsel %vm275, %v222, 0
    %v1040 = vsel %vm275, %v223, 0
    %v1043 = vsel %vm275, %v224, 0
    %v1046 = vsel %vm275, %v225, 0
    %1048 = vmatprep.subr.mxu0 %v1040
    %1049 = vmatpush1.msra.mxu0 %v1037
    %1050 = vmatprep.subr.mxu0 0.0
    %1051 = vmatpush1.msra.mxu0 0.0
    %1052 = vmatprep.subr.mxu0 0.0
    %1053 = vmatpush1.msra.mxu0 0.0
    %1054 = vmatprep.subr.mxu0 0.0
    %1055 = vmatpush1.msra.mxu0 0.0
    %1056 = vmatprep.subr.mxu0 0.0
    %1057 = vmatpush1.msra.mxu0 0.0
    %1058 = vmatprep.subr.mxu0 0.0
    %1059 = vmatpush1.msra.mxu0 0.0
    %1060 = vmatprep.subr.mxu0 0.0
    %1061 = vmatpush1.msra.mxu0 0.0
    %1062 = vmatprep.subr.mxu0 0.0
    %1063 = vmatpush1.msra.mxu0 0.0
    %1064 = vmatprep.subr.mxu0 0.0
    %1065 = vmatpush1.msra.mxu0 0.0
    %1066 = vmatprep.subr.mxu0 0.0
    %1067 = vmatpush1.msra.mxu0 0.0
    %1068 = vmatprep.subr.mxu0 0.0
    %1069 = vmatpush1.msra.mxu0 0.0
    %1070 = vmatprep.subr.mxu0 0.0
    %1071 = vmatpush1.msra.mxu0 0.0
    %1072 = vmatprep.subr.mxu0 0.0
    %1073 = vmatpush1.msra.mxu0 0.0
    %1074 = vmatprep.subr.mxu0 0.0
    %1075 = vmatpush1.msra.mxu0 0.0
    %1076 = vmatprep.subr.mxu0 0.0
    %1077 = vmatpush1.msra.mxu0 0.0
    %1078 = vmatprep.subr.mxu0 0.0
    %1079 = vmatpush1.msra.mxu0 0.0
    %1080 = vmatprep.subr.mxu0 0.0
    %1081 = vmatpush1.msra.mxu0 0.0
    %1082 = vmatprep.subr.mxu0 0.0
    %1083 = vmatpush1.msra.mxu0 0.0
    %1084 = vmatprep.subr.mxu0 0.0
    %1085 = vmatpush1.msra.mxu0 0.0
    %1086 = vmatprep.subr.mxu0 0.0
    %1087 = vmatpush1.msra.mxu0 0.0
    %1088 = vmatprep.subr.mxu0 0.0
    %1089 = vmatpush1.msra.mxu0 0.0
    %1090 = vmatprep.subr.mxu0 0.0
    %1091 = vmatpush1.msra.mxu0 0.0
    %1092 = vmatprep.subr.mxu0 0.0
    %1093 = vmatpush1.msra.mxu0 0.0
    %1094 = vmatprep.subr.mxu0 0.0
    %1095 = vmatpush1.msra.mxu0 0.0
    %1096 = vmatprep.subr.mxu0 0.0
    %1097 = vmatpush1.msra.mxu0 0.0
    %1098 = vmatprep.subr.mxu0 0.0
    %1099 = vmatpush1.msra.mxu0 0.0
    %1100 = vmatprep.subr.mxu0 0.0
    %1101 = vmatpush1.msra.mxu0 0.0
    %1102 = vmatprep.subr.mxu0 0.0
    %1103 = vmatpush1.msra.mxu0 0.0
    %1104 = vmatprep.subr.mxu0 0.0
    %1105 = vmatpush1.msra.mxu0 0.0
    %1106 = vmatprep.subr.mxu0 0.0
    %1107 = vmatpush1.msra.mxu0 0.0
    %1108 = vmatprep.subr.mxu0 0.0
    %1109 = vmatpush1.msra.mxu0 0.0
    %1110 = vmatprep.subr.mxu0 0.0
    %1111 = vmatpush1.msra.mxu0 0.0
    %1112 = vmatprep.mubr.f32.mxu0 0.0
    %1113 = vmatmul.mubr.f32.gmra.mrb[0].mxu0 %v989
    %v1114 = vpop.f32.mrb[0].mxu0
    %v1115 = vadd.f32 0.0, %v1114
    %v1116 = vpop.f32.mrb[0].mxu0
    %v1117 = vadd.f32 0.0, %v1116
    %1118 = vmatprep.mubr.f32.mxu0 0.0
    %1119 = vmatmul.mubr.f32.gmra.mrb[0].mxu0 %v992
    %v1120 = vpop.f32.mrb[0].mxu0
    %v1121 = vadd.f32 0.0, %v1120
    %v1122 = vpop.f32.mrb[0].mxu0
    %v1123 = vadd.f32 0.0, %v1122
    %1124 = vmatprep.mubr.f32.mxu0 0.0
    %1125 = vmatmul.mubr.f32.gmra.mrb[0].mxu0 %v995
    %v1126 = vpop.f32.mrb[0].mxu0
    %v1127 = vadd.f32 0.0, %v1126
    %v1128 = vpop.f32.mrb[0].mxu0
    %v1129 = vadd.f32 0.0, %v1128
    %1130 = vmatprep.mubr.f32.mxu0 0.0
    %1131 = vmatmul.mubr.f32.gmra.mrb[0].mxu0 %v998
    %v1132 = vpop.f32.mrb[0].mxu0
    %v1133 = vadd.f32 0.0, %v1132
    %v1134 = vpop.f32.mrb[0].mxu0
    %v1135 = vadd.f32 0.0, %v1134
    %1136 = vmatprep.mubr.f32.mxu0 0.0
    %1137 = vmatmul.mubr.f32.gmra.mrb[0].mxu0 %v1001
    %v1138 = vpop.f32.mrb[0].mxu0
    %v1139 = vadd.f32 0.0, %v1138
    %v1140 = vpop.f32.mrb[0].mxu0
    %v1141 = vadd.f32 0.0, %v1140
    %1142 = vmatprep.mubr.f32.mxu0 0.0
    %1143 = vmatmul.mubr.f32.gmra.mrb[0].mxu0 %v1004
    %v1144 = vpop.f32.mrb[0].mxu0
    %v1145 = vadd.f32 0.0, %v1144
    %v1146 = vpop.f32.mrb[0].mxu0
    %v1147 = vadd.f32 0.0, %v1146
    %1148 = vmatprep.mubr.f32.mxu0 0.0
    %1149 = vmatmul.mubr.f32.gmra.mrb[0].mxu0 %v1007
    %v1150 = vpop.f32.mrb[0].mxu0
    %v1151 = vadd.f32 0.0, %v1150
    %v1152 = vpop.f32.mrb[0].mxu0
    %v1153 = vadd.f32 0.0, %v1152
    %1154 = vmatprep.mubr.f32.mxu0 0.0
    %1155 = vmatmul.mubr.f32.gmra.mrb[0].mxu0 %v1010
    %v1156 = vpop.f32.mrb[0].mxu0
    %v1157 = vadd.f32 0.0, %v1156
    %v1158 = vpop.f32.mrb[0].mxu0
    %v1159 = vadd.f32 0.0, %v1158
    %1160 = vmatprep.mubr.f32.mxu0 0.0
    %1161 = vmatmul.mubr.f32.gmra.mrb[0].mxu0 %v1013
    %v1162 = vpop.f32.mrb[0].mxu0
    %v1163 = vadd.f32 0.0, %v1162
    %v1164 = vpop.f32.mrb[0].mxu0
    %v1165 = vadd.f32 0.0, %v1164
    %1166 = vmatprep.mubr.f32.mxu0 0.0
    %1167 = vmatmul.mubr.f32.gmra.mrb[0].mxu0 %v1016
    %v1168 = vpop.f32.mrb[0].mxu0
    %v1169 = vadd.f32 0.0, %v1168
    %v1170 = vpop.f32.mrb[0].mxu0
    %v1171 = vadd.f32 0.0, %v1170
    %1172 = vmatprep.mubr.f32.mxu0 0.0
    %1173 = vmatmul.mubr.f32.gmra.mrb[0].mxu0 %v1019
    %v1174 = vpop.f32.mrb[0].mxu0
    %v1175 = vadd.f32 0.0, %v1174
    %v1176 = vpop.f32.mrb[0].mxu0
    %v1177 = vadd.f32 0.0, %v1176
    %1178 = vmatprep.mubr.f32.mxu0 0.0
    %1179 = vmatmul.mubr.f32.gmra.mrb[0].mxu0 %v1022
    %v1180 = vpop.f32.mrb[0].mxu0
    %v1181 = vadd.f32 0.0, %v1180
    %v1182 = vpop.f32.mrb[0].mxu0
    %v1183 = vadd.f32 0.0, %v1182
    %1184 = vmatprep.mubr.f32.mxu0 0.0
    %1185 = vmatmul.mubr.f32.gmra.mrb[0].mxu0 %v1025
    %v1186 = vpop.f32.mrb[0].mxu0
    %v1187 = vadd.f32 0.0, %v1186
    %v1188 = vpop.f32.mrb[0].mxu0
    %v1189 = vadd.f32 0.0, %v1188
    %1190 = vmatprep.mubr.f32.mxu0 0.0
    %1191 = vmatmul.mubr.f32.gmra.mrb[0].mxu0 %v1028
    %v1192 = vpop.f32.mrb[0].mxu0
    %v1193 = vadd.f32 0.0, %v1192
    %v1194 = vpop.f32.mrb[0].mxu0
    %v1195 = vadd.f32 0.0, %v1194
    %1196 = vmatprep.mubr.f32.mxu0 0.0
    %1197 = vmatmul.mubr.f32.gmra.mrb[0].mxu0 %v1031
    %v1198 = vpop.f32.mrb[0].mxu0
    %v1199 = vadd.f32 0.0, %v1198
    %v1200 = vpop.f32.mrb[0].mxu0
    %v1201 = vadd.f32 0.0, %v1200
    %1202 = vmatprep.mubr.f32.mxu0 0.0
    %1203 = vmatmul.mubr.f32.gmra.mrb[0].mxu0 %v1034
    %v1204 = vpop.f32.mrb[0].mxu0
    %v1205 = vadd.f32 0.0, %v1204
    %v1206 = vpop.f32.mrb[0].mxu0
    %v1207 = vadd.f32 0.0, %v1206
    %1208 = vdwg.mxu0
    %1209 = vmatprep.subr.mxu0 %v1046
    %1210 = vmatpush1.msra.mxu0 %v1043
    %1211 = vmatprep.subr.mxu0 0.0
    %1212 = vmatpush1.msra.mxu0 0.0
    %1213 = vmatprep.subr.mxu0 0.0
    %1214 = vmatpush1.msra.mxu0 0.0
    %1215 = vmatprep.subr.mxu0 0.0
    %1216 = vmatpush1.msra.mxu0 0.0
    %1217 = vmatprep.subr.mxu0 0.0
    %1218 = vmatpush1.msra.mxu0 0.0
    %1219 = vmatprep.subr.mxu0 0.0
    %1220 = vmatpush1.msra.mxu0 0.0
    %1221 = vmatprep.subr.mxu0 0.0
    %1222 = vmatpush1.msra.mxu0 0.0
    %1223 = vmatprep.subr.mxu0 0.0
    %1224 = vmatpush1.msra.mxu0 0.0
    %1225 = vmatprep.subr.mxu0 0.0
    %1226 = vmatpush1.msra.mxu0 0.0
    %1227 = vmatprep.subr.mxu0 0.0
    %1228 = vmatpush1.msra.mxu0 0.0
    %1229 = vmatprep.subr.mxu0 0.0
    %1230 = vmatpush1.msra.mxu0 0.0
    %1231 = vmatprep.subr.mxu0 0.0
    %1232 = vmatpush1.msra.mxu0 0.0
    %1233 = vmatprep.subr.mxu0 0.0
    %1234 = vmatpush1.msra.mxu0 0.0
    %1235 = vmatprep.subr.mxu0 0.0
    %1236 = vmatpush1.msra.mxu0 0.0
    %1237 = vmatprep.subr.mxu0 0.0
    %1238 = vmatpush1.msra.mxu0 0.0
    %1239 = vmatprep.subr.mxu0 0.0
    %1240 = vmatpush1.msra.mxu0 0.0
    %1241 = vmatprep.subr.mxu0 0.0
    %1242 = vmatpush1.msra.mxu0 0.0
    %1243 = vmatprep.subr.mxu0 0.0
    %1244 = vmatpush1.msra.mxu0 0.0
    %1245 = vmatprep.subr.mxu0 0.0
    %1246 = vmatpush1.msra.mxu0 0.0
    %1247 = vmatprep.subr.mxu0 0.0
    %1248 = vmatpush1.msra.mxu0 0.0
    %1249 = vmatprep.subr.mxu0 0.0
    %1250 = vmatpush1.msra.mxu0 0.0
    %1251 = vmatprep.subr.mxu0 0.0
    %1252 = vmatpush1.msra.mxu0 0.0
    %1253 = vmatprep.subr.mxu0 0.0
    %1254 = vmatpush1.msra.mxu0 0.0
    %1255 = vmatprep.subr.mxu0 0.0
    %1256 = vmatpush1.msra.mxu0 0.0
    %1257 = vmatprep.subr.mxu0 0.0
    %1258 = vmatpush1.msra.mxu0 0.0
    %1259 = vmatprep.subr.mxu0 0.0
    %1260 = vmatpush1.msra.mxu0 0.0
    %1261 = vmatprep.subr.mxu0 0.0
    %1262 = vmatpush1.msra.mxu0 0.0
    %1263 = vmatprep.subr.mxu0 0.0
    %1264 = vmatpush1.msra.mxu0 0.0
    %1265 = vmatprep.subr.mxu0 0.0
    %1266 = vmatpush1.msra.mxu0 0.0
    %1267 = vmatprep.subr.mxu0 0.0
    %1268 = vmatpush1.msra.mxu0 0.0
    %1269 = vmatprep.subr.mxu0 0.0
    %1270 = vmatpush1.msra.mxu0 0.0
    %1271 = vmatprep.subr.mxu0 0.0
    %1272 = vmatpush1.msra.mxu0 0.0
    %1273 = vmatprep.mubr.f32.mxu0 0.0
    %1274 = vmatmul.mubr.f32.gmra.mrb[0].mxu0 %v989
    %v1275 = vpop.f32.mrb[0].mxu0
    %v1276 = vadd.f32 0.0, %v1275
    %v1277 = vpop.f32.mrb[0].mxu0
    %v1278 = vadd.f32 0.0, %v1277
    %1279 = vmatprep.mubr.f32.mxu0 0.0
    %1280 = vmatmul.mubr.f32.gmra.mrb[0].mxu0 %v992
    %v1281 = vpop.f32.mrb[0].mxu0
    %v1282 = vadd.f32 0.0, %v1281
    %v1283 = vpop.f32.mrb[0].mxu0
    %v1284 = vadd.f32 0.0, %v1283
    %1285 = vmatprep.mubr.f32.mxu0 0.0
    %1286 = vmatmul.mubr.f32.gmra.mrb[0].mxu0 %v995
    %v1287 = vpop.f32.mrb[0].mxu0
    %v1288 = vadd.f32 0.0, %v1287
    %v1289 = vpop.f32.mrb[0].mxu0
    %v1290 = vadd.f32 0.0, %v1289
    %1291 = vmatprep.mubr.f32.mxu0 0.0
    %1292 = vmatmul.mubr.f32.gmra.mrb[0].mxu0 %v998
    %v1293 = vpop.f32.mrb[0].mxu0
    %v1294 = vadd.f32 0.0, %v1293
    %v1295 = vpop.f32.mrb[0].mxu0
    %v1296 = vadd.f32 0.0, %v1295
    %1297 = vmatprep.mubr.f32.mxu0 0.0
    %1298 = vmatmul.mubr.f32.gmra.mrb[0].mxu0 %v1001
    %v1299 = vpop.f32.mrb[0].mxu0
    %v1300 = vadd.f32 0.0, %v1299
    %v1301 = vpop.f32.mrb[0].mxu0
    %v1302 = vadd.f32 0.0, %v1301
    %1303 = vmatprep.mubr.f32.mxu0 0.0
    %1304 = vmatmul.mubr.f32.gmra.mrb[0].mxu0 %v1004
    %v1305 = vpop.f32.mrb[0].mxu0
    %v1306 = vadd.f32 0.0, %v1305
    %v1307 = vpop.f32.mrb[0].mxu0
    %v1308 = vadd.f32 0.0, %v1307
    %1309 = vmatprep.mubr.f32.mxu0 0.0
    %1310 = vmatmul.mubr.f32.gmra.mrb[0].mxu0 %v1007
    %v1311 = vpop.f32.mrb[0].mxu0
    %v1312 = vadd.f32 0.0, %v1311
    %v1313 = vpop.f32.mrb[0].mxu0
    %v1314 = vadd.f32 0.0, %v1313
    %1315 = vmatprep.mubr.f32.mxu0 0.0
    %1316 = vmatmul.mubr.f32.gmra.mrb[0].mxu0 %v1010
    %v1317 = vpop.f32.mrb[0].mxu0
    %v1318 = vadd.f32 0.0, %v1317
    %v1319 = vpop.f32.mrb[0].mxu0
    %v1320 = vadd.f32 0.0, %v1319
    %1321 = vmatprep.mubr.f32.mxu0 0.0
    %1322 = vmatmul.mubr.f32.gmra.mrb[0].mxu0 %v1013
    %v1323 = vpop.f32.mrb[0].mxu0
    %v1324 = vadd.f32 0.0, %v1323
    %v1325 = vpop.f32.mrb[0].mxu0
    %v1326 = vadd.f32 0.0, %v1325
    %1327 = vmatprep.mubr.f32.mxu0 0.0
    %1328 = vmatmul.mubr.f32.gmra.mrb[0].mxu0 %v1016
    %v1329 = vpop.f32.mrb[0].mxu0
    %v1330 = vadd.f32 0.0, %v1329
    %v1331 = vpop.f32.mrb[0].mxu0
    %v1332 = vadd.f32 0.0, %v1331
    %1333 = vmatprep.mubr.f32.mxu0 0.0
    %1334 = vmatmul.mubr.f32.gmra.mrb[0].mxu0 %v1019
    %v1335 = vpop.f32.mrb[0].mxu0
    %v1336 = vadd.f32 0.0, %v1335
    %v1337 = vpop.f32.mrb[0].mxu0
    %v1338 = vadd.f32 0.0, %v1337
    %1339 = vmatprep.mubr.f32.mxu0 0.0
    %1340 = vmatmul.mubr.f32.gmra.mrb[0].mxu0 %v1022
    %v1341 = vpop.f32.mrb[0].mxu0
    %v1342 = vadd.f32 0.0, %v1341
    %v1343 = vpop.f32.mrb[0].mxu0
    %v1344 = vadd.f32 0.0, %v1343
    %1345 = vmatprep.mubr.f32.mxu0 0.0
    %1346 = vmatmul.mubr.f32.gmra.mrb[0].mxu0 %v1025
    %v1347 = vpop.f32.mrb[0].mxu0
    %v1348 = vadd.f32 0.0, %v1347
    %v1349 = vpop.f32.mrb[0].mxu0
    %v1350 = vadd.f32 0.0, %v1349
    %1351 = vmatprep.mubr.f32.mxu0 0.0
    %1352 = vmatmul.mubr.f32.gmra.mrb[0].mxu0 %v1028
    %v1353 = vpop.f32.mrb[0].mxu0
    %v1354 = vadd.f32 0.0, %v1353
    %v1355 = vpop.f32.mrb[0].mxu0
    %v1356 = vadd.f32 0.0, %v1355
    %1357 = vmatprep.mubr.f32.mxu0 0.0
    %1358 = vmatmul.mubr.f32.gmra.mrb[0].mxu0 %v1031
    %v1359 = vpop.f32.mrb[0].mxu0
    %v1360 = vadd.f32 0.0, %v1359
    %v1361 = vpop.f32.mrb[0].mxu0
    %v1362 = vadd.f32 0.0, %v1361
    %1363 = vmatprep.mubr.f32.mxu0 0.0
    %1364 = vmatmul.mubr.f32.gmra.mrb[0].mxu0 %v1034
    %v1365 = vpop.f32.mrb[0].mxu0
    %v1366 = vadd.f32 0.0, %v1365
    %v1367 = vpop.f32.mrb[0].mxu0
    %v1368 = vadd.f32 0.0, %v1367
    %1369 = vdwg.mxu0
    %v1370 = vadd.f32 %v733, %v1115
    %v1371 = vadd.f32 %v735, %v1117
    %v1372 = vadd.f32 %v894, %v1276
    %v1373 = vadd.f32 %v896, %v1278
    %v1374 = vadd.f32 %v739, %v1121
    %v1375 = vadd.f32 %v741, %v1123
    %v1376 = vadd.f32 %v900, %v1282
    %v1377 = vadd.f32 %v902, %v1284
    %v1378 = vadd.f32 %v745, %v1127
    %v1379 = vadd.f32 %v747, %v1129
    %v1380 = vadd.f32 %v906, %v1288
    %v1381 = vadd.f32 %v908, %v1290
    %v1382 = vadd.f32 %v751, %v1133
    %v1383 = vadd.f32 %v753, %v1135
    %v1384 = vadd.f32 %v912, %v1294
    %v1385 = vadd.f32 %v914, %v1296
    %v1386 = vadd.f32 %v757, %v1139
    %v1387 = vadd.f32 %v759, %v1141
    %v1388 = vadd.f32 %v918, %v1300
    %v1389 = vadd.f32 %v920, %v1302
    %v1390 = vadd.f32 %v763, %v1145
    %v1391 = vadd.f32 %v765, %v1147
    %v1392 = vadd.f32 %v924, %v1306
    %v1393 = vadd.f32 %v926, %v1308
    %v1394 = vadd.f32 %v769, %v1151
    %v1395 = vadd.f32 %v771, %v1153
    %v1396 = vadd.f32 %v930, %v1312
    %v1397 = vadd.f32 %v932, %v1314
    %v1398 = vadd.f32 %v775, %v1157
    %v1399 = vadd.f32 %v777, %v1159
    %v1400 = vadd.f32 %v936, %v1318
    %v1401 = vadd.f32 %v938, %v1320
    %v1402 = vadd.f32 %v781, %v1163
    %v1403 = vadd.f32 %v783, %v1165
    %v1404 = vadd.f32 %v942, %v1324
    %v1405 = vadd.f32 %v944, %v1326
    %v1406 = vadd.f32 %v787, %v1169
    %v1407 = vadd.f32 %v789, %v1171
    %v1408 = vadd.f32 %v948, %v1330
    %v1409 = vadd.f32 %v950, %v1332
    %v1410 = vadd.f32 %v793, %v1175
    %v1411 = vadd.f32 %v795, %v1177
    %v1412 = vadd.f32 %v954, %v1336
    %v1413 = vadd.f32 %v956, %v1338
    %v1414 = vadd.f32 %v799, %v1181
    %v1415 = vadd.f32 %v801, %v1183
    %v1416 = vadd.f32 %v960, %v1342
    %v1417 = vadd.f32 %v962, %v1344
    %v1418 = vadd.f32 %v805, %v1187
    %v1419 = vadd.f32 %v807, %v1189
    %v1420 = vadd.f32 %v966, %v1348
    %v1421 = vadd.f32 %v968, %v1350
    %v1422 = vadd.f32 %v811, %v1193
    %v1423 = vadd.f32 %v813, %v1195
    %v1424 = vadd.f32 %v972, %v1354
    %v1425 = vadd.f32 %v974, %v1356
    %v1426 = vadd.f32 %v817, %v1199
    %v1427 = vadd.f32 %v819, %v1201
    %v1428 = vadd.f32 %v978, %v1360
    %v1429 = vadd.f32 %v980, %v1362
    %v1430 = vadd.f32 %v823, %v1205
    %v1431 = vadd.f32 %v825, %v1207
    %v1432 = vadd.f32 %v984, %v1366
    %v1433 = vadd.f32 %v986, %v1368
    %1435 = vset.pattern.permute.xlu0 0
    %1436 = vperm.xlu0 %1435, %v170
    %v1437 = vpop.permute.xlu0 %1436
    %1440 = vset.pattern.permute.xlu0 0
    %1441 = vperm.xlu0 %1440, %v171
    %v1442 = vpop.permute.xlu0 %1441
    %1445 = vset.pattern.permute.xlu0 0
    %1446 = vperm.xlu0 %1445, %v172
    %v1447 = vpop.permute.xlu0 %1446
    %1450 = vset.pattern.permute.xlu0 0
    %1451 = vperm.xlu0 %1450, %v173
    %v1452 = vpop.permute.xlu0 %1451
    %1455 = vset.pattern.permute.xlu0 0
    %1456 = vperm.xlu0 %1455, %v174
    %v1457 = vpop.permute.xlu0 %1456
    %1460 = vset.pattern.permute.xlu0 0
    %1461 = vperm.xlu0 %1460, %v175
    %v1462 = vpop.permute.xlu0 %1461
    %1465 = vset.pattern.permute.xlu0 0
    %1466 = vperm.xlu0 %1465, %v176
    %v1467 = vpop.permute.xlu0 %1466
    %1470 = vset.pattern.permute.xlu0 0
    %1471 = vperm.xlu0 %1470, %v177
    %v1472 = vpop.permute.xlu0 %1471
    %1475 = vset.pattern.permute.xlu0 0
    %1476 = vperm.xlu0 %1475, %v178
    %v1477 = vpop.permute.xlu0 %1476
    %1480 = vset.pattern.permute.xlu0 0
    %1481 = vperm.xlu0 %1480, %v179
    %v1482 = vpop.permute.xlu0 %1481
    %1485 = vset.pattern.permute.xlu0 0
    %1486 = vperm.xlu0 %1485, %v180
    %v1487 = vpop.permute.xlu0 %1486
    %1490 = vset.pattern.permute.xlu0 0
    %1491 = vperm.xlu0 %1490, %v181
    %v1492 = vpop.permute.xlu0 %1491
    %1495 = vset.pattern.permute.xlu0 0
    %1496 = vperm.xlu0 %1495, %v182
    %v1497 = vpop.permute.xlu0 %1496
    %1500 = vset.pattern.permute.xlu0 0
    %1501 = vperm.xlu0 %1500, %v183
    %v1502 = vpop.permute.xlu0 %1501
    %1505 = vset.pattern.permute.xlu0 0
    %1506 = vperm.xlu0 %1505, %v184
    %v1507 = vpop.permute.xlu0 %1506
    %1510 = vset.pattern.permute.xlu0 0
    %1511 = vperm.xlu0 %1510, %v185
    %v1512 = vpop.permute.xlu0 %1511
    %v1514 = vadd.f32 %v1370, %v1437
    %v1515 = vadd.f32 %v1371, %v1437
    %v1516 = vadd.f32 %v1372, %v1437
    %v1517 = vadd.f32 %v1373, %v1437
    %v1518 = vadd.f32 %v1374, %v1442
    %v1519 = vadd.f32 %v1375, %v1442
    %v1520 = vadd.f32 %v1376, %v1442
    %v1521 = vadd.f32 %v1377, %v1442
    %v1522 = vadd.f32 %v1378, %v1447
    %v1523 = vadd.f32 %v1379, %v1447
    %v1524 = vadd.f32 %v1380, %v1447
    %v1525 = vadd.f32 %v1381, %v1447
    %v1526 = vadd.f32 %v1382, %v1452
    %v1527 = vadd.f32 %v1383, %v1452
    %v1528 = vadd.f32 %v1384, %v1452
    %v1529 = vadd.f32 %v1385, %v1452
    %v1530 = vadd.f32 %v1386, %v1457
    %v1531 = vadd.f32 %v1387, %v1457
    %v1532 = vadd.f32 %v1388, %v1457
    %v1533 = vadd.f32 %v1389, %v1457
    %v1534 = vadd.f32 %v1390, %v1462
    %v1535 = vadd.f32 %v1391, %v1462
    %v1536 = vadd.f32 %v1392, %v1462
    %v1537 = vadd.f32 %v1393, %v1462
    %v1538 = vadd.f32 %v1394, %v1467
    %v1539 = vadd.f32 %v1395, %v1467
    %v1540 = vadd.f32 %v1396, %v1467
    %v1541 = vadd.f32 %v1397, %v1467
    %v1542 = vadd.f32 %v1398, %v1472
    %v1543 = vadd.f32 %v1399, %v1472
    %v1544 = vadd.f32 %v1400, %v1472
    %v1545 = vadd.f32 %v1401, %v1472
    %v1546 = vadd.f32 %v1402, %v1477
    %v1547 = vadd.f32 %v1403, %v1477
    %v1548 = vadd.f32 %v1404, %v1477
    %v1549 = vadd.f32 %v1405, %v1477
    %v1550 = vadd.f32 %v1406, %v1482
    %v1551 = vadd.f32 %v1407, %v1482
    %v1552 = vadd.f32 %v1408, %v1482
    %v1553 = vadd.f32 %v1409, %v1482
    %v1554 = vadd.f32 %v1410, %v1487
    %v1555 = vadd.f32 %v1411, %v1487
    %v1556 = vadd.f32 %v1412, %v1487
    %v1557 = vadd.f32 %v1413, %v1487
    %v1558 = vadd.f32 %v1414, %v1492
    %v1559 = vadd.f32 %v1415, %v1492
    %v1560 = vadd.f32 %v1416, %v1492
    %v1561 = vadd.f32 %v1417, %v1492
    %v1562 = vadd.f32 %v1418, %v1497
    %v1563 = vadd.f32 %v1419, %v1497
    %v1564 = vadd.f32 %v1420, %v1497
    %v1565 = vadd.f32 %v1421, %v1497
    %v1566 = vadd.f32 %v1422, %v1502
    %v1567 = vadd.f32 %v1423, %v1502
    %v1568 = vadd.f32 %v1424, %v1502
    %v1569 = vadd.f32 %v1425, %v1502
    %v1570 = vadd.f32 %v1426, %v1507
    %v1571 = vadd.f32 %v1427, %v1507
    %v1572 = vadd.f32 %v1428, %v1507
    %v1573 = vadd.f32 %v1429, %v1507
    %v1574 = vadd.f32 %v1430, %v1512
    %v1575 = vadd.f32 %v1431, %v1512
    %v1576 = vadd.f32 %v1432, %v1512
    %v1577 = vadd.f32 %v1433, %v1512
    %v1578 = vmax.f32 %v1514, 0.0
    %v1579 = vmax.f32 %v1515, 0.0
    %v1580 = vmax.f32 %v1516, 0.0
    %v1581 = vmax.f32 %v1517, 0.0
    %v1582 = vmax.f32 %v1518, 0.0
    %v1583 = vmax.f32 %v1519, 0.0
    %v1584 = vmax.f32 %v1520, 0.0
    %v1585 = vmax.f32 %v1521, 0.0
    %v1586 = vmax.f32 %v1522, 0.0
    %v1587 = vmax.f32 %v1523, 0.0
    %v1588 = vmax.f32 %v1524, 0.0
    %v1589 = vmax.f32 %v1525, 0.0
    %v1590 = vmax.f32 %v1526, 0.0
    %v1591 = vmax.f32 %v1527, 0.0
    %v1592 = vmax.f32 %v1528, 0.0
    %v1593 = vmax.f32 %v1529, 0.0
    %v1594 = vmax.f32 %v1530, 0.0
    %v1595 = vmax.f32 %v1531, 0.0
    %v1596 = vmax.f32 %v1532, 0.0
    %v1597 = vmax.f32 %v1533, 0.0
    %v1598 = vmax.f32 %v1534, 0.0
    %v1599 = vmax.f32 %v1535, 0.0
    %v1600 = vmax.f32 %v1536, 0.0
    %v1601 = vmax.f32 %v1537, 0.0
    %v1602 = vmax.f32 %v1538, 0.0
    %v1603 = vmax.f32 %v1539, 0.0
    %v1604 = vmax.f32 %v1540, 0.0
    %v1605 = vmax.f32 %v1541, 0.0
    %v1606 = vmax.f32 %v1542, 0.0
    %v1607 = vmax.f32 %v1543, 0.0
    %v1608 = vmax.f32 %v1544, 0.0
    %v1609 = vmax.f32 %v1545, 0.0
    %v1610 = vmax.f32 %v1546, 0.0
    %v1611 = vmax.f32 %v1547, 0.0
    %v1612 = vmax.f32 %v1548, 0.0
    %v1613 = vmax.f32 %v1549, 0.0
    %v1614 = vmax.f32 %v1550, 0.0
    %v1615 = vmax.f32 %v1551, 0.0
    %v1616 = vmax.f32 %v1552, 0.0
    %v1617 = vmax.f32 %v1553, 0.0
    %v1618 = vmax.f32 %v1554, 0.0
    %v1619 = vmax.f32 %v1555, 0.0
    %v1620 = vmax.f32 %v1556, 0.0
    %v1621 = vmax.f32 %v1557, 0.0
    %v1622 = vmax.f32 %v1558, 0.0
    %v1623 = vmax.f32 %v1559, 0.0
    %v1624 = vmax.f32 %v1560, 0.0
    %v1625 = vmax.f32 %v1561, 0.0
    %v1626 = vmax.f32 %v1562, 0.0
    %v1627 = vmax.f32 %v1563, 0.0
    %v1628 = vmax.f32 %v1564, 0.0
    %v1629 = vmax.f32 %v1565, 0.0
    %v1630 = vmax.f32 %v1566, 0.0
    %v1631 = vmax.f32 %v1567, 0.0
    %v1632 = vmax.f32 %v1568, 0.0
    %v1633 = vmax.f32 %v1569, 0.0
    %v1634 = vmax.f32 %v1570, 0.0
    %v1635 = vmax.f32 %v1571, 0.0
    %v1636 = vmax.f32 %v1572, 0.0
    %v1637 = vmax.f32 %v1573, 0.0
    %v1638 = vmax.f32 %v1574, 0.0
    %v1639 = vmax.f32 %v1575, 0.0
    %v1640 = vmax.f32 %v1576, 0.0
    %v1641 = vmax.f32 %v1577, 0.0
    %v1642 = vld [vmem:[#allocation2] sm:$0xff]
    %v1643 = vld [vmem:[#allocation2 + $0x8] sm:$0xff]
    %v1644 = vld [vmem:[#allocation2 + $0x10] sm:$0xff]
    %v1645 = vld [vmem:[#allocation2 + $0x18] sm:$0xff]
    %v1646 = vld [vmem:[#allocation2 + $0x20] sm:$0xff]
    %v1647 = vld [vmem:[#allocation2 + $0x28] sm:$0xff]
    %v1648 = vld [vmem:[#allocation2 + $0x30] sm:$0xff]
    %v1649 = vld [vmem:[#allocation2 + $0x38] sm:$0xff]
    %v1650 = vld [vmem:[#allocation2 + $0x40] sm:$0xff]
    %v1651 = vld [vmem:[#allocation2 + $0x48] sm:$0xff]
    %v1652 = vld [vmem:[#allocation2 + $0x50] sm:$0xff]
    %v1653 = vld [vmem:[#allocation2 + $0x58] sm:$0xff]
    %v1654 = vld [vmem:[#allocation2 + $0x60] sm:$0xff]
    %v1655 = vld [vmem:[#allocation2 + $0x68] sm:$0xff]
    %v1656 = vld [vmem:[#allocation2 + $0x70] sm:$0xff]
    %v1657 = vld [vmem:[#allocation2 + $0x78] sm:$0xff]
    %s1658 = scalar_lea.vmem [#allocation2], 128
    %v1659 = vld [vmem:[%s1658] sm:$0xff]
    %v1660 = vld [vmem:[%s1658 + $0x8] sm:$0xff]
    %v1661 = vld [vmem:[%s1658 + $0x10] sm:$0xff]
    %v1662 = vld [vmem:[%s1658 + $0x18] sm:$0xff]
    %v1663 = vld [vmem:[%s1658 + $0x20] sm:$0xff]
    %v1664 = vld [vmem:[%s1658 + $0x28] sm:$0xff]
    %v1665 = vld [vmem:[%s1658 + $0x30] sm:$0xff]
    %v1666 = vld [vmem:[%s1658 + $0x38] sm:$0xff]
    %v1667 = vld [vmem:[%s1658 + $0x40] sm:$0xff]
    %v1668 = vld [vmem:[%s1658 + $0x48] sm:$0xff]
    %v1669 = vld [vmem:[%s1658 + $0x50] sm:$0xff]
    %v1670 = vld [vmem:[%s1658 + $0x58] sm:$0xff]
    %v1671 = vld [vmem:[%s1658 + $0x60] sm:$0xff]
    %v1672 = vld [vmem:[%s1658 + $0x68] sm:$0xff]
    %v1673 = vld [vmem:[%s1658 + $0x70] sm:$0xff]
    %v1674 = vld [vmem:[%s1658 + $0x78] sm:$0xff]
    %s1675 = scalar_lea.vmem [#allocation2], 256
    %v1676 = vld [vmem:[%s1675] sm:$0xff]
    %v1677 = vld [vmem:[%s1675 + $0x8] sm:$0xff]
    %v1678 = vld [vmem:[%s1675 + $0x10] sm:$0xff]
    %v1679 = vld [vmem:[%s1675 + $0x18] sm:$0xff]
    %v1680 = vld [vmem:[%s1675 + $0x20] sm:$0xff]
    %v1681 = vld [vmem:[%s1675 + $0x28] sm:$0xff]
    %v1682 = vld [vmem:[%s1675 + $0x30] sm:$0xff]
    %v1683 = vld [vmem:[%s1675 + $0x38] sm:$0xff]
    %v1684 = vld [vmem:[%s1675 + $0x40] sm:$0xff]
    %v1685 = vld [vmem:[%s1675 + $0x48] sm:$0xff]
    %v1686 = vld [vmem:[%s1675 + $0x50] sm:$0xff]
    %v1687 = vld [vmem:[%s1675 + $0x58] sm:$0xff]
    %v1688 = vld [vmem:[%s1675 + $0x60] sm:$0xff]
    %v1689 = vld [vmem:[%s1675 + $0x68] sm:$0xff]
    %v1690 = vld [vmem:[%s1675 + $0x70] sm:$0xff]
    %v1691 = vld [vmem:[%s1675 + $0x78] sm:$0xff]
    %v1692 = vld [vmem:[%s4] sm:$0xff]
    %v1693 = vld [vmem:[%s4 + $0x8] sm:$0xff]
    %v1694 = vld [vmem:[%s4 + $0x10] sm:$0xff]
    %v1695 = vld [vmem:[%s4 + $0x18] sm:$0xff]
    %v1696 = vld [vmem:[%s4 + $0x20] sm:$0xff]
    %v1697 = vld [vmem:[%s4 + $0x28] sm:$0xff]
    %v1698 = vld [vmem:[%s4 + $0x30] sm:$0xff]
    %v1699 = vld [vmem:[%s4 + $0x38] sm:$0xff]
    %v1700 = vld [vmem:[%s4 + $0x40] sm:$0xff]
    %v1701 = vld [vmem:[%s4 + $0x48] sm:$0xff]
    %v1702 = vld [vmem:[%s4 + $0x50] sm:$0xff]
    %v1703 = vld [vmem:[%s4 + $0x58] sm:$0xff]
    %v1704 = vld [vmem:[%s4 + $0x60] sm:$0xff]
    %v1705 = vld [vmem:[%s4 + $0x68] sm:$0xff]
    %v1706 = vld [vmem:[%s4 + $0x70] sm:$0xff]
    %v1707 = vld [vmem:[%s4 + $0x78] sm:$0xff]
    %1708 = vrot.lane.b32.xlu0 %v1578, 1
    %v1709 = vpop.permute.xlu0 %1708
    %1710 = vrot.lane.b32.xlu0 %v1582, 1
    %v1711 = vpop.permute.xlu0 %1710
    %1712 = vrot.lane.b32.xlu0 %v1586, 1
    %v1713 = vpop.permute.xlu0 %1712
    %1714 = vrot.lane.b32.xlu0 %v1590, 1
    %v1715 = vpop.permute.xlu0 %1714
    %1716 = vrot.lane.b32.xlu0 %v1594, 1
    %v1717 = vpop.permute.xlu0 %1716
    %1718 = vrot.lane.b32.xlu0 %v1598, 1
    %v1719 = vpop.permute.xlu0 %1718
    %1720 = vrot.lane.b32.xlu0 %v1602, 1
    %v1721 = vpop.permute.xlu0 %1720
    %1722 = vrot.lane.b32.xlu0 %v1606, 1
    %v1723 = vpop.permute.xlu0 %1722
    %1724 = vrot.lane.b32.xlu0 %v1610, 1
    %v1725 = vpop.permute.xlu0 %1724
    %1726 = vrot.lane.b32.xlu0 %v1614, 1
    %v1727 = vpop.permute.xlu0 %1726
    %1728 = vrot.lane.b32.xlu0 %v1618, 1
    %v1729 = vpop.permute.xlu0 %1728
    %1730 = vrot.lane.b32.xlu0 %v1622, 1
    %v1731 = vpop.permute.xlu0 %1730
    %1732 = vrot.lane.b32.xlu0 %v1626, 1
    %v1733 = vpop.permute.xlu0 %1732
    %1734 = vrot.lane.b32.xlu0 %v1630, 1
    %v1735 = vpop.permute.xlu0 %1734
    %1736 = vrot.lane.b32.xlu0 %v1634, 1
    %v1737 = vpop.permute.xlu0 %1736
    %1738 = vrot.lane.b32.xlu0 %v1638, 1
    %v1739 = vpop.permute.xlu0 %1738
    %1740 = vrot.lane.b32.xlu0 %v1579, 1
    %v1741 = vpop.permute.xlu0 %1740
    %1742 = vrot.lane.b32.xlu0 %v1583, 1
    %v1743 = vpop.permute.xlu0 %1742
    %1744 = vrot.lane.b32.xlu0 %v1587, 1
    %v1745 = vpop.permute.xlu0 %1744
    %1746 = vrot.lane.b32.xlu0 %v1591, 1
    %v1747 = vpop.permute.xlu0 %1746
    %1748 = vrot.lane.b32.xlu0 %v1595, 1
    %v1749 = vpop.permute.xlu0 %1748
    %1750 = vrot.lane.b32.xlu0 %v1599, 1
    %v1751 = vpop.permute.xlu0 %1750
    %1752 = vrot.lane.b32.xlu0 %v1603, 1
    %v1753 = vpop.permute.xlu0 %1752
    %1754 = vrot.lane.b32.xlu0 %v1607, 1
    %v1755 = vpop.permute.xlu0 %1754
    %1756 = vrot.lane.b32.xlu0 %v1611, 1
    %v1757 = vpop.permute.xlu0 %1756
    %1758 = vrot.lane.b32.xlu0 %v1615, 1
    %v1759 = vpop.permute.xlu0 %1758
    %1760 = vrot.lane.b32.xlu0 %v1619, 1
    %v1761 = vpop.permute.xlu0 %1760
    %1762 = vrot.lane.b32.xlu0 %v1623, 1
    %v1763 = vpop.permute.xlu0 %1762
    %1764 = vrot.lane.b32.xlu0 %v1627, 1
    %v1765 = vpop.permute.xlu0 %1764
    %1766 = vrot.lane.b32.xlu0 %v1631, 1
    %v1767 = vpop.permute.xlu0 %1766
    %1768 = vrot.lane.b32.xlu0 %v1635, 1
    %v1769 = vpop.permute.xlu0 %1768
    %1770 = vrot.lane.b32.xlu0 %v1639, 1
    %v1771 = vpop.permute.xlu0 %1770
    %1772 = vrot.lane.b32.xlu0 %v1580, 1
    %v1773 = vpop.permute.xlu0 %1772
    %1774 = vrot.lane.b32.xlu0 %v1584, 1
    %v1775 = vpop.permute.xlu0 %1774
    %1776 = vrot.lane.b32.xlu0 %v1588, 1
    %v1777 = vpop.permute.xlu0 %1776
    %1778 = vrot.lane.b32.xlu0 %v1592, 1
    %v1779 = vpop.permute.xlu0 %1778
    %1780 = vrot.lane.b32.xlu0 %v1596, 1
    %v1781 = vpop.permute.xlu0 %1780
    %1782 = vrot.lane.b32.xlu0 %v1600, 1
    %v1783 = vpop.permute.xlu0 %1782
    %1784 = vrot.lane.b32.xlu0 %v1604, 1
    %v1785 = vpop.permute.xlu0 %1784
    %1786 = vrot.lane.b32.xlu0 %v1608, 1
    %v1787 = vpop.permute.xlu0 %1786
    %1788 = vrot.lane.b32.xlu0 %v1612, 1
    %v1789 = vpop.permute.xlu0 %1788
    %1790 = vrot.lane.b32.xlu0 %v1616, 1
    %v1791 = vpop.permute.xlu0 %1790
    %1792 = vrot.lane.b32.xlu0 %v1620, 1
    %v1793 = vpop.permute.xlu0 %1792
    %1794 = vrot.lane.b32.xlu0 %v1624, 1
    %v1795 = vpop.permute.xlu0 %1794
    %1796 = vrot.lane.b32.xlu0 %v1628, 1
    %v1797 = vpop.permute.xlu0 %1796
    %1798 = vrot.lane.b32.xlu0 %v1632, 1
    %v1799 = vpop.permute.xlu0 %1798
    %1800 = vrot.lane.b32.xlu0 %v1636, 1
    %v1801 = vpop.permute.xlu0 %1800
    %1802 = vrot.lane.b32.xlu0 %v1640, 1
    %v1803 = vpop.permute.xlu0 %1802
    %1804 = vrot.lane.b32.xlu0 %v1581, 1
    %v1805 = vpop.permute.xlu0 %1804
    %1806 = vrot.lane.b32.xlu0 %v1585, 1
    %v1807 = vpop.permute.xlu0 %1806
    %1808 = vrot.lane.b32.xlu0 %v1589, 1
    %v1809 = vpop.permute.xlu0 %1808
    %1810 = vrot.lane.b32.xlu0 %v1593, 1
    %v1811 = vpop.permute.xlu0 %1810
    %1812 = vrot.lane.b32.xlu0 %v1597, 1
    %v1813 = vpop.permute.xlu0 %1812
    %1814 = vrot.lane.b32.xlu0 %v1601, 1
    %v1815 = vpop.permute.xlu0 %1814
    %1816 = vrot.lane.b32.xlu0 %v1605, 1
    %v1817 = vpop.permute.xlu0 %1816
    %1818 = vrot.lane.b32.xlu0 %v1609, 1
    %v1819 = vpop.permute.xlu0 %1818
    %1820 = vrot.lane.b32.xlu0 %v1613, 1
    %v1821 = vpop.permute.xlu0 %1820
    %1822 = vrot.lane.b32.xlu0 %v1617, 1
    %v1823 = vpop.permute.xlu0 %1822
    %1824 = vrot.lane.b32.xlu0 %v1621, 1
    %v1825 = vpop.permute.xlu0 %1824
    %1826 = vrot.lane.b32.xlu0 %v1625, 1
    %v1827 = vpop.permute.xlu0 %1826
    %1828 = vrot.lane.b32.xlu0 %v1629, 1
    %v1829 = vpop.permute.xlu0 %1828
    %1830 = vrot.lane.b32.xlu0 %v1633, 1
    %v1831 = vpop.permute.xlu0 %1830
    %1832 = vrot.lane.b32.xlu0 %v1637, 1
    %v1833 = vpop.permute.xlu0 %1832
    %1834 = vrot.lane.b32.xlu0 %v1641, 1
    %v1835 = vpop.permute.xlu0 %1834
    %v1836 = vsel %vm200, %v1773, %v1805
    %v1837 = vsel %vm200, %v1775, %v1807
    %v1838 = vsel %vm200, %v1777, %v1809
    %v1839 = vsel %vm200, %v1779, %v1811
    %v1840 = vsel %vm200, %v1781, %v1813
    %v1841 = vsel %vm200, %v1783, %v1815
    %v1842 = vsel %vm200, %v1785, %v1817
    %v1843 = vsel %vm200, %v1787, %v1819
    %v1844 = vsel %vm200, %v1789, %v1821
    %v1845 = vsel %vm200, %v1791, %v1823
    %v1846 = vsel %vm200, %v1793, %v1825
    %v1847 = vsel %vm200, %v1795, %v1827
    %v1848 = vsel %vm200, %v1797, %v1829
    %v1849 = vsel %vm200, %v1799, %v1831
    %v1850 = vsel %vm200, %v1801, %v1833
    %v1851 = vsel %vm200, %v1803, %v1835
    %v1852 = vsel %vm200, %v1741, %v1773
    %v1853 = vsel %vm200, %v1743, %v1775
    %v1854 = vsel %vm200, %v1745, %v1777
    %v1855 = vsel %vm200, %v1747, %v1779
    %v1856 = vsel %vm200, %v1749, %v1781
    %v1857 = vsel %vm200, %v1751, %v1783
    %v1858 = vsel %vm200, %v1753, %v1785
    %v1859 = vsel %vm200, %v1755, %v1787
    %v1860 = vsel %vm200, %v1757, %v1789
    %v1861 = vsel %vm200, %v1759, %v1791
    %v1862 = vsel %vm200, %v1761, %v1793
    %v1863 = vsel %vm200, %v1763, %v1795
    %v1864 = vsel %vm200, %v1765, %v1797
    %v1865 = vsel %vm200, %v1767, %v1799
    %v1866 = vsel %vm200, %v1769, %v1801
    %v1867 = vsel %vm200, %v1771, %v1803
    %v1868 = vsel %vm200, %v1709, %v1741
    %v1869 = vsel %vm200, %v1711, %v1743
    %v1870 = vsel %vm200, %v1713, %v1745
    %v1871 = vsel %vm200, %v1715, %v1747
    %v1872 = vsel %vm200, %v1717, %v1749
    %v1873 = vsel %vm200, %v1719, %v1751
    %v1874 = vsel %vm200, %v1721, %v1753
    %v1875 = vsel %vm200, %v1723, %v1755
    %v1876 = vsel %vm200, %v1725, %v1757
    %v1877 = vsel %vm200, %v1727, %v1759
    %v1878 = vsel %vm200, %v1729, %v1761
    %v1879 = vsel %vm200, %v1731, %v1763
    %v1880 = vsel %vm200, %v1733, %v1765
    %v1881 = vsel %vm200, %v1735, %v1767
    %v1882 = vsel %vm200, %v1737, %v1769
    %v1883 = vsel %vm200, %v1739, %v1771
    %v1884 = vsel %vm200, %v1805, %v1709
    %v1885 = vsel %vm200, %v1807, %v1711
    %v1886 = vsel %vm200, %v1809, %v1713
    %v1887 = vsel %vm200, %v1811, %v1715
    %v1888 = vsel %vm200, %v1813, %v1717
    %v1889 = vsel %vm200, %v1815, %v1719
    %v1890 = vsel %vm200, %v1817, %v1721
    %v1891 = vsel %vm200, %v1819, %v1723
    %v1892 = vsel %vm200, %v1821, %v1725
    %v1893 = vsel %vm200, %v1823, %v1727
    %v1894 = vsel %vm200, %v1825, %v1729
    %v1895 = vsel %vm200, %v1827, %v1731
    %v1896 = vsel %vm200, %v1829, %v1733
    %v1897 = vsel %vm200, %v1831, %v1735
    %v1898 = vsel %vm200, %v1833, %v1737
    %v1899 = vsel %vm200, %v1835, %v1739
    %v1900 = vmul.f32 %v1884, %v104
    %v1901 = vmul.f32 %v1868, %v105
    %v1902 = vmul.f32 %v1852, %v106
    %v1903 = vmul.f32 %v1836, %v107
    %v1904 = vmul.f32 %v1885, %v104
    %v1905 = vmul.f32 %v1869, %v105
    %v1906 = vmul.f32 %v1853, %v106
    %v1907 = vmul.f32 %v1837, %v107
    %v1908 = vmul.f32 %v1886, %v104
    %v1909 = vmul.f32 %v1870, %v105
    %v1910 = vmul.f32 %v1854, %v106
    %v1911 = vmul.f32 %v1838, %v107
    %v1912 = vmul.f32 %v1887, %v104
    %v1913 = vmul.f32 %v1871, %v105
    %v1914 = vmul.f32 %v1855, %v106
    %v1915 = vmul.f32 %v1839, %v107
    %v1916 = vmul.f32 %v1888, %v104
    %v1917 = vmul.f32 %v1872, %v105
    %v1918 = vmul.f32 %v1856, %v106
    %v1919 = vmul.f32 %v1840, %v107
    %v1920 = vmul.f32 %v1889, %v104
    %v1921 = vmul.f32 %v1873, %v105
    %v1922 = vmul.f32 %v1857, %v106
    %v1923 = vmul.f32 %v1841, %v107
    %v1924 = vmul.f32 %v1890, %v104
    %v1925 = vmul.f32 %v1874, %v105
    %v1926 = vmul.f32 %v1858, %v106
    %v1927 = vmul.f32 %v1842, %v107
    %v1928 = vmul.f32 %v1891, %v104
    %v1929 = vmul.f32 %v1875, %v105
    %v1930 = vmul.f32 %v1859, %v106
    %v1931 = vmul.f32 %v1843, %v107
    %v1932 = vmul.f32 %v1892, %v104
    %v1933 = vmul.f32 %v1876, %v105
    %v1934 = vmul.f32 %v1860, %v106
    %v1935 = vmul.f32 %v1844, %v107
    %v1936 = vmul.f32 %v1893, %v104
    %v1937 = vmul.f32 %v1877, %v105
    %v1938 = vmul.f32 %v1861, %v106
    %v1939 = vmul.f32 %v1845, %v107
    %v1940 = vmul.f32 %v1894, %v104
    %v1941 = vmul.f32 %v1878, %v105
    %v1942 = vmul.f32 %v1862, %v106
    %v1943 = vmul.f32 %v1846, %v107
    %v1944 = vmul.f32 %v1895, %v104
    %v1945 = vmul.f32 %v1879, %v105
    %v1946 = vmul.f32 %v1863, %v106
    %v1947 = vmul.f32 %v1847, %v107
    %v1948 = vmul.f32 %v1896, %v104
    %v1949 = vmul.f32 %v1880, %v105
    %v1950 = vmul.f32 %v1864, %v106
    %v1951 = vmul.f32 %v1848, %v107
    %v1952 = vmul.f32 %v1897, %v104
    %v1953 = vmul.f32 %v1881, %v105
    %v1954 = vmul.f32 %v1865, %v106
    %v1955 = vmul.f32 %v1849, %v107
    %v1956 = vmul.f32 %v1898, %v104
    %v1957 = vmul.f32 %v1882, %v105
    %v1958 = vmul.f32 %v1866, %v106
    %v1959 = vmul.f32 %v1850, %v107
    %v1960 = vmul.f32 %v1899, %v104
    %v1961 = vmul.f32 %v1883, %v105
    %v1962 = vmul.f32 %v1867, %v106
    %v1963 = vmul.f32 %v1851, %v107
    %1964 = vrot.lane.b32.xlu0 %v1578, 127
    %v1965 = vpop.permute.xlu0 %1964
    %1966 = vrot.lane.b32.xlu0 %v1582, 127
    %v1967 = vpop.permute.xlu0 %1966
    %1968 = vrot.lane.b32.xlu0 %v1586, 127
    %v1969 = vpop.permute.xlu0 %1968
    %1970 = vrot.lane.b32.xlu0 %v1590, 127
    %v1971 = vpop.permute.xlu0 %1970
    %1972 = vrot.lane.b32.xlu0 %v1594, 127
    %v1973 = vpop.permute.xlu0 %1972
    %1974 = vrot.lane.b32.xlu0 %v1598, 127
    %v1975 = vpop.permute.xlu0 %1974
    %1976 = vrot.lane.b32.xlu0 %v1602, 127
    %v1977 = vpop.permute.xlu0 %1976
    %1978 = vrot.lane.b32.xlu0 %v1606, 127
    %v1979 = vpop.permute.xlu0 %1978
    %1980 = vrot.lane.b32.xlu0 %v1610, 127
    %v1981 = vpop.permute.xlu0 %1980
    %1982 = vrot.lane.b32.xlu0 %v1614, 127
    %v1983 = vpop.permute.xlu0 %1982
    %1984 = vrot.lane.b32.xlu0 %v1618, 127
    %v1985 = vpop.permute.xlu0 %1984
    %1986 = vrot.lane.b32.xlu0 %v1622, 127
    %v1987 = vpop.permute.xlu0 %1986
    %1988 = vrot.lane.b32.xlu0 %v1626, 127
    %v1989 = vpop.permute.xlu0 %1988
    %1990 = vrot.lane.b32.xlu0 %v1630, 127
    %v1991 = vpop.permute.xlu0 %1990
    %1992 = vrot.lane.b32.xlu0 %v1634, 127
    %v1993 = vpop.permute.xlu0 %1992
    %1994 = vrot.lane.b32.xlu0 %v1638, 127
    %v1995 = vpop.permute.xlu0 %1994
    %1996 = vrot.lane.b32.xlu0 %v1579, 127
    %v1997 = vpop.permute.xlu0 %1996
    %1998 = vrot.lane.b32.xlu0 %v1583, 127
    %v1999 = vpop.permute.xlu0 %1998
    %2000 = vrot.lane.b32.xlu0 %v1587, 127
    %v2001 = vpop.permute.xlu0 %2000
    %2002 = vrot.lane.b32.xlu0 %v1591, 127
    %v2003 = vpop.permute.xlu0 %2002
    %2004 = vrot.lane.b32.xlu0 %v1595, 127
    %v2005 = vpop.permute.xlu0 %2004
    %2006 = vrot.lane.b32.xlu0 %v1599, 127
    %v2007 = vpop.permute.xlu0 %2006
    %2008 = vrot.lane.b32.xlu0 %v1603, 127
    %v2009 = vpop.permute.xlu0 %2008
    %2010 = vrot.lane.b32.xlu0 %v1607, 127
    %v2011 = vpop.permute.xlu0 %2010
    %2012 = vrot.lane.b32.xlu0 %v1611, 127
    %v2013 = vpop.permute.xlu0 %2012
    %2014 = vrot.lane.b32.xlu0 %v1615, 127
    %v2015 = vpop.permute.xlu0 %2014
    %2016 = vrot.lane.b32.xlu0 %v1619, 127
    %v2017 = vpop.permute.xlu0 %2016
    %2018 = vrot.lane.b32.xlu0 %v1623, 127
    %v2019 = vpop.permute.xlu0 %2018
    %2020 = vrot.lane.b32.xlu0 %v1627, 127
    %v2021 = vpop.permute.xlu0 %2020
    %2022 = vrot.lane.b32.xlu0 %v1631, 127
    %v2023 = vpop.permute.xlu0 %2022
    %2024 = vrot.lane.b32.xlu0 %v1635, 127
    %v2025 = vpop.permute.xlu0 %2024
    %2026 = vrot.lane.b32.xlu0 %v1639, 127
    %v2027 = vpop.permute.xlu0 %2026
    %2028 = vrot.lane.b32.xlu0 %v1580, 127
    %v2029 = vpop.permute.xlu0 %2028
    %2030 = vrot.lane.b32.xlu0 %v1584, 127
    %v2031 = vpop.permute.xlu0 %2030
    %2032 = vrot.lane.b32.xlu0 %v1588, 127
    %v2033 = vpop.permute.xlu0 %2032
    %2034 = vrot.lane.b32.xlu0 %v1592, 127
    %v2035 = vpop.permute.xlu0 %2034
    %2036 = vrot.lane.b32.xlu0 %v1596, 127
    %v2037 = vpop.permute.xlu0 %2036
    %2038 = vrot.lane.b32.xlu0 %v1600, 127
    %v2039 = vpop.permute.xlu0 %2038
    %2040 = vrot.lane.b32.xlu0 %v1604, 127
    %v2041 = vpop.permute.xlu0 %2040
    %2042 = vrot.lane.b32.xlu0 %v1608, 127
    %v2043 = vpop.permute.xlu0 %2042
    %2044 = vrot.lane.b32.xlu0 %v1612, 127
    %v2045 = vpop.permute.xlu0 %2044
    %2046 = vrot.lane.b32.xlu0 %v1616, 127
    %v2047 = vpop.permute.xlu0 %2046
    %2048 = vrot.lane.b32.xlu0 %v1620, 127
    %v2049 = vpop.permute.xlu0 %2048
    %2050 = vrot.lane.b32.xlu0 %v1624, 127
    %v2051 = vpop.permute.xlu0 %2050
    %2052 = vrot.lane.b32.xlu0 %v1628, 127
    %v2053 = vpop.permute.xlu0 %2052
    %2054 = vrot.lane.b32.xlu0 %v1632, 127
    %v2055 = vpop.permute.xlu0 %2054
    %2056 = vrot.lane.b32.xlu0 %v1636, 127
    %v2057 = vpop.permute.xlu0 %2056
    %2058 = vrot.lane.b32.xlu0 %v1640, 127
    %v2059 = vpop.permute.xlu0 %2058
    %2060 = vrot.lane.b32.xlu0 %v1581, 127
    %v2061 = vpop.permute.xlu0 %2060
    %2062 = vrot.lane.b32.xlu0 %v1585, 127
    %v2063 = vpop.permute.xlu0 %2062
    %2064 = vrot.lane.b32.xlu0 %v1589, 127
    %v2065 = vpop.permute.xlu0 %2064
    %2066 = vrot.lane.b32.xlu0 %v1593, 127
    %v2067 = vpop.permute.xlu0 %2066
    %2068 = vrot.lane.b32.xlu0 %v1597, 127
    %v2069 = vpop.permute.xlu0 %2068
    %2070 = vrot.lane.b32.xlu0 %v1601, 127
    %v2071 = vpop.permute.xlu0 %2070
    %2072 = vrot.lane.b32.xlu0 %v1605, 127
    %v2073 = vpop.permute.xlu0 %2072
    %2074 = vrot.lane.b32.xlu0 %v1609, 127
    %v2075 = vpop.permute.xlu0 %2074
    %2076 = vrot.lane.b32.xlu0 %v1613, 127
    %v2077 = vpop.permute.xlu0 %2076
    %2078 = vrot.lane.b32.xlu0 %v1617, 127
    %v2079 = vpop.permute.xlu0 %2078
    %2080 = vrot.lane.b32.xlu0 %v1621, 127
    %v2081 = vpop.permute.xlu0 %2080
    %2082 = vrot.lane.b32.xlu0 %v1625, 127
    %v2083 = vpop.permute.xlu0 %2082
    %2084 = vrot.lane.b32.xlu0 %v1629, 127
    %v2085 = vpop.permute.xlu0 %2084
    %2086 = vrot.lane.b32.xlu0 %v1633, 127
    %v2087 = vpop.permute.xlu0 %2086
    %2088 = vrot.lane.b32.xlu0 %v1637, 127
    %v2089 = vpop.permute.xlu0 %2088
    %2090 = vrot.lane.b32.xlu0 %v1641, 127
    %v2091 = vpop.permute.xlu0 %2090
    %v2092 = vsel %vm217, %v2029, %v2061
    %v2093 = vsel %vm217, %v2031, %v2063
    %v2094 = vsel %vm217, %v2033, %v2065
    %v2095 = vsel %vm217, %v2035, %v2067
    %v2096 = vsel %vm217, %v2037, %v2069
    %v2097 = vsel %vm217, %v2039, %v2071
    %v2098 = vsel %vm217, %v2041, %v2073
    %v2099 = vsel %vm217, %v2043, %v2075
    %v2100 = vsel %vm217, %v2045, %v2077
    %v2101 = vsel %vm217, %v2047, %v2079
    %v2102 = vsel %vm217, %v2049, %v2081
    %v2103 = vsel %vm217, %v2051, %v2083
    %v2104 = vsel %vm217, %v2053, %v2085
    %v2105 = vsel %vm217, %v2055, %v2087
    %v2106 = vsel %vm217, %v2057, %v2089
    %v2107 = vsel %vm217, %v2059, %v2091
    %v2108 = vsel %vm217, %v1997, %v2029
    %v2109 = vsel %vm217, %v1999, %v2031
    %v2110 = vsel %vm217, %v2001, %v2033
    %v2111 = vsel %vm217, %v2003, %v2035
    %v2112 = vsel %vm217, %v2005, %v2037
    %v2113 = vsel %vm217, %v2007, %v2039
    %v2114 = vsel %vm217, %v2009, %v2041
    %v2115 = vsel %vm217, %v2011, %v2043
    %v2116 = vsel %vm217, %v2013, %v2045
    %v2117 = vsel %vm217, %v2015, %v2047
    %v2118 = vsel %vm217, %v2017, %v2049
    %v2119 = vsel %vm217, %v2019, %v2051
    %v2120 = vsel %vm217, %v2021, %v2053
    %v2121 = vsel %vm217, %v2023, %v2055
    %v2122 = vsel %vm217, %v2025, %v2057
    %v2123 = vsel %vm217, %v2027, %v2059
    %v2124 = vsel %vm217, %v1965, %v1997
    %v2125 = vsel %vm217, %v1967, %v1999
    %v2126 = vsel %vm217, %v1969, %v2001
    %v2127 = vsel %vm217, %v1971, %v2003
    %v2128 = vsel %vm217, %v1973, %v2005
    %v2129 = vsel %vm217, %v1975, %v2007
    %v2130 = vsel %vm217, %v1977, %v2009
    %v2131 = vsel %vm217, %v1979, %v2011
    %v2132 = vsel %vm217, %v1981, %v2013
    %v2133 = vsel %vm217, %v1983, %v2015
    %v2134 = vsel %vm217, %v1985, %v2017
    %v2135 = vsel %vm217, %v1987, %v2019
    %v2136 = vsel %vm217, %v1989, %v2021
    %v2137 = vsel %vm217, %v1991, %v2023
    %v2138 = vsel %vm217, %v1993, %v2025
    %v2139 = vsel %vm217, %v1995, %v2027
    %v2140 = vsel %vm217, %v2061, %v1965
    %v2141 = vsel %vm217, %v2063, %v1967
    %v2142 = vsel %vm217, %v2065, %v1969
    %v2143 = vsel %vm217, %v2067, %v1971
    %v2144 = vsel %vm217, %v2069, %v1973
    %v2145 = vsel %vm217, %v2071, %v1975
    %v2146 = vsel %vm217, %v2073, %v1977
    %v2147 = vsel %vm217, %v2075, %v1979
    %v2148 = vsel %vm217, %v2077, %v1981
    %v2149 = vsel %vm217, %v2079, %v1983
    %v2150 = vsel %vm217, %v2081, %v1985
    %v2151 = vsel %vm217, %v2083, %v1987
    %v2152 = vsel %vm217, %v2085, %v1989
    %v2153 = vsel %vm217, %v2087, %v1991
    %v2154 = vsel %vm217, %v2089, %v1993
    %v2155 = vsel %vm217, %v2091, %v1995
    %v2156 = vmul.f32 %v2124, %v116
    %v2157 = vmul.f32 %v2108, %v117
    %v2158 = vmul.f32 %v2092, %v118
    %v2159 = vmul.f32 %v2140, %v119
    %v2160 = vmul.f32 %v2125, %v116
    %v2161 = vmul.f32 %v2109, %v117
    %v2162 = vmul.f32 %v2093, %v118
    %v2163 = vmul.f32 %v2141, %v119
    %v2164 = vmul.f32 %v2126, %v116
    %v2165 = vmul.f32 %v2110, %v117
    %v2166 = vmul.f32 %v2094, %v118
    %v2167 = vmul.f32 %v2142, %v119
    %v2168 = vmul.f32 %v2127, %v116
    %v2169 = vmul.f32 %v2111, %v117
    %v2170 = vmul.f32 %v2095, %v118
    %v2171 = vmul.f32 %v2143, %v119
    %v2172 = vmul.f32 %v2128, %v116
    %v2173 = vmul.f32 %v2112, %v117
    %v2174 = vmul.f32 %v2096, %v118
    %v2175 = vmul.f32 %v2144, %v119
    %v2176 = vmul.f32 %v2129, %v116
    %v2177 = vmul.f32 %v2113, %v117
    %v2178 = vmul.f32 %v2097, %v118
    %v2179 = vmul.f32 %v2145, %v119
    %v2180 = vmul.f32 %v2130, %v116
    %v2181 = vmul.f32 %v2114, %v117
    %v2182 = vmul.f32 %v2098, %v118
    %v2183 = vmul.f32 %v2146, %v119
    %v2184 = vmul.f32 %v2131, %v116
    %v2185 = vmul.f32 %v2115, %v117
    %v2186 = vmul.f32 %v2099, %v118
    %v2187 = vmul.f32 %v2147, %v119
    %v2188 = vmul.f32 %v2132, %v116
    %v2189 = vmul.f32 %v2116, %v117
    %v2190 = vmul.f32 %v2100, %v118
    %v2191 = vmul.f32 %v2148, %v119
    %v2192 = vmul.f32 %v2133, %v116
    %v2193 = vmul.f32 %v2117, %v117
    %v2194 = vmul.f32 %v2101, %v118
    %v2195 = vmul.f32 %v2149, %v119
    %v2196 = vmul.f32 %v2134, %v116
    %v2197 = vmul.f32 %v2118, %v117
    %v2198 = vmul.f32 %v2102, %v118
    %v2199 = vmul.f32 %v2150, %v119
    %v2200 = vmul.f32 %v2135, %v116
    %v2201 = vmul.f32 %v2119, %v117
    %v2202 = vmul.f32 %v2103, %v118
    %v2203 = vmul.f32 %v2151, %v119
    %v2204 = vmul.f32 %v2136, %v116
    %v2205 = vmul.f32 %v2120, %v117
    %v2206 = vmul.f32 %v2104, %v118
    %v2207 = vmul.f32 %v2152, %v119
    %v2208 = vmul.f32 %v2137, %v116
    %v2209 = vmul.f32 %v2121, %v117
    %v2210 = vmul.f32 %v2105, %v118
    %v2211 = vmul.f32 %v2153, %v119
    %v2212 = vmul.f32 %v2138, %v116
    %v2213 = vmul.f32 %v2122, %v117
    %v2214 = vmul.f32 %v2106, %v118
    %v2215 = vmul.f32 %v2154, %v119
    %v2216 = vmul.f32 %v2139, %v116
    %v2217 = vmul.f32 %v2123, %v117
    %v2218 = vmul.f32 %v2107, %v118
    %v2219 = vmul.f32 %v2155, %v119
    %2220 = vmatprep.subr.mxu0 %v1579
    %2221 = vmatpush1.msra.mxu0 %v1578
    %2222 = vmatprep.subr.mxu0 %v1583
    %2223 = vmatpush1.msra.mxu0 %v1582
    %2224 = vmatprep.subr.mxu0 %v1587
    %2225 = vmatpush1.msra.mxu0 %v1586
    %2226 = vmatprep.subr.mxu0 %v1591
    %2227 = vmatpush1.msra.mxu0 %v1590
    %2228 = vmatprep.subr.mxu0 %v1595
    %2229 = vmatpush1.msra.mxu0 %v1594
    %2230 = vmatprep.subr.mxu0 %v1599
    %2231 = vmatpush1.msra.mxu0 %v1598
    %2232 = vmatprep.subr.mxu0 %v1603
    %2233 = vmatpush1.msra.mxu0 %v1602
    %2234 = vmatprep.subr.mxu0 %v1607
    %2235 = vmatpush1.msra.mxu0 %v1606
    %2236 = vmatprep.subr.mxu0 %v1611
    %2237 = vmatpush1.msra.mxu0 %v1610
    %2238 = vmatprep.subr.mxu0 %v1615
    %2239 = vmatpush1.msra.mxu0 %v1614
    %2240 = vmatprep.subr.mxu0 %v1619
    %2241 = vmatpush1.msra.mxu0 %v1618
    %2242 = vmatprep.subr.mxu0 %v1623
    %2243 = vmatpush1.msra.mxu0 %v1622
    %2244 = vmatprep.subr.mxu0 %v1627
    %2245 = vmatpush1.msra.mxu0 %v1626
    %2246 = vmatprep.subr.mxu0 %v1631
    %2247 = vmatpush1.msra.mxu0 %v1630
    %2248 = vmatprep.subr.mxu0 %v1635
    %2249 = vmatpush1.msra.mxu0 %v1634
    %2250 = vmatprep.subr.mxu0 %v1639
    %2251 = vmatpush1.msra.mxu0 %v1638
    %2252 = vmatprep.subr.mxu0 0.0
    %2253 = vmatpush1.msra.mxu0 0.0
    %2254 = vmatprep.subr.mxu0 0.0
    %2255 = vmatpush1.msra.mxu0 0.0
    %2256 = vmatprep.subr.mxu0 0.0
    %2257 = vmatpush1.msra.mxu0 0.0
    %2258 = vmatprep.subr.mxu0 0.0
    %2259 = vmatpush1.msra.mxu0 0.0
    %2260 = vmatprep.subr.mxu0 0.0
    %2261 = vmatpush1.msra.mxu0 0.0
    %2262 = vmatprep.subr.mxu0 0.0
    %2263 = vmatpush1.msra.mxu0 0.0
    %2264 = vmatprep.subr.mxu0 0.0
    %2265 = vmatpush1.msra.mxu0 0.0
    %2266 = vmatprep.subr.mxu0 0.0
    %2267 = vmatpush1.msra.mxu0 0.0
    %2268 = vmatprep.subr.mxu0 0.0
    %2269 = vmatpush1.msra.mxu0 0.0
    %2270 = vmatprep.subr.mxu0 0.0
    %2271 = vmatpush1.msra.mxu0 0.0
    %2272 = vmatprep.subr.mxu0 0.0
    %2273 = vmatpush1.msra.mxu0 0.0
    %2274 = vmatprep.subr.mxu0 0.0
    %2275 = vmatpush1.msra.mxu0 0.0
    %2276 = vmatprep.subr.mxu0 0.0
    %2277 = vmatpush1.msra.mxu0 0.0
    %2278 = vmatprep.subr.mxu0 0.0
    %2279 = vmatpush1.msra.mxu0 0.0
    %2280 = vmatprep.subr.mxu0 0.0
    %2281 = vmatpush1.msra.mxu0 0.0
    %2282 = vmatprep.subr.mxu0 0.0
    %2283 = vmatpush1.msra.mxu0 0.0
    %2284 = vmatprep.mubr.f32.mxu0 0.0
    %2285 = vmatmul.mubr.f32.gmra.mrb[0].mxu0 %v1659
    %v2286 = vpop.f32.mrb[0].mxu0
    %v2287 = vadd.f32 0.0, %v2286
    %v2288 = vpop.f32.mrb[0].mxu0
    %v2289 = vadd.f32 0.0, %v2288
    %2290 = vmatprep.mubr.f32.mxu0 0.0
    %2291 = vmatmul.mubr.f32.gmra.mrb[0].mxu0 %v1660
    %v2292 = vpop.f32.mrb[0].mxu0
    %v2293 = vadd.f32 0.0, %v2292
    %v2294 = vpop.f32.mrb[0].mxu0
    %v2295 = vadd.f32 0.0, %v2294
    %2296 = vmatprep.mubr.f32.mxu0 0.0
    %2297 = vmatmul.mubr.f32.gmra.mrb[0].mxu0 %v1661
    %v2298 = vpop.f32.mrb[0].mxu0
    %v2299 = vadd.f32 0.0, %v2298
    %v2300 = vpop.f32.mrb[0].mxu0
    %v2301 = vadd.f32 0.0, %v2300
    %2302 = vmatprep.mubr.f32.mxu0 0.0
    %2303 = vmatmul.mubr.f32.gmra.mrb[0].mxu0 %v1662
    %v2304 = vpop.f32.mrb[0].mxu0
    %v2305 = vadd.f32 0.0, %v2304
    %v2306 = vpop.f32.mrb[0].mxu0
    %v2307 = vadd.f32 0.0, %v2306
    %2308 = vmatprep.mubr.f32.mxu0 0.0
    %2309 = vmatmul.mubr.f32.gmra.mrb[0].mxu0 %v1663
    %v2310 = vpop.f32.mrb[0].mxu0
    %v2311 = vadd.f32 0.0, %v2310
    %v2312 = vpop.f32.mrb[0].mxu0
    %v2313 = vadd.f32 0.0, %v2312
    %2314 = vmatprep.mubr.f32.mxu0 0.0
    %2315 = vmatmul.mubr.f32.gmra.mrb[0].mxu0 %v1664
    %v2316 = vpop.f32.mrb[0].mxu0
    %v2317 = vadd.f32 0.0, %v2316
    %v2318 = vpop.f32.mrb[0].mxu0
    %v2319 = vadd.f32 0.0, %v2318
    %2320 = vmatprep.mubr.f32.mxu0 0.0
    %2321 = vmatmul.mubr.f32.gmra.mrb[0].mxu0 %v1665
    %v2322 = vpop.f32.mrb[0].mxu0
    %v2323 = vadd.f32 0.0, %v2322
    %v2324 = vpop.f32.mrb[0].mxu0
    %v2325 = vadd.f32 0.0, %v2324
    %2326 = vmatprep.mubr.f32.mxu0 0.0
    %2327 = vmatmul.mubr.f32.gmra.mrb[0].mxu0 %v1666
    %v2328 = vpop.f32.mrb[0].mxu0
    %v2329 = vadd.f32 0.0, %v2328
    %v2330 = vpop.f32.mrb[0].mxu0
    %v2331 = vadd.f32 0.0, %v2330
    %2332 = vmatprep.mubr.f32.mxu0 0.0
    %2333 = vmatmul.mubr.f32.gmra.mrb[0].mxu0 %v1667
    %v2334 = vpop.f32.mrb[0].mxu0
    %v2335 = vadd.f32 0.0, %v2334
    %v2336 = vpop.f32.mrb[0].mxu0
    %v2337 = vadd.f32 0.0, %v2336
    %2338 = vmatprep.mubr.f32.mxu0 0.0
    %2339 = vmatmul.mubr.f32.gmra.mrb[0].mxu0 %v1668
    %v2340 = vpop.f32.mrb[0].mxu0
    %v2341 = vadd.f32 0.0, %v2340
    %v2342 = vpop.f32.mrb[0].mxu0
    %v2343 = vadd.f32 0.0, %v2342
    %2344 = vmatprep.mubr.f32.mxu0 0.0
    %2345 = vmatmul.mubr.f32.gmra.mrb[0].mxu0 %v1669
    %v2346 = vpop.f32.mrb[0].mxu0
    %v2347 = vadd.f32 0.0, %v2346
    %v2348 = vpop.f32.mrb[0].mxu0
    %v2349 = vadd.f32 0.0, %v2348
    %2350 = vmatprep.mubr.f32.mxu0 0.0
    %2351 = vmatmul.mubr.f32.gmra.mrb[0].mxu0 %v1670
    %v2352 = vpop.f32.mrb[0].mxu0
    %v2353 = vadd.f32 0.0, %v2352
    %v2354 = vpop.f32.mrb[0].mxu0
    %v2355 = vadd.f32 0.0, %v2354
    %2356 = vmatprep.mubr.f32.mxu0 0.0
    %2357 = vmatmul.mubr.f32.gmra.mrb[0].mxu0 %v1671
    %v2358 = vpop.f32.mrb[0].mxu0
    %v2359 = vadd.f32 0.0, %v2358
    %v2360 = vpop.f32.mrb[0].mxu0
    %v2361 = vadd.f32 0.0, %v2360
    %2362 = vmatprep.mubr.f32.mxu0 0.0
    %2363 = vmatmul.mubr.f32.gmra.mrb[0].mxu0 %v1672
    %v2364 = vpop.f32.mrb[0].mxu0
    %v2365 = vadd.f32 0.0, %v2364
    %v2366 = vpop.f32.mrb[0].mxu0
    %v2367 = vadd.f32 0.0, %v2366
    %2368 = vmatprep.mubr.f32.mxu0 0.0
    %2369 = vmatmul.mubr.f32.gmra.mrb[0].mxu0 %v1673
    %v2370 = vpop.f32.mrb[0].mxu0
    %v2371 = vadd.f32 0.0, %v2370
    %v2372 = vpop.f32.mrb[0].mxu0
    %v2373 = vadd.f32 0.0, %v2372
    %2374 = vmatprep.mubr.f32.mxu0 0.0
    %2375 = vmatmul.mubr.f32.gmra.mrb[0].mxu0 %v1674
    %v2376 = vpop.f32.mrb[0].mxu0
    %v2377 = vadd.f32 0.0, %v2376
    %v2378 = vpop.f32.mrb[0].mxu0
    %v2379 = vadd.f32 0.0, %v2378
    %2380 = vdwg.mxu0
    %2381 = vmatprep.subr.mxu0 %v1581
    %2382 = vmatpush1.msra.mxu0 %v1580
    %2383 = vmatprep.subr.mxu0 %v1585
    %2384 = vmatpush1.msra.mxu0 %v1584
    %2385 = vmatprep.subr.mxu0 %v1589
    %2386 = vmatpush1.msra.mxu0 %v1588
    %2387 = vmatprep.subr.mxu0 %v1593
    %2388 = vmatpush1.msra.mxu0 %v1592
    %2389 = vmatprep.subr.mxu0 %v1597
    %2390 = vmatpush1.msra.mxu0 %v1596
    %2391 = vmatprep.subr.mxu0 %v1601
    %2392 = vmatpush1.msra.mxu0 %v1600
    %2393 = vmatprep.subr.mxu0 %v1605
    %2394 = vmatpush1.msra.mxu0 %v1604
    %2395 = vmatprep.subr.mxu0 %v1609
    %2396 = vmatpush1.msra.mxu0 %v1608
    %2397 = vmatprep.subr.mxu0 %v1613
    %2398 = vmatpush1.msra.mxu0 %v1612
    %2399 = vmatprep.subr.mxu0 %v1617
    %2400 = vmatpush1.msra.mxu0 %v1616
    %2401 = vmatprep.subr.mxu0 %v1621
    %2402 = vmatpush1.msra.mxu0 %v1620
    %2403 = vmatprep.subr.mxu0 %v1625
    %2404 = vmatpush1.msra.mxu0 %v1624
    %2405 = vmatprep.subr.mxu0 %v1629
    %2406 = vmatpush1.msra.mxu0 %v1628
    %2407 = vmatprep.subr.mxu0 %v1633
    %2408 = vmatpush1.msra.mxu0 %v1632
    %2409 = vmatprep.subr.mxu0 %v1637
    %2410 = vmatpush1.msra.mxu0 %v1636
    %2411 = vmatprep.subr.mxu0 %v1641
    %2412 = vmatpush1.msra.mxu0 %v1640
    %2413 = vmatprep.subr.mxu0 0.0
    %2414 = vmatpush1.msra.mxu0 0.0
    %2415 = vmatprep.subr.mxu0 0.0
    %2416 = vmatpush1.msra.mxu0 0.0
    %2417 = vmatprep.subr.mxu0 0.0
    %2418 = vmatpush1.msra.mxu0 0.0
    %2419 = vmatprep.subr.mxu0 0.0
    %2420 = vmatpush1.msra.mxu0 0.0
    %2421 = vmatprep.subr.mxu0 0.0
    %2422 = vmatpush1.msra.mxu0 0.0
    %2423 = vmatprep.subr.mxu0 0.0
    %2424 = vmatpush1.msra.mxu0 0.0
    %2425 = vmatprep.subr.mxu0 0.0
    %2426 = vmatpush1.msra.mxu0 0.0
    %2427 = vmatprep.subr.mxu0 0.0
    %2428 = vmatpush1.msra.mxu0 0.0
    %2429 = vmatprep.subr.mxu0 0.0
    %2430 = vmatpush1.msra.mxu0 0.0
    %2431 = vmatprep.subr.mxu0 0.0
    %2432 = vmatpush1.msra.mxu0 0.0
    %2433 = vmatprep.subr.mxu0 0.0
    %2434 = vmatpush1.msra.mxu0 0.0
    %2435 = vmatprep.subr.mxu0 0.0
    %2436 = vmatpush1.msra.mxu0 0.0
    %2437 = vmatprep.subr.mxu0 0.0
    %2438 = vmatpush1.msra.mxu0 0.0
    %2439 = vmatprep.subr.mxu0 0.0
    %2440 = vmatpush1.msra.mxu0 0.0
    %2441 = vmatprep.subr.mxu0 0.0
    %2442 = vmatpush1.msra.mxu0 0.0
    %2443 = vmatprep.subr.mxu0 0.0
    %2444 = vmatpush1.msra.mxu0 0.0
    %2445 = vmatprep.mubr.f32.mxu0 0.0
    %2446 = vmatmul.mubr.f32.gmra.mrb[0].mxu0 %v1659
    %v2447 = vpop.f32.mrb[0].mxu0
    %v2448 = vadd.f32 0.0, %v2447
    %v2449 = vpop.f32.mrb[0].mxu0
    %v2450 = vadd.f32 0.0, %v2449
    %2451 = vmatprep.mubr.f32.mxu0 0.0
    %2452 = vmatmul.mubr.f32.gmra.mrb[0].mxu0 %v1660
    %v2453 = vpop.f32.mrb[0].mxu0
    %v2454 = vadd.f32 0.0, %v2453
    %v2455 = vpop.f32.mrb[0].mxu0
    %v2456 = vadd.f32 0.0, %v2455
    %2457 = vmatprep.mubr.f32.mxu0 0.0
    %2458 = vmatmul.mubr.f32.gmra.mrb[0].mxu0 %v1661
    %v2459 = vpop.f32.mrb[0].mxu0
    %v2460 = vadd.f32 0.0, %v2459
    %v2461 = vpop.f32.mrb[0].mxu0
    %v2462 = vadd.f32 0.0, %v2461
    %2463 = vmatprep.mubr.f32.mxu0 0.0
    %2464 = vmatmul.mubr.f32.gmra.mrb[0].mxu0 %v1662
    %v2465 = vpop.f32.mrb[0].mxu0
    %v2466 = vadd.f32 0.0, %v2465
    %v2467 = vpop.f32.mrb[0].mxu0
    %v2468 = vadd.f32 0.0, %v2467
    %2469 = vmatprep.mubr.f32.mxu0 0.0
    %2470 = vmatmul.mubr.f32.gmra.mrb[0].mxu0 %v1663
    %v2471 = vpop.f32.mrb[0].mxu0
    %v2472 = vadd.f32 0.0, %v2471
    %v2473 = vpop.f32.mrb[0].mxu0
    %v2474 = vadd.f32 0.0, %v2473
    %2475 = vmatprep.mubr.f32.mxu0 0.0
    %2476 = vmatmul.mubr.f32.gmra.mrb[0].mxu0 %v1664
    %v2477 = vpop.f32.mrb[0].mxu0
    %v2478 = vadd.f32 0.0, %v2477
    %v2479 = vpop.f32.mrb[0].mxu0
    %v2480 = vadd.f32 0.0, %v2479
    %2481 = vmatprep.mubr.f32.mxu0 0.0
    %2482 = vmatmul.mubr.f32.gmra.mrb[0].mxu0 %v1665
    %v2483 = vpop.f32.mrb[0].mxu0
    %v2484 = vadd.f32 0.0, %v2483
    %v2485 = vpop.f32.mrb[0].mxu0
    %v2486 = vadd.f32 0.0, %v2485
    %2487 = vmatprep.mubr.f32.mxu0 0.0
    %2488 = vmatmul.mubr.f32.gmra.mrb[0].mxu0 %v1666
    %v2489 = vpop.f32.mrb[0].mxu0
    %v2490 = vadd.f32 0.0, %v2489
    %v2491 = vpop.f32.mrb[0].mxu0
    %v2492 = vadd.f32 0.0, %v2491
    %2493 = vmatprep.mubr.f32.mxu0 0.0
    %2494 = vmatmul.mubr.f32.gmra.mrb[0].mxu0 %v1667
    %v2495 = vpop.f32.mrb[0].mxu0
    %v2496 = vadd.f32 0.0, %v2495
    %v2497 = vpop.f32.mrb[0].mxu0
    %v2498 = vadd.f32 0.0, %v2497
    %2499 = vmatprep.mubr.f32.mxu0 0.0
    %2500 = vmatmul.mubr.f32.gmra.mrb[0].mxu0 %v1668
    %v2501 = vpop.f32.mrb[0].mxu0
    %v2502 = vadd.f32 0.0, %v2501
    %v2503 = vpop.f32.mrb[0].mxu0
    %v2504 = vadd.f32 0.0, %v2503
    %2505 = vmatprep.mubr.f32.mxu0 0.0
    %2506 = vmatmul.mubr.f32.gmra.mrb[0].mxu0 %v1669
    %v2507 = vpop.f32.mrb[0].mxu0
    %v2508 = vadd.f32 0.0, %v2507
    %v2509 = vpop.f32.mrb[0].mxu0
    %v2510 = vadd.f32 0.0, %v2509
    %2511 = vmatprep.mubr.f32.mxu0 0.0
    %2512 = vmatmul.mubr.f32.gmra.mrb[0].mxu0 %v1670
    %v2513 = vpop.f32.mrb[0].mxu0
    %v2514 = vadd.f32 0.0, %v2513
    %v2515 = vpop.f32.mrb[0].mxu0
    %v2516 = vadd.f32 0.0, %v2515
    %2517 = vmatprep.mubr.f32.mxu0 0.0
    %2518 = vmatmul.mubr.f32.gmra.mrb[0].mxu0 %v1671
    %v2519 = vpop.f32.mrb[0].mxu0
    %v2520 = vadd.f32 0.0, %v2519
    %v2521 = vpop.f32.mrb[0].mxu0
    %v2522 = vadd.f32 0.0, %v2521
    %2523 = vmatprep.mubr.f32.mxu0 0.0
    %2524 = vmatmul.mubr.f32.gmra.mrb[0].mxu0 %v1672
    %v2525 = vpop.f32.mrb[0].mxu0
    %v2526 = vadd.f32 0.0, %v2525
    %v2527 = vpop.f32.mrb[0].mxu0
    %v2528 = vadd.f32 0.0, %v2527
    %2529 = vmatprep.mubr.f32.mxu0 0.0
    %2530 = vmatmul.mubr.f32.gmra.mrb[0].mxu0 %v1673
    %v2531 = vpop.f32.mrb[0].mxu0
    %v2532 = vadd.f32 0.0, %v2531
    %v2533 = vpop.f32.mrb[0].mxu0
    %v2534 = vadd.f32 0.0, %v2533
    %2535 = vmatprep.mubr.f32.mxu0 0.0
    %2536 = vmatmul.mubr.f32.gmra.mrb[0].mxu0 %v1674
    %v2537 = vpop.f32.mrb[0].mxu0
    %v2538 = vadd.f32 0.0, %v2537
    %v2539 = vpop.f32.mrb[0].mxu0
    %v2540 = vadd.f32 0.0, %v2539
    %2541 = vdwg.mxu0
    %2542 = vmatprep.subr.mxu0 %v1901
    %2543 = vmatpush1.msra.mxu0 %v1900
    %2544 = vmatprep.subr.mxu0 %v1905
    %2545 = vmatpush1.msra.mxu0 %v1904
    %2546 = vmatprep.subr.mxu0 %v1909
    %2547 = vmatpush1.msra.mxu0 %v1908
    %2548 = vmatprep.subr.mxu0 %v1913
    %2549 = vmatpush1.msra.mxu0 %v1912
    %2550 = vmatprep.subr.mxu0 %v1917
    %2551 = vmatpush1.msra.mxu0 %v1916
    %2552 = vmatprep.subr.mxu0 %v1921
    %2553 = vmatpush1.msra.mxu0 %v1920
    %2554 = vmatprep.subr.mxu0 %v1925
    %2555 = vmatpush1.msra.mxu0 %v1924
    %2556 = vmatprep.subr.mxu0 %v1929
    %2557 = vmatpush1.msra.mxu0 %v1928
    %2558 = vmatprep.subr.mxu0 %v1933
    %2559 = vmatpush1.msra.mxu0 %v1932
    %2560 = vmatprep.subr.mxu0 %v1937
    %2561 = vmatpush1.msra.mxu0 %v1936
    %2562 = vmatprep.subr.mxu0 %v1941
    %2563 = vmatpush1.msra.mxu0 %v1940
    %2564 = vmatprep.subr.mxu0 %v1945
    %2565 = vmatpush1.msra.mxu0 %v1944
    %2566 = vmatprep.subr.mxu0 %v1949
    %2567 = vmatpush1.msra.mxu0 %v1948
    %2568 = vmatprep.subr.mxu0 %v1953
    %2569 = vmatpush1.msra.mxu0 %v1952
    %2570 = vmatprep.subr.mxu0 %v1957
    %2571 = vmatpush1.msra.mxu0 %v1956
    %2572 = vmatprep.subr.mxu0 %v1961
    %2573 = vmatpush1.msra.mxu0 %v1960
    %2574 = vmatprep.subr.mxu0 0.0
    %2575 = vmatpush1.msra.mxu0 0.0
    %2576 = vmatprep.subr.mxu0 0.0
    %2577 = vmatpush1.msra.mxu0 0.0
    %2578 = vmatprep.subr.mxu0 0.0
    %2579 = vmatpush1.msra.mxu0 0.0
    %2580 = vmatprep.subr.mxu0 0.0
    %2581 = vmatpush1.msra.mxu0 0.0
    %2582 = vmatprep.subr.mxu0 0.0
    %2583 = vmatpush1.msra.mxu0 0.0
    %2584 = vmatprep.subr.mxu0 0.0
    %2585 = vmatpush1.msra.mxu0 0.0
    %2586 = vmatprep.subr.mxu0 0.0
    %2587 = vmatpush1.msra.mxu0 0.0
    %2588 = vmatprep.subr.mxu0 0.0
    %2589 = vmatpush1.msra.mxu0 0.0
    %2590 = vmatprep.subr.mxu0 0.0
    %2591 = vmatpush1.msra.mxu0 0.0
    %2592 = vmatprep.subr.mxu0 0.0
    %2593 = vmatpush1.msra.mxu0 0.0
    %2594 = vmatprep.subr.mxu0 0.0
    %2595 = vmatpush1.msra.mxu0 0.0
    %2596 = vmatprep.subr.mxu0 0.0
    %2597 = vmatpush1.msra.mxu0 0.0
    %2598 = vmatprep.subr.mxu0 0.0
    %2599 = vmatpush1.msra.mxu0 0.0
    %2600 = vmatprep.subr.mxu0 0.0
    %2601 = vmatpush1.msra.mxu0 0.0
    %2602 = vmatprep.subr.mxu0 0.0
    %2603 = vmatpush1.msra.mxu0 0.0
    %2604 = vmatprep.subr.mxu0 0.0
    %2605 = vmatpush1.msra.mxu0 0.0
    %2606 = vmatprep.mubr.f32.mxu0 0.0
    %2607 = vmatmul.mubr.f32.gmra.mrb[0].mxu0 %v1642
    %v2608 = vpop.f32.mrb[0].mxu0
    %v2609 = vadd.f32 %v2287, %v2608
    %v2610 = vpop.f32.mrb[0].mxu0
    %v2611 = vadd.f32 %v2289, %v2610
    %2612 = vmatprep.mubr.f32.mxu0 0.0
    %2613 = vmatmul.mubr.f32.gmra.mrb[0].mxu0 %v1643
    %v2614 = vpop.f32.mrb[0].mxu0
    %v2615 = vadd.f32 %v2293, %v2614
    %v2616 = vpop.f32.mrb[0].mxu0
    %v2617 = vadd.f32 %v2295, %v2616
    %2618 = vmatprep.mubr.f32.mxu0 0.0
    %2619 = vmatmul.mubr.f32.gmra.mrb[0].mxu0 %v1644
    %v2620 = vpop.f32.mrb[0].mxu0
    %v2621 = vadd.f32 %v2299, %v2620
    %v2622 = vpop.f32.mrb[0].mxu0
    %v2623 = vadd.f32 %v2301, %v2622
    %2624 = vmatprep.mubr.f32.mxu0 0.0
    %2625 = vmatmul.mubr.f32.gmra.mrb[0].mxu0 %v1645
    %v2626 = vpop.f32.mrb[0].mxu0
    %v2627 = vadd.f32 %v2305, %v2626
    %v2628 = vpop.f32.mrb[0].mxu0
    %v2629 = vadd.f32 %v2307, %v2628
    %2630 = vmatprep.mubr.f32.mxu0 0.0
    %2631 = vmatmul.mubr.f32.gmra.mrb[0].mxu0 %v1646
    %v2632 = vpop.f32.mrb[0].mxu0
    %v2633 = vadd.f32 %v2311, %v2632
    %v2634 = vpop.f32.mrb[0].mxu0
    %v2635 = vadd.f32 %v2313, %v2634
    %2636 = vmatprep.mubr.f32.mxu0 0.0
    %2637 = vmatmul.mubr.f32.gmra.mrb[0].mxu0 %v1647
    %v2638 = vpop.f32.mrb[0].mxu0
    %v2639 = vadd.f32 %v2317, %v2638
    %v2640 = vpop.f32.mrb[0].mxu0
    %v2641 = vadd.f32 %v2319, %v2640
    %2642 = vmatprep.mubr.f32.mxu0 0.0
    %2643 = vmatmul.mubr.f32.gmra.mrb[0].mxu0 %v1648
    %v2644 = vpop.f32.mrb[0].mxu0
    %v2645 = vadd.f32 %v2323, %v2644
    %v2646 = vpop.f32.mrb[0].mxu0
    %v2647 = vadd.f32 %v2325, %v2646
    %2648 = vmatprep.mubr.f32.mxu0 0.0
    %2649 = vmatmul.mubr.f32.gmra.mrb[0].mxu0 %v1649
    %v2650 = vpop.f32.mrb[0].mxu0
    %v2651 = vadd.f32 %v2329, %v2650
    %v2652 = vpop.f32.mrb[0].mxu0
    %v2653 = vadd.f32 %v2331, %v2652
    %2654 = vmatprep.mubr.f32.mxu0 0.0
    %2655 = vmatmul.mubr.f32.gmra.mrb[0].mxu0 %v1650
    %v2656 = vpop.f32.mrb[0].mxu0
    %v2657 = vadd.f32 %v2335, %v2656
    %v2658 = vpop.f32.mrb[0].mxu0
    %v2659 = vadd.f32 %v2337, %v2658
    %2660 = vmatprep.mubr.f32.mxu0 0.0
    %2661 = vmatmul.mubr.f32.gmra.mrb[0].mxu0 %v1651
    %v2662 = vpop.f32.mrb[0].mxu0
    %v2663 = vadd.f32 %v2341, %v2662
    %v2664 = vpop.f32.mrb[0].mxu0
    %v2665 = vadd.f32 %v2343, %v2664
    %2666 = vmatprep.mubr.f32.mxu0 0.0
    %2667 = vmatmul.mubr.f32.gmra.mrb[0].mxu0 %v1652
    %v2668 = vpop.f32.mrb[0].mxu0
    %v2669 = vadd.f32 %v2347, %v2668
    %v2670 = vpop.f32.mrb[0].mxu0
    %v2671 = vadd.f32 %v2349, %v2670
    %2672 = vmatprep.mubr.f32.mxu0 0.0
    %2673 = vmatmul.mubr.f32.gmra.mrb[0].mxu0 %v1653
    %v2674 = vpop.f32.mrb[0].mxu0
    %v2675 = vadd.f32 %v2353, %v2674
    %v2676 = vpop.f32.mrb[0].mxu0
    %v2677 = vadd.f32 %v2355, %v2676
    %2678 = vmatprep.mubr.f32.mxu0 0.0
    %2679 = vmatmul.mubr.f32.gmra.mrb[0].mxu0 %v1654
    %v2680 = vpop.f32.mrb[0].mxu0
    %v2681 = vadd.f32 %v2359, %v2680
    %v2682 = vpop.f32.mrb[0].mxu0
    %v2683 = vadd.f32 %v2361, %v2682
    %2684 = vmatprep.mubr.f32.mxu0 0.0
    %2685 = vmatmul.mubr.f32.gmra.mrb[0].mxu0 %v1655
    %v2686 = vpop.f32.mrb[0].mxu0
    %v2687 = vadd.f32 %v2365, %v2686
    %v2688 = vpop.f32.mrb[0].mxu0
    %v2689 = vadd.f32 %v2367, %v2688
    %2690 = vmatprep.mubr.f32.mxu0 0.0
    %2691 = vmatmul.mubr.f32.gmra.mrb[0].mxu0 %v1656
    %v2692 = vpop.f32.mrb[0].mxu0
    %v2693 = vadd.f32 %v2371, %v2692
    %v2694 = vpop.f32.mrb[0].mxu0
    %v2695 = vadd.f32 %v2373, %v2694
    %2696 = vmatprep.mubr.f32.mxu0 0.0
    %2697 = vmatmul.mubr.f32.gmra.mrb[0].mxu0 %v1657
    %v2698 = vpop.f32.mrb[0].mxu0
    %v2699 = vadd.f32 %v2377, %v2698
    %v2700 = vpop.f32.mrb[0].mxu0
    %v2701 = vadd.f32 %v2379, %v2700
    %2702 = vdwg.mxu0
    %2703 = vmatprep.subr.mxu0 %v1903
    %2704 = vmatpush1.msra.mxu0 %v1902
    %2705 = vmatprep.subr.mxu0 %v1907
    %2706 = vmatpush1.msra.mxu0 %v1906
    %2707 = vmatprep.subr.mxu0 %v1911
    %2708 = vmatpush1.msra.mxu0 %v1910
    %2709 = vmatprep.subr.mxu0 %v1915
    %2710 = vmatpush1.msra.mxu0 %v1914
    %2711 = vmatprep.subr.mxu0 %v1919
    %2712 = vmatpush1.msra.mxu0 %v1918
    %2713 = vmatprep.subr.mxu0 %v1923
    %2714 = vmatpush1.msra.mxu0 %v1922
    %2715 = vmatprep.subr.mxu0 %v1927
    %2716 = vmatpush1.msra.mxu0 %v1926
    %2717 = vmatprep.subr.mxu0 %v1931
    %2718 = vmatpush1.msra.mxu0 %v1930
    %2719 = vmatprep.subr.mxu0 %v1935
    %2720 = vmatpush1.msra.mxu0 %v1934
    %2721 = vmatprep.subr.mxu0 %v1939
    %2722 = vmatpush1.msra.mxu0 %v1938
    %2723 = vmatprep.subr.mxu0 %v1943
    %2724 = vmatpush1.msra.mxu0 %v1942
    %2725 = vmatprep.subr.mxu0 %v1947
    %2726 = vmatpush1.msra.mxu0 %v1946
    %2727 = vmatprep.subr.mxu0 %v1951
    %2728 = vmatpush1.msra.mxu0 %v1950
    %2729 = vmatprep.subr.mxu0 %v1955
    %2730 = vmatpush1.msra.mxu0 %v1954
    %2731 = vmatprep.subr.mxu0 %v1959
    %2732 = vmatpush1.msra.mxu0 %v1958
    %2733 = vmatprep.subr.mxu0 %v1963
    %2734 = vmatpush1.msra.mxu0 %v1962
    %2735 = vmatprep.subr.mxu0 0.0
    %2736 = vmatpush1.msra.mxu0 0.0
    %2737 = vmatprep.subr.mxu0 0.0
    %2738 = vmatpush1.msra.mxu0 0.0
    %2739 = vmatprep.subr.mxu0 0.0
    %2740 = vmatpush1.msra.mxu0 0.0
    %2741 = vmatprep.subr.mxu0 0.0
    %2742 = vmatpush1.msra.mxu0 0.0
    %2743 = vmatprep.subr.mxu0 0.0
    %2744 = vmatpush1.msra.mxu0 0.0
    %2745 = vmatprep.subr.mxu0 0.0
    %2746 = vmatpush1.msra.mxu0 0.0
    %2747 = vmatprep.subr.mxu0 0.0
    %2748 = vmatpush1.msra.mxu0 0.0
    %2749 = vmatprep.subr.mxu0 0.0
    %2750 = vmatpush1.msra.mxu0 0.0
    %2751 = vmatprep.subr.mxu0 0.0
    %2752 = vmatpush1.msra.mxu0 0.0
    %2753 = vmatprep.subr.mxu0 0.0
    %2754 = vmatpush1.msra.mxu0 0.0
    %2755 = vmatprep.subr.mxu0 0.0
    %2756 = vmatpush1.msra.mxu0 0.0
    %2757 = vmatprep.subr.mxu0 0.0
    %2758 = vmatpush1.msra.mxu0 0.0
    %2759 = vmatprep.subr.mxu0 0.0
    %2760 = vmatpush1.msra.mxu0 0.0
    %2761 = vmatprep.subr.mxu0 0.0
    %2762 = vmatpush1.msra.mxu0 0.0
    %2763 = vmatprep.subr.mxu0 0.0
    %2764 = vmatpush1.msra.mxu0 0.0
    %2765 = vmatprep.subr.mxu0 0.0
    %2766 = vmatpush1.msra.mxu0 0.0
    %2767 = vmatprep.mubr.f32.mxu0 0.0
    %2768 = vmatmul.mubr.f32.gmra.mrb[0].mxu0 %v1642
    %v2769 = vpop.f32.mrb[0].mxu0
    %v2770 = vadd.f32 %v2448, %v2769
    %v2771 = vpop.f32.mrb[0].mxu0
    %v2772 = vadd.f32 %v2450, %v2771
    %2773 = vmatprep.mubr.f32.mxu0 0.0
    %2774 = vmatmul.mubr.f32.gmra.mrb[0].mxu0 %v1643
    %v2775 = vpop.f32.mrb[0].mxu0
    %v2776 = vadd.f32 %v2454, %v2775
    %v2777 = vpop.f32.mrb[0].mxu0
    %v2778 = vadd.f32 %v2456, %v2777
    %2779 = vmatprep.mubr.f32.mxu0 0.0
    %2780 = vmatmul.mubr.f32.gmra.mrb[0].mxu0 %v1644
    %v2781 = vpop.f32.mrb[0].mxu0
    %v2782 = vadd.f32 %v2460, %v2781
    %v2783 = vpop.f32.mrb[0].mxu0
    %v2784 = vadd.f32 %v2462, %v2783
    %2785 = vmatprep.mubr.f32.mxu0 0.0
    %2786 = vmatmul.mubr.f32.gmra.mrb[0].mxu0 %v1645
    %v2787 = vpop.f32.mrb[0].mxu0
    %v2788 = vadd.f32 %v2466, %v2787
    %v2789 = vpop.f32.mrb[0].mxu0
    %v2790 = vadd.f32 %v2468, %v2789
    %2791 = vmatprep.mubr.f32.mxu0 0.0
    %2792 = vmatmul.mubr.f32.gmra.mrb[0].mxu0 %v1646
    %v2793 = vpop.f32.mrb[0].mxu0
    %v2794 = vadd.f32 %v2472, %v2793
    %v2795 = vpop.f32.mrb[0].mxu0
    %v2796 = vadd.f32 %v2474, %v2795
    %2797 = vmatprep.mubr.f32.mxu0 0.0
    %2798 = vmatmul.mubr.f32.gmra.mrb[0].mxu0 %v1647
    %v2799 = vpop.f32.mrb[0].mxu0
    %v2800 = vadd.f32 %v2478, %v2799
    %v2801 = vpop.f32.mrb[0].mxu0
    %v2802 = vadd.f32 %v2480, %v2801
    %2803 = vmatprep.mubr.f32.mxu0 0.0
    %2804 = vmatmul.mubr.f32.gmra.mrb[0].mxu0 %v1648
    %v2805 = vpop.f32.mrb[0].mxu0
    %v2806 = vadd.f32 %v2484, %v2805
    %v2807 = vpop.f32.mrb[0].mxu0
    %v2808 = vadd.f32 %v2486, %v2807
    %2809 = vmatprep.mubr.f32.mxu0 0.0
    %2810 = vmatmul.mubr.f32.gmra.mrb[0].mxu0 %v1649
    %v2811 = vpop.f32.mrb[0].mxu0
    %v2812 = vadd.f32 %v2490, %v2811
    %v2813 = vpop.f32.mrb[0].mxu0
    %v2814 = vadd.f32 %v2492, %v2813
    %2815 = vmatprep.mubr.f32.mxu0 0.0
    %2816 = vmatmul.mubr.f32.gmra.mrb[0].mxu0 %v1650
    %v2817 = vpop.f32.mrb[0].mxu0
    %v2818 = vadd.f32 %v2496, %v2817
    %v2819 = vpop.f32.mrb[0].mxu0
    %v2820 = vadd.f32 %v2498, %v2819
    %2821 = vmatprep.mubr.f32.mxu0 0.0
    %2822 = vmatmul.mubr.f32.gmra.mrb[0].mxu0 %v1651
    %v2823 = vpop.f32.mrb[0].mxu0
    %v2824 = vadd.f32 %v2502, %v2823
    %v2825 = vpop.f32.mrb[0].mxu0
    %v2826 = vadd.f32 %v2504, %v2825
    %2827 = vmatprep.mubr.f32.mxu0 0.0
    %2828 = vmatmul.mubr.f32.gmra.mrb[0].mxu0 %v1652
    %v2829 = vpop.f32.mrb[0].mxu0
    %v2830 = vadd.f32 %v2508, %v2829
    %v2831 = vpop.f32.mrb[0].mxu0
    %v2832 = vadd.f32 %v2510, %v2831
    %2833 = vmatprep.mubr.f32.mxu0 0.0
    %2834 = vmatmul.mubr.f32.gmra.mrb[0].mxu0 %v1653
    %v2835 = vpop.f32.mrb[0].mxu0
    %v2836 = vadd.f32 %v2514, %v2835
    %v2837 = vpop.f32.mrb[0].mxu0
    %v2838 = vadd.f32 %v2516, %v2837
    %2839 = vmatprep.mubr.f32.mxu0 0.0
    %2840 = vmatmul.mubr.f32.gmra.mrb[0].mxu0 %v1654
    %v2841 = vpop.f32.mrb[0].mxu0
    %v2842 = vadd.f32 %v2520, %v2841
    %v2843 = vpop.f32.mrb[0].mxu0
    %v2844 = vadd.f32 %v2522, %v2843
    %2845 = vmatprep.mubr.f32.mxu0 0.0
    %2846 = vmatmul.mubr.f32.gmra.mrb[0].mxu0 %v1655
    %v2847 = vpop.f32.mrb[0].mxu0
    %v2848 = vadd.f32 %v2526, %v2847
    %v2849 = vpop.f32.mrb[0].mxu0
    %v2850 = vadd.f32 %v2528, %v2849
    %2851 = vmatprep.mubr.f32.mxu0 0.0
    %2852 = vmatmul.mubr.f32.gmra.mrb[0].mxu0 %v1656
    %v2853 = vpop.f32.mrb[0].mxu0
    %v2854 = vadd.f32 %v2532, %v2853
    %v2855 = vpop.f32.mrb[0].mxu0
    %v2856 = vadd.f32 %v2534, %v2855
    %2857 = vmatprep.mubr.f32.mxu0 0.0
    %2858 = vmatmul.mubr.f32.gmra.mrb[0].mxu0 %v1657
    %v2859 = vpop.f32.mrb[0].mxu0
    %v2860 = vadd.f32 %v2538, %v2859
    %v2861 = vpop.f32.mrb[0].mxu0
    %v2862 = vadd.f32 %v2540, %v2861
    %2863 = vdwg.mxu0
    %2864 = vmatprep.subr.mxu0 %v2157
    %2865 = vmatpush1.msra.mxu0 %v2156
    %2866 = vmatprep.subr.mxu0 %v2161
    %2867 = vmatpush1.msra.mxu0 %v2160
    %2868 = vmatprep.subr.mxu0 %v2165
    %2869 = vmatpush1.msra.mxu0 %v2164
    %2870 = vmatprep.subr.mxu0 %v2169
    %2871 = vmatpush1.msra.mxu0 %v2168
    %2872 = vmatprep.subr.mxu0 %v2173
    %2873 = vmatpush1.msra.mxu0 %v2172
    %2874 = vmatprep.subr.mxu0 %v2177
    %2875 = vmatpush1.msra.mxu0 %v2176
    %2876 = vmatprep.subr.mxu0 %v2181
    %2877 = vmatpush1.msra.mxu0 %v2180
    %2878 = vmatprep.subr.mxu0 %v2185
    %2879 = vmatpush1.msra.mxu0 %v2184
    %2880 = vmatprep.subr.mxu0 %v2189
    %2881 = vmatpush1.msra.mxu0 %v2188
    %2882 = vmatprep.subr.mxu0 %v2193
    %2883 = vmatpush1.msra.mxu0 %v2192
    %2884 = vmatprep.subr.mxu0 %v2197
    %2885 = vmatpush1.msra.mxu0 %v2196
    %2886 = vmatprep.subr.mxu0 %v2201
    %2887 = vmatpush1.msra.mxu0 %v2200
    %2888 = vmatprep.subr.mxu0 %v2205
    %2889 = vmatpush1.msra.mxu0 %v2204
    %2890 = vmatprep.subr.mxu0 %v2209
    %2891 = vmatpush1.msra.mxu0 %v2208
    %2892 = vmatprep.subr.mxu0 %v2213
    %2893 = vmatpush1.msra.mxu0 %v2212
    %2894 = vmatprep.subr.mxu0 %v2217
    %2895 = vmatpush1.msra.mxu0 %v2216
    %2896 = vmatprep.subr.mxu0 0.0
    %2897 = vmatpush1.msra.mxu0 0.0
    %2898 = vmatprep.subr.mxu0 0.0
    %2899 = vmatpush1.msra.mxu0 0.0
    %2900 = vmatprep.subr.mxu0 0.0
    %2901 = vmatpush1.msra.mxu0 0.0
    %2902 = vmatprep.subr.mxu0 0.0
    %2903 = vmatpush1.msra.mxu0 0.0
    %2904 = vmatprep.subr.mxu0 0.0
    %2905 = vmatpush1.msra.mxu0 0.0
    %2906 = vmatprep.subr.mxu0 0.0
    %2907 = vmatpush1.msra.mxu0 0.0
    %2908 = vmatprep.subr.mxu0 0.0
    %2909 = vmatpush1.msra.mxu0 0.0
    %2910 = vmatprep.subr.mxu0 0.0
    %2911 = vmatpush1.msra.mxu0 0.0
    %2912 = vmatprep.subr.mxu0 0.0
    %2913 = vmatpush1.msra.mxu0 0.0
    %2914 = vmatprep.subr.mxu0 0.0
    %2915 = vmatpush1.msra.mxu0 0.0
    %2916 = vmatprep.subr.mxu0 0.0
    %2917 = vmatpush1.msra.mxu0 0.0
    %2918 = vmatprep.subr.mxu0 0.0
    %2919 = vmatpush1.msra.mxu0 0.0
    %2920 = vmatprep.subr.mxu0 0.0
    %2921 = vmatpush1.msra.mxu0 0.0
    %2922 = vmatprep.subr.mxu0 0.0
    %2923 = vmatpush1.msra.mxu0 0.0
    %2924 = vmatprep.subr.mxu0 0.0
    %2925 = vmatpush1.msra.mxu0 0.0
    %2926 = vmatprep.subr.mxu0 0.0
    %2927 = vmatpush1.msra.mxu0 0.0
    %2928 = vmatprep.mubr.f32.mxu0 0.0
    %2929 = vmatmul.mubr.f32.gmra.mrb[0].mxu0 %v1676
    %v2930 = vpop.f32.mrb[0].mxu0
    %v2931 = vadd.f32 0.0, %v2930
    %v2932 = vpop.f32.mrb[0].mxu0
    %v2933 = vadd.f32 0.0, %v2932
    %2934 = vmatprep.mubr.f32.mxu0 0.0
    %2935 = vmatmul.mubr.f32.gmra.mrb[0].mxu0 %v1677
    %v2936 = vpop.f32.mrb[0].mxu0
    %v2937 = vadd.f32 0.0, %v2936
    %v2938 = vpop.f32.mrb[0].mxu0
    %v2939 = vadd.f32 0.0, %v2938
    %2940 = vmatprep.mubr.f32.mxu0 0.0
    %2941 = vmatmul.mubr.f32.gmra.mrb[0].mxu0 %v1678
    %v2942 = vpop.f32.mrb[0].mxu0
    %v2943 = vadd.f32 0.0, %v2942
    %v2944 = vpop.f32.mrb[0].mxu0
    %v2945 = vadd.f32 0.0, %v2944
    %2946 = vmatprep.mubr.f32.mxu0 0.0
    %2947 = vmatmul.mubr.f32.gmra.mrb[0].mxu0 %v1679
    %v2948 = vpop.f32.mrb[0].mxu0
    %v2949 = vadd.f32 0.0, %v2948
    %v2950 = vpop.f32.mrb[0].mxu0
    %v2951 = vadd.f32 0.0, %v2950
    %2952 = vmatprep.mubr.f32.mxu0 0.0
    %2953 = vmatmul.mubr.f32.gmra.mrb[0].mxu0 %v1680
    %v2954 = vpop.f32.mrb[0].mxu0
    %v2955 = vadd.f32 0.0, %v2954
    %v2956 = vpop.f32.mrb[0].mxu0
    %v2957 = vadd.f32 0.0, %v2956
    %2958 = vmatprep.mubr.f32.mxu0 0.0
    %2959 = vmatmul.mubr.f32.gmra.mrb[0].mxu0 %v1681
    %v2960 = vpop.f32.mrb[0].mxu0
    %v2961 = vadd.f32 0.0, %v2960
    %v2962 = vpop.f32.mrb[0].mxu0
    %v2963 = vadd.f32 0.0, %v2962
    %2964 = vmatprep.mubr.f32.mxu0 0.0
    %2965 = vmatmul.mubr.f32.gmra.mrb[0].mxu0 %v1682
    %v2966 = vpop.f32.mrb[0].mxu0
    %v2967 = vadd.f32 0.0, %v2966
    %v2968 = vpop.f32.mrb[0].mxu0
    %v2969 = vadd.f32 0.0, %v2968
    %2970 = vmatprep.mubr.f32.mxu0 0.0
    %2971 = vmatmul.mubr.f32.gmra.mrb[0].mxu0 %v1683
    %v2972 = vpop.f32.mrb[0].mxu0
    %v2973 = vadd.f32 0.0, %v2972
    %v2974 = vpop.f32.mrb[0].mxu0
    %v2975 = vadd.f32 0.0, %v2974
    %2976 = vmatprep.mubr.f32.mxu0 0.0
    %2977 = vmatmul.mubr.f32.gmra.mrb[0].mxu0 %v1684
    %v2978 = vpop.f32.mrb[0].mxu0
    %v2979 = vadd.f32 0.0, %v2978
    %v2980 = vpop.f32.mrb[0].mxu0
    %v2981 = vadd.f32 0.0, %v2980
    %2982 = vmatprep.mubr.f32.mxu0 0.0
    %2983 = vmatmul.mubr.f32.gmra.mrb[0].mxu0 %v1685
    %v2984 = vpop.f32.mrb[0].mxu0
    %v2985 = vadd.f32 0.0, %v2984
    %v2986 = vpop.f32.mrb[0].mxu0
    %v2987 = vadd.f32 0.0, %v2986
    %2988 = vmatprep.mubr.f32.mxu0 0.0
    %2989 = vmatmul.mubr.f32.gmra.mrb[0].mxu0 %v1686
    %v2990 = vpop.f32.mrb[0].mxu0
    %v2991 = vadd.f32 0.0, %v2990
    %v2992 = vpop.f32.mrb[0].mxu0
    %v2993 = vadd.f32 0.0, %v2992
    %2994 = vmatprep.mubr.f32.mxu0 0.0
    %2995 = vmatmul.mubr.f32.gmra.mrb[0].mxu0 %v1687
    %v2996 = vpop.f32.mrb[0].mxu0
    %v2997 = vadd.f32 0.0, %v2996
    %v2998 = vpop.f32.mrb[0].mxu0
    %v2999 = vadd.f32 0.0, %v2998
    %3000 = vmatprep.mubr.f32.mxu0 0.0
    %3001 = vmatmul.mubr.f32.gmra.mrb[0].mxu0 %v1688
    %v3002 = vpop.f32.mrb[0].mxu0
    %v3003 = vadd.f32 0.0, %v3002
    %v3004 = vpop.f32.mrb[0].mxu0
    %v3005 = vadd.f32 0.0, %v3004
    %3006 = vmatprep.mubr.f32.mxu0 0.0
    %3007 = vmatmul.mubr.f32.gmra.mrb[0].mxu0 %v1689
    %v3008 = vpop.f32.mrb[0].mxu0
    %v3009 = vadd.f32 0.0, %v3008
    %v3010 = vpop.f32.mrb[0].mxu0
    %v3011 = vadd.f32 0.0, %v3010
    %3012 = vmatprep.mubr.f32.mxu0 0.0
    %3013 = vmatmul.mubr.f32.gmra.mrb[0].mxu0 %v1690
    %v3014 = vpop.f32.mrb[0].mxu0
    %v3015 = vadd.f32 0.0, %v3014
    %v3016 = vpop.f32.mrb[0].mxu0
    %v3017 = vadd.f32 0.0, %v3016
    %3018 = vmatprep.mubr.f32.mxu0 0.0
    %3019 = vmatmul.mubr.f32.gmra.mrb[0].mxu0 %v1691
    %v3020 = vpop.f32.mrb[0].mxu0
    %v3021 = vadd.f32 0.0, %v3020
    %v3022 = vpop.f32.mrb[0].mxu0
    %v3023 = vadd.f32 0.0, %v3022
    %3024 = vdwg.mxu0
    %3025 = vmatprep.subr.mxu0 %v2159
    %3026 = vmatpush1.msra.mxu0 %v2158
    %3027 = vmatprep.subr.mxu0 %v2163
    %3028 = vmatpush1.msra.mxu0 %v2162
    %3029 = vmatprep.subr.mxu0 %v2167
    %3030 = vmatpush1.msra.mxu0 %v2166
    %3031 = vmatprep.subr.mxu0 %v2171
    %3032 = vmatpush1.msra.mxu0 %v2170
    %3033 = vmatprep.subr.mxu0 %v2175
    %3034 = vmatpush1.msra.mxu0 %v2174
    %3035 = vmatprep.subr.mxu0 %v2179
    %3036 = vmatpush1.msra.mxu0 %v2178
    %3037 = vmatprep.subr.mxu0 %v2183
    %3038 = vmatpush1.msra.mxu0 %v2182
    %3039 = vmatprep.subr.mxu0 %v2187
    %3040 = vmatpush1.msra.mxu0 %v2186
    %3041 = vmatprep.subr.mxu0 %v2191
    %3042 = vmatpush1.msra.mxu0 %v2190
    %3043 = vmatprep.subr.mxu0 %v2195
    %3044 = vmatpush1.msra.mxu0 %v2194
    %3045 = vmatprep.subr.mxu0 %v2199
    %3046 = vmatpush1.msra.mxu0 %v2198
    %3047 = vmatprep.subr.mxu0 %v2203
    %3048 = vmatpush1.msra.mxu0 %v2202
    %3049 = vmatprep.subr.mxu0 %v2207
    %3050 = vmatpush1.msra.mxu0 %v2206
    %3051 = vmatprep.subr.mxu0 %v2211
    %3052 = vmatpush1.msra.mxu0 %v2210
    %3053 = vmatprep.subr.mxu0 %v2215
    %3054 = vmatpush1.msra.mxu0 %v2214
    %3055 = vmatprep.subr.mxu0 %v2219
    %3056 = vmatpush1.msra.mxu0 %v2218
    %3057 = vmatprep.subr.mxu0 0.0
    %3058 = vmatpush1.msra.mxu0 0.0
    %3059 = vmatprep.subr.mxu0 0.0
    %3060 = vmatpush1.msra.mxu0 0.0
    %3061 = vmatprep.subr.mxu0 0.0
    %3062 = vmatpush1.msra.mxu0 0.0
    %3063 = vmatprep.subr.mxu0 0.0
    %3064 = vmatpush1.msra.mxu0 0.0
    %3065 = vmatprep.subr.mxu0 0.0
    %3066 = vmatpush1.msra.mxu0 0.0
    %3067 = vmatprep.subr.mxu0 0.0
    %3068 = vmatpush1.msra.mxu0 0.0
    %3069 = vmatprep.subr.mxu0 0.0
    %3070 = vmatpush1.msra.mxu0 0.0
    %3071 = vmatprep.subr.mxu0 0.0
    %3072 = vmatpush1.msra.mxu0 0.0
    %3073 = vmatprep.subr.mxu0 0.0
    %3074 = vmatpush1.msra.mxu0 0.0
    %3075 = vmatprep.subr.mxu0 0.0
    %3076 = vmatpush1.msra.mxu0 0.0
    %3077 = vmatprep.subr.mxu0 0.0
    %3078 = vmatpush1.msra.mxu0 0.0
    %3079 = vmatprep.subr.mxu0 0.0
    %3080 = vmatpush1.msra.mxu0 0.0
    %3081 = vmatprep.subr.mxu0 0.0
    %3082 = vmatpush1.msra.mxu0 0.0
    %3083 = vmatprep.subr.mxu0 0.0
    %3084 = vmatpush1.msra.mxu0 0.0
    %3085 = vmatprep.subr.mxu0 0.0
    %3086 = vmatpush1.msra.mxu0 0.0
    %3087 = vmatprep.subr.mxu0 0.0
    %3088 = vmatpush1.msra.mxu0 0.0
    %3089 = vmatprep.mubr.f32.mxu0 0.0
    %3090 = vmatmul.mubr.f32.gmra.mrb[0].mxu0 %v1676
    %v3091 = vpop.f32.mrb[0].mxu0
    %v3092 = vadd.f32 0.0, %v3091
    %v3093 = vpop.f32.mrb[0].mxu0
    %v3094 = vadd.f32 0.0, %v3093
    %3095 = vmatprep.mubr.f32.mxu0 0.0
    %3096 = vmatmul.mubr.f32.gmra.mrb[0].mxu0 %v1677
    %v3097 = vpop.f32.mrb[0].mxu0
    %v3098 = vadd.f32 0.0, %v3097
    %v3099 = vpop.f32.mrb[0].mxu0
    %v3100 = vadd.f32 0.0, %v3099
    %3101 = vmatprep.mubr.f32.mxu0 0.0
    %3102 = vmatmul.mubr.f32.gmra.mrb[0].mxu0 %v1678
    %v3103 = vpop.f32.mrb[0].mxu0
    %v3104 = vadd.f32 0.0, %v3103
    %v3105 = vpop.f32.mrb[0].mxu0
    %v3106 = vadd.f32 0.0, %v3105
    %3107 = vmatprep.mubr.f32.mxu0 0.0
    %3108 = vmatmul.mubr.f32.gmra.mrb[0].mxu0 %v1679
    %v3109 = vpop.f32.mrb[0].mxu0
    %v3110 = vadd.f32 0.0, %v3109
    %v3111 = vpop.f32.mrb[0].mxu0
    %v3112 = vadd.f32 0.0, %v3111
    %3113 = vmatprep.mubr.f32.mxu0 0.0
    %3114 = vmatmul.mubr.f32.gmra.mrb[0].mxu0 %v1680
    %v3115 = vpop.f32.mrb[0].mxu0
    %v3116 = vadd.f32 0.0, %v3115
    %v3117 = vpop.f32.mrb[0].mxu0
    %v3118 = vadd.f32 0.0, %v3117
    %3119 = vmatprep.mubr.f32.mxu0 0.0
    %3120 = vmatmul.mubr.f32.gmra.mrb[0].mxu0 %v1681
    %v3121 = vpop.f32.mrb[0].mxu0
    %v3122 = vadd.f32 0.0, %v3121
    %v3123 = vpop.f32.mrb[0].mxu0
    %v3124 = vadd.f32 0.0, %v3123
    %3125 = vmatprep.mubr.f32.mxu0 0.0
    %3126 = vmatmul.mubr.f32.gmra.mrb[0].mxu0 %v1682
    %v3127 = vpop.f32.mrb[0].mxu0
    %v3128 = vadd.f32 0.0, %v3127
    %v3129 = vpop.f32.mrb[0].mxu0
    %v3130 = vadd.f32 0.0, %v3129
    %3131 = vmatprep.mubr.f32.mxu0 0.0
    %3132 = vmatmul.mubr.f32.gmra.mrb[0].mxu0 %v1683
    %v3133 = vpop.f32.mrb[0].mxu0
    %v3134 = vadd.f32 0.0, %v3133
    %v3135 = vpop.f32.mrb[0].mxu0
    %v3136 = vadd.f32 0.0, %v3135
    %3137 = vmatprep.mubr.f32.mxu0 0.0
    %3138 = vmatmul.mubr.f32.gmra.mrb[0].mxu0 %v1684
    %v3139 = vpop.f32.mrb[0].mxu0
    %v3140 = vadd.f32 0.0, %v3139
    %v3141 = vpop.f32.mrb[0].mxu0
    %v3142 = vadd.f32 0.0, %v3141
    %3143 = vmatprep.mubr.f32.mxu0 0.0
    %3144 = vmatmul.mubr.f32.gmra.mrb[0].mxu0 %v1685
    %v3145 = vpop.f32.mrb[0].mxu0
    %v3146 = vadd.f32 0.0, %v3145
    %v3147 = vpop.f32.mrb[0].mxu0
    %v3148 = vadd.f32 0.0, %v3147
    %3149 = vmatprep.mubr.f32.mxu0 0.0
    %3150 = vmatmul.mubr.f32.gmra.mrb[0].mxu0 %v1686
    %v3151 = vpop.f32.mrb[0].mxu0
    %v3152 = vadd.f32 0.0, %v3151
    %v3153 = vpop.f32.mrb[0].mxu0
    %v3154 = vadd.f32 0.0, %v3153
    %3155 = vmatprep.mubr.f32.mxu0 0.0
    %3156 = vmatmul.mubr.f32.gmra.mrb[0].mxu0 %v1687
    %v3157 = vpop.f32.mrb[0].mxu0
    %v3158 = vadd.f32 0.0, %v3157
    %v3159 = vpop.f32.mrb[0].mxu0
    %v3160 = vadd.f32 0.0, %v3159
    %3161 = vmatprep.mubr.f32.mxu0 0.0
    %3162 = vmatmul.mubr.f32.gmra.mrb[0].mxu0 %v1688
    %v3163 = vpop.f32.mrb[0].mxu0
    %v3164 = vadd.f32 0.0, %v3163
    %v3165 = vpop.f32.mrb[0].mxu0
    %v3166 = vadd.f32 0.0, %v3165
    %3167 = vmatprep.mubr.f32.mxu0 0.0
    %3168 = vmatmul.mubr.f32.gmra.mrb[0].mxu0 %v1689
    %v3169 = vpop.f32.mrb[0].mxu0
    %v3170 = vadd.f32 0.0, %v3169
    %v3171 = vpop.f32.mrb[0].mxu0
    %v3172 = vadd.f32 0.0, %v3171
    %3173 = vmatprep.mubr.f32.mxu0 0.0
    %3174 = vmatmul.mubr.f32.gmra.mrb[0].mxu0 %v1690
    %v3175 = vpop.f32.mrb[0].mxu0
    %v3176 = vadd.f32 0.0, %v3175
    %v3177 = vpop.f32.mrb[0].mxu0
    %v3178 = vadd.f32 0.0, %v3177
    %3179 = vmatprep.mubr.f32.mxu0 0.0
    %3180 = vmatmul.mubr.f32.gmra.mrb[0].mxu0 %v1691
    %v3181 = vpop.f32.mrb[0].mxu0
    %v3182 = vadd.f32 0.0, %v3181
    %v3183 = vpop.f32.mrb[0].mxu0
    %v3184 = vadd.f32 0.0, %v3183
    %3185 = vdwg.mxu0
    %v3186 = vadd.f32 %v2609, %v2931
    %v3187 = vadd.f32 %v2611, %v2933
    %v3188 = vadd.f32 %v2770, %v3092
    %v3189 = vadd.f32 %v2772, %v3094
    %v3190 = vadd.f32 %v2615, %v2937
    %v3191 = vadd.f32 %v2617, %v2939
    %v3192 = vadd.f32 %v2776, %v3098
    %v3193 = vadd.f32 %v2778, %v3100
    %v3194 = vadd.f32 %v2621, %v2943
    %v3195 = vadd.f32 %v2623, %v2945
    %v3196 = vadd.f32 %v2782, %v3104
    %v3197 = vadd.f32 %v2784, %v3106
    %v3198 = vadd.f32 %v2627, %v2949
    %v3199 = vadd.f32 %v2629, %v2951
    %v3200 = vadd.f32 %v2788, %v3110
    %v3201 = vadd.f32 %v2790, %v3112
    %v3202 = vadd.f32 %v2633, %v2955
    %v3203 = vadd.f32 %v2635, %v2957
    %v3204 = vadd.f32 %v2794, %v3116
    %v3205 = vadd.f32 %v2796, %v3118
    %v3206 = vadd.f32 %v2639, %v2961
    %v3207 = vadd.f32 %v2641, %v2963
    %v3208 = vadd.f32 %v2800, %v3122
    %v3209 = vadd.f32 %v2802, %v3124
    %v3210 = vadd.f32 %v2645, %v2967
    %v3211 = vadd.f32 %v2647, %v2969
    %v3212 = vadd.f32 %v2806, %v3128
    %v3213 = vadd.f32 %v2808, %v3130
    %v3214 = vadd.f32 %v2651, %v2973
    %v3215 = vadd.f32 %v2653, %v2975
    %v3216 = vadd.f32 %v2812, %v3134
    %v3217 = vadd.f32 %v2814, %v3136
    %v3218 = vadd.f32 %v2657, %v2979
    %v3219 = vadd.f32 %v2659, %v2981
    %v3220 = vadd.f32 %v2818, %v3140
    %v3221 = vadd.f32 %v2820, %v3142
    %v3222 = vadd.f32 %v2663, %v2985
    %v3223 = vadd.f32 %v2665, %v2987
    %v3224 = vadd.f32 %v2824, %v3146
    %v3225 = vadd.f32 %v2826, %v3148
    %v3226 = vadd.f32 %v2669, %v2991
    %v3227 = vadd.f32 %v2671, %v2993
    %v3228 = vadd.f32 %v2830, %v3152
    %v3229 = vadd.f32 %v2832, %v3154
    %v3230 = vadd.f32 %v2675, %v2997
    %v3231 = vadd.f32 %v2677, %v2999
    %v3232 = vadd.f32 %v2836, %v3158
    %v3233 = vadd.f32 %v2838, %v3160
    %v3234 = vadd.f32 %v2681, %v3003
    %v3235 = vadd.f32 %v2683, %v3005
    %v3236 = vadd.f32 %v2842, %v3164
    %v3237 = vadd.f32 %v2844, %v3166
    %v3238 = vadd.f32 %v2687, %v3009
    %v3239 = vadd.f32 %v2689, %v3011
    %v3240 = vadd.f32 %v2848, %v3170
    %v3241 = vadd.f32 %v2850, %v3172
    %v3242 = vadd.f32 %v2693, %v3015
    %v3243 = vadd.f32 %v2695, %v3017
    %v3244 = vadd.f32 %v2854, %v3176
    %v3245 = vadd.f32 %v2856, %v3178
    %v3246 = vadd.f32 %v2699, %v3021
    %v3247 = vadd.f32 %v2701, %v3023
    %v3248 = vadd.f32 %v2860, %v3182
    %v3249 = vadd.f32 %v2862, %v3184
    %3251 = vset.pattern.permute.xlu0 0
    %3252 = vperm.xlu0 %3251, %v1692
    %v3253 = vpop.permute.xlu0 %3252
    %3256 = vset.pattern.permute.xlu0 0
    %3257 = vperm.xlu0 %3256, %v1693
    %v3258 = vpop.permute.xlu0 %3257
    %3261 = vset.pattern.permute.xlu0 0
    %3262 = vperm.xlu0 %3261, %v1694
    %v3263 = vpop.permute.xlu0 %3262
    %3266 = vset.pattern.permute.xlu0 0
    %3267 = vperm.xlu0 %3266, %v1695
    %v3268 = vpop.permute.xlu0 %3267
    %3271 = vset.pattern.permute.xlu0 0
    %3272 = vperm.xlu0 %3271, %v1696
    %v3273 = vpop.permute.xlu0 %3272
    %3276 = vset.pattern.permute.xlu0 0
    %3277 = vperm.xlu0 %3276, %v1697
    %v3278 = vpop.permute.xlu0 %3277
    %3281 = vset.pattern.permute.xlu0 0
    %3282 = vperm.xlu0 %3281, %v1698
    %v3283 = vpop.permute.xlu0 %3282
    %3286 = vset.pattern.permute.xlu0 0
    %3287 = vperm.xlu0 %3286, %v1699
    %v3288 = vpop.permute.xlu0 %3287
    %3291 = vset.pattern.permute.xlu0 0
    %3292 = vperm.xlu0 %3291, %v1700
    %v3293 = vpop.permute.xlu0 %3292
    %3296 = vset.pattern.permute.xlu0 0
    %3297 = vperm.xlu0 %3296, %v1701
    %v3298 = vpop.permute.xlu0 %3297
    %3301 = vset.pattern.permute.xlu0 0
    %3302 = vperm.xlu0 %3301, %v1702
    %v3303 = vpop.permute.xlu0 %3302
    %3306 = vset.pattern.permute.xlu0 0
    %3307 = vperm.xlu0 %3306, %v1703
    %v3308 = vpop.permute.xlu0 %3307
    %3311 = vset.pattern.permute.xlu0 0
    %3312 = vperm.xlu0 %3311, %v1704
    %v3313 = vpop.permute.xlu0 %3312
    %3316 = vset.pattern.permute.xlu0 0
    %3317 = vperm.xlu0 %3316, %v1705
    %v3318 = vpop.permute.xlu0 %3317
    %3321 = vset.pattern.permute.xlu0 0
    %3322 = vperm.xlu0 %3321, %v1706
    %v3323 = vpop.permute.xlu0 %3322
    %3326 = vset.pattern.permute.xlu0 0
    %3327 = vperm.xlu0 %3326, %v1707
    %v3328 = vpop.permute.xlu0 %3327
    %v3330 = vadd.f32 %v3186, %v3253
    %v3331 = vadd.f32 %v3187, %v3253
    %v3332 = vadd.f32 %v3188, %v3253
    %v3333 = vadd.f32 %v3189, %v3253
    %v3334 = vadd.f32 %v3190, %v3258
    %v3335 = vadd.f32 %v3191, %v3258
    %v3336 = vadd.f32 %v3192, %v3258
    %v3337 = vadd.f32 %v3193, %v3258
    %v3338 = vadd.f32 %v3194, %v3263
    %v3339 = vadd.f32 %v3195, %v3263
    %v3340 = vadd.f32 %v3196, %v3263
    %v3341 = vadd.f32 %v3197, %v3263
    %v3342 = vadd.f32 %v3198, %v3268
    %v3343 = vadd.f32 %v3199, %v3268
    %v3344 = vadd.f32 %v3200, %v3268
    %v3345 = vadd.f32 %v3201, %v3268
    %v3346 = vadd.f32 %v3202, %v3273
    %v3347 = vadd.f32 %v3203, %v3273
    %v3348 = vadd.f32 %v3204, %v3273
    %v3349 = vadd.f32 %v3205, %v3273
    %v3350 = vadd.f32 %v3206, %v3278
    %v3351 = vadd.f32 %v3207, %v3278
    %v3352 = vadd.f32 %v3208, %v3278
    %v3353 = vadd.f32 %v3209, %v3278
    %v3354 = vadd.f32 %v3210, %v3283
    %v3355 = vadd.f32 %v3211, %v3283
    %v3356 = vadd.f32 %v3212, %v3283
    %v3357 = vadd.f32 %v3213, %v3283
    %v3358 = vadd.f32 %v3214, %v3288
    %v3359 = vadd.f32 %v3215, %v3288
    %v3360 = vadd.f32 %v3216, %v3288
    %v3361 = vadd.f32 %v3217, %v3288
    %v3362 = vadd.f32 %v3218, %v3293
    %v3363 = vadd.f32 %v3219, %v3293
    %v3364 = vadd.f32 %v3220, %v3293
    %v3365 = vadd.f32 %v3221, %v3293
    %v3366 = vadd.f32 %v3222, %v3298
    %v3367 = vadd.f32 %v3223, %v3298
    %v3368 = vadd.f32 %v3224, %v3298
    %v3369 = vadd.f32 %v3225, %v3298
    %v3370 = vadd.f32 %v3226, %v3303
    %v3371 = vadd.f32 %v3227, %v3303
    %v3372 = vadd.f32 %v3228, %v3303
    %v3373 = vadd.f32 %v3229, %v3303
    %v3374 = vadd.f32 %v3230, %v3308
    %v3375 = vadd.f32 %v3231, %v3308
    %v3376 = vadd.f32 %v3232, %v3308
    %v3377 = vadd.f32 %v3233, %v3308
    %v3378 = vadd.f32 %v3234, %v3313
    %v3379 = vadd.f32 %v3235, %v3313
    %v3380 = vadd.f32 %v3236, %v3313
    %v3381 = vadd.f32 %v3237, %v3313
    %v3382 = vadd.f32 %v3238, %v3318
    %v3383 = vadd.f32 %v3239, %v3318
    %v3384 = vadd.f32 %v3240, %v3318
    %v3385 = vadd.f32 %v3241, %v3318
    %v3386 = vadd.f32 %v3242, %v3323
    %v3387 = vadd.f32 %v3243, %v3323
    %v3388 = vadd.f32 %v3244, %v3323
    %v3389 = vadd.f32 %v3245, %v3323
    %v3390 = vadd.f32 %v3246, %v3328
    %v3391 = vadd.f32 %v3247, %v3328
    %v3392 = vadd.f32 %v3248, %v3328
    %v3393 = vadd.f32 %v3249, %v3328
    %v3394 = vmax.f32 %v3330, 0.0
    %v3395 = vmax.f32 %v3331, 0.0
    %v3396 = vmax.f32 %v3332, 0.0
    %v3397 = vmax.f32 %v3333, 0.0
    %v3398 = vmax.f32 %v3334, 0.0
    %v3399 = vmax.f32 %v3335, 0.0
    %v3400 = vmax.f32 %v3336, 0.0
    %v3401 = vmax.f32 %v3337, 0.0
    %v3402 = vmax.f32 %v3338, 0.0
    %v3403 = vmax.f32 %v3339, 0.0
    %v3404 = vmax.f32 %v3340, 0.0
    %v3405 = vmax.f32 %v3341, 0.0
    %v3406 = vmax.f32 %v3342, 0.0
    %v3407 = vmax.f32 %v3343, 0.0
    %v3408 = vmax.f32 %v3344, 0.0
    %v3409 = vmax.f32 %v3345, 0.0
    %v3410 = vmax.f32 %v3346, 0.0
    %v3411 = vmax.f32 %v3347, 0.0
    %v3412 = vmax.f32 %v3348, 0.0
    %v3413 = vmax.f32 %v3349, 0.0
    %v3414 = vmax.f32 %v3350, 0.0
    %v3415 = vmax.f32 %v3351, 0.0
    %v3416 = vmax.f32 %v3352, 0.0
    %v3417 = vmax.f32 %v3353, 0.0
    %v3418 = vmax.f32 %v3354, 0.0
    %v3419 = vmax.f32 %v3355, 0.0
    %v3420 = vmax.f32 %v3356, 0.0
    %v3421 = vmax.f32 %v3357, 0.0
    %v3422 = vmax.f32 %v3358, 0.0
    %v3423 = vmax.f32 %v3359, 0.0
    %v3424 = vmax.f32 %v3360, 0.0
    %v3425 = vmax.f32 %v3361, 0.0
    %v3426 = vmax.f32 %v3362, 0.0
    %v3427 = vmax.f32 %v3363, 0.0
    %v3428 = vmax.f32 %v3364, 0.0
    %v3429 = vmax.f32 %v3365, 0.0
    %v3430 = vmax.f32 %v3366, 0.0
    %v3431 = vmax.f32 %v3367, 0.0
    %v3432 = vmax.f32 %v3368, 0.0
    %v3433 = vmax.f32 %v3369, 0.0
    %v3434 = vmax.f32 %v3370, 0.0
    %v3435 = vmax.f32 %v3371, 0.0
    %v3436 = vmax.f32 %v3372, 0.0
    %v3437 = vmax.f32 %v3373, 0.0
    %v3438 = vmax.f32 %v3374, 0.0
    %v3439 = vmax.f32 %v3375, 0.0
    %v3440 = vmax.f32 %v3376, 0.0
    %v3441 = vmax.f32 %v3377, 0.0
    %v3442 = vmax.f32 %v3378, 0.0
    %v3443 = vmax.f32 %v3379, 0.0
    %v3444 = vmax.f32 %v3380, 0.0
    %v3445 = vmax.f32 %v3381, 0.0
    %v3446 = vmax.f32 %v3382, 0.0
    %v3447 = vmax.f32 %v3383, 0.0
    %v3448 = vmax.f32 %v3384, 0.0
    %v3449 = vmax.f32 %v3385, 0.0
    %v3450 = vmax.f32 %v3386, 0.0
    %v3451 = vmax.f32 %v3387, 0.0
    %v3452 = vmax.f32 %v3388, 0.0
    %v3453 = vmax.f32 %v3389, 0.0
    %v3454 = vmax.f32 %v3390, 0.0
    %v3455 = vmax.f32 %v3391, 0.0
    %v3456 = vmax.f32 %v3392, 0.0
    %v3457 = vmax.f32 %v3393, 0.0
    %s3458 = scalar_lea.vmem [#allocation2], 384
    %v3459 = vld [vmem:[%s3458] sm:$0xff]
    %v3460 = vld [vmem:[%s3458 + $0x8] sm:$0xff]
    %v3461 = vld [vmem:[%s3458 + $0x10] sm:$0xff]
    %v3462 = vld [vmem:[%s3458 + $0x18] sm:$0xff]
    %v3463 = vld [vmem:[%s3458 + $0x20] sm:$0xff]
    %v3464 = vld [vmem:[%s3458 + $0x28] sm:$0xff]
    %v3465 = vld [vmem:[%s3458 + $0x30] sm:$0xff]
    %v3466 = vld [vmem:[%s3458 + $0x38] sm:$0xff]
    %v3467 = vld [vmem:[%s3458 + $0x40] sm:$0xff]
    %v3468 = vld [vmem:[%s3458 + $0x48] sm:$0xff]
    %v3469 = vld [vmem:[%s3458 + $0x50] sm:$0xff]
    %v3470 = vld [vmem:[%s3458 + $0x58] sm:$0xff]
    %v3471 = vld [vmem:[%s3458 + $0x60] sm:$0xff]
    %v3472 = vld [vmem:[%s3458 + $0x68] sm:$0xff]
    %v3473 = vld [vmem:[%s3458 + $0x70] sm:$0xff]
    %v3474 = vld [vmem:[%s3458 + $0x78] sm:$0xff]
    %s3475 = scalar_lea.vmem [#allocation2], 512
    %v3476 = vld [vmem:[%s3475] sm:$0xff]
    %v3477 = vld [vmem:[%s3475 + $0x8] sm:$0xff]
    %v3478 = vld [vmem:[%s3475 + $0x10] sm:$0xff]
    %v3479 = vld [vmem:[%s3475 + $0x18] sm:$0xff]
    %v3480 = vld [vmem:[%s3475 + $0x20] sm:$0xff]
    %v3481 = vld [vmem:[%s3475 + $0x28] sm:$0xff]
    %v3482 = vld [vmem:[%s3475 + $0x30] sm:$0xff]
    %v3483 = vld [vmem:[%s3475 + $0x38] sm:$0xff]
    %v3484 = vld [vmem:[%s3475 + $0x40] sm:$0xff]
    %v3485 = vld [vmem:[%s3475 + $0x48] sm:$0xff]
    %v3486 = vld [vmem:[%s3475 + $0x50] sm:$0xff]
    %v3487 = vld [vmem:[%s3475 + $0x58] sm:$0xff]
    %v3488 = vld [vmem:[%s3475 + $0x60] sm:$0xff]
    %v3489 = vld [vmem:[%s3475 + $0x68] sm:$0xff]
    %v3490 = vld [vmem:[%s3475 + $0x70] sm:$0xff]
    %v3491 = vld [vmem:[%s3475 + $0x78] sm:$0xff]
    %s3492 = scalar_lea.vmem [#allocation2], 640
    %v3493 = vld [vmem:[%s3492] sm:$0xff]
    %v3494 = vld [vmem:[%s3492 + $0x8] sm:$0xff]
    %v3495 = vld [vmem:[%s3492 + $0x10] sm:$0xff]
    %v3496 = vld [vmem:[%s3492 + $0x18] sm:$0xff]
    %v3497 = vld [vmem:[%s3492 + $0x20] sm:$0xff]
    %v3498 = vld [vmem:[%s3492 + $0x28] sm:$0xff]
    %v3499 = vld [vmem:[%s3492 + $0x30] sm:$0xff]
    %v3500 = vld [vmem:[%s3492 + $0x38] sm:$0xff]
    %v3501 = vld [vmem:[%s3492 + $0x40] sm:$0xff]
    %v3502 = vld [vmem:[%s3492 + $0x48] sm:$0xff]
    %v3503 = vld [vmem:[%s3492 + $0x50] sm:$0xff]
    %v3504 = vld [vmem:[%s3492 + $0x58] sm:$0xff]
    %v3505 = vld [vmem:[%s3492 + $0x60] sm:$0xff]
    %v3506 = vld [vmem:[%s3492 + $0x68] sm:$0xff]
    %v3507 = vld [vmem:[%s3492 + $0x70] sm:$0xff]
    %v3508 = vld [vmem:[%s3492 + $0x78] sm:$0xff]
    %s3509 = scalar_lea.vmem %s4, 128
    %v3510 = vld [vmem:[%s3509] sm:$0xff]
    %v3511 = vld [vmem:[%s3509 + $0x8] sm:$0xff]
    %v3512 = vld [vmem:[%s3509 + $0x10] sm:$0xff]
    %v3513 = vld [vmem:[%s3509 + $0x18] sm:$0xff]
    %v3514 = vld [vmem:[%s3509 + $0x20] sm:$0xff]
    %v3515 = vld [vmem:[%s3509 + $0x28] sm:$0xff]
    %v3516 = vld [vmem:[%s3509 + $0x30] sm:$0xff]
    %v3517 = vld [vmem:[%s3509 + $0x38] sm:$0xff]
    %v3518 = vld [vmem:[%s3509 + $0x40] sm:$0xff]
    %v3519 = vld [vmem:[%s3509 + $0x48] sm:$0xff]
    %v3520 = vld [vmem:[%s3509 + $0x50] sm:$0xff]
    %v3521 = vld [vmem:[%s3509 + $0x58] sm:$0xff]
    %v3522 = vld [vmem:[%s3509 + $0x60] sm:$0xff]
    %v3523 = vld [vmem:[%s3509 + $0x68] sm:$0xff]
    %v3524 = vld [vmem:[%s3509 + $0x70] sm:$0xff]
    %v3525 = vld [vmem:[%s3509 + $0x78] sm:$0xff]
    %3526 = vrot.lane.b32.xlu0 %v3394, 1
    %v3527 = vpop.permute.xlu0 %3526
    %3528 = vrot.lane.b32.xlu0 %v3398, 1
    %v3529 = vpop.permute.xlu0 %3528
    %3530 = vrot.lane.b32.xlu0 %v3402, 1
    %v3531 = vpop.permute.xlu0 %3530
    %3532 = vrot.lane.b32.xlu0 %v3406, 1
    %v3533 = vpop.permute.xlu0 %3532
    %3534 = vrot.lane.b32.xlu0 %v3410, 1
    %v3535 = vpop.permute.xlu0 %3534
    %3536 = vrot.lane.b32.xlu0 %v3414, 1
    %v3537 = vpop.permute.xlu0 %3536
    %3538 = vrot.lane.b32.xlu0 %v3418, 1
    %v3539 = vpop.permute.xlu0 %3538
    %3540 = vrot.lane.b32.xlu0 %v3422, 1
    %v3541 = vpop.permute.xlu0 %3540
    %3542 = vrot.lane.b32.xlu0 %v3426, 1
    %v3543 = vpop.permute.xlu0 %3542
    %3544 = vrot.lane.b32.xlu0 %v3430, 1
    %v3545 = vpop.permute.xlu0 %3544
    %3546 = vrot.lane.b32.xlu0 %v3434, 1
    %v3547 = vpop.permute.xlu0 %3546
    %3548 = vrot.lane.b32.xlu0 %v3438, 1
    %v3549 = vpop.permute.xlu0 %3548
    %3550 = vrot.lane.b32.xlu0 %v3442, 1
    %v3551 = vpop.permute.xlu0 %3550
    %3552 = vrot.lane.b32.xlu0 %v3446, 1
    %v3553 = vpop.permute.xlu0 %3552
    %3554 = vrot.lane.b32.xlu0 %v3450, 1
    %v3555 = vpop.permute.xlu0 %3554
    %3556 = vrot.lane.b32.xlu0 %v3454, 1
    %v3557 = vpop.permute.xlu0 %3556
    %3558 = vrot.lane.b32.xlu0 %v3395, 1
    %v3559 = vpop.permute.xlu0 %3558
    %3560 = vrot.lane.b32.xlu0 %v3399, 1
    %v3561 = vpop.permute.xlu0 %3560
    %3562 = vrot.lane.b32.xlu0 %v3403, 1
    %v3563 = vpop.permute.xlu0 %3562
    %3564 = vrot.lane.b32.xlu0 %v3407, 1
    %v3565 = vpop.permute.xlu0 %3564
    %3566 = vrot.lane.b32.xlu0 %v3411, 1
    %v3567 = vpop.permute.xlu0 %3566
    %3568 = vrot.lane.b32.xlu0 %v3415, 1
    %v3569 = vpop.permute.xlu0 %3568
    %3570 = vrot.lane.b32.xlu0 %v3419, 1
    %v3571 = vpop.permute.xlu0 %3570
    %3572 = vrot.lane.b32.xlu0 %v3423, 1
    %v3573 = vpop.permute.xlu0 %3572
    %3574 = vrot.lane.b32.xlu0 %v3427, 1
    %v3575 = vpop.permute.xlu0 %3574
    %3576 = vrot.lane.b32.xlu0 %v3431, 1
    %v3577 = vpop.permute.xlu0 %3576
    %3578 = vrot.lane.b32.xlu0 %v3435, 1
    %v3579 = vpop.permute.xlu0 %3578
    %3580 = vrot.lane.b32.xlu0 %v3439, 1
    %v3581 = vpop.permute.xlu0 %3580
    %3582 = vrot.lane.b32.xlu0 %v3443, 1
    %v3583 = vpop.permute.xlu0 %3582
    %3584 = vrot.lane.b32.xlu0 %v3447, 1
    %v3585 = vpop.permute.xlu0 %3584
    %3586 = vrot.lane.b32.xlu0 %v3451, 1
    %v3587 = vpop.permute.xlu0 %3586
    %3588 = vrot.lane.b32.xlu0 %v3455, 1
    %v3589 = vpop.permute.xlu0 %3588
    %3590 = vrot.lane.b32.xlu0 %v3396, 1
    %v3591 = vpop.permute.xlu0 %3590
    %3592 = vrot.lane.b32.xlu0 %v3400, 1
    %v3593 = vpop.permute.xlu0 %3592
    %3594 = vrot.lane.b32.xlu0 %v3404, 1
    %v3595 = vpop.permute.xlu0 %3594
    %3596 = vrot.lane.b32.xlu0 %v3408, 1
    %v3597 = vpop.permute.xlu0 %3596
    %3598 = vrot.lane.b32.xlu0 %v3412, 1
    %v3599 = vpop.permute.xlu0 %3598
    %3600 = vrot.lane.b32.xlu0 %v3416, 1
    %v3601 = vpop.permute.xlu0 %3600
    %3602 = vrot.lane.b32.xlu0 %v3420, 1
    %v3603 = vpop.permute.xlu0 %3602
    %3604 = vrot.lane.b32.xlu0 %v3424, 1
    %v3605 = vpop.permute.xlu0 %3604
    %3606 = vrot.lane.b32.xlu0 %v3428, 1
    %v3607 = vpop.permute.xlu0 %3606
    %3608 = vrot.lane.b32.xlu0 %v3432, 1
    %v3609 = vpop.permute.xlu0 %3608
    %3610 = vrot.lane.b32.xlu0 %v3436, 1
    %v3611 = vpop.permute.xlu0 %3610
    %3612 = vrot.lane.b32.xlu0 %v3440, 1
    %v3613 = vpop.permute.xlu0 %3612
    %3614 = vrot.lane.b32.xlu0 %v3444, 1
    %v3615 = vpop.permute.xlu0 %3614
    %3616 = vrot.lane.b32.xlu0 %v3448, 1
    %v3617 = vpop.permute.xlu0 %3616
    %3618 = vrot.lane.b32.xlu0 %v3452, 1
    %v3619 = vpop.permute.xlu0 %3618
    %3620 = vrot.lane.b32.xlu0 %v3456, 1
    %v3621 = vpop.permute.xlu0 %3620
    %3622 = vrot.lane.b32.xlu0 %v3397, 1
    %v3623 = vpop.permute.xlu0 %3622
    %3624 = vrot.lane.b32.xlu0 %v3401, 1
    %v3625 = vpop.permute.xlu0 %3624
    %3626 = vrot.lane.b32.xlu0 %v3405, 1
    %v3627 = vpop.permute.xlu0 %3626
    %3628 = vrot.lane.b32.xlu0 %v3409, 1
    %v3629 = vpop.permute.xlu0 %3628
    %3630 = vrot.lane.b32.xlu0 %v3413, 1
    %v3631 = vpop.permute.xlu0 %3630
    %3632 = vrot.lane.b32.xlu0 %v3417, 1
    %v3633 = vpop.permute.xlu0 %3632
    %3634 = vrot.lane.b32.xlu0 %v3421, 1
    %v3635 = vpop.permute.xlu0 %3634
    %3636 = vrot.lane.b32.xlu0 %v3425, 1
    %v3637 = vpop.permute.xlu0 %3636
    %3638 = vrot.lane.b32.xlu0 %v3429, 1
    %v3639 = vpop.permute.xlu0 %3638
    %3640 = vrot.lane.b32.xlu0 %v3433, 1
    %v3641 = vpop.permute.xlu0 %3640
    %3642 = vrot.lane.b32.xlu0 %v3437, 1
    %v3643 = vpop.permute.xlu0 %3642
    %3644 = vrot.lane.b32.xlu0 %v3441, 1
    %v3645 = vpop.permute.xlu0 %3644
    %3646 = vrot.lane.b32.xlu0 %v3445, 1
    %v3647 = vpop.permute.xlu0 %3646
    %3648 = vrot.lane.b32.xlu0 %v3449, 1
    %v3649 = vpop.permute.xlu0 %3648
    %3650 = vrot.lane.b32.xlu0 %v3453, 1
    %v3651 = vpop.permute.xlu0 %3650
    %3652 = vrot.lane.b32.xlu0 %v3457, 1
    %v3653 = vpop.permute.xlu0 %3652
    %v3654 = vsel %vm200, %v3591, %v3623
    %v3655 = vsel %vm200, %v3593, %v3625
    %v3656 = vsel %vm200, %v3595, %v3627
    %v3657 = vsel %vm200, %v3597, %v3629
    %v3658 = vsel %vm200, %v3599, %v3631
    %v3659 = vsel %vm200, %v3601, %v3633
    %v3660 = vsel %vm200, %v3603, %v3635
    %v3661 = vsel %vm200, %v3605, %v3637
    %v3662 = vsel %vm200, %v3607, %v3639
    %v3663 = vsel %vm200, %v3609, %v3641
    %v3664 = vsel %vm200, %v3611, %v3643
    %v3665 = vsel %vm200, %v3613, %v3645
    %v3666 = vsel %vm200, %v3615, %v3647
    %v3667 = vsel %vm200, %v3617, %v3649
    %v3668 = vsel %vm200, %v3619, %v3651
    %v3669 = vsel %vm200, %v3621, %v3653
    %v3670 = vsel %vm200, %v3559, %v3591
    %v3671 = vsel %vm200, %v3561, %v3593
    %v3672 = vsel %vm200, %v3563, %v3595
    %v3673 = vsel %vm200, %v3565, %v3597
    %v3674 = vsel %vm200, %v3567, %v3599
    %v3675 = vsel %vm200, %v3569, %v3601
    %v3676 = vsel %vm200, %v3571, %v3603
    %v3677 = vsel %vm200, %v3573, %v3605
    %v3678 = vsel %vm200, %v3575, %v3607
    %v3679 = vsel %vm200, %v3577, %v3609
    %v3680 = vsel %vm200, %v3579, %v3611
    %v3681 = vsel %vm200, %v3581, %v3613
    %v3682 = vsel %vm200, %v3583, %v3615
    %v3683 = vsel %vm200, %v3585, %v3617
    %v3684 = vsel %vm200, %v3587, %v3619
    %v3685 = vsel %vm200, %v3589, %v3621
    %v3686 = vsel %vm200, %v3527, %v3559
    %v3687 = vsel %vm200, %v3529, %v3561
    %v3688 = vsel %vm200, %v3531, %v3563
    %v3689 = vsel %vm200, %v3533, %v3565
    %v3690 = vsel %vm200, %v3535, %v3567
    %v3691 = vsel %vm200, %v3537, %v3569
    %v3692 = vsel %vm200, %v3539, %v3571
    %v3693 = vsel %vm200, %v3541, %v3573
    %v3694 = vsel %vm200, %v3543, %v3575
    %v3695 = vsel %vm200, %v3545, %v3577
    %v3696 = vsel %vm200, %v3547, %v3579
    %v3697 = vsel %vm200, %v3549, %v3581
    %v3698 = vsel %vm200, %v3551, %v3583
    %v3699 = vsel %vm200, %v3553, %v3585
    %v3700 = vsel %vm200, %v3555, %v3587
    %v3701 = vsel %vm200, %v3557, %v3589
    %v3702 = vsel %vm200, %v3623, %v3527
    %v3703 = vsel %vm200, %v3625, %v3529
    %v3704 = vsel %vm200, %v3627, %v3531
    %v3705 = vsel %vm200, %v3629, %v3533
    %v3706 = vsel %vm200, %v3631, %v3535
    %v3707 = vsel %vm200, %v3633, %v3537
    %v3708 = vsel %vm200, %v3635, %v3539
    %v3709 = vsel %vm200, %v3637, %v3541
    %v3710 = vsel %vm200, %v3639, %v3543
    %v3711 = vsel %vm200, %v3641, %v3545
    %v3712 = vsel %vm200, %v3643, %v3547
    %v3713 = vsel %vm200, %v3645, %v3549
    %v3714 = vsel %vm200, %v3647, %v3551
    %v3715 = vsel %vm200, %v3649, %v3553
    %v3716 = vsel %vm200, %v3651, %v3555
    %v3717 = vsel %vm200, %v3653, %v3557
    %v3718 = vmul.f32 %v3702, %v104
    %v3719 = vmul.f32 %v3686, %v105
    %v3720 = vmul.f32 %v3670, %v106
    %v3721 = vmul.f32 %v3654, %v107
    %v3722 = vmul.f32 %v3703, %v104
    %v3723 = vmul.f32 %v3687, %v105
    %v3724 = vmul.f32 %v3671, %v106
    %v3725 = vmul.f32 %v3655, %v107
    %v3726 = vmul.f32 %v3704, %v104
    %v3727 = vmul.f32 %v3688, %v105
    %v3728 = vmul.f32 %v3672, %v106
    %v3729 = vmul.f32 %v3656, %v107
    %v3730 = vmul.f32 %v3705, %v104
    %v3731 = vmul.f32 %v3689, %v105
    %v3732 = vmul.f32 %v3673, %v106
    %v3733 = vmul.f32 %v3657, %v107
    %v3734 = vmul.f32 %v3706, %v104
    %v3735 = vmul.f32 %v3690, %v105
    %v3736 = vmul.f32 %v3674, %v106
    %v3737 = vmul.f32 %v3658, %v107
    %v3738 = vmul.f32 %v3707, %v104
    %v3739 = vmul.f32 %v3691, %v105
    %v3740 = vmul.f32 %v3675, %v106
    %v3741 = vmul.f32 %v3659, %v107
    %v3742 = vmul.f32 %v3708, %v104
    %v3743 = vmul.f32 %v3692, %v105
    %v3744 = vmul.f32 %v3676, %v106
    %v3745 = vmul.f32 %v3660, %v107
    %v3746 = vmul.f32 %v3709, %v104
    %v3747 = vmul.f32 %v3693, %v105
    %v3748 = vmul.f32 %v3677, %v106
    %v3749 = vmul.f32 %v3661, %v107
    %v3750 = vmul.f32 %v3710, %v104
    %v3751 = vmul.f32 %v3694, %v105
    %v3752 = vmul.f32 %v3678, %v106
    %v3753 = vmul.f32 %v3662, %v107
    %v3754 = vmul.f32 %v3711, %v104
    %v3755 = vmul.f32 %v3695, %v105
    %v3756 = vmul.f32 %v3679, %v106
    %v3757 = vmul.f32 %v3663, %v107
    %v3758 = vmul.f32 %v3712, %v104
    %v3759 = vmul.f32 %v3696, %v105
    %v3760 = vmul.f32 %v3680, %v106
    %v3761 = vmul.f32 %v3664, %v107
    %v3762 = vmul.f32 %v3713, %v104
    %v3763 = vmul.f32 %v3697, %v105
    %v3764 = vmul.f32 %v3681, %v106
    %v3765 = vmul.f32 %v3665, %v107
    %v3766 = vmul.f32 %v3714, %v104
    %v3767 = vmul.f32 %v3698, %v105
    %v3768 = vmul.f32 %v3682, %v106
    %v3769 = vmul.f32 %v3666, %v107
    %v3770 = vmul.f32 %v3715, %v104
    %v3771 = vmul.f32 %v3699, %v105
    %v3772 = vmul.f32 %v3683, %v106
    %v3773 = vmul.f32 %v3667, %v107
    %v3774 = vmul.f32 %v3716, %v104
    %v3775 = vmul.f32 %v3700, %v105
    %v3776 = vmul.f32 %v3684, %v106
    %v3777 = vmul.f32 %v3668, %v107
    %v3778 = vmul.f32 %v3717, %v104
    %v3779 = vmul.f32 %v3701, %v105
    %v3780 = vmul.f32 %v3685, %v106
    %v3781 = vmul.f32 %v3669, %v107
    %3782 = vrot.lane.b32.xlu0 %v3394, 127
    %v3783 = vpop.permute.xlu0 %3782
    %3784 = vrot.lane.b32.xlu0 %v3398, 127
    %v3785 = vpop.permute.xlu0 %3784
    %3786 = vrot.lane.b32.xlu0 %v3402, 127
    %v3787 = vpop.permute.xlu0 %3786
    %3788 = vrot.lane.b32.xlu0 %v3406, 127
    %v3789 = vpop.permute.xlu0 %3788
    %3790 = vrot.lane.b32.xlu0 %v3410, 127
    %v3791 = vpop.permute.xlu0 %3790
    %3792 = vrot.lane.b32.xlu0 %v3414, 127
    %v3793 = vpop.permute.xlu0 %3792
    %3794 = vrot.lane.b32.xlu0 %v3418, 127
    %v3795 = vpop.permute.xlu0 %3794
    %3796 = vrot.lane.b32.xlu0 %v3422, 127
    %v3797 = vpop.permute.xlu0 %3796
    %3798 = vrot.lane.b32.xlu0 %v3426, 127
    %v3799 = vpop.permute.xlu0 %3798
    %3800 = vrot.lane.b32.xlu0 %v3430, 127
    %v3801 = vpop.permute.xlu0 %3800
    %3802 = vrot.lane.b32.xlu0 %v3434, 127
    %v3803 = vpop.permute.xlu0 %3802
    %3804 = vrot.lane.b32.xlu0 %v3438, 127
    %v3805 = vpop.permute.xlu0 %3804
    %3806 = vrot.lane.b32.xlu0 %v3442, 127
    %v3807 = vpop.permute.xlu0 %3806
    %3808 = vrot.lane.b32.xlu0 %v3446, 127
    %v3809 = vpop.permute.xlu0 %3808
    %3810 = vrot.lane.b32.xlu0 %v3450, 127
    %v3811 = vpop.permute.xlu0 %3810
    %3812 = vrot.lane.b32.xlu0 %v3454, 127
    %v3813 = vpop.permute.xlu0 %3812
    %3814 = vrot.lane.b32.xlu0 %v3395, 127
    %v3815 = vpop.permute.xlu0 %3814
    %3816 = vrot.lane.b32.xlu0 %v3399, 127
    %v3817 = vpop.permute.xlu0 %3816
    %3818 = vrot.lane.b32.xlu0 %v3403, 127
    %v3819 = vpop.permute.xlu0 %3818
    %3820 = vrot.lane.b32.xlu0 %v3407, 127
    %v3821 = vpop.permute.xlu0 %3820
    %3822 = vrot.lane.b32.xlu0 %v3411, 127
    %v3823 = vpop.permute.xlu0 %3822
    %3824 = vrot.lane.b32.xlu0 %v3415, 127
    %v3825 = vpop.permute.xlu0 %3824
    %3826 = vrot.lane.b32.xlu0 %v3419, 127
    %v3827 = vpop.permute.xlu0 %3826
    %3828 = vrot.lane.b32.xlu0 %v3423, 127
    %v3829 = vpop.permute.xlu0 %3828
    %3830 = vrot.lane.b32.xlu0 %v3427, 127
    %v3831 = vpop.permute.xlu0 %3830
    %3832 = vrot.lane.b32.xlu0 %v3431, 127
    %v3833 = vpop.permute.xlu0 %3832
    %3834 = vrot.lane.b32.xlu0 %v3435, 127
    %v3835 = vpop.permute.xlu0 %3834
    %3836 = vrot.lane.b32.xlu0 %v3439, 127
    %v3837 = vpop.permute.xlu0 %3836
    %3838 = vrot.lane.b32.xlu0 %v3443, 127
    %v3839 = vpop.permute.xlu0 %3838
    %3840 = vrot.lane.b32.xlu0 %v3447, 127
    %v3841 = vpop.permute.xlu0 %3840
    %3842 = vrot.lane.b32.xlu0 %v3451, 127
    %v3843 = vpop.permute.xlu0 %3842
    %3844 = vrot.lane.b32.xlu0 %v3455, 127
    %v3845 = vpop.permute.xlu0 %3844
    %3846 = vrot.lane.b32.xlu0 %v3396, 127
    %v3847 = vpop.permute.xlu0 %3846
    %3848 = vrot.lane.b32.xlu0 %v3400, 127
    %v3849 = vpop.permute.xlu0 %3848
    %3850 = vrot.lane.b32.xlu0 %v3404, 127
    %v3851 = vpop.permute.xlu0 %3850
    %3852 = vrot.lane.b32.xlu0 %v3408, 127
    %v3853 = vpop.permute.xlu0 %3852
    %3854 = vrot.lane.b32.xlu0 %v3412, 127
    %v3855 = vpop.permute.xlu0 %3854
    %3856 = vrot.lane.b32.xlu0 %v3416, 127
    %v3857 = vpop.permute.xlu0 %3856
    %3858 = vrot.lane.b32.xlu0 %v3420, 127
    %v3859 = vpop.permute.xlu0 %3858
    %3860 = vrot.lane.b32.xlu0 %v3424, 127
    %v3861 = vpop.permute.xlu0 %3860
    %3862 = vrot.lane.b32.xlu0 %v3428, 127
    %v3863 = vpop.permute.xlu0 %3862
    %3864 = vrot.lane.b32.xlu0 %v3432, 127
    %v3865 = vpop.permute.xlu0 %3864
    %3866 = vrot.lane.b32.xlu0 %v3436, 127
    %v3867 = vpop.permute.xlu0 %3866
    %3868 = vrot.lane.b32.xlu0 %v3440, 127
    %v3869 = vpop.permute.xlu0 %3868
    %3870 = vrot.lane.b32.xlu0 %v3444, 127
    %v3871 = vpop.permute.xlu0 %3870
    %3872 = vrot.lane.b32.xlu0 %v3448, 127
    %v3873 = vpop.permute.xlu0 %3872
    %3874 = vrot.lane.b32.xlu0 %v3452, 127
    %v3875 = vpop.permute.xlu0 %3874
    %3876 = vrot.lane.b32.xlu0 %v3456, 127
    %v3877 = vpop.permute.xlu0 %3876
    %3878 = vrot.lane.b32.xlu0 %v3397, 127
    %v3879 = vpop.permute.xlu0 %3878
    %3880 = vrot.lane.b32.xlu0 %v3401, 127
    %v3881 = vpop.permute.xlu0 %3880
    %3882 = vrot.lane.b32.xlu0 %v3405, 127
    %v3883 = vpop.permute.xlu0 %3882
    %3884 = vrot.lane.b32.xlu0 %v3409, 127
    %v3885 = vpop.permute.xlu0 %3884
    %3886 = vrot.lane.b32.xlu0 %v3413, 127
    %v3887 = vpop.permute.xlu0 %3886
    %3888 = vrot.lane.b32.xlu0 %v3417, 127
    %v3889 = vpop.permute.xlu0 %3888
    %3890 = vrot.lane.b32.xlu0 %v3421, 127
    %v3891 = vpop.permute.xlu0 %3890
    %3892 = vrot.lane.b32.xlu0 %v3425, 127
    %v3893 = vpop.permute.xlu0 %3892
    %3894 = vrot.lane.b32.xlu0 %v3429, 127
    %v3895 = vpop.permute.xlu0 %3894
    %3896 = vrot.lane.b32.xlu0 %v3433, 127
    %v3897 = vpop.permute.xlu0 %3896
    %3898 = vrot.lane.b32.xlu0 %v3437, 127
    %v3899 = vpop.permute.xlu0 %3898
    %3900 = vrot.lane.b32.xlu0 %v3441, 127
    %v3901 = vpop.permute.xlu0 %3900
    %3902 = vrot.lane.b32.xlu0 %v3445, 127
    %v3903 = vpop.permute.xlu0 %3902
    %3904 = vrot.lane.b32.xlu0 %v3449, 127
    %v3905 = vpop.permute.xlu0 %3904
    %3906 = vrot.lane.b32.xlu0 %v3453, 127
    %v3907 = vpop.permute.xlu0 %3906
    %3908 = vrot.lane.b32.xlu0 %v3457, 127
    %v3909 = vpop.permute.xlu0 %3908
    %v3910 = vsel %vm217, %v3847, %v3879
    %v3911 = vsel %vm217, %v3849, %v3881
    %v3912 = vsel %vm217, %v3851, %v3883
    %v3913 = vsel %vm217, %v3853, %v3885
    %v3914 = vsel %vm217, %v3855, %v3887
    %v3915 = vsel %vm217, %v3857, %v3889
    %v3916 = vsel %vm217, %v3859, %v3891
    %v3917 = vsel %vm217, %v3861, %v3893
    %v3918 = vsel %vm217, %v3863, %v3895
    %v3919 = vsel %vm217, %v3865, %v3897
    %v3920 = vsel %vm217, %v3867, %v3899
    %v3921 = vsel %vm217, %v3869, %v3901
    %v3922 = vsel %vm217, %v3871, %v3903
    %v3923 = vsel %vm217, %v3873, %v3905
    %v3924 = vsel %vm217, %v3875, %v3907
    %v3925 = vsel %vm217, %v3877, %v3909
    %v3926 = vsel %vm217, %v3815, %v3847
    %v3927 = vsel %vm217, %v3817, %v3849
    %v3928 = vsel %vm217, %v3819, %v3851
    %v3929 = vsel %vm217, %v3821, %v3853
    %v3930 = vsel %vm217, %v3823, %v3855
    %v3931 = vsel %vm217, %v3825, %v3857
    %v3932 = vsel %vm217, %v3827, %v3859
    %v3933 = vsel %vm217, %v3829, %v3861
    %v3934 = vsel %vm217, %v3831, %v3863
    %v3935 = vsel %vm217, %v3833, %v3865
    %v3936 = vsel %vm217, %v3835, %v3867
    %v3937 = vsel %vm217, %v3837, %v3869
    %v3938 = vsel %vm217, %v3839, %v3871
    %v3939 = vsel %vm217, %v3841, %v3873
    %v3940 = vsel %vm217, %v3843, %v3875
    %v3941 = vsel %vm217, %v3845, %v3877
    %v3942 = vsel %vm217, %v3783, %v3815
    %v3943 = vsel %vm217, %v3785, %v3817
    %v3944 = vsel %vm217, %v3787, %v3819
    %v3945 = vsel %vm217, %v3789, %v3821
    %v3946 = vsel %vm217, %v3791, %v3823
    %v3947 = vsel %vm217, %v3793, %v3825
    %v3948 = vsel %vm217, %v3795, %v3827
    %v3949 = vsel %vm217, %v3797, %v3829
    %v3950 = vsel %vm217, %v3799, %v3831
    %v3951 = vsel %vm217, %v3801, %v3833
    %v3952 = vsel %vm217, %v3803, %v3835
    %v3953 = vsel %vm217, %v3805, %v3837
    %v3954 = vsel %vm217, %v3807, %v3839
    %v3955 = vsel %vm217, %v3809, %v3841
    %v3956 = vsel %vm217, %v3811, %v3843
    %v3957 = vsel %vm217, %v3813, %v3845
    %v3958 = vsel %vm217, %v3879, %v3783
    %v3959 = vsel %vm217, %v3881, %v3785
    %v3960 = vsel %vm217, %v3883, %v3787
    %v3961 = vsel %vm217, %v3885, %v3789
    %v3962 = vsel %vm217, %v3887, %v3791
    %v3963 = vsel %vm217, %v3889, %v3793
    %v3964 = vsel %vm217, %v3891, %v3795
    %v3965 = vsel %vm217, %v3893, %v3797
    %v3966 = vsel %vm217, %v3895, %v3799
    %v3967 = vsel %vm217, %v3897, %v3801
    %v3968 = vsel %vm217, %v3899, %v3803
    %v3969 = vsel %vm217, %v3901, %v3805
    %v3970 = vsel %vm217, %v3903, %v3807
    %v3971 = vsel %vm217, %v3905, %v3809
    %v3972 = vsel %vm217, %v3907, %v3811
    %v3973 = vsel %vm217, %v3909, %v3813
    %v3974 = vmul.f32 %v3942, %v116
    %v3975 = vmul.f32 %v3926, %v117
    %v3976 = vmul.f32 %v3910, %v118
    %v3977 = vmul.f32 %v3958, %v119
    %v3978 = vmul.f32 %v3943, %v116
    %v3979 = vmul.f32 %v3927, %v117
    %v3980 = vmul.f32 %v3911, %v118
    %v3981 = vmul.f32 %v3959, %v119
    %v3982 = vmul.f32 %v3944, %v116
    %v3983 = vmul.f32 %v3928, %v117
    %v3984 = vmul.f32 %v3912, %v118
    %v3985 = vmul.f32 %v3960, %v119
    %v3986 = vmul.f32 %v3945, %v116
    %v3987 = vmul.f32 %v3929, %v117
    %v3988 = vmul.f32 %v3913, %v118
    %v3989 = vmul.f32 %v3961, %v119
    %v3990 = vmul.f32 %v3946, %v116
    %v3991 = vmul.f32 %v3930, %v117
    %v3992 = vmul.f32 %v3914, %v118
    %v3993 = vmul.f32 %v3962, %v119
    %v3994 = vmul.f32 %v3947, %v116
    %v3995 = vmul.f32 %v3931, %v117
    %v3996 = vmul.f32 %v3915, %v118
    %v3997 = vmul.f32 %v3963, %v119
    %v3998 = vmul.f32 %v3948, %v116
    %v3999 = vmul.f32 %v3932, %v117
    %v4000 = vmul.f32 %v3916, %v118
    %v4001 = vmul.f32 %v3964, %v119
    %v4002 = vmul.f32 %v3949, %v116
    %v4003 = vmul.f32 %v3933, %v117
    %v4004 = vmul.f32 %v3917, %v118
    %v4005 = vmul.f32 %v3965, %v119
    %v4006 = vmul.f32 %v3950, %v116
    %v4007 = vmul.f32 %v3934, %v117
    %v4008 = vmul.f32 %v3918, %v118
    %v4009 = vmul.f32 %v3966, %v119
    %v4010 = vmul.f32 %v3951, %v116
    %v4011 = vmul.f32 %v3935, %v117
    %v4012 = vmul.f32 %v3919, %v118
    %v4013 = vmul.f32 %v3967, %v119
    %v4014 = vmul.f32 %v3952, %v116
    %v4015 = vmul.f32 %v3936, %v117
    %v4016 = vmul.f32 %v3920, %v118
    %v4017 = vmul.f32 %v3968, %v119
    %v4018 = vmul.f32 %v3953, %v116
    %v4019 = vmul.f32 %v3937, %v117
    %v4020 = vmul.f32 %v3921, %v118
    %v4021 = vmul.f32 %v3969, %v119
    %v4022 = vmul.f32 %v3954, %v116
    %v4023 = vmul.f32 %v3938, %v117
    %v4024 = vmul.f32 %v3922, %v118
    %v4025 = vmul.f32 %v3970, %v119
    %v4026 = vmul.f32 %v3955, %v116
    %v4027 = vmul.f32 %v3939, %v117
    %v4028 = vmul.f32 %v3923, %v118
    %v4029 = vmul.f32 %v3971, %v119
    %v4030 = vmul.f32 %v3956, %v116
    %v4031 = vmul.f32 %v3940, %v117
    %v4032 = vmul.f32 %v3924, %v118
    %v4033 = vmul.f32 %v3972, %v119
    %v4034 = vmul.f32 %v3957, %v116
    %v4035 = vmul.f32 %v3941, %v117
    %v4036 = vmul.f32 %v3925, %v118
    %v4037 = vmul.f32 %v3973, %v119
    %4038 = vmatprep.subr.mxu0 %v3395
    %4039 = vmatpush1.msra.mxu0 %v3394
    %4040 = vmatprep.subr.mxu0 %v3399
    %4041 = vmatpush1.msra.mxu0 %v3398
    %4042 = vmatprep.subr.mxu0 %v3403
    %4043 = vmatpush1.msra.mxu0 %v3402
    %4044 = vmatprep.subr.mxu0 %v3407
    %4045 = vmatpush1.msra.mxu0 %v3406
    %4046 = vmatprep.subr.mxu0 %v3411
    %4047 = vmatpush1.msra.mxu0 %v3410
    %4048 = vmatprep.subr.mxu0 %v3415
    %4049 = vmatpush1.msra.mxu0 %v3414
    %4050 = vmatprep.subr.mxu0 %v3419
    %4051 = vmatpush1.msra.mxu0 %v3418
    %4052 = vmatprep.subr.mxu0 %v3423
    %4053 = vmatpush1.msra.mxu0 %v3422
    %4054 = vmatprep.subr.mxu0 %v3427
    %4055 = vmatpush1.msra.mxu0 %v3426
    %4056 = vmatprep.subr.mxu0 %v3431
    %4057 = vmatpush1.msra.mxu0 %v3430
    %4058 = vmatprep.subr.mxu0 %v3435
    %4059 = vmatpush1.msra.mxu0 %v3434
    %4060 = vmatprep.subr.mxu0 %v3439
    %4061 = vmatpush1.msra.mxu0 %v3438
    %4062 = vmatprep.subr.mxu0 %v3443
    %4063 = vmatpush1.msra.mxu0 %v3442
    %4064 = vmatprep.subr.mxu0 %v3447
    %4065 = vmatpush1.msra.mxu0 %v3446
    %4066 = vmatprep.subr.mxu0 %v3451
    %4067 = vmatpush1.msra.mxu0 %v3450
    %4068 = vmatprep.subr.mxu0 %v3455
    %4069 = vmatpush1.msra.mxu0 %v3454
    %4070 = vmatprep.subr.mxu0 0.0
    %4071 = vmatpush1.msra.mxu0 0.0
    %4072 = vmatprep.subr.mxu0 0.0
    %4073 = vmatpush1.msra.mxu0 0.0
    %4074 = vmatprep.subr.mxu0 0.0
    %4075 = vmatpush1.msra.mxu0 0.0
    %4076 = vmatprep.subr.mxu0 0.0
    %4077 = vmatpush1.msra.mxu0 0.0
    %4078 = vmatprep.subr.mxu0 0.0
    %4079 = vmatpush1.msra.mxu0 0.0
    %4080 = vmatprep.subr.mxu0 0.0
    %4081 = vmatpush1.msra.mxu0 0.0
    %4082 = vmatprep.subr.mxu0 0.0
    %4083 = vmatpush1.msra.mxu0 0.0
    %4084 = vmatprep.subr.mxu0 0.0
    %4085 = vmatpush1.msra.mxu0 0.0
    %4086 = vmatprep.subr.mxu0 0.0
    %4087 = vmatpush1.msra.mxu0 0.0
    %4088 = vmatprep.subr.mxu0 0.0
    %4089 = vmatpush1.msra.mxu0 0.0
    %4090 = vmatprep.subr.mxu0 0.0
    %4091 = vmatpush1.msra.mxu0 0.0
    %4092 = vmatprep.subr.mxu0 0.0
    %4093 = vmatpush1.msra.mxu0 0.0
    %4094 = vmatprep.subr.mxu0 0.0
    %4095 = vmatpush1.msra.mxu0 0.0
    %4096 = vmatprep.subr.mxu0 0.0
    %4097 = vmatpush1.msra.mxu0 0.0
    %4098 = vmatprep.subr.mxu0 0.0
    %4099 = vmatpush1.msra.mxu0 0.0
    %4100 = vmatprep.subr.mxu0 0.0
    %4101 = vmatpush1.msra.mxu0 0.0
    %4102 = vmatprep.mubr.f32.mxu0 0.0
    %4103 = vmatmul.mubr.f32.gmra.mrb[0].mxu0 %v3476
    %v4104 = vpop.f32.mrb[0].mxu0
    %v4105 = vadd.f32 0.0, %v4104
    %v4106 = vpop.f32.mrb[0].mxu0
    %v4107 = vadd.f32 0.0, %v4106
    %4108 = vmatprep.mubr.f32.mxu0 0.0
    %4109 = vmatmul.mubr.f32.gmra.mrb[0].mxu0 %v3477
    %v4110 = vpop.f32.mrb[0].mxu0
    %v4111 = vadd.f32 0.0, %v4110
    %v4112 = vpop.f32.mrb[0].mxu0
    %v4113 = vadd.f32 0.0, %v4112
    %4114 = vmatprep.mubr.f32.mxu0 0.0
    %4115 = vmatmul.mubr.f32.gmra.mrb[0].mxu0 %v3478
    %v4116 = vpop.f32.mrb[0].mxu0
    %v4117 = vadd.f32 0.0, %v4116
    %v4118 = vpop.f32.mrb[0].mxu0
    %v4119 = vadd.f32 0.0, %v4118
    %4120 = vmatprep.mubr.f32.mxu0 0.0
    %4121 = vmatmul.mubr.f32.gmra.mrb[0].mxu0 %v3479
    %v4122 = vpop.f32.mrb[0].mxu0
    %v4123 = vadd.f32 0.0, %v4122
    %v4124 = vpop.f32.mrb[0].mxu0
    %v4125 = vadd.f32 0.0, %v4124
    %4126 = vmatprep.mubr.f32.mxu0 0.0
    %4127 = vmatmul.mubr.f32.gmra.mrb[0].mxu0 %v3480
    %v4128 = vpop.f32.mrb[0].mxu0
    %v4129 = vadd.f32 0.0, %v4128
    %v4130 = vpop.f32.mrb[0].mxu0
    %v4131 = vadd.f32 0.0, %v4130
    %4132 = vmatprep.mubr.f32.mxu0 0.0
    %4133 = vmatmul.mubr.f32.gmra.mrb[0].mxu0 %v3481
    %v4134 = vpop.f32.mrb[0].mxu0
    %v4135 = vadd.f32 0.0, %v4134
    %v4136 = vpop.f32.mrb[0].mxu0
    %v4137 = vadd.f32 0.0, %v4136
    %4138 = vmatprep.mubr.f32.mxu0 0.0
    %4139 = vmatmul.mubr.f32.gmra.mrb[0].mxu0 %v3482
    %v4140 = vpop.f32.mrb[0].mxu0
    %v4141 = vadd.f32 0.0, %v4140
    %v4142 = vpop.f32.mrb[0].mxu0
    %v4143 = vadd.f32 0.0, %v4142
    %4144 = vmatprep.mubr.f32.mxu0 0.0
    %4145 = vmatmul.mubr.f32.gmra.mrb[0].mxu0 %v3483
    %v4146 = vpop.f32.mrb[0].mxu0
    %v4147 = vadd.f32 0.0, %v4146
    %v4148 = vpop.f32.mrb[0].mxu0
    %v4149 = vadd.f32 0.0, %v4148
    %4150 = vmatprep.mubr.f32.mxu0 0.0
    %4151 = vmatmul.mubr.f32.gmra.mrb[0].mxu0 %v3484
    %v4152 = vpop.f32.mrb[0].mxu0
    %v4153 = vadd.f32 0.0, %v4152
    %v4154 = vpop.f32.mrb[0].mxu0
    %v4155 = vadd.f32 0.0, %v4154
    %4156 = vmatprep.mubr.f32.mxu0 0.0
    %4157 = vmatmul.mubr.f32.gmra.mrb[0].mxu0 %v3485
    %v4158 = vpop.f32.mrb[0].mxu0
    %v4159 = vadd.f32 0.0, %v4158
    %v4160 = vpop.f32.mrb[0].mxu0
    %v4161 = vadd.f32 0.0, %v4160
    %4162 = vmatprep.mubr.f32.mxu0 0.0
    %4163 = vmatmul.mubr.f32.gmra.mrb[0].mxu0 %v3486
    %v4164 = vpop.f32.mrb[0].mxu0
    %v4165 = vadd.f32 0.0, %v4164
    %v4166 = vpop.f32.mrb[0].mxu0
    %v4167 = vadd.f32 0.0, %v4166
    %4168 = vmatprep.mubr.f32.mxu0 0.0
    %4169 = vmatmul.mubr.f32.gmra.mrb[0].mxu0 %v3487
    %v4170 = vpop.f32.mrb[0].mxu0
    %v4171 = vadd.f32 0.0, %v4170
    %v4172 = vpop.f32.mrb[0].mxu0
    %v4173 = vadd.f32 0.0, %v4172
    %4174 = vmatprep.mubr.f32.mxu0 0.0
    %4175 = vmatmul.mubr.f32.gmra.mrb[0].mxu0 %v3488
    %v4176 = vpop.f32.mrb[0].mxu0
    %v4177 = vadd.f32 0.0, %v4176
    %v4178 = vpop.f32.mrb[0].mxu0
    %v4179 = vadd.f32 0.0, %v4178
    %4180 = vmatprep.mubr.f32.mxu0 0.0
    %4181 = vmatmul.mubr.f32.gmra.mrb[0].mxu0 %v3489
    %v4182 = vpop.f32.mrb[0].mxu0
    %v4183 = vadd.f32 0.0, %v4182
    %v4184 = vpop.f32.mrb[0].mxu0
    %v4185 = vadd.f32 0.0, %v4184
    %4186 = vmatprep.mubr.f32.mxu0 0.0
    %4187 = vmatmul.mubr.f32.gmra.mrb[0].mxu0 %v3490
    %v4188 = vpop.f32.mrb[0].mxu0
    %v4189 = vadd.f32 0.0, %v4188
    %v4190 = vpop.f32.mrb[0].mxu0
    %v4191 = vadd.f32 0.0, %v4190
    %4192 = vmatprep.mubr.f32.mxu0 0.0
    %4193 = vmatmul.mubr.f32.gmra.mrb[0].mxu0 %v3491
    %v4194 = vpop.f32.mrb[0].mxu0
    %v4195 = vadd.f32 0.0, %v4194
    %v4196 = vpop.f32.mrb[0].mxu0
    %v4197 = vadd.f32 0.0, %v4196
    %4198 = vdwg.mxu0
    %4199 = vmatprep.subr.mxu0 %v3397
    %4200 = vmatpush1.msra.mxu0 %v3396
    %4201 = vmatprep.subr.mxu0 %v3401
    %4202 = vmatpush1.msra.mxu0 %v3400
    %4203 = vmatprep.subr.mxu0 %v3405
    %4204 = vmatpush1.msra.mxu0 %v3404
    %4205 = vmatprep.subr.mxu0 %v3409
    %4206 = vmatpush1.msra.mxu0 %v3408
    %4207 = vmatprep.subr.mxu0 %v3413
    %4208 = vmatpush1.msra.mxu0 %v3412
    %4209 = vmatprep.subr.mxu0 %v3417
    %4210 = vmatpush1.msra.mxu0 %v3416
    %4211 = vmatprep.subr.mxu0 %v3421
    %4212 = vmatpush1.msra.mxu0 %v3420
    %4213 = vmatprep.subr.mxu0 %v3425
    %4214 = vmatpush1.msra.mxu0 %v3424
    %4215 = vmatprep.subr.mxu0 %v3429
    %4216 = vmatpush1.msra.mxu0 %v3428
    %4217 = vmatprep.subr.mxu0 %v3433
    %4218 = vmatpush1.msra.mxu0 %v3432
    %4219 = vmatprep.subr.mxu0 %v3437
    %4220 = vmatpush1.msra.mxu0 %v3436
    %4221 = vmatprep.subr.mxu0 %v3441
    %4222 = vmatpush1.msra.mxu0 %v3440
    %4223 = vmatprep.subr.mxu0 %v3445
    %4224 = vmatpush1.msra.mxu0 %v3444
    %4225 = vmatprep.subr.mxu0 %v3449
    %4226 = vmatpush1.msra.mxu0 %v3448
    %4227 = vmatprep.subr.mxu0 %v3453
    %4228 = vmatpush1.msra.mxu0 %v3452
    %4229 = vmatprep.subr.mxu0 %v3457
    %4230 = vmatpush1.msra.mxu0 %v3456
    %4231 = vmatprep.subr.mxu0 0.0
    %4232 = vmatpush1.msra.mxu0 0.0
    %4233 = vmatprep.subr.mxu0 0.0
    %4234 = vmatpush1.msra.mxu0 0.0
    %4235 = vmatprep.subr.mxu0 0.0
    %4236 = vmatpush1.msra.mxu0 0.0
    %4237 = vmatprep.subr.mxu0 0.0
    %4238 = vmatpush1.msra.mxu0 0.0
    %4239 = vmatprep.subr.mxu0 0.0
    %4240 = vmatpush1.msra.mxu0 0.0
    %4241 = vmatprep.subr.mxu0 0.0
    %4242 = vmatpush1.msra.mxu0 0.0
    %4243 = vmatprep.subr.mxu0 0.0
    %4244 = vmatpush1.msra.mxu0 0.0
    %4245 = vmatprep.subr.mxu0 0.0
    %4246 = vmatpush1.msra.mxu0 0.0
    %4247 = vmatprep.subr.mxu0 0.0
    %4248 = vmatpush1.msra.mxu0 0.0
    %4249 = vmatprep.subr.mxu0 0.0
    %4250 = vmatpush1.msra.mxu0 0.0
    %4251 = vmatprep.subr.mxu0 0.0
    %4252 = vmatpush1.msra.mxu0 0.0
    %4253 = vmatprep.subr.mxu0 0.0
    %4254 = vmatpush1.msra.mxu0 0.0
    %4255 = vmatprep.subr.mxu0 0.0
    %4256 = vmatpush1.msra.mxu0 0.0
    %4257 = vmatprep.subr.mxu0 0.0
    %4258 = vmatpush1.msra.mxu0 0.0
    %4259 = vmatprep.subr.mxu0 0.0
    %4260 = vmatpush1.msra.mxu0 0.0
    %4261 = vmatprep.subr.mxu0 0.0
    %4262 = vmatpush1.msra.mxu0 0.0
    %4263 = vmatprep.mubr.f32.mxu0 0.0
    %4264 = vmatmul.mubr.f32.gmra.mrb[0].mxu0 %v3476
    %v4265 = vpop.f32.mrb[0].mxu0
    %v4266 = vadd.f32 0.0, %v4265
    %v4267 = vpop.f32.mrb[0].mxu0
    %v4268 = vadd.f32 0.0, %v4267
    %4269 = vmatprep.mubr.f32.mxu0 0.0
    %4270 = vmatmul.mubr.f32.gmra.mrb[0].mxu0 %v3477
    %v4271 = vpop.f32.mrb[0].mxu0
    %v4272 = vadd.f32 0.0, %v4271
    %v4273 = vpop.f32.mrb[0].mxu0
    %v4274 = vadd.f32 0.0, %v4273
    %4275 = vmatprep.mubr.f32.mxu0 0.0
    %4276 = vmatmul.mubr.f32.gmra.mrb[0].mxu0 %v3478
    %v4277 = vpop.f32.mrb[0].mxu0
    %v4278 = vadd.f32 0.0, %v4277
    %v4279 = vpop.f32.mrb[0].mxu0
    %v4280 = vadd.f32 0.0, %v4279
    %4281 = vmatprep.mubr.f32.mxu0 0.0
    %4282 = vmatmul.mubr.f32.gmra.mrb[0].mxu0 %v3479
    %v4283 = vpop.f32.mrb[0].mxu0
    %v4284 = vadd.f32 0.0, %v4283
    %v4285 = vpop.f32.mrb[0].mxu0
    %v4286 = vadd.f32 0.0, %v4285
    %4287 = vmatprep.mubr.f32.mxu0 0.0
    %4288 = vmatmul.mubr.f32.gmra.mrb[0].mxu0 %v3480
    %v4289 = vpop.f32.mrb[0].mxu0
    %v4290 = vadd.f32 0.0, %v4289
    %v4291 = vpop.f32.mrb[0].mxu0
    %v4292 = vadd.f32 0.0, %v4291
    %4293 = vmatprep.mubr.f32.mxu0 0.0
    %4294 = vmatmul.mubr.f32.gmra.mrb[0].mxu0 %v3481
    %v4295 = vpop.f32.mrb[0].mxu0
    %v4296 = vadd.f32 0.0, %v4295
    %v4297 = vpop.f32.mrb[0].mxu0
    %v4298 = vadd.f32 0.0, %v4297
    %4299 = vmatprep.mubr.f32.mxu0 0.0
    %4300 = vmatmul.mubr.f32.gmra.mrb[0].mxu0 %v3482
    %v4301 = vpop.f32.mrb[0].mxu0
    %v4302 = vadd.f32 0.0, %v4301
    %v4303 = vpop.f32.mrb[0].mxu0
    %v4304 = vadd.f32 0.0, %v4303
    %4305 = vmatprep.mubr.f32.mxu0 0.0
    %4306 = vmatmul.mubr.f32.gmra.mrb[0].mxu0 %v3483
    %v4307 = vpop.f32.mrb[0].mxu0
    %v4308 = vadd.f32 0.0, %v4307
    %v4309 = vpop.f32.mrb[0].mxu0
    %v4310 = vadd.f32 0.0, %v4309
    %4311 = vmatprep.mubr.f32.mxu0 0.0
    %4312 = vmatmul.mubr.f32.gmra.mrb[0].mxu0 %v3484
    %v4313 = vpop.f32.mrb[0].mxu0
    %v4314 = vadd.f32 0.0, %v4313
    %v4315 = vpop.f32.mrb[0].mxu0
    %v4316 = vadd.f32 0.0, %v4315
    %4317 = vmatprep.mubr.f32.mxu0 0.0
    %4318 = vmatmul.mubr.f32.gmra.mrb[0].mxu0 %v3485
    %v4319 = vpop.f32.mrb[0].mxu0
    %v4320 = vadd.f32 0.0, %v4319
    %v4321 = vpop.f32.mrb[0].mxu0
    %v4322 = vadd.f32 0.0, %v4321
    %4323 = vmatprep.mubr.f32.mxu0 0.0
    %4324 = vmatmul.mubr.f32.gmra.mrb[0].mxu0 %v3486
    %v4325 = vpop.f32.mrb[0].mxu0
    %v4326 = vadd.f32 0.0, %v4325
    %v4327 = vpop.f32.mrb[0].mxu0
    %v4328 = vadd.f32 0.0, %v4327
    %4329 = vmatprep.mubr.f32.mxu0 0.0
    %4330 = vmatmul.mubr.f32.gmra.mrb[0].mxu0 %v3487
    %v4331 = vpop.f32.mrb[0].mxu0
    %v4332 = vadd.f32 0.0, %v4331
    %v4333 = vpop.f32.mrb[0].mxu0
    %v4334 = vadd.f32 0.0, %v4333
    %4335 = vmatprep.mubr.f32.mxu0 0.0
    %4336 = vmatmul.mubr.f32.gmra.mrb[0].mxu0 %v3488
    %v4337 = vpop.f32.mrb[0].mxu0
    %v4338 = vadd.f32 0.0, %v4337
    %v4339 = vpop.f32.mrb[0].mxu0
    %v4340 = vadd.f32 0.0, %v4339
    %4341 = vmatprep.mubr.f32.mxu0 0.0
    %4342 = vmatmul.mubr.f32.gmra.mrb[0].mxu0 %v3489
    %v4343 = vpop.f32.mrb[0].mxu0
    %v4344 = vadd.f32 0.0, %v4343
    %v4345 = vpop.f32.mrb[0].mxu0
    %v4346 = vadd.f32 0.0, %v4345
    %4347 = vmatprep.mubr.f32.mxu0 0.0
    %4348 = vmatmul.mubr.f32.gmra.mrb[0].mxu0 %v3490
    %v4349 = vpop.f32.mrb[0].mxu0
    %v4350 = vadd.f32 0.0, %v4349
    %v4351 = vpop.f32.mrb[0].mxu0
    %v4352 = vadd.f32 0.0, %v4351
    %4353 = vmatprep.mubr.f32.mxu0 0.0
    %4354 = vmatmul.mubr.f32.gmra.mrb[0].mxu0 %v3491
    %v4355 = vpop.f32.mrb[0].mxu0
    %v4356 = vadd.f32 0.0, %v4355
    %v4357 = vpop.f32.mrb[0].mxu0
    %v4358 = vadd.f32 0.0, %v4357
    %4359 = vdwg.mxu0
    %4360 = vmatprep.subr.mxu0 %v3719
    %4361 = vmatpush1.msra.mxu0 %v3718
    %4362 = vmatprep.subr.mxu0 %v3723
    %4363 = vmatpush1.msra.mxu0 %v3722
    %4364 = vmatprep.subr.mxu0 %v3727
    %4365 = vmatpush1.msra.mxu0 %v3726
    %4366 = vmatprep.subr.mxu0 %v3731
    %4367 = vmatpush1.msra.mxu0 %v3730
    %4368 = vmatprep.subr.mxu0 %v3735
    %4369 = vmatpush1.msra.mxu0 %v3734
    %4370 = vmatprep.subr.mxu0 %v3739
    %4371 = vmatpush1.msra.mxu0 %v3738
    %4372 = vmatprep.subr.mxu0 %v3743
    %4373 = vmatpush1.msra.mxu0 %v3742
    %4374 = vmatprep.subr.mxu0 %v3747
    %4375 = vmatpush1.msra.mxu0 %v3746
    %4376 = vmatprep.subr.mxu0 %v3751
    %4377 = vmatpush1.msra.mxu0 %v3750
    %4378 = vmatprep.subr.mxu0 %v3755
    %4379 = vmatpush1.msra.mxu0 %v3754
    %4380 = vmatprep.subr.mxu0 %v3759
    %4381 = vmatpush1.msra.mxu0 %v3758
    %4382 = vmatprep.subr.mxu0 %v3763
    %4383 = vmatpush1.msra.mxu0 %v3762
    %4384 = vmatprep.subr.mxu0 %v3767
    %4385 = vmatpush1.msra.mxu0 %v3766
    %4386 = vmatprep.subr.mxu0 %v3771
    %4387 = vmatpush1.msra.mxu0 %v3770
    %4388 = vmatprep.subr.mxu0 %v3775
    %4389 = vmatpush1.msra.mxu0 %v3774
    %4390 = vmatprep.subr.mxu0 %v3779
    %4391 = vmatpush1.msra.mxu0 %v3778
    %4392 = vmatprep.subr.mxu0 0.0
    %4393 = vmatpush1.msra.mxu0 0.0
    %4394 = vmatprep.subr.mxu0 0.0
    %4395 = vmatpush1.msra.mxu0 0.0
    %4396 = vmatprep.subr.mxu0 0.0
    %4397 = vmatpush1.msra.mxu0 0.0
    %4398 = vmatprep.subr.mxu0 0.0
    %4399 = vmatpush1.msra.mxu0 0.0
    %4400 = vmatprep.subr.mxu0 0.0
    %4401 = vmatpush1.msra.mxu0 0.0
    %4402 = vmatprep.subr.mxu0 0.0
    %4403 = vmatpush1.msra.mxu0 0.0
    %4404 = vmatprep.subr.mxu0 0.0
    %4405 = vmatpush1.msra.mxu0 0.0
    %4406 = vmatprep.subr.mxu0 0.0
    %4407 = vmatpush1.msra.mxu0 0.0
    %4408 = vmatprep.subr.mxu0 0.0
    %4409 = vmatpush1.msra.mxu0 0.0
    %4410 = vmatprep.subr.mxu0 0.0
    %4411 = vmatpush1.msra.mxu0 0.0
    %4412 = vmatprep.subr.mxu0 0.0
    %4413 = vmatpush1.msra.mxu0 0.0
    %4414 = vmatprep.subr.mxu0 0.0
    %4415 = vmatpush1.msra.mxu0 0.0
    %4416 = vmatprep.subr.mxu0 0.0
    %4417 = vmatpush1.msra.mxu0 0.0
    %4418 = vmatprep.subr.mxu0 0.0
    %4419 = vmatpush1.msra.mxu0 0.0
    %4420 = vmatprep.subr.mxu0 0.0
    %4421 = vmatpush1.msra.mxu0 0.0
    %4422 = vmatprep.subr.mxu0 0.0
    %4423 = vmatpush1.msra.mxu0 0.0
    %4424 = vmatprep.mubr.f32.mxu0 0.0
    %4425 = vmatmul.mubr.f32.gmra.mrb[0].mxu0 %v3459
    %v4426 = vpop.f32.mrb[0].mxu0
    %v4427 = vadd.f32 %v4105, %v4426
    %v4428 = vpop.f32.mrb[0].mxu0
    %v4429 = vadd.f32 %v4107, %v4428
    %4430 = vmatprep.mubr.f32.mxu0 0.0
    %4431 = vmatmul.mubr.f32.gmra.mrb[0].mxu0 %v3460
    %v4432 = vpop.f32.mrb[0].mxu0
    %v4433 = vadd.f32 %v4111, %v4432
    %v4434 = vpop.f32.mrb[0].mxu0
    %v4435 = vadd.f32 %v4113, %v4434
    %4436 = vmatprep.mubr.f32.mxu0 0.0
    %4437 = vmatmul.mubr.f32.gmra.mrb[0].mxu0 %v3461
    %v4438 = vpop.f32.mrb[0].mxu0
    %v4439 = vadd.f32 %v4117, %v4438
    %v4440 = vpop.f32.mrb[0].mxu0
    %v4441 = vadd.f32 %v4119, %v4440
    %4442 = vmatprep.mubr.f32.mxu0 0.0
    %4443 = vmatmul.mubr.f32.gmra.mrb[0].mxu0 %v3462
    %v4444 = vpop.f32.mrb[0].mxu0
    %v4445 = vadd.f32 %v4123, %v4444
    %v4446 = vpop.f32.mrb[0].mxu0
    %v4447 = vadd.f32 %v4125, %v4446
    %4448 = vmatprep.mubr.f32.mxu0 0.0
    %4449 = vmatmul.mubr.f32.gmra.mrb[0].mxu0 %v3463
    %v4450 = vpop.f32.mrb[0].mxu0
    %v4451 = vadd.f32 %v4129, %v4450
    %v4452 = vpop.f32.mrb[0].mxu0
    %v4453 = vadd.f32 %v4131, %v4452
    %4454 = vmatprep.mubr.f32.mxu0 0.0
    %4455 = vmatmul.mubr.f32.gmra.mrb[0].mxu0 %v3464
    %v4456 = vpop.f32.mrb[0].mxu0
    %v4457 = vadd.f32 %v4135, %v4456
    %v4458 = vpop.f32.mrb[0].mxu0
    %v4459 = vadd.f32 %v4137, %v4458
    %4460 = vmatprep.mubr.f32.mxu0 0.0
    %4461 = vmatmul.mubr.f32.gmra.mrb[0].mxu0 %v3465
    %v4462 = vpop.f32.mrb[0].mxu0
    %v4463 = vadd.f32 %v4141, %v4462
    %v4464 = vpop.f32.mrb[0].mxu0
    %v4465 = vadd.f32 %v4143, %v4464
    %4466 = vmatprep.mubr.f32.mxu0 0.0
    %4467 = vmatmul.mubr.f32.gmra.mrb[0].mxu0 %v3466
    %v4468 = vpop.f32.mrb[0].mxu0
    %v4469 = vadd.f32 %v4147, %v4468
    %v4470 = vpop.f32.mrb[0].mxu0
    %v4471 = vadd.f32 %v4149, %v4470
    %4472 = vmatprep.mubr.f32.mxu0 0.0
    %4473 = vmatmul.mubr.f32.gmra.mrb[0].mxu0 %v3467
    %v4474 = vpop.f32.mrb[0].mxu0
    %v4475 = vadd.f32 %v4153, %v4474
    %v4476 = vpop.f32.mrb[0].mxu0
    %v4477 = vadd.f32 %v4155, %v4476
    %4478 = vmatprep.mubr.f32.mxu0 0.0
    %4479 = vmatmul.mubr.f32.gmra.mrb[0].mxu0 %v3468
    %v4480 = vpop.f32.mrb[0].mxu0
    %v4481 = vadd.f32 %v4159, %v4480
    %v4482 = vpop.f32.mrb[0].mxu0
    %v4483 = vadd.f32 %v4161, %v4482
    %4484 = vmatprep.mubr.f32.mxu0 0.0
    %4485 = vmatmul.mubr.f32.gmra.mrb[0].mxu0 %v3469
    %v4486 = vpop.f32.mrb[0].mxu0
    %v4487 = vadd.f32 %v4165, %v4486
    %v4488 = vpop.f32.mrb[0].mxu0
    %v4489 = vadd.f32 %v4167, %v4488
    %4490 = vmatprep.mubr.f32.mxu0 0.0
    %4491 = vmatmul.mubr.f32.gmra.mrb[0].mxu0 %v3470
    %v4492 = vpop.f32.mrb[0].mxu0
    %v4493 = vadd.f32 %v4171, %v4492
    %v4494 = vpop.f32.mrb[0].mxu0
    %v4495 = vadd.f32 %v4173, %v4494
    %4496 = vmatprep.mubr.f32.mxu0 0.0
    %4497 = vmatmul.mubr.f32.gmra.mrb[0].mxu0 %v3471
    %v4498 = vpop.f32.mrb[0].mxu0
    %v4499 = vadd.f32 %v4177, %v4498
    %v4500 = vpop.f32.mrb[0].mxu0
    %v4501 = vadd.f32 %v4179, %v4500
    %4502 = vmatprep.mubr.f32.mxu0 0.0
    %4503 = vmatmul.mubr.f32.gmra.mrb[0].mxu0 %v3472
    %v4504 = vpop.f32.mrb[0].mxu0
    %v4505 = vadd.f32 %v4183, %v4504
    %v4506 = vpop.f32.mrb[0].mxu0
    %v4507 = vadd.f32 %v4185, %v4506
    %4508 = vmatprep.mubr.f32.mxu0 0.0
    %4509 = vmatmul.mubr.f32.gmra.mrb[0].mxu0 %v3473
    %v4510 = vpop.f32.mrb[0].mxu0
    %v4511 = vadd.f32 %v4189, %v4510
    %v4512 = vpop.f32.mrb[0].mxu0
    %v4513 = vadd.f32 %v4191, %v4512
    %4514 = vmatprep.mubr.f32.mxu0 0.0
    %4515 = vmatmul.mubr.f32.gmra.mrb[0].mxu0 %v3474
    %v4516 = vpop.f32.mrb[0].mxu0
    %v4517 = vadd.f32 %v4195, %v4516
    %v4518 = vpop.f32.mrb[0].mxu0
    %v4519 = vadd.f32 %v4197, %v4518
    %4520 = vdwg.mxu0
    %4521 = vmatprep.subr.mxu0 %v3721
    %4522 = vmatpush1.msra.mxu0 %v3720
    %4523 = vmatprep.subr.mxu0 %v3725
    %4524 = vmatpush1.msra.mxu0 %v3724
    %4525 = vmatprep.subr.mxu0 %v3729
    %4526 = vmatpush1.msra.mxu0 %v3728
    %4527 = vmatprep.subr.mxu0 %v3733
    %4528 = vmatpush1.msra.mxu0 %v3732
    %4529 = vmatprep.subr.mxu0 %v3737
    %4530 = vmatpush1.msra.mxu0 %v3736
    %4531 = vmatprep.subr.mxu0 %v3741
    %4532 = vmatpush1.msra.mxu0 %v3740
    %4533 = vmatprep.subr.mxu0 %v3745
    %4534 = vmatpush1.msra.mxu0 %v3744
    %4535 = vmatprep.subr.mxu0 %v3749
    %4536 = vmatpush1.msra.mxu0 %v3748
    %4537 = vmatprep.subr.mxu0 %v3753
    %4538 = vmatpush1.msra.mxu0 %v3752
    %4539 = vmatprep.subr.mxu0 %v3757
    %4540 = vmatpush1.msra.mxu0 %v3756
    %4541 = vmatprep.subr.mxu0 %v3761
    %4542 = vmatpush1.msra.mxu0 %v3760
    %4543 = vmatprep.subr.mxu0 %v3765
    %4544 = vmatpush1.msra.mxu0 %v3764
    %4545 = vmatprep.subr.mxu0 %v3769
    %4546 = vmatpush1.msra.mxu0 %v3768
    %4547 = vmatprep.subr.mxu0 %v3773
    %4548 = vmatpush1.msra.mxu0 %v3772
    %4549 = vmatprep.subr.mxu0 %v3777
    %4550 = vmatpush1.msra.mxu0 %v3776
    %4551 = vmatprep.subr.mxu0 %v3781
    %4552 = vmatpush1.msra.mxu0 %v3780
    %4553 = vmatprep.subr.mxu0 0.0
    %4554 = vmatpush1.msra.mxu0 0.0
    %4555 = vmatprep.subr.mxu0 0.0
    %4556 = vmatpush1.msra.mxu0 0.0
    %4557 = vmatprep.subr.mxu0 0.0
    %4558 = vmatpush1.msra.mxu0 0.0
    %4559 = vmatprep.subr.mxu0 0.0
    %4560 = vmatpush1.msra.mxu0 0.0
    %4561 = vmatprep.subr.mxu0 0.0
    %4562 = vmatpush1.msra.mxu0 0.0
    %4563 = vmatprep.subr.mxu0 0.0
    %4564 = vmatpush1.msra.mxu0 0.0
    %4565 = vmatprep.subr.mxu0 0.0
    %4566 = vmatpush1.msra.mxu0 0.0
    %4567 = vmatprep.subr.mxu0 0.0
    %4568 = vmatpush1.msra.mxu0 0.0
    %4569 = vmatprep.subr.mxu0 0.0
    %4570 = vmatpush1.msra.mxu0 0.0
    %4571 = vmatprep.subr.mxu0 0.0
    %4572 = vmatpush1.msra.mxu0 0.0
    %4573 = vmatprep.subr.mxu0 0.0
    %4574 = vmatpush1.msra.mxu0 0.0
    %4575 = vmatprep.subr.mxu0 0.0
    %4576 = vmatpush1.msra.mxu0 0.0
    %4577 = vmatprep.subr.mxu0 0.0
    %4578 = vmatpush1.msra.mxu0 0.0
    %4579 = vmatprep.subr.mxu0 0.0
    %4580 = vmatpush1.msra.mxu0 0.0
    %4581 = vmatprep.subr.mxu0 0.0
    %4582 = vmatpush1.msra.mxu0 0.0
    %4583 = vmatprep.subr.mxu0 0.0
    %4584 = vmatpush1.msra.mxu0 0.0
    %4585 = vmatprep.mubr.f32.mxu0 0.0
    %4586 = vmatmul.mubr.f32.gmra.mrb[0].mxu0 %v3459
    %v4587 = vpop.f32.mrb[0].mxu0
    %v4588 = vadd.f32 %v4266, %v4587
    %v4589 = vpop.f32.mrb[0].mxu0
    %v4590 = vadd.f32 %v4268, %v4589
    %4591 = vmatprep.mubr.f32.mxu0 0.0
    %4592 = vmatmul.mubr.f32.gmra.mrb[0].mxu0 %v3460
    %v4593 = vpop.f32.mrb[0].mxu0
    %v4594 = vadd.f32 %v4272, %v4593
    %v4595 = vpop.f32.mrb[0].mxu0
    %v4596 = vadd.f32 %v4274, %v4595
    %4597 = vmatprep.mubr.f32.mxu0 0.0
    %4598 = vmatmul.mubr.f32.gmra.mrb[0].mxu0 %v3461
    %v4599 = vpop.f32.mrb[0].mxu0
    %v4600 = vadd.f32 %v4278, %v4599
    %v4601 = vpop.f32.mrb[0].mxu0
    %v4602 = vadd.f32 %v4280, %v4601
    %4603 = vmatprep.mubr.f32.mxu0 0.0
    %4604 = vmatmul.mubr.f32.gmra.mrb[0].mxu0 %v3462
    %v4605 = vpop.f32.mrb[0].mxu0
    %v4606 = vadd.f32 %v4284, %v4605
    %v4607 = vpop.f32.mrb[0].mxu0
    %v4608 = vadd.f32 %v4286, %v4607
    %4609 = vmatprep.mubr.f32.mxu0 0.0
    %4610 = vmatmul.mubr.f32.gmra.mrb[0].mxu0 %v3463
    %v4611 = vpop.f32.mrb[0].mxu0
    %v4612 = vadd.f32 %v4290, %v4611
    %v4613 = vpop.f32.mrb[0].mxu0
    %v4614 = vadd.f32 %v4292, %v4613
    %4615 = vmatprep.mubr.f32.mxu0 0.0
    %4616 = vmatmul.mubr.f32.gmra.mrb[0].mxu0 %v3464
    %v4617 = vpop.f32.mrb[0].mxu0
    %v4618 = vadd.f32 %v4296, %v4617
    %v4619 = vpop.f32.mrb[0].mxu0
    %v4620 = vadd.f32 %v4298, %v4619
    %4621 = vmatprep.mubr.f32.mxu0 0.0
    %4622 = vmatmul.mubr.f32.gmra.mrb[0].mxu0 %v3465
    %v4623 = vpop.f32.mrb[0].mxu0
    %v4624 = vadd.f32 %v4302, %v4623
    %v4625 = vpop.f32.mrb[0].mxu0
    %v4626 = vadd.f32 %v4304, %v4625
    %4627 = vmatprep.mubr.f32.mxu0 0.0
    %4628 = vmatmul.mubr.f32.gmra.mrb[0].mxu0 %v3466
    %v4629 = vpop.f32.mrb[0].mxu0
    %v4630 = vadd.f32 %v4308, %v4629
    %v4631 = vpop.f32.mrb[0].mxu0
    %v4632 = vadd.f32 %v4310, %v4631
    %4633 = vmatprep.mubr.f32.mxu0 0.0
    %4634 = vmatmul.mubr.f32.gmra.mrb[0].mxu0 %v3467
    %v4635 = vpop.f32.mrb[0].mxu0
    %v4636 = vadd.f32 %v4314, %v4635
    %v4637 = vpop.f32.mrb[0].mxu0
    %v4638 = vadd.f32 %v4316, %v4637
    %4639 = vmatprep.mubr.f32.mxu0 0.0
    %4640 = vmatmul.mubr.f32.gmra.mrb[0].mxu0 %v3468
    %v4641 = vpop.f32.mrb[0].mxu0
    %v4642 = vadd.f32 %v4320, %v4641
    %v4643 = vpop.f32.mrb[0].mxu0
    %v4644 = vadd.f32 %v4322, %v4643
    %4645 = vmatprep.mubr.f32.mxu0 0.0
    %4646 = vmatmul.mubr.f32.gmra.mrb[0].mxu0 %v3469
    %v4647 = vpop.f32.mrb[0].mxu0
    %v4648 = vadd.f32 %v4326, %v4647
    %v4649 = vpop.f32.mrb[0].mxu0
    %v4650 = vadd.f32 %v4328, %v4649
    %4651 = vmatprep.mubr.f32.mxu0 0.0
    %4652 = vmatmul.mubr.f32.gmra.mrb[0].mxu0 %v3470
    %v4653 = vpop.f32.mrb[0].mxu0
    %v4654 = vadd.f32 %v4332, %v4653
    %v4655 = vpop.f32.mrb[0].mxu0
    %v4656 = vadd.f32 %v4334, %v4655
    %4657 = vmatprep.mubr.f32.mxu0 0.0
    %4658 = vmatmul.mubr.f32.gmra.mrb[0].mxu0 %v3471
    %v4659 = vpop.f32.mrb[0].mxu0
    %v4660 = vadd.f32 %v4338, %v4659
    %v4661 = vpop.f32.mrb[0].mxu0
    %v4662 = vadd.f32 %v4340, %v4661
    %4663 = vmatprep.mubr.f32.mxu0 0.0
    %4664 = vmatmul.mubr.f32.gmra.mrb[0].mxu0 %v3472
    %v4665 = vpop.f32.mrb[0].mxu0
    %v4666 = vadd.f32 %v4344, %v4665
    %v4667 = vpop.f32.mrb[0].mxu0
    %v4668 = vadd.f32 %v4346, %v4667
    %4669 = vmatprep.mubr.f32.mxu0 0.0
    %4670 = vmatmul.mubr.f32.gmra.mrb[0].mxu0 %v3473
    %v4671 = vpop.f32.mrb[0].mxu0
    %v4672 = vadd.f32 %v4350, %v4671
    %v4673 = vpop.f32.mrb[0].mxu0
    %v4674 = vadd.f32 %v4352, %v4673
    %4675 = vmatprep.mubr.f32.mxu0 0.0
    %4676 = vmatmul.mubr.f32.gmra.mrb[0].mxu0 %v3474
    %v4677 = vpop.f32.mrb[0].mxu0
    %v4678 = vadd.f32 %v4356, %v4677
    %v4679 = vpop.f32.mrb[0].mxu0
    %v4680 = vadd.f32 %v4358, %v4679
    %4681 = vdwg.mxu0
    %4682 = vmatprep.subr.mxu0 %v3975
    %4683 = vmatpush1.msra.mxu0 %v3974
    %4684 = vmatprep.subr.mxu0 %v3979
    %4685 = vmatpush1.msra.mxu0 %v3978
    %4686 = vmatprep.subr.mxu0 %v3983
    %4687 = vmatpush1.msra.mxu0 %v3982
    %4688 = vmatprep.subr.mxu0 %v3987
    %4689 = vmatpush1.msra.mxu0 %v3986
    %4690 = vmatprep.subr.mxu0 %v3991
    %4691 = vmatpush1.msra.mxu0 %v3990
    %4692 = vmatprep.subr.mxu0 %v3995
    %4693 = vmatpush1.msra.mxu0 %v3994
    %4694 = vmatprep.subr.mxu0 %v3999
    %4695 = vmatpush1.msra.mxu0 %v3998
    %4696 = vmatprep.subr.mxu0 %v4003
    %4697 = vmatpush1.msra.mxu0 %v4002
    %4698 = vmatprep.subr.mxu0 %v4007
    %4699 = vmatpush1.msra.mxu0 %v4006
    %4700 = vmatprep.subr.mxu0 %v4011
    %4701 = vmatpush1.msra.mxu0 %v4010
    %4702 = vmatprep.subr.mxu0 %v4015
    %4703 = vmatpush1.msra.mxu0 %v4014
    %4704 = vmatprep.subr.mxu0 %v4019
    %4705 = vmatpush1.msra.mxu0 %v4018
    %4706 = vmatprep.subr.mxu0 %v4023
    %4707 = vmatpush1.msra.mxu0 %v4022
    %4708 = vmatprep.subr.mxu0 %v4027
    %4709 = vmatpush1.msra.mxu0 %v4026
    %4710 = vmatprep.subr.mxu0 %v4031
    %4711 = vmatpush1.msra.mxu0 %v4030
    %4712 = vmatprep.subr.mxu0 %v4035
    %4713 = vmatpush1.msra.mxu0 %v4034
    %4714 = vmatprep.subr.mxu0 0.0
    %4715 = vmatpush1.msra.mxu0 0.0
    %4716 = vmatprep.subr.mxu0 0.0
    %4717 = vmatpush1.msra.mxu0 0.0
    %4718 = vmatprep.subr.mxu0 0.0
    %4719 = vmatpush1.msra.mxu0 0.0
    %4720 = vmatprep.subr.mxu0 0.0
    %4721 = vmatpush1.msra.mxu0 0.0
    %4722 = vmatprep.subr.mxu0 0.0
    %4723 = vmatpush1.msra.mxu0 0.0
    %4724 = vmatprep.subr.mxu0 0.0
    %4725 = vmatpush1.msra.mxu0 0.0
    %4726 = vmatprep.subr.mxu0 0.0
    %4727 = vmatpush1.msra.mxu0 0.0
    %4728 = vmatprep.subr.mxu0 0.0
    %4729 = vmatpush1.msra.mxu0 0.0
    %4730 = vmatprep.subr.mxu0 0.0
    %4731 = vmatpush1.msra.mxu0 0.0
    %4732 = vmatprep.subr.mxu0 0.0
    %4733 = vmatpush1.msra.mxu0 0.0
    %4734 = vmatprep.subr.mxu0 0.0
    %4735 = vmatpush1.msra.mxu0 0.0
    %4736 = vmatprep.subr.mxu0 0.0
    %4737 = vmatpush1.msra.mxu0 0.0
    %4738 = vmatprep.subr.mxu0 0.0
    %4739 = vmatpush1.msra.mxu0 0.0
    %4740 = vmatprep.subr.mxu0 0.0
    %4741 = vmatpush1.msra.mxu0 0.0
    %4742 = vmatprep.subr.mxu0 0.0
    %4743 = vmatpush1.msra.mxu0 0.0
    %4744 = vmatprep.subr.mxu0 0.0
    %4745 = vmatpush1.msra.mxu0 0.0
    %4746 = vmatprep.mubr.f32.mxu0 0.0
    %4747 = vmatmul.mubr.f32.gmra.mrb[0].mxu0 %v3493
    %v4748 = vpop.f32.mrb[0].mxu0
    %v4749 = vadd.f32 0.0, %v4748
    %v4750 = vpop.f32.mrb[0].mxu0
    %v4751 = vadd.f32 0.0, %v4750
    %4752 = vmatprep.mubr.f32.mxu0 0.0
    %4753 = vmatmul.mubr.f32.gmra.mrb[0].mxu0 %v3494
    %v4754 = vpop.f32.mrb[0].mxu0
    %v4755 = vadd.f32 0.0, %v4754
    %v4756 = vpop.f32.mrb[0].mxu0
    %v4757 = vadd.f32 0.0, %v4756
    %4758 = vmatprep.mubr.f32.mxu0 0.0
    %4759 = vmatmul.mubr.f32.gmra.mrb[0].mxu0 %v3495
    %v4760 = vpop.f32.mrb[0].mxu0
    %v4761 = vadd.f32 0.0, %v4760
    %v4762 = vpop.f32.mrb[0].mxu0
    %v4763 = vadd.f32 0.0, %v4762
    %4764 = vmatprep.mubr.f32.mxu0 0.0
    %4765 = vmatmul.mubr.f32.gmra.mrb[0].mxu0 %v3496
    %v4766 = vpop.f32.mrb[0].mxu0
    %v4767 = vadd.f32 0.0, %v4766
    %v4768 = vpop.f32.mrb[0].mxu0
    %v4769 = vadd.f32 0.0, %v4768
    %4770 = vmatprep.mubr.f32.mxu0 0.0
    %4771 = vmatmul.mubr.f32.gmra.mrb[0].mxu0 %v3497
    %v4772 = vpop.f32.mrb[0].mxu0
    %v4773 = vadd.f32 0.0, %v4772
    %v4774 = vpop.f32.mrb[0].mxu0
    %v4775 = vadd.f32 0.0, %v4774
    %4776 = vmatprep.mubr.f32.mxu0 0.0
    %4777 = vmatmul.mubr.f32.gmra.mrb[0].mxu0 %v3498
    %v4778 = vpop.f32.mrb[0].mxu0
    %v4779 = vadd.f32 0.0, %v4778
    %v4780 = vpop.f32.mrb[0].mxu0
    %v4781 = vadd.f32 0.0, %v4780
    %4782 = vmatprep.mubr.f32.mxu0 0.0
    %4783 = vmatmul.mubr.f32.gmra.mrb[0].mxu0 %v3499
    %v4784 = vpop.f32.mrb[0].mxu0
    %v4785 = vadd.f32 0.0, %v4784
    %v4786 = vpop.f32.mrb[0].mxu0
    %v4787 = vadd.f32 0.0, %v4786
    %4788 = vmatprep.mubr.f32.mxu0 0.0
    %4789 = vmatmul.mubr.f32.gmra.mrb[0].mxu0 %v3500
    %v4790 = vpop.f32.mrb[0].mxu0
    %v4791 = vadd.f32 0.0, %v4790
    %v4792 = vpop.f32.mrb[0].mxu0
    %v4793 = vadd.f32 0.0, %v4792
    %4794 = vmatprep.mubr.f32.mxu0 0.0
    %4795 = vmatmul.mubr.f32.gmra.mrb[0].mxu0 %v3501
    %v4796 = vpop.f32.mrb[0].mxu0
    %v4797 = vadd.f32 0.0, %v4796
    %v4798 = vpop.f32.mrb[0].mxu0
    %v4799 = vadd.f32 0.0, %v4798
    %4800 = vmatprep.mubr.f32.mxu0 0.0
    %4801 = vmatmul.mubr.f32.gmra.mrb[0].mxu0 %v3502
    %v4802 = vpop.f32.mrb[0].mxu0
    %v4803 = vadd.f32 0.0, %v4802
    %v4804 = vpop.f32.mrb[0].mxu0
    %v4805 = vadd.f32 0.0, %v4804
    %4806 = vmatprep.mubr.f32.mxu0 0.0
    %4807 = vmatmul.mubr.f32.gmra.mrb[0].mxu0 %v3503
    %v4808 = vpop.f32.mrb[0].mxu0
    %v4809 = vadd.f32 0.0, %v4808
    %v4810 = vpop.f32.mrb[0].mxu0
    %v4811 = vadd.f32 0.0, %v4810
    %4812 = vmatprep.mubr.f32.mxu0 0.0
    %4813 = vmatmul.mubr.f32.gmra.mrb[0].mxu0 %v3504
    %v4814 = vpop.f32.mrb[0].mxu0
    %v4815 = vadd.f32 0.0, %v4814
    %v4816 = vpop.f32.mrb[0].mxu0
    %v4817 = vadd.f32 0.0, %v4816
    %4818 = vmatprep.mubr.f32.mxu0 0.0
    %4819 = vmatmul.mubr.f32.gmra.mrb[0].mxu0 %v3505
    %v4820 = vpop.f32.mrb[0].mxu0
    %v4821 = vadd.f32 0.0, %v4820
    %v4822 = vpop.f32.mrb[0].mxu0
    %v4823 = vadd.f32 0.0, %v4822
    %4824 = vmatprep.mubr.f32.mxu0 0.0
    %4825 = vmatmul.mubr.f32.gmra.mrb[0].mxu0 %v3506
    %v4826 = vpop.f32.mrb[0].mxu0
    %v4827 = vadd.f32 0.0, %v4826
    %v4828 = vpop.f32.mrb[0].mxu0
    %v4829 = vadd.f32 0.0, %v4828
    %4830 = vmatprep.mubr.f32.mxu0 0.0
    %4831 = vmatmul.mubr.f32.gmra.mrb[0].mxu0 %v3507
    %v4832 = vpop.f32.mrb[0].mxu0
    %v4833 = vadd.f32 0.0, %v4832
    %v4834 = vpop.f32.mrb[0].mxu0
    %v4835 = vadd.f32 0.0, %v4834
    %4836 = vmatprep.mubr.f32.mxu0 0.0
    %4837 = vmatmul.mubr.f32.gmra.mrb[0].mxu0 %v3508
    %v4838 = vpop.f32.mrb[0].mxu0
    %v4839 = vadd.f32 0.0, %v4838
    %v4840 = vpop.f32.mrb[0].mxu0
    %v4841 = vadd.f32 0.0, %v4840
    %4842 = vdwg.mxu0
    %4843 = vmatprep.subr.mxu0 %v3977
    %4844 = vmatpush1.msra.mxu0 %v3976
    %4845 = vmatprep.subr.mxu0 %v3981
    %4846 = vmatpush1.msra.mxu0 %v3980
    %4847 = vmatprep.subr.mxu0 %v3985
    %4848 = vmatpush1.msra.mxu0 %v3984
    %4849 = vmatprep.subr.mxu0 %v3989
    %4850 = vmatpush1.msra.mxu0 %v3988
    %4851 = vmatprep.subr.mxu0 %v3993
    %4852 = vmatpush1.msra.mxu0 %v3992
    %4853 = vmatprep.subr.mxu0 %v3997
    %4854 = vmatpush1.msra.mxu0 %v3996
    %4855 = vmatprep.subr.mxu0 %v4001
    %4856 = vmatpush1.msra.mxu0 %v4000
    %4857 = vmatprep.subr.mxu0 %v4005
    %4858 = vmatpush1.msra.mxu0 %v4004
    %4859 = vmatprep.subr.mxu0 %v4009
    %4860 = vmatpush1.msra.mxu0 %v4008
    %4861 = vmatprep.subr.mxu0 %v4013
    %4862 = vmatpush1.msra.mxu0 %v4012
    %4863 = vmatprep.subr.mxu0 %v4017
    %4864 = vmatpush1.msra.mxu0 %v4016
    %4865 = vmatprep.subr.mxu0 %v4021
    %4866 = vmatpush1.msra.mxu0 %v4020
    %4867 = vmatprep.subr.mxu0 %v4025
    %4868 = vmatpush1.msra.mxu0 %v4024
    %4869 = vmatprep.subr.mxu0 %v4029
    %4870 = vmatpush1.msra.mxu0 %v4028
    %4871 = vmatprep.subr.mxu0 %v4033
    %4872 = vmatpush1.msra.mxu0 %v4032
    %4873 = vmatprep.subr.mxu0 %v4037
    %4874 = vmatpush1.msra.mxu0 %v4036
    %4875 = vmatprep.subr.mxu0 0.0
    %4876 = vmatpush1.msra.mxu0 0.0
    %4877 = vmatprep.subr.mxu0 0.0
    %4878 = vmatpush1.msra.mxu0 0.0
    %4879 = vmatprep.subr.mxu0 0.0
    %4880 = vmatpush1.msra.mxu0 0.0
    %4881 = vmatprep.subr.mxu0 0.0
    %4882 = vmatpush1.msra.mxu0 0.0
    %4883 = vmatprep.subr.mxu0 0.0
    %4884 = vmatpush1.msra.mxu0 0.0
    %4885 = vmatprep.subr.mxu0 0.0
    %4886 = vmatpush1.msra.mxu0 0.0
    %4887 = vmatprep.subr.mxu0 0.0
    %4888 = vmatpush1.msra.mxu0 0.0
    %4889 = vmatprep.subr.mxu0 0.0
    %4890 = vmatpush1.msra.mxu0 0.0
    %4891 = vmatprep.subr.mxu0 0.0
    %4892 = vmatpush1.msra.mxu0 0.0
    %4893 = vmatprep.subr.mxu0 0.0
    %4894 = vmatpush1.msra.mxu0 0.0
    %4895 = vmatprep.subr.mxu0 0.0
    %4896 = vmatpush1.msra.mxu0 0.0
    %4897 = vmatprep.subr.mxu0 0.0
    %4898 = vmatpush1.msra.mxu0 0.0
    %4899 = vmatprep.subr.mxu0 0.0
    %4900 = vmatpush1.msra.mxu0 0.0
    %4901 = vmatprep.subr.mxu0 0.0
    %4902 = vmatpush1.msra.mxu0 0.0
    %4903 = vmatprep.subr.mxu0 0.0
    %4904 = vmatpush1.msra.mxu0 0.0
    %4905 = vmatprep.subr.mxu0 0.0
    %4906 = vmatpush1.msra.mxu0 0.0
    %4907 = vmatprep.mubr.f32.mxu0 0.0
    %4908 = vmatmul.mubr.f32.gmra.mrb[0].mxu0 %v3493
    %v4909 = vpop.f32.mrb[0].mxu0
    %v4910 = vadd.f32 0.0, %v4909
    %v4911 = vpop.f32.mrb[0].mxu0
    %v4912 = vadd.f32 0.0, %v4911
    %4913 = vmatprep.mubr.f32.mxu0 0.0
    %4914 = vmatmul.mubr.f32.gmra.mrb[0].mxu0 %v3494
    %v4915 = vpop.f32.mrb[0].mxu0
    %v4916 = vadd.f32 0.0, %v4915
    %v4917 = vpop.f32.mrb[0].mxu0
    %v4918 = vadd.f32 0.0, %v4917
    %4919 = vmatprep.mubr.f32.mxu0 0.0
    %4920 = vmatmul.mubr.f32.gmra.mrb[0].mxu0 %v3495
    %v4921 = vpop.f32.mrb[0].mxu0
    %v4922 = vadd.f32 0.0, %v4921
    %v4923 = vpop.f32.mrb[0].mxu0
    %v4924 = vadd.f32 0.0, %v4923
    %4925 = vmatprep.mubr.f32.mxu0 0.0
    %4926 = vmatmul.mubr.f32.gmra.mrb[0].mxu0 %v3496
    %v4927 = vpop.f32.mrb[0].mxu0
    %v4928 = vadd.f32 0.0, %v4927
    %v4929 = vpop.f32.mrb[0].mxu0
    %v4930 = vadd.f32 0.0, %v4929
    %4931 = vmatprep.mubr.f32.mxu0 0.0
    %4932 = vmatmul.mubr.f32.gmra.mrb[0].mxu0 %v3497
    %v4933 = vpop.f32.mrb[0].mxu0
    %v4934 = vadd.f32 0.0, %v4933
    %v4935 = vpop.f32.mrb[0].mxu0
    %v4936 = vadd.f32 0.0, %v4935
    %4937 = vmatprep.mubr.f32.mxu0 0.0
    %4938 = vmatmul.mubr.f32.gmra.mrb[0].mxu0 %v3498
    %v4939 = vpop.f32.mrb[0].mxu0
    %v4940 = vadd.f32 0.0, %v4939
    %v4941 = vpop.f32.mrb[0].mxu0
    %v4942 = vadd.f32 0.0, %v4941
    %4943 = vmatprep.mubr.f32.mxu0 0.0
    %4944 = vmatmul.mubr.f32.gmra.mrb[0].mxu0 %v3499
    %v4945 = vpop.f32.mrb[0].mxu0
    %v4946 = vadd.f32 0.0, %v4945
    %v4947 = vpop.f32.mrb[0].mxu0
    %v4948 = vadd.f32 0.0, %v4947
    %4949 = vmatprep.mubr.f32.mxu0 0.0
    %4950 = vmatmul.mubr.f32.gmra.mrb[0].mxu0 %v3500
    %v4951 = vpop.f32.mrb[0].mxu0
    %v4952 = vadd.f32 0.0, %v4951
    %v4953 = vpop.f32.mrb[0].mxu0
    %v4954 = vadd.f32 0.0, %v4953
    %4955 = vmatprep.mubr.f32.mxu0 0.0
    %4956 = vmatmul.mubr.f32.gmra.mrb[0].mxu0 %v3501
    %v4957 = vpop.f32.mrb[0].mxu0
    %v4958 = vadd.f32 0.0, %v4957
    %v4959 = vpop.f32.mrb[0].mxu0
    %v4960 = vadd.f32 0.0, %v4959
    %4961 = vmatprep.mubr.f32.mxu0 0.0
    %4962 = vmatmul.mubr.f32.gmra.mrb[0].mxu0 %v3502
    %v4963 = vpop.f32.mrb[0].mxu0
    %v4964 = vadd.f32 0.0, %v4963
    %v4965 = vpop.f32.mrb[0].mxu0
    %v4966 = vadd.f32 0.0, %v4965
    %4967 = vmatprep.mubr.f32.mxu0 0.0
    %4968 = vmatmul.mubr.f32.gmra.mrb[0].mxu0 %v3503
    %v4969 = vpop.f32.mrb[0].mxu0
    %v4970 = vadd.f32 0.0, %v4969
    %v4971 = vpop.f32.mrb[0].mxu0
    %v4972 = vadd.f32 0.0, %v4971
    %4973 = vmatprep.mubr.f32.mxu0 0.0
    %4974 = vmatmul.mubr.f32.gmra.mrb[0].mxu0 %v3504
    %v4975 = vpop.f32.mrb[0].mxu0
    %v4976 = vadd.f32 0.0, %v4975
    %v4977 = vpop.f32.mrb[0].mxu0
    %v4978 = vadd.f32 0.0, %v4977
    %4979 = vmatprep.mubr.f32.mxu0 0.0
    %4980 = vmatmul.mubr.f32.gmra.mrb[0].mxu0 %v3505
    %v4981 = vpop.f32.mrb[0].mxu0
    %v4982 = vadd.f32 0.0, %v4981
    %v4983 = vpop.f32.mrb[0].mxu0
    %v4984 = vadd.f32 0.0, %v4983
    %4985 = vmatprep.mubr.f32.mxu0 0.0
    %4986 = vmatmul.mubr.f32.gmra.mrb[0].mxu0 %v3506
    %v4987 = vpop.f32.mrb[0].mxu0
    %v4988 = vadd.f32 0.0, %v4987
    %v4989 = vpop.f32.mrb[0].mxu0
    %v4990 = vadd.f32 0.0, %v4989
    %4991 = vmatprep.mubr.f32.mxu0 0.0
    %4992 = vmatmul.mubr.f32.gmra.mrb[0].mxu0 %v3507
    %v4993 = vpop.f32.mrb[0].mxu0
    %v4994 = vadd.f32 0.0, %v4993
    %v4995 = vpop.f32.mrb[0].mxu0
    %v4996 = vadd.f32 0.0, %v4995
    %4997 = vmatprep.mubr.f32.mxu0 0.0
    %4998 = vmatmul.mubr.f32.gmra.mrb[0].mxu0 %v3508
    %v4999 = vpop.f32.mrb[0].mxu0
    %v5000 = vadd.f32 0.0, %v4999
    %v5001 = vpop.f32.mrb[0].mxu0
    %v5002 = vadd.f32 0.0, %v5001
    %5003 = vdwg.mxu0
    %v5004 = vadd.f32 %v4427, %v4749
    %v5005 = vadd.f32 %v4429, %v4751
    %v5006 = vadd.f32 %v4588, %v4910
    %v5007 = vadd.f32 %v4590, %v4912
    %v5008 = vadd.f32 %v4433, %v4755
    %v5009 = vadd.f32 %v4435, %v4757
    %v5010 = vadd.f32 %v4594, %v4916
    %v5011 = vadd.f32 %v4596, %v4918
    %v5012 = vadd.f32 %v4439, %v4761
    %v5013 = vadd.f32 %v4441, %v4763
    %v5014 = vadd.f32 %v4600, %v4922
    %v5015 = vadd.f32 %v4602, %v4924
    %v5016 = vadd.f32 %v4445, %v4767
    %v5017 = vadd.f32 %v4447, %v4769
    %v5018 = vadd.f32 %v4606, %v4928
    %v5019 = vadd.f32 %v4608, %v4930
    %v5020 = vadd.f32 %v4451, %v4773
    %v5021 = vadd.f32 %v4453, %v4775
    %v5022 = vadd.f32 %v4612, %v4934
    %v5023 = vadd.f32 %v4614, %v4936
    %v5024 = vadd.f32 %v4457, %v4779
    %v5025 = vadd.f32 %v4459, %v4781
    %v5026 = vadd.f32 %v4618, %v4940
    %v5027 = vadd.f32 %v4620, %v4942
    %v5028 = vadd.f32 %v4463, %v4785
    %v5029 = vadd.f32 %v4465, %v4787
    %v5030 = vadd.f32 %v4624, %v4946
    %v5031 = vadd.f32 %v4626, %v4948
    %v5032 = vadd.f32 %v4469, %v4791
    %v5033 = vadd.f32 %v4471, %v4793
    %v5034 = vadd.f32 %v4630, %v4952
    %v5035 = vadd.f32 %v4632, %v4954
    %v5036 = vadd.f32 %v4475, %v4797
    %v5037 = vadd.f32 %v4477, %v4799
    %v5038 = vadd.f32 %v4636, %v4958
    %v5039 = vadd.f32 %v4638, %v4960
    %v5040 = vadd.f32 %v4481, %v4803
    %v5041 = vadd.f32 %v4483, %v4805
    %v5042 = vadd.f32 %v4642, %v4964
    %v5043 = vadd.f32 %v4644, %v4966
    %v5044 = vadd.f32 %v4487, %v4809
    %v5045 = vadd.f32 %v4489, %v4811
    %v5046 = vadd.f32 %v4648, %v4970
    %v5047 = vadd.f32 %v4650, %v4972
    %v5048 = vadd.f32 %v4493, %v4815
    %v5049 = vadd.f32 %v4495, %v4817
    %v5050 = vadd.f32 %v4654, %v4976
    %v5051 = vadd.f32 %v4656, %v4978
    %v5052 = vadd.f32 %v4499, %v4821
    %v5053 = vadd.f32 %v4501, %v4823
    %v5054 = vadd.f32 %v4660, %v4982
    %v5055 = vadd.f32 %v4662, %v4984
    %v5056 = vadd.f32 %v4505, %v4827
    %v5057 = vadd.f32 %v4507, %v4829
    %v5058 = vadd.f32 %v4666, %v4988
    %v5059 = vadd.f32 %v4668, %v4990
    %v5060 = vadd.f32 %v4511, %v4833
    %v5061 = vadd.f32 %v4513, %v4835
    %v5062 = vadd.f32 %v4672, %v4994
    %v5063 = vadd.f32 %v4674, %v4996
    %v5064 = vadd.f32 %v4517, %v4839
    %v5065 = vadd.f32 %v4519, %v4841
    %v5066 = vadd.f32 %v4678, %v5000
    %v5067 = vadd.f32 %v4680, %v5002
    %5069 = vset.pattern.permute.xlu0 0
    %5070 = vperm.xlu0 %5069, %v3510
    %v5071 = vpop.permute.xlu0 %5070
    %5074 = vset.pattern.permute.xlu0 0
    %5075 = vperm.xlu0 %5074, %v3511
    %v5076 = vpop.permute.xlu0 %5075
    %5079 = vset.pattern.permute.xlu0 0
    %5080 = vperm.xlu0 %5079, %v3512
    %v5081 = vpop.permute.xlu0 %5080
    %5084 = vset.pattern.permute.xlu0 0
    %5085 = vperm.xlu0 %5084, %v3513
    %v5086 = vpop.permute.xlu0 %5085
    %5089 = vset.pattern.permute.xlu0 0
    %5090 = vperm.xlu0 %5089, %v3514
    %v5091 = vpop.permute.xlu0 %5090
    %5094 = vset.pattern.permute.xlu0 0
    %5095 = vperm.xlu0 %5094, %v3515
    %v5096 = vpop.permute.xlu0 %5095
    %5099 = vset.pattern.permute.xlu0 0
    %5100 = vperm.xlu0 %5099, %v3516
    %v5101 = vpop.permute.xlu0 %5100
    %5104 = vset.pattern.permute.xlu0 0
    %5105 = vperm.xlu0 %5104, %v3517
    %v5106 = vpop.permute.xlu0 %5105
    %5109 = vset.pattern.permute.xlu0 0
    %5110 = vperm.xlu0 %5109, %v3518
    %v5111 = vpop.permute.xlu0 %5110
    %5114 = vset.pattern.permute.xlu0 0
    %5115 = vperm.xlu0 %5114, %v3519
    %v5116 = vpop.permute.xlu0 %5115
    %5119 = vset.pattern.permute.xlu0 0
    %5120 = vperm.xlu0 %5119, %v3520
    %v5121 = vpop.permute.xlu0 %5120
    %5124 = vset.pattern.permute.xlu0 0
    %5125 = vperm.xlu0 %5124, %v3521
    %v5126 = vpop.permute.xlu0 %5125
    %5129 = vset.pattern.permute.xlu0 0
    %5130 = vperm.xlu0 %5129, %v3522
    %v5131 = vpop.permute.xlu0 %5130
    %5134 = vset.pattern.permute.xlu0 0
    %5135 = vperm.xlu0 %5134, %v3523
    %v5136 = vpop.permute.xlu0 %5135
    %5139 = vset.pattern.permute.xlu0 0
    %5140 = vperm.xlu0 %5139, %v3524
    %v5141 = vpop.permute.xlu0 %5140
    %5144 = vset.pattern.permute.xlu0 0
    %5145 = vperm.xlu0 %5144, %v3525
    %v5146 = vpop.permute.xlu0 %5145
    %v5148 = vadd.f32 %v5004, %v5071
    %v5149 = vadd.f32 %v5005, %v5071
    %v5150 = vadd.f32 %v5006, %v5071
    %v5151 = vadd.f32 %v5007, %v5071
    %v5152 = vadd.f32 %v5008, %v5076
    %v5153 = vadd.f32 %v5009, %v5076
    %v5154 = vadd.f32 %v5010, %v5076
    %v5155 = vadd.f32 %v5011, %v5076
    %v5156 = vadd.f32 %v5012, %v5081
    %v5157 = vadd.f32 %v5013, %v5081
    %v5158 = vadd.f32 %v5014, %v5081
    %v5159 = vadd.f32 %v5015, %v5081
    %v5160 = vadd.f32 %v5016, %v5086
    %v5161 = vadd.f32 %v5017, %v5086
    %v5162 = vadd.f32 %v5018, %v5086
    %v5163 = vadd.f32 %v5019, %v5086
    %v5164 = vadd.f32 %v5020, %v5091
    %v5165 = vadd.f32 %v5021, %v5091
    %v5166 = vadd.f32 %v5022, %v5091
    %v5167 = vadd.f32 %v5023, %v5091
    %v5168 = vadd.f32 %v5024, %v5096
    %v5169 = vadd.f32 %v5025, %v5096
    %v5170 = vadd.f32 %v5026, %v5096
    %v5171 = vadd.f32 %v5027, %v5096
    %v5172 = vadd.f32 %v5028, %v5101
    %v5173 = vadd.f32 %v5029, %v5101
    %v5174 = vadd.f32 %v5030, %v5101
    %v5175 = vadd.f32 %v5031, %v5101
    %v5176 = vadd.f32 %v5032, %v5106
    %v5177 = vadd.f32 %v5033, %v5106
    %v5178 = vadd.f32 %v5034, %v5106
    %v5179 = vadd.f32 %v5035, %v5106
    %v5180 = vadd.f32 %v5036, %v5111
    %v5181 = vadd.f32 %v5037, %v5111
    %v5182 = vadd.f32 %v5038, %v5111
    %v5183 = vadd.f32 %v5039, %v5111
    %v5184 = vadd.f32 %v5040, %v5116
    %v5185 = vadd.f32 %v5041, %v5116
    %v5186 = vadd.f32 %v5042, %v5116
    %v5187 = vadd.f32 %v5043, %v5116
    %v5188 = vadd.f32 %v5044, %v5121
    %v5189 = vadd.f32 %v5045, %v5121
    %v5190 = vadd.f32 %v5046, %v5121
    %v5191 = vadd.f32 %v5047, %v5121
    %v5192 = vadd.f32 %v5048, %v5126
    %v5193 = vadd.f32 %v5049, %v5126
    %v5194 = vadd.f32 %v5050, %v5126
    %v5195 = vadd.f32 %v5051, %v5126
    %v5196 = vadd.f32 %v5052, %v5131
    %v5197 = vadd.f32 %v5053, %v5131
    %v5198 = vadd.f32 %v5054, %v5131
    %v5199 = vadd.f32 %v5055, %v5131
    %v5200 = vadd.f32 %v5056, %v5136
    %v5201 = vadd.f32 %v5057, %v5136
    %v5202 = vadd.f32 %v5058, %v5136
    %v5203 = vadd.f32 %v5059, %v5136
    %v5204 = vadd.f32 %v5060, %v5141
    %v5205 = vadd.f32 %v5061, %v5141
    %v5206 = vadd.f32 %v5062, %v5141
    %v5207 = vadd.f32 %v5063, %v5141
    %v5208 = vadd.f32 %v5064, %v5146
    %v5209 = vadd.f32 %v5065, %v5146
    %v5210 = vadd.f32 %v5066, %v5146
    %v5211 = vadd.f32 %v5067, %v5146
    %v5212 = vmax.f32 %v5148, 0.0
    %v5213 = vmax.f32 %v5149, 0.0
    %v5214 = vmax.f32 %v5150, 0.0
    %v5215 = vmax.f32 %v5151, 0.0
    %v5216 = vmax.f32 %v5152, 0.0
    %v5217 = vmax.f32 %v5153, 0.0
    %v5218 = vmax.f32 %v5154, 0.0
    %v5219 = vmax.f32 %v5155, 0.0
    %v5220 = vmax.f32 %v5156, 0.0
    %v5221 = vmax.f32 %v5157, 0.0
    %v5222 = vmax.f32 %v5158, 0.0
    %v5223 = vmax.f32 %v5159, 0.0
    %v5224 = vmax.f32 %v5160, 0.0
    %v5225 = vmax.f32 %v5161, 0.0
    %v5226 = vmax.f32 %v5162, 0.0
    %v5227 = vmax.f32 %v5163, 0.0
    %v5228 = vmax.f32 %v5164, 0.0
    %v5229 = vmax.f32 %v5165, 0.0
    %v5230 = vmax.f32 %v5166, 0.0
    %v5231 = vmax.f32 %v5167, 0.0
    %v5232 = vmax.f32 %v5168, 0.0
    %v5233 = vmax.f32 %v5169, 0.0
    %v5234 = vmax.f32 %v5170, 0.0
    %v5235 = vmax.f32 %v5171, 0.0
    %v5236 = vmax.f32 %v5172, 0.0
    %v5237 = vmax.f32 %v5173, 0.0
    %v5238 = vmax.f32 %v5174, 0.0
    %v5239 = vmax.f32 %v5175, 0.0
    %v5240 = vmax.f32 %v5176, 0.0
    %v5241 = vmax.f32 %v5177, 0.0
    %v5242 = vmax.f32 %v5178, 0.0
    %v5243 = vmax.f32 %v5179, 0.0
    %v5244 = vmax.f32 %v5180, 0.0
    %v5245 = vmax.f32 %v5181, 0.0
    %v5246 = vmax.f32 %v5182, 0.0
    %v5247 = vmax.f32 %v5183, 0.0
    %v5248 = vmax.f32 %v5184, 0.0
    %v5249 = vmax.f32 %v5185, 0.0
    %v5250 = vmax.f32 %v5186, 0.0
    %v5251 = vmax.f32 %v5187, 0.0
    %v5252 = vmax.f32 %v5188, 0.0
    %v5253 = vmax.f32 %v5189, 0.0
    %v5254 = vmax.f32 %v5190, 0.0
    %v5255 = vmax.f32 %v5191, 0.0
    %v5256 = vmax.f32 %v5192, 0.0
    %v5257 = vmax.f32 %v5193, 0.0
    %v5258 = vmax.f32 %v5194, 0.0
    %v5259 = vmax.f32 %v5195, 0.0
    %v5260 = vmax.f32 %v5196, 0.0
    %v5261 = vmax.f32 %v5197, 0.0
    %v5262 = vmax.f32 %v5198, 0.0
    %v5263 = vmax.f32 %v5199, 0.0
    %v5264 = vmax.f32 %v5200, 0.0
    %v5265 = vmax.f32 %v5201, 0.0
    %v5266 = vmax.f32 %v5202, 0.0
    %v5267 = vmax.f32 %v5203, 0.0
    %v5268 = vmax.f32 %v5204, 0.0
    %v5269 = vmax.f32 %v5205, 0.0
    %v5270 = vmax.f32 %v5206, 0.0
    %v5271 = vmax.f32 %v5207, 0.0
    %v5272 = vmax.f32 %v5208, 0.0
    %v5273 = vmax.f32 %v5209, 0.0
    %v5274 = vmax.f32 %v5210, 0.0
    %v5275 = vmax.f32 %v5211, 0.0
    %s5276 = scalar_lea.vmem [#allocation2], 768
    %v5277 = vld [vmem:[%s5276] sm:$0xff]
    %v5278 = vld [vmem:[%s5276 + $0x8] sm:$0xff]
    %v5279 = vld [vmem:[%s5276 + $0x10] sm:$0xff]
    %v5280 = vld [vmem:[%s5276 + $0x18] sm:$0xff]
    %v5281 = vld [vmem:[%s5276 + $0x20] sm:$0xff]
    %v5282 = vld [vmem:[%s5276 + $0x28] sm:$0xff]
    %v5283 = vld [vmem:[%s5276 + $0x30] sm:$0xff]
    %v5284 = vld [vmem:[%s5276 + $0x38] sm:$0xff]
    %v5285 = vld [vmem:[%s5276 + $0x40] sm:$0xff]
    %v5286 = vld [vmem:[%s5276 + $0x48] sm:$0xff]
    %v5287 = vld [vmem:[%s5276 + $0x50] sm:$0xff]
    %v5288 = vld [vmem:[%s5276 + $0x58] sm:$0xff]
    %v5289 = vld [vmem:[%s5276 + $0x60] sm:$0xff]
    %v5290 = vld [vmem:[%s5276 + $0x68] sm:$0xff]
    %v5291 = vld [vmem:[%s5276 + $0x70] sm:$0xff]
    %v5292 = vld [vmem:[%s5276 + $0x78] sm:$0xff]
    %s5293 = scalar_lea.vmem [#allocation2], 896
    %v5294 = vld [vmem:[%s5293] sm:$0xff]
    %v5295 = vld [vmem:[%s5293 + $0x8] sm:$0xff]
    %v5296 = vld [vmem:[%s5293 + $0x10] sm:$0xff]
    %v5297 = vld [vmem:[%s5293 + $0x18] sm:$0xff]
    %v5298 = vld [vmem:[%s5293 + $0x20] sm:$0xff]
    %v5299 = vld [vmem:[%s5293 + $0x28] sm:$0xff]
    %v5300 = vld [vmem:[%s5293 + $0x30] sm:$0xff]
    %v5301 = vld [vmem:[%s5293 + $0x38] sm:$0xff]
    %v5302 = vld [vmem:[%s5293 + $0x40] sm:$0xff]
    %v5303 = vld [vmem:[%s5293 + $0x48] sm:$0xff]
    %v5304 = vld [vmem:[%s5293 + $0x50] sm:$0xff]
    %v5305 = vld [vmem:[%s5293 + $0x58] sm:$0xff]
    %v5306 = vld [vmem:[%s5293 + $0x60] sm:$0xff]
    %v5307 = vld [vmem:[%s5293 + $0x68] sm:$0xff]
    %v5308 = vld [vmem:[%s5293 + $0x70] sm:$0xff]
    %v5309 = vld [vmem:[%s5293 + $0x78] sm:$0xff]
    %s5310 = scalar_lea.vmem [#allocation2], 1024
    %v5311 = vld [vmem:[%s5310] sm:$0xff]
    %v5312 = vld [vmem:[%s5310 + $0x8] sm:$0xff]
    %v5313 = vld [vmem:[%s5310 + $0x10] sm:$0xff]
    %v5314 = vld [vmem:[%s5310 + $0x18] sm:$0xff]
    %v5315 = vld [vmem:[%s5310 + $0x20] sm:$0xff]
    %v5316 = vld [vmem:[%s5310 + $0x28] sm:$0xff]
    %v5317 = vld [vmem:[%s5310 + $0x30] sm:$0xff]
    %v5318 = vld [vmem:[%s5310 + $0x38] sm:$0xff]
    %v5319 = vld [vmem:[%s5310 + $0x40] sm:$0xff]
    %v5320 = vld [vmem:[%s5310 + $0x48] sm:$0xff]
    %v5321 = vld [vmem:[%s5310 + $0x50] sm:$0xff]
    %v5322 = vld [vmem:[%s5310 + $0x58] sm:$0xff]
    %v5323 = vld [vmem:[%s5310 + $0x60] sm:$0xff]
    %v5324 = vld [vmem:[%s5310 + $0x68] sm:$0xff]
    %v5325 = vld [vmem:[%s5310 + $0x70] sm:$0xff]
    %v5326 = vld [vmem:[%s5310 + $0x78] sm:$0xff]
    %s5327 = scalar_lea.vmem %s4, 256
    %v5328 = vld [vmem:[%s5327] sm:$0xff]
    %v5329 = vld [vmem:[%s5327 + $0x8] sm:$0xff]
    %v5330 = vld [vmem:[%s5327 + $0x10] sm:$0xff]
    %v5331 = vld [vmem:[%s5327 + $0x18] sm:$0xff]
    %v5332 = vld [vmem:[%s5327 + $0x20] sm:$0xff]
    %v5333 = vld [vmem:[%s5327 + $0x28] sm:$0xff]
    %v5334 = vld [vmem:[%s5327 + $0x30] sm:$0xff]
    %v5335 = vld [vmem:[%s5327 + $0x38] sm:$0xff]
    %v5336 = vld [vmem:[%s5327 + $0x40] sm:$0xff]
    %v5337 = vld [vmem:[%s5327 + $0x48] sm:$0xff]
    %v5338 = vld [vmem:[%s5327 + $0x50] sm:$0xff]
    %v5339 = vld [vmem:[%s5327 + $0x58] sm:$0xff]
    %v5340 = vld [vmem:[%s5327 + $0x60] sm:$0xff]
    %v5341 = vld [vmem:[%s5327 + $0x68] sm:$0xff]
    %v5342 = vld [vmem:[%s5327 + $0x70] sm:$0xff]
    %v5343 = vld [vmem:[%s5327 + $0x78] sm:$0xff]
    %5344 = vrot.lane.b32.xlu0 %v5212, 1
    %v5345 = vpop.permute.xlu0 %5344
    %5346 = vrot.lane.b32.xlu0 %v5216, 1
    %v5347 = vpop.permute.xlu0 %5346
    %5348 = vrot.lane.b32.xlu0 %v5220, 1
    %v5349 = vpop.permute.xlu0 %5348
    %5350 = vrot.lane.b32.xlu0 %v5224, 1
    %v5351 = vpop.permute.xlu0 %5350
    %5352 = vrot.lane.b32.xlu0 %v5228, 1
    %v5353 = vpop.permute.xlu0 %5352
    %5354 = vrot.lane.b32.xlu0 %v5232, 1
    %v5355 = vpop.permute.xlu0 %5354
    %5356 = vrot.lane.b32.xlu0 %v5236, 1
    %v5357 = vpop.permute.xlu0 %5356
    %5358 = vrot.lane.b32.xlu0 %v5240, 1
    %v5359 = vpop.permute.xlu0 %5358
    %5360 = vrot.lane.b32.xlu0 %v5244, 1
    %v5361 = vpop.permute.xlu0 %5360
    %5362 = vrot.lane.b32.xlu0 %v5248, 1
    %v5363 = vpop.permute.xlu0 %5362
    %5364 = vrot.lane.b32.xlu0 %v5252, 1
    %v5365 = vpop.permute.xlu0 %5364
    %5366 = vrot.lane.b32.xlu0 %v5256, 1
    %v5367 = vpop.permute.xlu0 %5366
    %5368 = vrot.lane.b32.xlu0 %v5260, 1
    %v5369 = vpop.permute.xlu0 %5368
    %5370 = vrot.lane.b32.xlu0 %v5264, 1
    %v5371 = vpop.permute.xlu0 %5370
    %5372 = vrot.lane.b32.xlu0 %v5268, 1
    %v5373 = vpop.permute.xlu0 %5372
    %5374 = vrot.lane.b32.xlu0 %v5272, 1
    %v5375 = vpop.permute.xlu0 %5374
    %5376 = vrot.lane.b32.xlu0 %v5213, 1
    %v5377 = vpop.permute.xlu0 %5376
    %5378 = vrot.lane.b32.xlu0 %v5217, 1
    %v5379 = vpop.permute.xlu0 %5378
    %5380 = vrot.lane.b32.xlu0 %v5221, 1
    %v5381 = vpop.permute.xlu0 %5380
    %5382 = vrot.lane.b32.xlu0 %v5225, 1
    %v5383 = vpop.permute.xlu0 %5382
    %5384 = vrot.lane.b32.xlu0 %v5229, 1
    %v5385 = vpop.permute.xlu0 %5384
    %5386 = vrot.lane.b32.xlu0 %v5233, 1
    %v5387 = vpop.permute.xlu0 %5386
    %5388 = vrot.lane.b32.xlu0 %v5237, 1
    %v5389 = vpop.permute.xlu0 %5388
    %5390 = vrot.lane.b32.xlu0 %v5241, 1
    %v5391 = vpop.permute.xlu0 %5390
    %5392 = vrot.lane.b32.xlu0 %v5245, 1
    %v5393 = vpop.permute.xlu0 %5392
    %5394 = vrot.lane.b32.xlu0 %v5249, 1
    %v5395 = vpop.permute.xlu0 %5394
    %5396 = vrot.lane.b32.xlu0 %v5253, 1
    %v5397 = vpop.permute.xlu0 %5396
    %5398 = vrot.lane.b32.xlu0 %v5257, 1
    %v5399 = vpop.permute.xlu0 %5398
    %5400 = vrot.lane.b32.xlu0 %v5261, 1
    %v5401 = vpop.permute.xlu0 %5400
    %5402 = vrot.lane.b32.xlu0 %v5265, 1
    %v5403 = vpop.permute.xlu0 %5402
    %5404 = vrot.lane.b32.xlu0 %v5269, 1
    %v5405 = vpop.permute.xlu0 %5404
    %5406 = vrot.lane.b32.xlu0 %v5273, 1
    %v5407 = vpop.permute.xlu0 %5406
    %5408 = vrot.lane.b32.xlu0 %v5214, 1
    %v5409 = vpop.permute.xlu0 %5408
    %5410 = vrot.lane.b32.xlu0 %v5218, 1
    %v5411 = vpop.permute.xlu0 %5410
    %5412 = vrot.lane.b32.xlu0 %v5222, 1
    %v5413 = vpop.permute.xlu0 %5412
    %5414 = vrot.lane.b32.xlu0 %v5226, 1
    %v5415 = vpop.permute.xlu0 %5414
    %5416 = vrot.lane.b32.xlu0 %v5230, 1
    %v5417 = vpop.permute.xlu0 %5416
    %5418 = vrot.lane.b32.xlu0 %v5234, 1
    %v5419 = vpop.permute.xlu0 %5418
    %5420 = vrot.lane.b32.xlu0 %v5238, 1
    %v5421 = vpop.permute.xlu0 %5420
    %5422 = vrot.lane.b32.xlu0 %v5242, 1
    %v5423 = vpop.permute.xlu0 %5422
    %5424 = vrot.lane.b32.xlu0 %v5246, 1
    %v5425 = vpop.permute.xlu0 %5424
    %5426 = vrot.lane.b32.xlu0 %v5250, 1
    %v5427 = vpop.permute.xlu0 %5426
    %5428 = vrot.lane.b32.xlu0 %v5254, 1
    %v5429 = vpop.permute.xlu0 %5428
    %5430 = vrot.lane.b32.xlu0 %v5258, 1
    %v5431 = vpop.permute.xlu0 %5430
    %5432 = vrot.lane.b32.xlu0 %v5262, 1
    %v5433 = vpop.permute.xlu0 %5432
    %5434 = vrot.lane.b32.xlu0 %v5266, 1
    %v5435 = vpop.permute.xlu0 %5434
    %5436 = vrot.lane.b32.xlu0 %v5270, 1
    %v5437 = vpop.permute.xlu0 %5436
    %5438 = vrot.lane.b32.xlu0 %v5274, 1
    %v5439 = vpop.permute.xlu0 %5438
    %5440 = vrot.lane.b32.xlu0 %v5215, 1
    %v5441 = vpop.permute.xlu0 %5440
    %5442 = vrot.lane.b32.xlu0 %v5219, 1
    %v5443 = vpop.permute.xlu0 %5442
    %5444 = vrot.lane.b32.xlu0 %v5223, 1
    %v5445 = vpop.permute.xlu0 %5444
    %5446 = vrot.lane.b32.xlu0 %v5227, 1
    %v5447 = vpop.permute.xlu0 %5446
    %5448 = vrot.lane.b32.xlu0 %v5231, 1
    %v5449 = vpop.permute.xlu0 %5448
    %5450 = vrot.lane.b32.xlu0 %v5235, 1
    %v5451 = vpop.permute.xlu0 %5450
    %5452 = vrot.lane.b32.xlu0 %v5239, 1
    %v5453 = vpop.permute.xlu0 %5452
    %5454 = vrot.lane.b32.xlu0 %v5243, 1
    %v5455 = vpop.permute.xlu0 %5454
    %5456 = vrot.lane.b32.xlu0 %v5247, 1
    %v5457 = vpop.permute.xlu0 %5456
    %5458 = vrot.lane.b32.xlu0 %v5251, 1
    %v5459 = vpop.permute.xlu0 %5458
    %5460 = vrot.lane.b32.xlu0 %v5255, 1
    %v5461 = vpop.permute.xlu0 %5460
    %5462 = vrot.lane.b32.xlu0 %v5259, 1
    %v5463 = vpop.permute.xlu0 %5462
    %5464 = vrot.lane.b32.xlu0 %v5263, 1
    %v5465 = vpop.permute.xlu0 %5464
    %5466 = vrot.lane.b32.xlu0 %v5267, 1
    %v5467 = vpop.permute.xlu0 %5466
    %5468 = vrot.lane.b32.xlu0 %v5271, 1
    %v5469 = vpop.permute.xlu0 %5468
    %5470 = vrot.lane.b32.xlu0 %v5275, 1
    %v5471 = vpop.permute.xlu0 %5470
    %v5472 = vsel %vm200, %v5409, %v5441
    %v5473 = vsel %vm200, %v5411, %v5443
    %v5474 = vsel %vm200, %v5413, %v5445
    %v5475 = vsel %vm200, %v5415, %v5447
    %v5476 = vsel %vm200, %v5417, %v5449
    %v5477 = vsel %vm200, %v5419, %v5451
    %v5478 = vsel %vm200, %v5421, %v5453
    %v5479 = vsel %vm200, %v5423, %v5455
    %v5480 = vsel %vm200, %v5425, %v5457
    %v5481 = vsel %vm200, %v5427, %v5459
    %v5482 = vsel %vm200, %v5429, %v5461
    %v5483 = vsel %vm200, %v5431, %v5463
    %v5484 = vsel %vm200, %v5433, %v5465
    %v5485 = vsel %vm200, %v5435, %v5467
    %v5486 = vsel %vm200, %v5437, %v5469
    %v5487 = vsel %vm200, %v5439, %v5471
    %v5488 = vsel %vm200, %v5377, %v5409
    %v5489 = vsel %vm200, %v5379, %v5411
    %v5490 = vsel %vm200, %v5381, %v5413
    %v5491 = vsel %vm200, %v5383, %v5415
    %v5492 = vsel %vm200, %v5385, %v5417
    %v5493 = vsel %vm200, %v5387, %v5419
    %v5494 = vsel %vm200, %v5389, %v5421
    %v5495 = vsel %vm200, %v5391, %v5423
    %v5496 = vsel %vm200, %v5393, %v5425
    %v5497 = vsel %vm200, %v5395, %v5427
    %v5498 = vsel %vm200, %v5397, %v5429
    %v5499 = vsel %vm200, %v5399, %v5431
    %v5500 = vsel %vm200, %v5401, %v5433
    %v5501 = vsel %vm200, %v5403, %v5435
    %v5502 = vsel %vm200, %v5405, %v5437
    %v5503 = vsel %vm200, %v5407, %v5439
    %v5504 = vsel %vm200, %v5345, %v5377
    %v5505 = vsel %vm200, %v5347, %v5379
    %v5506 = vsel %vm200, %v5349, %v5381
    %v5507 = vsel %vm200, %v5351, %v5383
    %v5508 = vsel %vm200, %v5353, %v5385
    %v5509 = vsel %vm200, %v5355, %v5387
    %v5510 = vsel %vm200, %v5357, %v5389
    %v5511 = vsel %vm200, %v5359, %v5391
    %v5512 = vsel %vm200, %v5361, %v5393
    %v5513 = vsel %vm200, %v5363, %v5395
    %v5514 = vsel %vm200, %v5365, %v5397
    %v5515 = vsel %vm200, %v5367, %v5399
    %v5516 = vsel %vm200, %v5369, %v5401
    %v5517 = vsel %vm200, %v5371, %v5403
    %v5518 = vsel %vm200, %v5373, %v5405
    %v5519 = vsel %vm200, %v5375, %v5407
    %v5520 = vsel %vm200, %v5441, %v5345
    %v5521 = vsel %vm200, %v5443, %v5347
    %v5522 = vsel %vm200, %v5445, %v5349
    %v5523 = vsel %vm200, %v5447, %v5351
    %v5524 = vsel %vm200, %v5449, %v5353
    %v5525 = vsel %vm200, %v5451, %v5355
    %v5526 = vsel %vm200, %v5453, %v5357
    %v5527 = vsel %vm200, %v5455, %v5359
    %v5528 = vsel %vm200, %v5457, %v5361
    %v5529 = vsel %vm200, %v5459, %v5363
    %v5530 = vsel %vm200, %v5461, %v5365
    %v5531 = vsel %vm200, %v5463, %v5367
    %v5532 = vsel %vm200, %v5465, %v5369
    %v5533 = vsel %vm200, %v5467, %v5371
    %v5534 = vsel %vm200, %v5469, %v5373
    %v5535 = vsel %vm200, %v5471, %v5375
    %v5536 = vmul.f32 %v5520, %v104
    %v5537 = vmul.f32 %v5504, %v105
    %v5538 = vmul.f32 %v5488, %v106
    %v5539 = vmul.f32 %v5472, %v107
    %v5540 = vmul.f32 %v5521, %v104
    %v5541 = vmul.f32 %v5505, %v105
    %v5542 = vmul.f32 %v5489, %v106
    %v5543 = vmul.f32 %v5473, %v107
    %v5544 = vmul.f32 %v5522, %v104
    %v5545 = vmul.f32 %v5506, %v105
    %v5546 = vmul.f32 %v5490, %v106
    %v5547 = vmul.f32 %v5474, %v107
    %v5548 = vmul.f32 %v5523, %v104
    %v5549 = vmul.f32 %v5507, %v105
    %v5550 = vmul.f32 %v5491, %v106
    %v5551 = vmul.f32 %v5475, %v107
    %v5552 = vmul.f32 %v5524, %v104
    %v5553 = vmul.f32 %v5508, %v105
    %v5554 = vmul.f32 %v5492, %v106
    %v5555 = vmul.f32 %v5476, %v107
    %v5556 = vmul.f32 %v5525, %v104
    %v5557 = vmul.f32 %v5509, %v105
    %v5558 = vmul.f32 %v5493, %v106
    %v5559 = vmul.f32 %v5477, %v107
    %v5560 = vmul.f32 %v5526, %v104
    %v5561 = vmul.f32 %v5510, %v105
    %v5562 = vmul.f32 %v5494, %v106
    %v5563 = vmul.f32 %v5478, %v107
    %v5564 = vmul.f32 %v5527, %v104
    %v5565 = vmul.f32 %v5511, %v105
    %v5566 = vmul.f32 %v5495, %v106
    %v5567 = vmul.f32 %v5479, %v107
    %v5568 = vmul.f32 %v5528, %v104
    %v5569 = vmul.f32 %v5512, %v105
    %v5570 = vmul.f32 %v5496, %v106
    %v5571 = vmul.f32 %v5480, %v107
    %v5572 = vmul.f32 %v5529, %v104
    %v5573 = vmul.f32 %v5513, %v105
    %v5574 = vmul.f32 %v5497, %v106
    %v5575 = vmul.f32 %v5481, %v107
    %v5576 = vmul.f32 %v5530, %v104
    %v5577 = vmul.f32 %v5514, %v105
    %v5578 = vmul.f32 %v5498, %v106
    %v5579 = vmul.f32 %v5482, %v107
    %v5580 = vmul.f32 %v5531, %v104
    %v5581 = vmul.f32 %v5515, %v105
    %v5582 = vmul.f32 %v5499, %v106
    %v5583 = vmul.f32 %v5483, %v107
    %v5584 = vmul.f32 %v5532, %v104
    %v5585 = vmul.f32 %v5516, %v105
    %v5586 = vmul.f32 %v5500, %v106
    %v5587 = vmul.f32 %v5484, %v107
    %v5588 = vmul.f32 %v5533, %v104
    %v5589 = vmul.f32 %v5517, %v105
    %v5590 = vmul.f32 %v5501, %v106
    %v5591 = vmul.f32 %v5485, %v107
    %v5592 = vmul.f32 %v5534, %v104
    %v5593 = vmul.f32 %v5518, %v105
    %v5594 = vmul.f32 %v5502, %v106
    %v5595 = vmul.f32 %v5486, %v107
    %v5596 = vmul.f32 %v5535, %v104
    %v5597 = vmul.f32 %v5519, %v105
    %v5598 = vmul.f32 %v5503, %v106
    %v5599 = vmul.f32 %v5487, %v107
    %5600 = vrot.lane.b32.xlu0 %v5212, 127
    %v5601 = vpop.permute.xlu0 %5600
    %5602 = vrot.lane.b32.xlu0 %v5216, 127
    %v5603 = vpop.permute.xlu0 %5602
    %5604 = vrot.lane.b32.xlu0 %v5220, 127
    %v5605 = vpop.permute.xlu0 %5604
    %5606 = vrot.lane.b32.xlu0 %v5224, 127
    %v5607 = vpop.permute.xlu0 %5606
    %5608 = vrot.lane.b32.xlu0 %v5228, 127
    %v5609 = vpop.permute.xlu0 %5608
    %5610 = vrot.lane.b32.xlu0 %v5232, 127
    %v5611 = vpop.permute.xlu0 %5610
    %5612 = vrot.lane.b32.xlu0 %v5236, 127
    %v5613 = vpop.permute.xlu0 %5612
    %5614 = vrot.lane.b32.xlu0 %v5240, 127
    %v5615 = vpop.permute.xlu0 %5614
    %5616 = vrot.lane.b32.xlu0 %v5244, 127
    %v5617 = vpop.permute.xlu0 %5616
    %5618 = vrot.lane.b32.xlu0 %v5248, 127
    %v5619 = vpop.permute.xlu0 %5618
    %5620 = vrot.lane.b32.xlu0 %v5252, 127
    %v5621 = vpop.permute.xlu0 %5620
    %5622 = vrot.lane.b32.xlu0 %v5256, 127
    %v5623 = vpop.permute.xlu0 %5622
    %5624 = vrot.lane.b32.xlu0 %v5260, 127
    %v5625 = vpop.permute.xlu0 %5624
    %5626 = vrot.lane.b32.xlu0 %v5264, 127
    %v5627 = vpop.permute.xlu0 %5626
    %5628 = vrot.lane.b32.xlu0 %v5268, 127
    %v5629 = vpop.permute.xlu0 %5628
    %5630 = vrot.lane.b32.xlu0 %v5272, 127
    %v5631 = vpop.permute.xlu0 %5630
    %5632 = vrot.lane.b32.xlu0 %v5213, 127
    %v5633 = vpop.permute.xlu0 %5632
    %5634 = vrot.lane.b32.xlu0 %v5217, 127
    %v5635 = vpop.permute.xlu0 %5634
    %5636 = vrot.lane.b32.xlu0 %v5221, 127
    %v5637 = vpop.permute.xlu0 %5636
    %5638 = vrot.lane.b32.xlu0 %v5225, 127
    %v5639 = vpop.permute.xlu0 %5638
    %5640 = vrot.lane.b32.xlu0 %v5229, 127
    %v5641 = vpop.permute.xlu0 %5640
    %5642 = vrot.lane.b32.xlu0 %v5233, 127
    %v5643 = vpop.permute.xlu0 %5642
    %5644 = vrot.lane.b32.xlu0 %v5237, 127
    %v5645 = vpop.permute.xlu0 %5644
    %5646 = vrot.lane.b32.xlu0 %v5241, 127
    %v5647 = vpop.permute.xlu0 %5646
    %5648 = vrot.lane.b32.xlu0 %v5245, 127
    %v5649 = vpop.permute.xlu0 %5648
    %5650 = vrot.lane.b32.xlu0 %v5249, 127
    %v5651 = vpop.permute.xlu0 %5650
    %5652 = vrot.lane.b32.xlu0 %v5253, 127
    %v5653 = vpop.permute.xlu0 %5652
    %5654 = vrot.lane.b32.xlu0 %v5257, 127
    %v5655 = vpop.permute.xlu0 %5654
    %5656 = vrot.lane.b32.xlu0 %v5261, 127
    %v5657 = vpop.permute.xlu0 %5656
    %5658 = vrot.lane.b32.xlu0 %v5265, 127
    %v5659 = vpop.permute.xlu0 %5658
    %5660 = vrot.lane.b32.xlu0 %v5269, 127
    %v5661 = vpop.permute.xlu0 %5660
    %5662 = vrot.lane.b32.xlu0 %v5273, 127
    %v5663 = vpop.permute.xlu0 %5662
    %5664 = vrot.lane.b32.xlu0 %v5214, 127
    %v5665 = vpop.permute.xlu0 %5664
    %5666 = vrot.lane.b32.xlu0 %v5218, 127
    %v5667 = vpop.permute.xlu0 %5666
    %5668 = vrot.lane.b32.xlu0 %v5222, 127
    %v5669 = vpop.permute.xlu0 %5668
    %5670 = vrot.lane.b32.xlu0 %v5226, 127
    %v5671 = vpop.permute.xlu0 %5670
    %5672 = vrot.lane.b32.xlu0 %v5230, 127
    %v5673 = vpop.permute.xlu0 %5672
    %5674 = vrot.lane.b32.xlu0 %v5234, 127
    %v5675 = vpop.permute.xlu0 %5674
    %5676 = vrot.lane.b32.xlu0 %v5238, 127
    %v5677 = vpop.permute.xlu0 %5676
    %5678 = vrot.lane.b32.xlu0 %v5242, 127
    %v5679 = vpop.permute.xlu0 %5678
    %5680 = vrot.lane.b32.xlu0 %v5246, 127
    %v5681 = vpop.permute.xlu0 %5680
    %5682 = vrot.lane.b32.xlu0 %v5250, 127
    %v5683 = vpop.permute.xlu0 %5682
    %5684 = vrot.lane.b32.xlu0 %v5254, 127
    %v5685 = vpop.permute.xlu0 %5684
    %5686 = vrot.lane.b32.xlu0 %v5258, 127
    %v5687 = vpop.permute.xlu0 %5686
    %5688 = vrot.lane.b32.xlu0 %v5262, 127
    %v5689 = vpop.permute.xlu0 %5688
    %5690 = vrot.lane.b32.xlu0 %v5266, 127
    %v5691 = vpop.permute.xlu0 %5690
    %5692 = vrot.lane.b32.xlu0 %v5270, 127
    %v5693 = vpop.permute.xlu0 %5692
    %5694 = vrot.lane.b32.xlu0 %v5274, 127
    %v5695 = vpop.permute.xlu0 %5694
    %5696 = vrot.lane.b32.xlu0 %v5215, 127
    %v5697 = vpop.permute.xlu0 %5696
    %5698 = vrot.lane.b32.xlu0 %v5219, 127
    %v5699 = vpop.permute.xlu0 %5698
    %5700 = vrot.lane.b32.xlu0 %v5223, 127
    %v5701 = vpop.permute.xlu0 %5700
    %5702 = vrot.lane.b32.xlu0 %v5227, 127
    %v5703 = vpop.permute.xlu0 %5702
    %5704 = vrot.lane.b32.xlu0 %v5231, 127
    %v5705 = vpop.permute.xlu0 %5704
    %5706 = vrot.lane.b32.xlu0 %v5235, 127
    %v5707 = vpop.permute.xlu0 %5706
    %5708 = vrot.lane.b32.xlu0 %v5239, 127
    %v5709 = vpop.permute.xlu0 %5708
    %5710 = vrot.lane.b32.xlu0 %v5243, 127
    %v5711 = vpop.permute.xlu0 %5710
    %5712 = vrot.lane.b32.xlu0 %v5247, 127
    %v5713 = vpop.permute.xlu0 %5712
    %5714 = vrot.lane.b32.xlu0 %v5251, 127
    %v5715 = vpop.permute.xlu0 %5714
    %5716 = vrot.lane.b32.xlu0 %v5255, 127
    %v5717 = vpop.permute.xlu0 %5716
    %5718 = vrot.lane.b32.xlu0 %v5259, 127
    %v5719 = vpop.permute.xlu0 %5718
    %5720 = vrot.lane.b32.xlu0 %v5263, 127
    %v5721 = vpop.permute.xlu0 %5720
    %5722 = vrot.lane.b32.xlu0 %v5267, 127
    %v5723 = vpop.permute.xlu0 %5722
    %5724 = vrot.lane.b32.xlu0 %v5271, 127
    %v5725 = vpop.permute.xlu0 %5724
    %5726 = vrot.lane.b32.xlu0 %v5275, 127
    %v5727 = vpop.permute.xlu0 %5726
    %v5728 = vsel %vm217, %v5665, %v5697
    %v5729 = vsel %vm217, %v5667, %v5699
    %v5730 = vsel %vm217, %v5669, %v5701
    %v5731 = vsel %vm217, %v5671, %v5703
    %v5732 = vsel %vm217, %v5673, %v5705
    %v5733 = vsel %vm217, %v5675, %v5707
    %v5734 = vsel %vm217, %v5677, %v5709
    %v5735 = vsel %vm217, %v5679, %v5711
    %v5736 = vsel %vm217, %v5681, %v5713
    %v5737 = vsel %vm217, %v5683, %v5715
    %v5738 = vsel %vm217, %v5685, %v5717
    %v5739 = vsel %vm217, %v5687, %v5719
    %v5740 = vsel %vm217, %v5689, %v5721
    %v5741 = vsel %vm217, %v5691, %v5723
    %v5742 = vsel %vm217, %v5693, %v5725
    %v5743 = vsel %vm217, %v5695, %v5727
    %v5744 = vsel %vm217, %v5633, %v5665
    %v5745 = vsel %vm217, %v5635, %v5667
    %v5746 = vsel %vm217, %v5637, %v5669
    %v5747 = vsel %vm217, %v5639, %v5671
    %v5748 = vsel %vm217, %v5641, %v5673
    %v5749 = vsel %vm217, %v5643, %v5675
    %v5750 = vsel %vm217, %v5645, %v5677
    %v5751 = vsel %vm217, %v5647, %v5679
    %v5752 = vsel %vm217, %v5649, %v5681
    %v5753 = vsel %vm217, %v5651, %v5683
    %v5754 = vsel %vm217, %v5653, %v5685
    %v5755 = vsel %vm217, %v5655, %v5687
    %v5756 = vsel %vm217, %v5657, %v5689
    %v5757 = vsel %vm217, %v5659, %v5691
    %v5758 = vsel %vm217, %v5661, %v5693
    %v5759 = vsel %vm217, %v5663, %v5695
    %v5760 = vsel %vm217, %v5601, %v5633
    %v5761 = vsel %vm217, %v5603, %v5635
    %v5762 = vsel %vm217, %v5605, %v5637
    %v5763 = vsel %vm217, %v5607, %v5639
    %v5764 = vsel %vm217, %v5609, %v5641
    %v5765 = vsel %vm217, %v5611, %v5643
    %v5766 = vsel %vm217, %v5613, %v5645
    %v5767 = vsel %vm217, %v5615, %v5647
    %v5768 = vsel %vm217, %v5617, %v5649
    %v5769 = vsel %vm217, %v5619, %v5651
    %v5770 = vsel %vm217, %v5621, %v5653
    %v5771 = vsel %vm217, %v5623, %v5655
    %v5772 = vsel %vm217, %v5625, %v5657
    %v5773 = vsel %vm217, %v5627, %v5659
    %v5774 = vsel %vm217, %v5629, %v5661
    %v5775 = vsel %vm217, %v5631, %v5663
    %v5776 = vsel %vm217, %v5697, %v5601
    %v5777 = vsel %vm217, %v5699, %v5603
    %v5778 = vsel %vm217, %v5701, %v5605
    %v5779 = vsel %vm217, %v5703, %v5607
    %v5780 = vsel %vm217, %v5705, %v5609
    %v5781 = vsel %vm217, %v5707, %v5611
    %v5782 = vsel %vm217, %v5709, %v5613
    %v5783 = vsel %vm217, %v5711, %v5615
    %v5784 = vsel %vm217, %v5713, %v5617
    %v5785 = vsel %vm217, %v5715, %v5619
    %v5786 = vsel %vm217, %v5717, %v5621
    %v5787 = vsel %vm217, %v5719, %v5623
    %v5788 = vsel %vm217, %v5721, %v5625
    %v5789 = vsel %vm217, %v5723, %v5627
    %v5790 = vsel %vm217, %v5725, %v5629
    %v5791 = vsel %vm217, %v5727, %v5631
    %v5792 = vmul.f32 %v5760, %v116
    %v5793 = vmul.f32 %v5744, %v117
    %v5794 = vmul.f32 %v5728, %v118
    %v5795 = vmul.f32 %v5776, %v119
    %v5796 = vmul.f32 %v5761, %v116
    %v5797 = vmul.f32 %v5745, %v117
    %v5798 = vmul.f32 %v5729, %v118
    %v5799 = vmul.f32 %v5777, %v119
    %v5800 = vmul.f32 %v5762, %v116
    %v5801 = vmul.f32 %v5746, %v117
    %v5802 = vmul.f32 %v5730, %v118
    %v5803 = vmul.f32 %v5778, %v119
    %v5804 = vmul.f32 %v5763, %v116
    %v5805 = vmul.f32 %v5747, %v117
    %v5806 = vmul.f32 %v5731, %v118
    %v5807 = vmul.f32 %v5779, %v119
    %v5808 = vmul.f32 %v5764, %v116
    %v5809 = vmul.f32 %v5748, %v117
    %v5810 = vmul.f32 %v5732, %v118
    %v5811 = vmul.f32 %v5780, %v119
    %v5812 = vmul.f32 %v5765, %v116
    %v5813 = vmul.f32 %v5749, %v117
    %v5814 = vmul.f32 %v5733, %v118
    %v5815 = vmul.f32 %v5781, %v119
    %v5816 = vmul.f32 %v5766, %v116
    %v5817 = vmul.f32 %v5750, %v117
    %v5818 = vmul.f32 %v5734, %v118
    %v5819 = vmul.f32 %v5782, %v119
    %v5820 = vmul.f32 %v5767, %v116
    %v5821 = vmul.f32 %v5751, %v117
    %v5822 = vmul.f32 %v5735, %v118
    %v5823 = vmul.f32 %v5783, %v119
    %v5824 = vmul.f32 %v5768, %v116
    %v5825 = vmul.f32 %v5752, %v117
    %v5826 = vmul.f32 %v5736, %v118
    %v5827 = vmul.f32 %v5784, %v119
    %v5828 = vmul.f32 %v5769, %v116
    %v5829 = vmul.f32 %v5753, %v117
    %v5830 = vmul.f32 %v5737, %v118
    %v5831 = vmul.f32 %v5785, %v119
    %v5832 = vmul.f32 %v5770, %v116
    %v5833 = vmul.f32 %v5754, %v117
    %v5834 = vmul.f32 %v5738, %v118
    %v5835 = vmul.f32 %v5786, %v119
    %v5836 = vmul.f32 %v5771, %v116
    %v5837 = vmul.f32 %v5755, %v117
    %v5838 = vmul.f32 %v5739, %v118
    %v5839 = vmul.f32 %v5787, %v119
    %v5840 = vmul.f32 %v5772, %v116
    %v5841 = vmul.f32 %v5756, %v117
    %v5842 = vmul.f32 %v5740, %v118
    %v5843 = vmul.f32 %v5788, %v119
    %v5844 = vmul.f32 %v5773, %v116
    %v5845 = vmul.f32 %v5757, %v117
    %v5846 = vmul.f32 %v5741, %v118
    %v5847 = vmul.f32 %v5789, %v119
    %v5848 = vmul.f32 %v5774, %v116
    %v5849 = vmul.f32 %v5758, %v117
    %v5850 = vmul.f32 %v5742, %v118
    %v5851 = vmul.f32 %v5790, %v119
    %v5852 = vmul.f32 %v5775, %v116
    %v5853 = vmul.f32 %v5759, %v117
    %v5854 = vmul.f32 %v5743, %v118
    %v5855 = vmul.f32 %v5791, %v119
    %5856 = vmatprep.subr.mxu0 %v5213
    %5857 = vmatpush1.msra.mxu0 %v5212
    %5858 = vmatprep.subr.mxu0 %v5217
    %5859 = vmatpush1.msra.mxu0 %v5216
    %5860 = vmatprep.subr.mxu0 %v5221
    %5861 = vmatpush1.msra.mxu0 %v5220
    %5862 = vmatprep.subr.mxu0 %v5225
    %5863 = vmatpush1.msra.mxu0 %v5224
    %5864 = vmatprep.subr.mxu0 %v5229
    %5865 = vmatpush1.msra.mxu0 %v5228
    %5866 = vmatprep.subr.mxu0 %v5233
    %5867 = vmatpush1.msra.mxu0 %v5232
    %5868 = vmatprep.subr.mxu0 %v5237
    %5869 = vmatpush1.msra.mxu0 %v5236
    %5870 = vmatprep.subr.mxu0 %v5241
    %5871 = vmatpush1.msra.mxu0 %v5240
    %5872 = vmatprep.subr.mxu0 %v5245
    %5873 = vmatpush1.msra.mxu0 %v5244
    %5874 = vmatprep.subr.mxu0 %v5249
    %5875 = vmatpush1.msra.mxu0 %v5248
    %5876 = vmatprep.subr.mxu0 %v5253
    %5877 = vmatpush1.msra.mxu0 %v5252
    %5878 = vmatprep.subr.mxu0 %v5257
    %5879 = vmatpush1.msra.mxu0 %v5256
    %5880 = vmatprep.subr.mxu0 %v5261
    %5881 = vmatpush1.msra.mxu0 %v5260
    %5882 = vmatprep.subr.mxu0 %v5265
    %5883 = vmatpush1.msra.mxu0 %v5264
    %5884 = vmatprep.subr.mxu0 %v5269
    %5885 = vmatpush1.msra.mxu0 %v5268
    %5886 = vmatprep.subr.mxu0 %v5273
    %5887 = vmatpush1.msra.mxu0 %v5272
    %5888 = vmatprep.subr.mxu0 0.0
    %5889 = vmatpush1.msra.mxu0 0.0
    %5890 = vmatprep.subr.mxu0 0.0
    %5891 = vmatpush1.msra.mxu0 0.0
    %5892 = vmatprep.subr.mxu0 0.0
    %5893 = vmatpush1.msra.mxu0 0.0
    %5894 = vmatprep.subr.mxu0 0.0
    %5895 = vmatpush1.msra.mxu0 0.0
    %5896 = vmatprep.subr.mxu0 0.0
    %5897 = vmatpush1.msra.mxu0 0.0
    %5898 = vmatprep.subr.mxu0 0.0
    %5899 = vmatpush1.msra.mxu0 0.0
    %5900 = vmatprep.subr.mxu0 0.0
    %5901 = vmatpush1.msra.mxu0 0.0
    %5902 = vmatprep.subr.mxu0 0.0
    %5903 = vmatpush1.msra.mxu0 0.0
    %5904 = vmatprep.subr.mxu0 0.0
    %5905 = vmatpush1.msra.mxu0 0.0
    %5906 = vmatprep.subr.mxu0 0.0
    %5907 = vmatpush1.msra.mxu0 0.0
    %5908 = vmatprep.subr.mxu0 0.0
    %5909 = vmatpush1.msra.mxu0 0.0
    %5910 = vmatprep.subr.mxu0 0.0
    %5911 = vmatpush1.msra.mxu0 0.0
    %5912 = vmatprep.subr.mxu0 0.0
    %5913 = vmatpush1.msra.mxu0 0.0
    %5914 = vmatprep.subr.mxu0 0.0
    %5915 = vmatpush1.msra.mxu0 0.0
    %5916 = vmatprep.subr.mxu0 0.0
    %5917 = vmatpush1.msra.mxu0 0.0
    %5918 = vmatprep.subr.mxu0 0.0
    %5919 = vmatpush1.msra.mxu0 0.0
    %5920 = vmatprep.mubr.f32.mxu0 0.0
    %5921 = vmatmul.mubr.f32.gmra.mrb[0].mxu0 %v5294
    %v5922 = vpop.f32.mrb[0].mxu0
    %v5923 = vadd.f32 0.0, %v5922
    %v5924 = vpop.f32.mrb[0].mxu0
    %v5925 = vadd.f32 0.0, %v5924
    %5926 = vmatprep.mubr.f32.mxu0 0.0
    %5927 = vmatmul.mubr.f32.gmra.mrb[0].mxu0 %v5295
    %v5928 = vpop.f32.mrb[0].mxu0
    %v5929 = vadd.f32 0.0, %v5928
    %v5930 = vpop.f32.mrb[0].mxu0
    %v5931 = vadd.f32 0.0, %v5930
    %5932 = vmatprep.mubr.f32.mxu0 0.0
    %5933 = vmatmul.mubr.f32.gmra.mrb[0].mxu0 %v5296
    %v5934 = vpop.f32.mrb[0].mxu0
    %v5935 = vadd.f32 0.0, %v5934
    %v5936 = vpop.f32.mrb[0].mxu0
    %v5937 = vadd.f32 0.0, %v5936
    %5938 = vmatprep.mubr.f32.mxu0 0.0
    %5939 = vmatmul.mubr.f32.gmra.mrb[0].mxu0 %v5297
    %v5940 = vpop.f32.mrb[0].mxu0
    %v5941 = vadd.f32 0.0, %v5940
    %v5942 = vpop.f32.mrb[0].mxu0
    %v5943 = vadd.f32 0.0, %v5942
    %5944 = vmatprep.mubr.f32.mxu0 0.0
    %5945 = vmatmul.mubr.f32.gmra.mrb[0].mxu0 %v5298
    %v5946 = vpop.f32.mrb[0].mxu0
    %v5947 = vadd.f32 0.0, %v5946
    %v5948 = vpop.f32.mrb[0].mxu0
    %v5949 = vadd.f32 0.0, %v5948
    %5950 = vmatprep.mubr.f32.mxu0 0.0
    %5951 = vmatmul.mubr.f32.gmra.mrb[0].mxu0 %v5299
    %v5952 = vpop.f32.mrb[0].mxu0
    %v5953 = vadd.f32 0.0, %v5952
    %v5954 = vpop.f32.mrb[0].mxu0
    %v5955 = vadd.f32 0.0, %v5954
    %5956 = vmatprep.mubr.f32.mxu0 0.0
    %5957 = vmatmul.mubr.f32.gmra.mrb[0].mxu0 %v5300
    %v5958 = vpop.f32.mrb[0].mxu0
    %v5959 = vadd.f32 0.0, %v5958
    %v5960 = vpop.f32.mrb[0].mxu0
    %v5961 = vadd.f32 0.0, %v5960
    %5962 = vmatprep.mubr.f32.mxu0 0.0
    %5963 = vmatmul.mubr.f32.gmra.mrb[0].mxu0 %v5301
    %v5964 = vpop.f32.mrb[0].mxu0
    %v5965 = vadd.f32 0.0, %v5964
    %v5966 = vpop.f32.mrb[0].mxu0
    %v5967 = vadd.f32 0.0, %v5966
    %5968 = vmatprep.mubr.f32.mxu0 0.0
    %5969 = vmatmul.mubr.f32.gmra.mrb[0].mxu0 %v5302
    %v5970 = vpop.f32.mrb[0].mxu0
    %v5971 = vadd.f32 0.0, %v5970
    %v5972 = vpop.f32.mrb[0].mxu0
    %v5973 = vadd.f32 0.0, %v5972
    %5974 = vmatprep.mubr.f32.mxu0 0.0
    %5975 = vmatmul.mubr.f32.gmra.mrb[0].mxu0 %v5303
    %v5976 = vpop.f32.mrb[0].mxu0
    %v5977 = vadd.f32 0.0, %v5976
    %v5978 = vpop.f32.mrb[0].mxu0
    %v5979 = vadd.f32 0.0, %v5978
    %5980 = vmatprep.mubr.f32.mxu0 0.0
    %5981 = vmatmul.mubr.f32.gmra.mrb[0].mxu0 %v5304
    %v5982 = vpop.f32.mrb[0].mxu0
    %v5983 = vadd.f32 0.0, %v5982
    %v5984 = vpop.f32.mrb[0].mxu0
    %v5985 = vadd.f32 0.0, %v5984
    %5986 = vmatprep.mubr.f32.mxu0 0.0
    %5987 = vmatmul.mubr.f32.gmra.mrb[0].mxu0 %v5305
    %v5988 = vpop.f32.mrb[0].mxu0
    %v5989 = vadd.f32 0.0, %v5988
    %v5990 = vpop.f32.mrb[0].mxu0
    %v5991 = vadd.f32 0.0, %v5990
    %5992 = vmatprep.mubr.f32.mxu0 0.0
    %5993 = vmatmul.mubr.f32.gmra.mrb[0].mxu0 %v5306
    %v5994 = vpop.f32.mrb[0].mxu0
    %v5995 = vadd.f32 0.0, %v5994
    %v5996 = vpop.f32.mrb[0].mxu0
    %v5997 = vadd.f32 0.0, %v5996
    %5998 = vmatprep.mubr.f32.mxu0 0.0
    %5999 = vmatmul.mubr.f32.gmra.mrb[0].mxu0 %v5307
    %v6000 = vpop.f32.mrb[0].mxu0
    %v6001 = vadd.f32 0.0, %v6000
    %v6002 = vpop.f32.mrb[0].mxu0
    %v6003 = vadd.f32 0.0, %v6002
    %6004 = vmatprep.mubr.f32.mxu0 0.0
    %6005 = vmatmul.mubr.f32.gmra.mrb[0].mxu0 %v5308
    %v6006 = vpop.f32.mrb[0].mxu0
    %v6007 = vadd.f32 0.0, %v6006
    %v6008 = vpop.f32.mrb[0].mxu0
    %v6009 = vadd.f32 0.0, %v6008
    %6010 = vmatprep.mubr.f32.mxu0 0.0
    %6011 = vmatmul.mubr.f32.gmra.mrb[0].mxu0 %v5309
    %v6012 = vpop.f32.mrb[0].mxu0
    %v6013 = vadd.f32 0.0, %v6012
    %v6014 = vpop.f32.mrb[0].mxu0
    %v6015 = vadd.f32 0.0, %v6014
    %6016 = vdwg.mxu0
    %6017 = vmatprep.subr.mxu0 %v5215
    %6018 = vmatpush1.msra.mxu0 %v5214
    %6019 = vmatprep.subr.mxu0 %v5219
    %6020 = vmatpush1.msra.mxu0 %v5218
    %6021 = vmatprep.subr.mxu0 %v5223
    %6022 = vmatpush1.msra.mxu0 %v5222
    %6023 = vmatprep.subr.mxu0 %v5227
    %6024 = vmatpush1.msra.mxu0 %v5226
    %6025 = vmatprep.subr.mxu0 %v5231
    %6026 = vmatpush1.msra.mxu0 %v5230
    %6027 = vmatprep.subr.mxu0 %v5235
    %6028 = vmatpush1.msra.mxu0 %v5234
    %6029 = vmatprep.subr.mxu0 %v5239
    %6030 = vmatpush1.msra.mxu0 %v5238
    %6031 = vmatprep.subr.mxu0 %v5243
    %6032 = vmatpush1.msra.mxu0 %v5242
    %6033 = vmatprep.subr.mxu0 %v5247
    %6034 = vmatpush1.msra.mxu0 %v5246
    %6035 = vmatprep.subr.mxu0 %v5251
    %6036 = vmatpush1.msra.mxu0 %v5250
    %6037 = vmatprep.subr.mxu0 %v5255
    %6038 = vmatpush1.msra.mxu0 %v5254
    %6039 = vmatprep.subr.mxu0 %v5259
    %6040 = vmatpush1.msra.mxu0 %v5258
    %6041 = vmatprep.subr.mxu0 %v5263
    %6042 = vmatpush1.msra.mxu0 %v5262
    %6043 = vmatprep.subr.mxu0 %v5267
    %6044 = vmatpush1.msra.mxu0 %v5266
    %6045 = vmatprep.subr.mxu0 %v5271
    %6046 = vmatpush1.msra.mxu0 %v5270
    %6047 = vmatprep.subr.mxu0 %v5275
    %6048 = vmatpush1.msra.mxu0 %v5274
    %6049 = vmatprep.subr.mxu0 0.0
    %6050 = vmatpush1.msra.mxu0 0.0
    %6051 = vmatprep.subr.mxu0 0.0
    %6052 = vmatpush1.msra.mxu0 0.0
    %6053 = vmatprep.subr.mxu0 0.0
    %6054 = vmatpush1.msra.mxu0 0.0
    %6055 = vmatprep.subr.mxu0 0.0
    %6056 = vmatpush1.msra.mxu0 0.0
    %6057 = vmatprep.subr.mxu0 0.0
    %6058 = vmatpush1.msra.mxu0 0.0
    %6059 = vmatprep.subr.mxu0 0.0
    %6060 = vmatpush1.msra.mxu0 0.0
    %6061 = vmatprep.subr.mxu0 0.0
    %6062 = vmatpush1.msra.mxu0 0.0
    %6063 = vmatprep.subr.mxu0 0.0
    %6064 = vmatpush1.msra.mxu0 0.0
    %6065 = vmatprep.subr.mxu0 0.0
    %6066 = vmatpush1.msra.mxu0 0.0
    %6067 = vmatprep.subr.mxu0 0.0
    %6068 = vmatpush1.msra.mxu0 0.0
    %6069 = vmatprep.subr.mxu0 0.0
    %6070 = vmatpush1.msra.mxu0 0.0
    %6071 = vmatprep.subr.mxu0 0.0
    %6072 = vmatpush1.msra.mxu0 0.0
    %6073 = vmatprep.subr.mxu0 0.0
    %6074 = vmatpush1.msra.mxu0 0.0
    %6075 = vmatprep.subr.mxu0 0.0
    %6076 = vmatpush1.msra.mxu0 0.0
    %6077 = vmatprep.subr.mxu0 0.0
    %6078 = vmatpush1.msra.mxu0 0.0
    %6079 = vmatprep.subr.mxu0 0.0
    %6080 = vmatpush1.msra.mxu0 0.0
    %6081 = vmatprep.mubr.f32.mxu0 0.0
    %6082 = vmatmul.mubr.f32.gmra.mrb[0].mxu0 %v5294
    %v6083 = vpop.f32.mrb[0].mxu0
    %v6084 = vadd.f32 0.0, %v6083
    %v6085 = vpop.f32.mrb[0].mxu0
    %v6086 = vadd.f32 0.0, %v6085
    %6087 = vmatprep.mubr.f32.mxu0 0.0
    %6088 = vmatmul.mubr.f32.gmra.mrb[0].mxu0 %v5295
    %v6089 = vpop.f32.mrb[0].mxu0
    %v6090 = vadd.f32 0.0, %v6089
    %v6091 = vpop.f32.mrb[0].mxu0
    %v6092 = vadd.f32 0.0, %v6091
    %6093 = vmatprep.mubr.f32.mxu0 0.0
    %6094 = vmatmul.mubr.f32.gmra.mrb[0].mxu0 %v5296
    %v6095 = vpop.f32.mrb[0].mxu0
    %v6096 = vadd.f32 0.0, %v6095
    %v6097 = vpop.f32.mrb[0].mxu0
    %v6098 = vadd.f32 0.0, %v6097
    %6099 = vmatprep.mubr.f32.mxu0 0.0
    %6100 = vmatmul.mubr.f32.gmra.mrb[0].mxu0 %v5297
    %v6101 = vpop.f32.mrb[0].mxu0
    %v6102 = vadd.f32 0.0, %v6101
    %v6103 = vpop.f32.mrb[0].mxu0
    %v6104 = vadd.f32 0.0, %v6103
    %6105 = vmatprep.mubr.f32.mxu0 0.0
    %6106 = vmatmul.mubr.f32.gmra.mrb[0].mxu0 %v5298
    %v6107 = vpop.f32.mrb[0].mxu0
    %v6108 = vadd.f32 0.0, %v6107
    %v6109 = vpop.f32.mrb[0].mxu0
    %v6110 = vadd.f32 0.0, %v6109
    %6111 = vmatprep.mubr.f32.mxu0 0.0
    %6112 = vmatmul.mubr.f32.gmra.mrb[0].mxu0 %v5299
    %v6113 = vpop.f32.mrb[0].mxu0
    %v6114 = vadd.f32 0.0, %v6113
    %v6115 = vpop.f32.mrb[0].mxu0
    %v6116 = vadd.f32 0.0, %v6115
    %6117 = vmatprep.mubr.f32.mxu0 0.0
    %6118 = vmatmul.mubr.f32.gmra.mrb[0].mxu0 %v5300
    %v6119 = vpop.f32.mrb[0].mxu0
    %v6120 = vadd.f32 0.0, %v6119
    %v6121 = vpop.f32.mrb[0].mxu0
    %v6122 = vadd.f32 0.0, %v6121
    %6123 = vmatprep.mubr.f32.mxu0 0.0
    %6124 = vmatmul.mubr.f32.gmra.mrb[0].mxu0 %v5301
    %v6125 = vpop.f32.mrb[0].mxu0
    %v6126 = vadd.f32 0.0, %v6125
    %v6127 = vpop.f32.mrb[0].mxu0
    %v6128 = vadd.f32 0.0, %v6127
    %6129 = vmatprep.mubr.f32.mxu0 0.0
    %6130 = vmatmul.mubr.f32.gmra.mrb[0].mxu0 %v5302
    %v6131 = vpop.f32.mrb[0].mxu0
    %v6132 = vadd.f32 0.0, %v6131
    %v6133 = vpop.f32.mrb[0].mxu0
    %v6134 = vadd.f32 0.0, %v6133
    %6135 = vmatprep.mubr.f32.mxu0 0.0
    %6136 = vmatmul.mubr.f32.gmra.mrb[0].mxu0 %v5303
    %v6137 = vpop.f32.mrb[0].mxu0
    %v6138 = vadd.f32 0.0, %v6137
    %v6139 = vpop.f32.mrb[0].mxu0
    %v6140 = vadd.f32 0.0, %v6139
    %6141 = vmatprep.mubr.f32.mxu0 0.0
    %6142 = vmatmul.mubr.f32.gmra.mrb[0].mxu0 %v5304
    %v6143 = vpop.f32.mrb[0].mxu0
    %v6144 = vadd.f32 0.0, %v6143
    %v6145 = vpop.f32.mrb[0].mxu0
    %v6146 = vadd.f32 0.0, %v6145
    %6147 = vmatprep.mubr.f32.mxu0 0.0
    %6148 = vmatmul.mubr.f32.gmra.mrb[0].mxu0 %v5305
    %v6149 = vpop.f32.mrb[0].mxu0
    %v6150 = vadd.f32 0.0, %v6149
    %v6151 = vpop.f32.mrb[0].mxu0
    %v6152 = vadd.f32 0.0, %v6151
    %6153 = vmatprep.mubr.f32.mxu0 0.0
    %6154 = vmatmul.mubr.f32.gmra.mrb[0].mxu0 %v5306
    %v6155 = vpop.f32.mrb[0].mxu0
    %v6156 = vadd.f32 0.0, %v6155
    %v6157 = vpop.f32.mrb[0].mxu0
    %v6158 = vadd.f32 0.0, %v6157
    %6159 = vmatprep.mubr.f32.mxu0 0.0
    %6160 = vmatmul.mubr.f32.gmra.mrb[0].mxu0 %v5307
    %v6161 = vpop.f32.mrb[0].mxu0
    %v6162 = vadd.f32 0.0, %v6161
    %v6163 = vpop.f32.mrb[0].mxu0
    %v6164 = vadd.f32 0.0, %v6163
    %6165 = vmatprep.mubr.f32.mxu0 0.0
    %6166 = vmatmul.mubr.f32.gmra.mrb[0].mxu0 %v5308
    %v6167 = vpop.f32.mrb[0].mxu0
    %v6168 = vadd.f32 0.0, %v6167
    %v6169 = vpop.f32.mrb[0].mxu0
    %v6170 = vadd.f32 0.0, %v6169
    %6171 = vmatprep.mubr.f32.mxu0 0.0
    %6172 = vmatmul.mubr.f32.gmra.mrb[0].mxu0 %v5309
    %v6173 = vpop.f32.mrb[0].mxu0
    %v6174 = vadd.f32 0.0, %v6173
    %v6175 = vpop.f32.mrb[0].mxu0
    %v6176 = vadd.f32 0.0, %v6175
    %6177 = vdwg.mxu0
    %6178 = vmatprep.subr.mxu0 %v5537
    %6179 = vmatpush1.msra.mxu0 %v5536
    %6180 = vmatprep.subr.mxu0 %v5541
    %6181 = vmatpush1.msra.mxu0 %v5540
    %6182 = vmatprep.subr.mxu0 %v5545
    %6183 = vmatpush1.msra.mxu0 %v5544
    %6184 = vmatprep.subr.mxu0 %v5549
    %6185 = vmatpush1.msra.mxu0 %v5548
    %6186 = vmatprep.subr.mxu0 %v5553
    %6187 = vmatpush1.msra.mxu0 %v5552
    %6188 = vmatprep.subr.mxu0 %v5557
    %6189 = vmatpush1.msra.mxu0 %v5556
    %6190 = vmatprep.subr.mxu0 %v5561
    %6191 = vmatpush1.msra.mxu0 %v5560
    %6192 = vmatprep.subr.mxu0 %v5565
    %6193 = vmatpush1.msra.mxu0 %v5564
    %6194 = vmatprep.subr.mxu0 %v5569
    %6195 = vmatpush1.msra.mxu0 %v5568
    %6196 = vmatprep.subr.mxu0 %v5573
    %6197 = vmatpush1.msra.mxu0 %v5572
    %6198 = vmatprep.subr.mxu0 %v5577
    %6199 = vmatpush1.msra.mxu0 %v5576
    %6200 = vmatprep.subr.mxu0 %v5581
    %6201 = vmatpush1.msra.mxu0 %v5580
    %6202 = vmatprep.subr.mxu0 %v5585
    %6203 = vmatpush1.msra.mxu0 %v5584
    %6204 = vmatprep.subr.mxu0 %v5589
    %6205 = vmatpush1.msra.mxu0 %v5588
    %6206 = vmatprep.subr.mxu0 %v5593
    %6207 = vmatpush1.msra.mxu0 %v5592
    %6208 = vmatprep.subr.mxu0 %v5597
    %6209 = vmatpush1.msra.mxu0 %v5596
    %6210 = vmatprep.subr.mxu0 0.0
    %6211 = vmatpush1.msra.mxu0 0.0
    %6212 = vmatprep.subr.mxu0 0.0
    %6213 = vmatpush1.msra.mxu0 0.0
    %6214 = vmatprep.subr.mxu0 0.0
    %6215 = vmatpush1.msra.mxu0 0.0
    %6216 = vmatprep.subr.mxu0 0.0
    %6217 = vmatpush1.msra.mxu0 0.0
    %6218 = vmatprep.subr.mxu0 0.0
    %6219 = vmatpush1.msra.mxu0 0.0
    %6220 = vmatprep.subr.mxu0 0.0
    %6221 = vmatpush1.msra.mxu0 0.0
    %6222 = vmatprep.subr.mxu0 0.0
    %6223 = vmatpush1.msra.mxu0 0.0
    %6224 = vmatprep.subr.mxu0 0.0
    %6225 = vmatpush1.msra.mxu0 0.0
    %6226 = vmatprep.subr.mxu0 0.0
    %6227 = vmatpush1.msra.mxu0 0.0
    %6228 = vmatprep.subr.mxu0 0.0
    %6229 = vmatpush1.msra.mxu0 0.0
    %6230 = vmatprep.subr.mxu0 0.0
    %6231 = vmatpush1.msra.mxu0 0.0
    %6232 = vmatprep.subr.mxu0 0.0
    %6233 = vmatpush1.msra.mxu0 0.0
    %6234 = vmatprep.subr.mxu0 0.0
    %6235 = vmatpush1.msra.mxu0 0.0
    %6236 = vmatprep.subr.mxu0 0.0
    %6237 = vmatpush1.msra.mxu0 0.0
    %6238 = vmatprep.subr.mxu0 0.0
    %6239 = vmatpush1.msra.mxu0 0.0
    %6240 = vmatprep.subr.mxu0 0.0
    %6241 = vmatpush1.msra.mxu0 0.0
    %6242 = vmatprep.mubr.f32.mxu0 0.0
    %6243 = vmatmul.mubr.f32.gmra.mrb[0].mxu0 %v5277
    %v6244 = vpop.f32.mrb[0].mxu0
    %v6245 = vadd.f32 %v5923, %v6244
    %v6246 = vpop.f32.mrb[0].mxu0
    %v6247 = vadd.f32 %v5925, %v6246
    %6248 = vmatprep.mubr.f32.mxu0 0.0
    %6249 = vmatmul.mubr.f32.gmra.mrb[0].mxu0 %v5278
    %v6250 = vpop.f32.mrb[0].mxu0
    %v6251 = vadd.f32 %v5929, %v6250
    %v6252 = vpop.f32.mrb[0].mxu0
    %v6253 = vadd.f32 %v5931, %v6252
    %6254 = vmatprep.mubr.f32.mxu0 0.0
    %6255 = vmatmul.mubr.f32.gmra.mrb[0].mxu0 %v5279
    %v6256 = vpop.f32.mrb[0].mxu0
    %v6257 = vadd.f32 %v5935, %v6256
    %v6258 = vpop.f32.mrb[0].mxu0
    %v6259 = vadd.f32 %v5937, %v6258
    %6260 = vmatprep.mubr.f32.mxu0 0.0
    %6261 = vmatmul.mubr.f32.gmra.mrb[0].mxu0 %v5280
    %v6262 = vpop.f32.mrb[0].mxu0
    %v6263 = vadd.f32 %v5941, %v6262
    %v6264 = vpop.f32.mrb[0].mxu0
    %v6265 = vadd.f32 %v5943, %v6264
    %6266 = vmatprep.mubr.f32.mxu0 0.0
    %6267 = vmatmul.mubr.f32.gmra.mrb[0].mxu0 %v5281
    %v6268 = vpop.f32.mrb[0].mxu0
    %v6269 = vadd.f32 %v5947, %v6268
    %v6270 = vpop.f32.mrb[0].mxu0
    %v6271 = vadd.f32 %v5949, %v6270
    %6272 = vmatprep.mubr.f32.mxu0 0.0
    %6273 = vmatmul.mubr.f32.gmra.mrb[0].mxu0 %v5282
    %v6274 = vpop.f32.mrb[0].mxu0
    %v6275 = vadd.f32 %v5953, %v6274
    %v6276 = vpop.f32.mrb[0].mxu0
    %v6277 = vadd.f32 %v5955, %v6276
    %6278 = vmatprep.mubr.f32.mxu0 0.0
    %6279 = vmatmul.mubr.f32.gmra.mrb[0].mxu0 %v5283
    %v6280 = vpop.f32.mrb[0].mxu0
    %v6281 = vadd.f32 %v5959, %v6280
    %v6282 = vpop.f32.mrb[0].mxu0
    %v6283 = vadd.f32 %v5961, %v6282
    %6284 = vmatprep.mubr.f32.mxu0 0.0
    %6285 = vmatmul.mubr.f32.gmra.mrb[0].mxu0 %v5284
    %v6286 = vpop.f32.mrb[0].mxu0
    %v6287 = vadd.f32 %v5965, %v6286
    %v6288 = vpop.f32.mrb[0].mxu0
    %v6289 = vadd.f32 %v5967, %v6288
    %6290 = vmatprep.mubr.f32.mxu0 0.0
    %6291 = vmatmul.mubr.f32.gmra.mrb[0].mxu0 %v5285
    %v6292 = vpop.f32.mrb[0].mxu0
    %v6293 = vadd.f32 %v5971, %v6292
    %v6294 = vpop.f32.mrb[0].mxu0
    %v6295 = vadd.f32 %v5973, %v6294
    %6296 = vmatprep.mubr.f32.mxu0 0.0
    %6297 = vmatmul.mubr.f32.gmra.mrb[0].mxu0 %v5286
    %v6298 = vpop.f32.mrb[0].mxu0
    %v6299 = vadd.f32 %v5977, %v6298
    %v6300 = vpop.f32.mrb[0].mxu0
    %v6301 = vadd.f32 %v5979, %v6300
    %6302 = vmatprep.mubr.f32.mxu0 0.0
    %6303 = vmatmul.mubr.f32.gmra.mrb[0].mxu0 %v5287
    %v6304 = vpop.f32.mrb[0].mxu0
    %v6305 = vadd.f32 %v5983, %v6304
    %v6306 = vpop.f32.mrb[0].mxu0
    %v6307 = vadd.f32 %v5985, %v6306
    %6308 = vmatprep.mubr.f32.mxu0 0.0
    %6309 = vmatmul.mubr.f32.gmra.mrb[0].mxu0 %v5288
    %v6310 = vpop.f32.mrb[0].mxu0
    %v6311 = vadd.f32 %v5989, %v6310
    %v6312 = vpop.f32.mrb[0].mxu0
    %v6313 = vadd.f32 %v5991, %v6312
    %6314 = vmatprep.mubr.f32.mxu0 0.0
    %6315 = vmatmul.mubr.f32.gmra.mrb[0].mxu0 %v5289
    %v6316 = vpop.f32.mrb[0].mxu0
    %v6317 = vadd.f32 %v5995, %v6316
    %v6318 = vpop.f32.mrb[0].mxu0
    %v6319 = vadd.f32 %v5997, %v6318
    %6320 = vmatprep.mubr.f32.mxu0 0.0
    %6321 = vmatmul.mubr.f32.gmra.mrb[0].mxu0 %v5290
    %v6322 = vpop.f32.mrb[0].mxu0
    %v6323 = vadd.f32 %v6001, %v6322
    %v6324 = vpop.f32.mrb[0].mxu0
    %v6325 = vadd.f32 %v6003, %v6324
    %6326 = vmatprep.mubr.f32.mxu0 0.0
    %6327 = vmatmul.mubr.f32.gmra.mrb[0].mxu0 %v5291
    %v6328 = vpop.f32.mrb[0].mxu0
    %v6329 = vadd.f32 %v6007, %v6328
    %v6330 = vpop.f32.mrb[0].mxu0
    %v6331 = vadd.f32 %v6009, %v6330
    %6332 = vmatprep.mubr.f32.mxu0 0.0
    %6333 = vmatmul.mubr.f32.gmra.mrb[0].mxu0 %v5292
    %v6334 = vpop.f32.mrb[0].mxu0
    %v6335 = vadd.f32 %v6013, %v6334
    %v6336 = vpop.f32.mrb[0].mxu0
    %v6337 = vadd.f32 %v6015, %v6336
    %6338 = vdwg.mxu0
    %6339 = vmatprep.subr.mxu0 %v5539
    %6340 = vmatpush1.msra.mxu0 %v5538
    %6341 = vmatprep.subr.mxu0 %v5543
    %6342 = vmatpush1.msra.mxu0 %v5542
    %6343 = vmatprep.subr.mxu0 %v5547
    %6344 = vmatpush1.msra.mxu0 %v5546
    %6345 = vmatprep.subr.mxu0 %v5551
    %6346 = vmatpush1.msra.mxu0 %v5550
    %6347 = vmatprep.subr.mxu0 %v5555
    %6348 = vmatpush1.msra.mxu0 %v5554
    %6349 = vmatprep.subr.mxu0 %v5559
    %6350 = vmatpush1.msra.mxu0 %v5558
    %6351 = vmatprep.subr.mxu0 %v5563
    %6352 = vmatpush1.msra.mxu0 %v5562
    %6353 = vmatprep.subr.mxu0 %v5567
    %6354 = vmatpush1.msra.mxu0 %v5566
    %6355 = vmatprep.subr.mxu0 %v5571
    %6356 = vmatpush1.msra.mxu0 %v5570
    %6357 = vmatprep.subr.mxu0 %v5575
    %6358 = vmatpush1.msra.mxu0 %v5574
    %6359 = vmatprep.subr.mxu0 %v5579
    %6360 = vmatpush1.msra.mxu0 %v5578
    %6361 = vmatprep.subr.mxu0 %v5583
    %6362 = vmatpush1.msra.mxu0 %v5582
    %6363 = vmatprep.subr.mxu0 %v5587
    %6364 = vmatpush1.msra.mxu0 %v5586
    %6365 = vmatprep.subr.mxu0 %v5591
    %6366 = vmatpush1.msra.mxu0 %v5590
    %6367 = vmatprep.subr.mxu0 %v5595
    %6368 = vmatpush1.msra.mxu0 %v5594
    %6369 = vmatprep.subr.mxu0 %v5599
    %6370 = vmatpush1.msra.mxu0 %v5598
    %6371 = vmatprep.subr.mxu0 0.0
    %6372 = vmatpush1.msra.mxu0 0.0
    %6373 = vmatprep.subr.mxu0 0.0
    %6374 = vmatpush1.msra.mxu0 0.0
    %6375 = vmatprep.subr.mxu0 0.0
    %6376 = vmatpush1.msra.mxu0 0.0
    %6377 = vmatprep.subr.mxu0 0.0
    %6378 = vmatpush1.msra.mxu0 0.0
    %6379 = vmatprep.subr.mxu0 0.0
    %6380 = vmatpush1.msra.mxu0 0.0
    %6381 = vmatprep.subr.mxu0 0.0
    %6382 = vmatpush1.msra.mxu0 0.0
    %6383 = vmatprep.subr.mxu0 0.0
    %6384 = vmatpush1.msra.mxu0 0.0
    %6385 = vmatprep.subr.mxu0 0.0
    %6386 = vmatpush1.msra.mxu0 0.0
    %6387 = vmatprep.subr.mxu0 0.0
    %6388 = vmatpush1.msra.mxu0 0.0
    %6389 = vmatprep.subr.mxu0 0.0
    %6390 = vmatpush1.msra.mxu0 0.0
    %6391 = vmatprep.subr.mxu0 0.0
    %6392 = vmatpush1.msra.mxu0 0.0
    %6393 = vmatprep.subr.mxu0 0.0
    %6394 = vmatpush1.msra.mxu0 0.0
    %6395 = vmatprep.subr.mxu0 0.0
    %6396 = vmatpush1.msra.mxu0 0.0
    %6397 = vmatprep.subr.mxu0 0.0
    %6398 = vmatpush1.msra.mxu0 0.0
    %6399 = vmatprep.subr.mxu0 0.0
    %6400 = vmatpush1.msra.mxu0 0.0
    %6401 = vmatprep.subr.mxu0 0.0
    %6402 = vmatpush1.msra.mxu0 0.0
    %6403 = vmatprep.mubr.f32.mxu0 0.0
    %6404 = vmatmul.mubr.f32.gmra.mrb[0].mxu0 %v5277
    %v6405 = vpop.f32.mrb[0].mxu0
    %v6406 = vadd.f32 %v6084, %v6405
    %v6407 = vpop.f32.mrb[0].mxu0
    %v6408 = vadd.f32 %v6086, %v6407
    %6409 = vmatprep.mubr.f32.mxu0 0.0
    %6410 = vmatmul.mubr.f32.gmra.mrb[0].mxu0 %v5278
    %v6411 = vpop.f32.mrb[0].mxu0
    %v6412 = vadd.f32 %v6090, %v6411
    %v6413 = vpop.f32.mrb[0].mxu0
    %v6414 = vadd.f32 %v6092, %v6413
    %6415 = vmatprep.mubr.f32.mxu0 0.0
    %6416 = vmatmul.mubr.f32.gmra.mrb[0].mxu0 %v5279
    %v6417 = vpop.f32.mrb[0].mxu0
    %v6418 = vadd.f32 %v6096, %v6417
    %v6419 = vpop.f32.mrb[0].mxu0
    %v6420 = vadd.f32 %v6098, %v6419
    %6421 = vmatprep.mubr.f32.mxu0 0.0
    %6422 = vmatmul.mubr.f32.gmra.mrb[0].mxu0 %v5280
    %v6423 = vpop.f32.mrb[0].mxu0
    %v6424 = vadd.f32 %v6102, %v6423
    %v6425 = vpop.f32.mrb[0].mxu0
    %v6426 = vadd.f32 %v6104, %v6425
    %6427 = vmatprep.mubr.f32.mxu0 0.0
    %6428 = vmatmul.mubr.f32.gmra.mrb[0].mxu0 %v5281
    %v6429 = vpop.f32.mrb[0].mxu0
    %v6430 = vadd.f32 %v6108, %v6429
    %v6431 = vpop.f32.mrb[0].mxu0
    %v6432 = vadd.f32 %v6110, %v6431
    %6433 = vmatprep.mubr.f32.mxu0 0.0
    %6434 = vmatmul.mubr.f32.gmra.mrb[0].mxu0 %v5282
    %v6435 = vpop.f32.mrb[0].mxu0
    %v6436 = vadd.f32 %v6114, %v6435
    %v6437 = vpop.f32.mrb[0].mxu0
    %v6438 = vadd.f32 %v6116, %v6437
    %6439 = vmatprep.mubr.f32.mxu0 0.0
    %6440 = vmatmul.mubr.f32.gmra.mrb[0].mxu0 %v5283
    %v6441 = vpop.f32.mrb[0].mxu0
    %v6442 = vadd.f32 %v6120, %v6441
    %v6443 = vpop.f32.mrb[0].mxu0
    %v6444 = vadd.f32 %v6122, %v6443
    %6445 = vmatprep.mubr.f32.mxu0 0.0
    %6446 = vmatmul.mubr.f32.gmra.mrb[0].mxu0 %v5284
    %v6447 = vpop.f32.mrb[0].mxu0
    %v6448 = vadd.f32 %v6126, %v6447
    %v6449 = vpop.f32.mrb[0].mxu0
    %v6450 = vadd.f32 %v6128, %v6449
    %6451 = vmatprep.mubr.f32.mxu0 0.0
    %6452 = vmatmul.mubr.f32.gmra.mrb[0].mxu0 %v5285
    %v6453 = vpop.f32.mrb[0].mxu0
    %v6454 = vadd.f32 %v6132, %v6453
    %v6455 = vpop.f32.mrb[0].mxu0
    %v6456 = vadd.f32 %v6134, %v6455
    %6457 = vmatprep.mubr.f32.mxu0 0.0
    %6458 = vmatmul.mubr.f32.gmra.mrb[0].mxu0 %v5286
    %v6459 = vpop.f32.mrb[0].mxu0
    %v6460 = vadd.f32 %v6138, %v6459
    %v6461 = vpop.f32.mrb[0].mxu0
    %v6462 = vadd.f32 %v6140, %v6461
    %6463 = vmatprep.mubr.f32.mxu0 0.0
    %6464 = vmatmul.mubr.f32.gmra.mrb[0].mxu0 %v5287
    %v6465 = vpop.f32.mrb[0].mxu0
    %v6466 = vadd.f32 %v6144, %v6465
    %v6467 = vpop.f32.mrb[0].mxu0
    %v6468 = vadd.f32 %v6146, %v6467
    %6469 = vmatprep.mubr.f32.mxu0 0.0
    %6470 = vmatmul.mubr.f32.gmra.mrb[0].mxu0 %v5288
    %v6471 = vpop.f32.mrb[0].mxu0
    %v6472 = vadd.f32 %v6150, %v6471
    %v6473 = vpop.f32.mrb[0].mxu0
    %v6474 = vadd.f32 %v6152, %v6473
    %6475 = vmatprep.mubr.f32.mxu0 0.0
    %6476 = vmatmul.mubr.f32.gmra.mrb[0].mxu0 %v5289
    %v6477 = vpop.f32.mrb[0].mxu0
    %v6478 = vadd.f32 %v6156, %v6477
    %v6479 = vpop.f32.mrb[0].mxu0
    %v6480 = vadd.f32 %v6158, %v6479
    %6481 = vmatprep.mubr.f32.mxu0 0.0
    %6482 = vmatmul.mubr.f32.gmra.mrb[0].mxu0 %v5290
    %v6483 = vpop.f32.mrb[0].mxu0
    %v6484 = vadd.f32 %v6162, %v6483
    %v6485 = vpop.f32.mrb[0].mxu0
    %v6486 = vadd.f32 %v6164, %v6485
    %6487 = vmatprep.mubr.f32.mxu0 0.0
    %6488 = vmatmul.mubr.f32.gmra.mrb[0].mxu0 %v5291
    %v6489 = vpop.f32.mrb[0].mxu0
    %v6490 = vadd.f32 %v6168, %v6489
    %v6491 = vpop.f32.mrb[0].mxu0
    %v6492 = vadd.f32 %v6170, %v6491
    %6493 = vmatprep.mubr.f32.mxu0 0.0
    %6494 = vmatmul.mubr.f32.gmra.mrb[0].mxu0 %v5292
    %v6495 = vpop.f32.mrb[0].mxu0
    %v6496 = vadd.f32 %v6174, %v6495
    %v6497 = vpop.f32.mrb[0].mxu0
    %v6498 = vadd.f32 %v6176, %v6497
    %6499 = vdwg.mxu0
    %6500 = vmatprep.subr.mxu0 %v5793
    %6501 = vmatpush1.msra.mxu0 %v5792
    %6502 = vmatprep.subr.mxu0 %v5797
    %6503 = vmatpush1.msra.mxu0 %v5796
    %6504 = vmatprep.subr.mxu0 %v5801
    %6505 = vmatpush1.msra.mxu0 %v5800
    %6506 = vmatprep.subr.mxu0 %v5805
    %6507 = vmatpush1.msra.mxu0 %v5804
    %6508 = vmatprep.subr.mxu0 %v5809
    %6509 = vmatpush1.msra.mxu0 %v5808
    %6510 = vmatprep.subr.mxu0 %v5813
    %6511 = vmatpush1.msra.mxu0 %v5812
    %6512 = vmatprep.subr.mxu0 %v5817
    %6513 = vmatpush1.msra.mxu0 %v5816
    %6514 = vmatprep.subr.mxu0 %v5821
    %6515 = vmatpush1.msra.mxu0 %v5820
    %6516 = vmatprep.subr.mxu0 %v5825
    %6517 = vmatpush1.msra.mxu0 %v5824
    %6518 = vmatprep.subr.mxu0 %v5829
    %6519 = vmatpush1.msra.mxu0 %v5828
    %6520 = vmatprep.subr.mxu0 %v5833
    %6521 = vmatpush1.msra.mxu0 %v5832
    %6522 = vmatprep.subr.mxu0 %v5837
    %6523 = vmatpush1.msra.mxu0 %v5836
    %6524 = vmatprep.subr.mxu0 %v5841
    %6525 = vmatpush1.msra.mxu0 %v5840
    %6526 = vmatprep.subr.mxu0 %v5845
    %6527 = vmatpush1.msra.mxu0 %v5844
    %6528 = vmatprep.subr.mxu0 %v5849
    %6529 = vmatpush1.msra.mxu0 %v5848
    %6530 = vmatprep.subr.mxu0 %v5853
    %6531 = vmatpush1.msra.mxu0 %v5852
    %6532 = vmatprep.subr.mxu0 0.0
    %6533 = vmatpush1.msra.mxu0 0.0
    %6534 = vmatprep.subr.mxu0 0.0
    %6535 = vmatpush1.msra.mxu0 0.0
    %6536 = vmatprep.subr.mxu0 0.0
    %6537 = vmatpush1.msra.mxu0 0.0
    %6538 = vmatprep.subr.mxu0 0.0
    %6539 = vmatpush1.msra.mxu0 0.0
    %6540 = vmatprep.subr.mxu0 0.0
    %6541 = vmatpush1.msra.mxu0 0.0
    %6542 = vmatprep.subr.mxu0 0.0
    %6543 = vmatpush1.msra.mxu0 0.0
    %6544 = vmatprep.subr.mxu0 0.0
    %6545 = vmatpush1.msra.mxu0 0.0
    %6546 = vmatprep.subr.mxu0 0.0
    %6547 = vmatpush1.msra.mxu0 0.0
    %6548 = vmatprep.subr.mxu0 0.0
    %6549 = vmatpush1.msra.mxu0 0.0
    %6550 = vmatprep.subr.mxu0 0.0
    %6551 = vmatpush1.msra.mxu0 0.0
    %6552 = vmatprep.subr.mxu0 0.0
    %6553 = vmatpush1.msra.mxu0 0.0
    %6554 = vmatprep.subr.mxu0 0.0
    %6555 = vmatpush1.msra.mxu0 0.0
    %6556 = vmatprep.subr.mxu0 0.0
    %6557 = vmatpush1.msra.mxu0 0.0
    %6558 = vmatprep.subr.mxu0 0.0
    %6559 = vmatpush1.msra.mxu0 0.0
    %6560 = vmatprep.subr.mxu0 0.0
    %6561 = vmatpush1.msra.mxu0 0.0
    %6562 = vmatprep.subr.mxu0 0.0
    %6563 = vmatpush1.msra.mxu0 0.0
    %6564 = vmatprep.mubr.f32.mxu0 0.0
    %6565 = vmatmul.mubr.f32.gmra.mrb[0].mxu0 %v5311
    %v6566 = vpop.f32.mrb[0].mxu0
    %v6567 = vadd.f32 0.0, %v6566
    %v6568 = vpop.f32.mrb[0].mxu0
    %v6569 = vadd.f32 0.0, %v6568
    %6570 = vmatprep.mubr.f32.mxu0 0.0
    %6571 = vmatmul.mubr.f32.gmra.mrb[0].mxu0 %v5312
    %v6572 = vpop.f32.mrb[0].mxu0
    %v6573 = vadd.f32 0.0, %v6572
    %v6574 = vpop.f32.mrb[0].mxu0
    %v6575 = vadd.f32 0.0, %v6574
    %6576 = vmatprep.mubr.f32.mxu0 0.0
    %6577 = vmatmul.mubr.f32.gmra.mrb[0].mxu0 %v5313
    %v6578 = vpop.f32.mrb[0].mxu0
    %v6579 = vadd.f32 0.0, %v6578
    %v6580 = vpop.f32.mrb[0].mxu0
    %v6581 = vadd.f32 0.0, %v6580
    %6582 = vmatprep.mubr.f32.mxu0 0.0
    %6583 = vmatmul.mubr.f32.gmra.mrb[0].mxu0 %v5314
    %v6584 = vpop.f32.mrb[0].mxu0
    %v6585 = vadd.f32 0.0, %v6584
    %v6586 = vpop.f32.mrb[0].mxu0
    %v6587 = vadd.f32 0.0, %v6586
    %6588 = vmatprep.mubr.f32.mxu0 0.0
    %6589 = vmatmul.mubr.f32.gmra.mrb[0].mxu0 %v5315
    %v6590 = vpop.f32.mrb[0].mxu0
    %v6591 = vadd.f32 0.0, %v6590
    %v6592 = vpop.f32.mrb[0].mxu0
    %v6593 = vadd.f32 0.0, %v6592
    %6594 = vmatprep.mubr.f32.mxu0 0.0
    %6595 = vmatmul.mubr.f32.gmra.mrb[0].mxu0 %v5316
    %v6596 = vpop.f32.mrb[0].mxu0
    %v6597 = vadd.f32 0.0, %v6596
    %v6598 = vpop.f32.mrb[0].mxu0
    %v6599 = vadd.f32 0.0, %v6598
    %6600 = vmatprep.mubr.f32.mxu0 0.0
    %6601 = vmatmul.mubr.f32.gmra.mrb[0].mxu0 %v5317
    %v6602 = vpop.f32.mrb[0].mxu0
    %v6603 = vadd.f32 0.0, %v6602
    %v6604 = vpop.f32.mrb[0].mxu0
    %v6605 = vadd.f32 0.0, %v6604
    %6606 = vmatprep.mubr.f32.mxu0 0.0
    %6607 = vmatmul.mubr.f32.gmra.mrb[0].mxu0 %v5318
    %v6608 = vpop.f32.mrb[0].mxu0
    %v6609 = vadd.f32 0.0, %v6608
    %v6610 = vpop.f32.mrb[0].mxu0
    %v6611 = vadd.f32 0.0, %v6610
    %6612 = vmatprep.mubr.f32.mxu0 0.0
    %6613 = vmatmul.mubr.f32.gmra.mrb[0].mxu0 %v5319
    %v6614 = vpop.f32.mrb[0].mxu0
    %v6615 = vadd.f32 0.0, %v6614
    %v6616 = vpop.f32.mrb[0].mxu0
    %v6617 = vadd.f32 0.0, %v6616
    %6618 = vmatprep.mubr.f32.mxu0 0.0
    %6619 = vmatmul.mubr.f32.gmra.mrb[0].mxu0 %v5320
    %v6620 = vpop.f32.mrb[0].mxu0
    %v6621 = vadd.f32 0.0, %v6620
    %v6622 = vpop.f32.mrb[0].mxu0
    %v6623 = vadd.f32 0.0, %v6622
    %6624 = vmatprep.mubr.f32.mxu0 0.0
    %6625 = vmatmul.mubr.f32.gmra.mrb[0].mxu0 %v5321
    %v6626 = vpop.f32.mrb[0].mxu0
    %v6627 = vadd.f32 0.0, %v6626
    %v6628 = vpop.f32.mrb[0].mxu0
    %v6629 = vadd.f32 0.0, %v6628
    %6630 = vmatprep.mubr.f32.mxu0 0.0
    %6631 = vmatmul.mubr.f32.gmra.mrb[0].mxu0 %v5322
    %v6632 = vpop.f32.mrb[0].mxu0
    %v6633 = vadd.f32 0.0, %v6632
    %v6634 = vpop.f32.mrb[0].mxu0
    %v6635 = vadd.f32 0.0, %v6634
    %6636 = vmatprep.mubr.f32.mxu0 0.0
    %6637 = vmatmul.mubr.f32.gmra.mrb[0].mxu0 %v5323
    %v6638 = vpop.f32.mrb[0].mxu0
    %v6639 = vadd.f32 0.0, %v6638
    %v6640 = vpop.f32.mrb[0].mxu0
    %v6641 = vadd.f32 0.0, %v6640
    %6642 = vmatprep.mubr.f32.mxu0 0.0
    %6643 = vmatmul.mubr.f32.gmra.mrb[0].mxu0 %v5324
    %v6644 = vpop.f32.mrb[0].mxu0
    %v6645 = vadd.f32 0.0, %v6644
    %v6646 = vpop.f32.mrb[0].mxu0
    %v6647 = vadd.f32 0.0, %v6646
    %6648 = vmatprep.mubr.f32.mxu0 0.0
    %6649 = vmatmul.mubr.f32.gmra.mrb[0].mxu0 %v5325
    %v6650 = vpop.f32.mrb[0].mxu0
    %v6651 = vadd.f32 0.0, %v6650
    %v6652 = vpop.f32.mrb[0].mxu0
    %v6653 = vadd.f32 0.0, %v6652
    %6654 = vmatprep.mubr.f32.mxu0 0.0
    %6655 = vmatmul.mubr.f32.gmra.mrb[0].mxu0 %v5326
    %v6656 = vpop.f32.mrb[0].mxu0
    %v6657 = vadd.f32 0.0, %v6656
    %v6658 = vpop.f32.mrb[0].mxu0
    %v6659 = vadd.f32 0.0, %v6658
    %6660 = vdwg.mxu0
    %6661 = vmatprep.subr.mxu0 %v5795
    %6662 = vmatpush1.msra.mxu0 %v5794
    %6663 = vmatprep.subr.mxu0 %v5799
    %6664 = vmatpush1.msra.mxu0 %v5798
    %6665 = vmatprep.subr.mxu0 %v5803
    %6666 = vmatpush1.msra.mxu0 %v5802
    %6667 = vmatprep.subr.mxu0 %v5807
    %6668 = vmatpush1.msra.mxu0 %v5806
    %6669 = vmatprep.subr.mxu0 %v5811
    %6670 = vmatpush1.msra.mxu0 %v5810
    %6671 = vmatprep.subr.mxu0 %v5815
    %6672 = vmatpush1.msra.mxu0 %v5814
    %6673 = vmatprep.subr.mxu0 %v5819
    %6674 = vmatpush1.msra.mxu0 %v5818
    %6675 = vmatprep.subr.mxu0 %v5823
    %6676 = vmatpush1.msra.mxu0 %v5822
    %6677 = vmatprep.subr.mxu0 %v5827
    %6678 = vmatpush1.msra.mxu0 %v5826
    %6679 = vmatprep.subr.mxu0 %v5831
    %6680 = vmatpush1.msra.mxu0 %v5830
    %6681 = vmatprep.subr.mxu0 %v5835
    %6682 = vmatpush1.msra.mxu0 %v5834
    %6683 = vmatprep.subr.mxu0 %v5839
    %6684 = vmatpush1.msra.mxu0 %v5838
    %6685 = vmatprep.subr.mxu0 %v5843
    %6686 = vmatpush1.msra.mxu0 %v5842
    %6687 = vmatprep.subr.mxu0 %v5847
    %6688 = vmatpush1.msra.mxu0 %v5846
    %6689 = vmatprep.subr.mxu0 %v5851
    %6690 = vmatpush1.msra.mxu0 %v5850
    %6691 = vmatprep.subr.mxu0 %v5855
    %6692 = vmatpush1.msra.mxu0 %v5854
    %6693 = vmatprep.subr.mxu0 0.0
    %6694 = vmatpush1.msra.mxu0 0.0
    %6695 = vmatprep.subr.mxu0 0.0
    %6696 = vmatpush1.msra.mxu0 0.0
    %6697 = vmatprep.subr.mxu0 0.0
    %6698 = vmatpush1.msra.mxu0 0.0
    %6699 = vmatprep.subr.mxu0 0.0
    %6700 = vmatpush1.msra.mxu0 0.0
    %6701 = vmatprep.subr.mxu0 0.0
    %6702 = vmatpush1.msra.mxu0 0.0
    %6703 = vmatprep.subr.mxu0 0.0
    %6704 = vmatpush1.msra.mxu0 0.0
    %6705 = vmatprep.subr.mxu0 0.0
    %6706 = vmatpush1.msra.mxu0 0.0
    %6707 = vmatprep.subr.mxu0 0.0
    %6708 = vmatpush1.msra.mxu0 0.0
    %6709 = vmatprep.subr.mxu0 0.0
    %6710 = vmatpush1.msra.mxu0 0.0
    %6711 = vmatprep.subr.mxu0 0.0
    %6712 = vmatpush1.msra.mxu0 0.0
    %6713 = vmatprep.subr.mxu0 0.0
    %6714 = vmatpush1.msra.mxu0 0.0
    %6715 = vmatprep.subr.mxu0 0.0
    %6716 = vmatpush1.msra.mxu0 0.0
    %6717 = vmatprep.subr.mxu0 0.0
    %6718 = vmatpush1.msra.mxu0 0.0
    %6719 = vmatprep.subr.mxu0 0.0
    %6720 = vmatpush1.msra.mxu0 0.0
    %6721 = vmatprep.subr.mxu0 0.0
    %6722 = vmatpush1.msra.mxu0 0.0
    %6723 = vmatprep.subr.mxu0 0.0
    %6724 = vmatpush1.msra.mxu0 0.0
    %6725 = vmatprep.mubr.f32.mxu0 0.0
    %6726 = vmatmul.mubr.f32.gmra.mrb[0].mxu0 %v5311
    %v6727 = vpop.f32.mrb[0].mxu0
    %v6728 = vadd.f32 0.0, %v6727
    %v6729 = vpop.f32.mrb[0].mxu0
    %v6730 = vadd.f32 0.0, %v6729
    %6731 = vmatprep.mubr.f32.mxu0 0.0
    %6732 = vmatmul.mubr.f32.gmra.mrb[0].mxu0 %v5312
    %v6733 = vpop.f32.mrb[0].mxu0
    %v6734 = vadd.f32 0.0, %v6733
    %v6735 = vpop.f32.mrb[0].mxu0
    %v6736 = vadd.f32 0.0, %v6735
    %6737 = vmatprep.mubr.f32.mxu0 0.0
    %6738 = vmatmul.mubr.f32.gmra.mrb[0].mxu0 %v5313
    %v6739 = vpop.f32.mrb[0].mxu0
    %v6740 = vadd.f32 0.0, %v6739
    %v6741 = vpop.f32.mrb[0].mxu0
    %v6742 = vadd.f32 0.0, %v6741
    %6743 = vmatprep.mubr.f32.mxu0 0.0
    %6744 = vmatmul.mubr.f32.gmra.mrb[0].mxu0 %v5314
    %v6745 = vpop.f32.mrb[0].mxu0
    %v6746 = vadd.f32 0.0, %v6745
    %v6747 = vpop.f32.mrb[0].mxu0
    %v6748 = vadd.f32 0.0, %v6747
    %6749 = vmatprep.mubr.f32.mxu0 0.0
    %6750 = vmatmul.mubr.f32.gmra.mrb[0].mxu0 %v5315
    %v6751 = vpop.f32.mrb[0].mxu0
    %v6752 = vadd.f32 0.0, %v6751
    %v6753 = vpop.f32.mrb[0].mxu0
    %v6754 = vadd.f32 0.0, %v6753
    %6755 = vmatprep.mubr.f32.mxu0 0.0
    %6756 = vmatmul.mubr.f32.gmra.mrb[0].mxu0 %v5316
    %v6757 = vpop.f32.mrb[0].mxu0
    %v6758 = vadd.f32 0.0, %v6757
    %v6759 = vpop.f32.mrb[0].mxu0
    %v6760 = vadd.f32 0.0, %v6759
    %6761 = vmatprep.mubr.f32.mxu0 0.0
    %6762 = vmatmul.mubr.f32.gmra.mrb[0].mxu0 %v5317
    %v6763 = vpop.f32.mrb[0].mxu0
    %v6764 = vadd.f32 0.0, %v6763
    %v6765 = vpop.f32.mrb[0].mxu0
    %v6766 = vadd.f32 0.0, %v6765
    %6767 = vmatprep.mubr.f32.mxu0 0.0
    %6768 = vmatmul.mubr.f32.gmra.mrb[0].mxu0 %v5318
    %v6769 = vpop.f32.mrb[0].mxu0
    %v6770 = vadd.f32 0.0, %v6769
    %v6771 = vpop.f32.mrb[0].mxu0
    %v6772 = vadd.f32 0.0, %v6771
    %6773 = vmatprep.mubr.f32.mxu0 0.0
    %6774 = vmatmul.mubr.f32.gmra.mrb[0].mxu0 %v5319
    %v6775 = vpop.f32.mrb[0].mxu0
    %v6776 = vadd.f32 0.0, %v6775
    %v6777 = vpop.f32.mrb[0].mxu0
    %v6778 = vadd.f32 0.0, %v6777
    %6779 = vmatprep.mubr.f32.mxu0 0.0
    %6780 = vmatmul.mubr.f32.gmra.mrb[0].mxu0 %v5320
    %v6781 = vpop.f32.mrb[0].mxu0
    %v6782 = vadd.f32 0.0, %v6781
    %v6783 = vpop.f32.mrb[0].mxu0
    %v6784 = vadd.f32 0.0, %v6783
    %6785 = vmatprep.mubr.f32.mxu0 0.0
    %6786 = vmatmul.mubr.f32.gmra.mrb[0].mxu0 %v5321
    %v6787 = vpop.f32.mrb[0].mxu0
    %v6788 = vadd.f32 0.0, %v6787
    %v6789 = vpop.f32.mrb[0].mxu0
    %v6790 = vadd.f32 0.0, %v6789
    %6791 = vmatprep.mubr.f32.mxu0 0.0
    %6792 = vmatmul.mubr.f32.gmra.mrb[0].mxu0 %v5322
    %v6793 = vpop.f32.mrb[0].mxu0
    %v6794 = vadd.f32 0.0, %v6793
    %v6795 = vpop.f32.mrb[0].mxu0
    %v6796 = vadd.f32 0.0, %v6795
    %6797 = vmatprep.mubr.f32.mxu0 0.0
    %6798 = vmatmul.mubr.f32.gmra.mrb[0].mxu0 %v5323
    %v6799 = vpop.f32.mrb[0].mxu0
    %v6800 = vadd.f32 0.0, %v6799
    %v6801 = vpop.f32.mrb[0].mxu0
    %v6802 = vadd.f32 0.0, %v6801
    %6803 = vmatprep.mubr.f32.mxu0 0.0
    %6804 = vmatmul.mubr.f32.gmra.mrb[0].mxu0 %v5324
    %v6805 = vpop.f32.mrb[0].mxu0
    %v6806 = vadd.f32 0.0, %v6805
    %v6807 = vpop.f32.mrb[0].mxu0
    %v6808 = vadd.f32 0.0, %v6807
    %6809 = vmatprep.mubr.f32.mxu0 0.0
    %6810 = vmatmul.mubr.f32.gmra.mrb[0].mxu0 %v5325
    %v6811 = vpop.f32.mrb[0].mxu0
    %v6812 = vadd.f32 0.0, %v6811
    %v6813 = vpop.f32.mrb[0].mxu0
    %v6814 = vadd.f32 0.0, %v6813
    %6815 = vmatprep.mubr.f32.mxu0 0.0
    %6816 = vmatmul.mubr.f32.gmra.mrb[0].mxu0 %v5326
    %v6817 = vpop.f32.mrb[0].mxu0
    %v6818 = vadd.f32 0.0, %v6817
    %v6819 = vpop.f32.mrb[0].mxu0
    %v6820 = vadd.f32 0.0, %v6819
    %6821 = vdwg.mxu0
    %v6822 = vadd.f32 %v6245, %v6567
    %v6823 = vadd.f32 %v6247, %v6569
    %v6824 = vadd.f32 %v6406, %v6728
    %v6825 = vadd.f32 %v6408, %v6730
    %v6826 = vadd.f32 %v6251, %v6573
    %v6827 = vadd.f32 %v6253, %v6575
    %v6828 = vadd.f32 %v6412, %v6734
    %v6829 = vadd.f32 %v6414, %v6736
    %v6830 = vadd.f32 %v6257, %v6579
    %v6831 = vadd.f32 %v6259, %v6581
    %v6832 = vadd.f32 %v6418, %v6740
    %v6833 = vadd.f32 %v6420, %v6742
    %v6834 = vadd.f32 %v6263, %v6585
    %v6835 = vadd.f32 %v6265, %v6587
    %v6836 = vadd.f32 %v6424, %v6746
    %v6837 = vadd.f32 %v6426, %v6748
    %v6838 = vadd.f32 %v6269, %v6591
    %v6839 = vadd.f32 %v6271, %v6593
    %v6840 = vadd.f32 %v6430, %v6752
    %v6841 = vadd.f32 %v6432, %v6754
    %v6842 = vadd.f32 %v6275, %v6597
    %v6843 = vadd.f32 %v6277, %v6599
    %v6844 = vadd.f32 %v6436, %v6758
    %v6845 = vadd.f32 %v6438, %v6760
    %v6846 = vadd.f32 %v6281, %v6603
    %v6847 = vadd.f32 %v6283, %v6605
    %v6848 = vadd.f32 %v6442, %v6764
    %v6849 = vadd.f32 %v6444, %v6766
    %v6850 = vadd.f32 %v6287, %v6609
    %v6851 = vadd.f32 %v6289, %v6611
    %v6852 = vadd.f32 %v6448, %v6770
    %v6853 = vadd.f32 %v6450, %v6772
    %v6854 = vadd.f32 %v6293, %v6615
    %v6855 = vadd.f32 %v6295, %v6617
    %v6856 = vadd.f32 %v6454, %v6776
    %v6857 = vadd.f32 %v6456, %v6778
    %v6858 = vadd.f32 %v6299, %v6621
    %v6859 = vadd.f32 %v6301, %v6623
    %v6860 = vadd.f32 %v6460, %v6782
    %v6861 = vadd.f32 %v6462, %v6784
    %v6862 = vadd.f32 %v6305, %v6627
    %v6863 = vadd.f32 %v6307, %v6629
    %v6864 = vadd.f32 %v6466, %v6788
    %v6865 = vadd.f32 %v6468, %v6790
    %v6866 = vadd.f32 %v6311, %v6633
    %v6867 = vadd.f32 %v6313, %v6635
    %v6868 = vadd.f32 %v6472, %v6794
    %v6869 = vadd.f32 %v6474, %v6796
    %v6870 = vadd.f32 %v6317, %v6639
    %v6871 = vadd.f32 %v6319, %v6641
    %v6872 = vadd.f32 %v6478, %v6800
    %v6873 = vadd.f32 %v6480, %v6802
    %v6874 = vadd.f32 %v6323, %v6645
    %v6875 = vadd.f32 %v6325, %v6647
    %v6876 = vadd.f32 %v6484, %v6806
    %v6877 = vadd.f32 %v6486, %v6808
    %v6878 = vadd.f32 %v6329, %v6651
    %v6879 = vadd.f32 %v6331, %v6653
    %v6880 = vadd.f32 %v6490, %v6812
    %v6881 = vadd.f32 %v6492, %v6814
    %v6882 = vadd.f32 %v6335, %v6657
    %v6883 = vadd.f32 %v6337, %v6659
    %v6884 = vadd.f32 %v6496, %v6818
    %v6885 = vadd.f32 %v6498, %v6820
    %6887 = vset.pattern.permute.xlu0 0
    %6888 = vperm.xlu0 %6887, %v5328
    %v6889 = vpop.permute.xlu0 %6888
    %6892 = vset.pattern.permute.xlu0 0
    %6893 = vperm.xlu0 %6892, %v5329
    %v6894 = vpop.permute.xlu0 %6893
    %6897 = vset.pattern.permute.xlu0 0
    %6898 = vperm.xlu0 %6897, %v5330
    %v6899 = vpop.permute.xlu0 %6898
    %6902 = vset.pattern.permute.xlu0 0
    %6903 = vperm.xlu0 %6902, %v5331
    %v6904 = vpop.permute.xlu0 %6903
    %6907 = vset.pattern.permute.xlu0 0
    %6908 = vperm.xlu0 %6907, %v5332
    %v6909 = vpop.permute.xlu0 %6908
    %6912 = vset.pattern.permute.xlu0 0
    %6913 = vperm.xlu0 %6912, %v5333
    %v6914 = vpop.permute.xlu0 %6913
    %6917 = vset.pattern.permute.xlu0 0
    %6918 = vperm.xlu0 %6917, %v5334
    %v6919 = vpop.permute.xlu0 %6918
    %6922 = vset.pattern.permute.xlu0 0
    %6923 = vperm.xlu0 %6922, %v5335
    %v6924 = vpop.permute.xlu0 %6923
    %6927 = vset.pattern.permute.xlu0 0
    %6928 = vperm.xlu0 %6927, %v5336
    %v6929 = vpop.permute.xlu0 %6928
    %6932 = vset.pattern.permute.xlu0 0
    %6933 = vperm.xlu0 %6932, %v5337
    %v6934 = vpop.permute.xlu0 %6933
    %6937 = vset.pattern.permute.xlu0 0
    %6938 = vperm.xlu0 %6937, %v5338
    %v6939 = vpop.permute.xlu0 %6938
    %6942 = vset.pattern.permute.xlu0 0
    %6943 = vperm.xlu0 %6942, %v5339
    %v6944 = vpop.permute.xlu0 %6943
    %6947 = vset.pattern.permute.xlu0 0
    %6948 = vperm.xlu0 %6947, %v5340
    %v6949 = vpop.permute.xlu0 %6948
    %6952 = vset.pattern.permute.xlu0 0
    %6953 = vperm.xlu0 %6952, %v5341
    %v6954 = vpop.permute.xlu0 %6953
    %6957 = vset.pattern.permute.xlu0 0
    %6958 = vperm.xlu0 %6957, %v5342
    %v6959 = vpop.permute.xlu0 %6958
    %6962 = vset.pattern.permute.xlu0 0
    %6963 = vperm.xlu0 %6962, %v5343
    %v6964 = vpop.permute.xlu0 %6963
    %v6966 = vadd.f32 %v6822, %v6889
    %v6967 = vadd.f32 %v6823, %v6889
    %v6968 = vadd.f32 %v6824, %v6889
    %v6969 = vadd.f32 %v6825, %v6889
    %v6970 = vadd.f32 %v6826, %v6894
    %v6971 = vadd.f32 %v6827, %v6894
    %v6972 = vadd.f32 %v6828, %v6894
    %v6973 = vadd.f32 %v6829, %v6894
    %v6974 = vadd.f32 %v6830, %v6899
    %v6975 = vadd.f32 %v6831, %v6899
    %v6976 = vadd.f32 %v6832, %v6899
    %v6977 = vadd.f32 %v6833, %v6899
    %v6978 = vadd.f32 %v6834, %v6904
    %v6979 = vadd.f32 %v6835, %v6904
    %v6980 = vadd.f32 %v6836, %v6904
    %v6981 = vadd.f32 %v6837, %v6904
    %v6982 = vadd.f32 %v6838, %v6909
    %v6983 = vadd.f32 %v6839, %v6909
    %v6984 = vadd.f32 %v6840, %v6909
    %v6985 = vadd.f32 %v6841, %v6909
    %v6986 = vadd.f32 %v6842, %v6914
    %v6987 = vadd.f32 %v6843, %v6914
    %v6988 = vadd.f32 %v6844, %v6914
    %v6989 = vadd.f32 %v6845, %v6914
    %v6990 = vadd.f32 %v6846, %v6919
    %v6991 = vadd.f32 %v6847, %v6919
    %v6992 = vadd.f32 %v6848, %v6919
    %v6993 = vadd.f32 %v6849, %v6919
    %v6994 = vadd.f32 %v6850, %v6924
    %v6995 = vadd.f32 %v6851, %v6924
    %v6996 = vadd.f32 %v6852, %v6924
    %v6997 = vadd.f32 %v6853, %v6924
    %v6998 = vadd.f32 %v6854, %v6929
    %v6999 = vadd.f32 %v6855, %v6929
    %v7000 = vadd.f32 %v6856, %v6929
    %v7001 = vadd.f32 %v6857, %v6929
    %v7002 = vadd.f32 %v6858, %v6934
    %v7003 = vadd.f32 %v6859, %v6934
    %v7004 = vadd.f32 %v6860, %v6934
    %v7005 = vadd.f32 %v6861, %v6934
    %v7006 = vadd.f32 %v6862, %v6939
    %v7007 = vadd.f32 %v6863, %v6939
    %v7008 = vadd.f32 %v6864, %v6939
    %v7009 = vadd.f32 %v6865, %v6939
    %v7010 = vadd.f32 %v6866, %v6944
    %v7011 = vadd.f32 %v6867, %v6944
    %v7012 = vadd.f32 %v6868, %v6944
    %v7013 = vadd.f32 %v6869, %v6944
    %v7014 = vadd.f32 %v6870, %v6949
    %v7015 = vadd.f32 %v6871, %v6949
    %v7016 = vadd.f32 %v6872, %v6949
    %v7017 = vadd.f32 %v6873, %v6949
    %v7018 = vadd.f32 %v6874, %v6954
    %v7019 = vadd.f32 %v6875, %v6954
    %v7020 = vadd.f32 %v6876, %v6954
    %v7021 = vadd.f32 %v6877, %v6954
    %v7022 = vadd.f32 %v6878, %v6959
    %v7023 = vadd.f32 %v6879, %v6959
    %v7024 = vadd.f32 %v6880, %v6959
    %v7025 = vadd.f32 %v6881, %v6959
    %v7026 = vadd.f32 %v6882, %v6964
    %v7027 = vadd.f32 %v6883, %v6964
    %v7028 = vadd.f32 %v6884, %v6964
    %v7029 = vadd.f32 %v6885, %v6964
    %v7030 = vmax.f32 %v6966, 0.0
    %v7031 = vmax.f32 %v6967, 0.0
    %v7032 = vmax.f32 %v6968, 0.0
    %v7033 = vmax.f32 %v6969, 0.0
    %v7034 = vmax.f32 %v6970, 0.0
    %v7035 = vmax.f32 %v6971, 0.0
    %v7036 = vmax.f32 %v6972, 0.0
    %v7037 = vmax.f32 %v6973, 0.0
    %v7038 = vmax.f32 %v6974, 0.0
    %v7039 = vmax.f32 %v6975, 0.0
    %v7040 = vmax.f32 %v6976, 0.0
    %v7041 = vmax.f32 %v6977, 0.0
    %v7042 = vmax.f32 %v6978, 0.0
    %v7043 = vmax.f32 %v6979, 0.0
    %v7044 = vmax.f32 %v6980, 0.0
    %v7045 = vmax.f32 %v6981, 0.0
    %v7046 = vmax.f32 %v6982, 0.0
    %v7047 = vmax.f32 %v6983, 0.0
    %v7048 = vmax.f32 %v6984, 0.0
    %v7049 = vmax.f32 %v6985, 0.0
    %v7050 = vmax.f32 %v6986, 0.0
    %v7051 = vmax.f32 %v6987, 0.0
    %v7052 = vmax.f32 %v6988, 0.0
    %v7053 = vmax.f32 %v6989, 0.0
    %v7054 = vmax.f32 %v6990, 0.0
    %v7055 = vmax.f32 %v6991, 0.0
    %v7056 = vmax.f32 %v6992, 0.0
    %v7057 = vmax.f32 %v6993, 0.0
    %v7058 = vmax.f32 %v6994, 0.0
    %v7059 = vmax.f32 %v6995, 0.0
    %v7060 = vmax.f32 %v6996, 0.0
    %v7061 = vmax.f32 %v6997, 0.0
    %v7062 = vmax.f32 %v6998, 0.0
    %v7063 = vmax.f32 %v6999, 0.0
    %v7064 = vmax.f32 %v7000, 0.0
    %v7065 = vmax.f32 %v7001, 0.0
    %v7066 = vmax.f32 %v7002, 0.0
    %v7067 = vmax.f32 %v7003, 0.0
    %v7068 = vmax.f32 %v7004, 0.0
    %v7069 = vmax.f32 %v7005, 0.0
    %v7070 = vmax.f32 %v7006, 0.0
    %v7071 = vmax.f32 %v7007, 0.0
    %v7072 = vmax.f32 %v7008, 0.0
    %v7073 = vmax.f32 %v7009, 0.0
    %v7074 = vmax.f32 %v7010, 0.0
    %v7075 = vmax.f32 %v7011, 0.0
    %v7076 = vmax.f32 %v7012, 0.0
    %v7077 = vmax.f32 %v7013, 0.0
    %v7078 = vmax.f32 %v7014, 0.0
    %v7079 = vmax.f32 %v7015, 0.0
    %v7080 = vmax.f32 %v7016, 0.0
    %v7081 = vmax.f32 %v7017, 0.0
    %v7082 = vmax.f32 %v7018, 0.0
    %v7083 = vmax.f32 %v7019, 0.0
    %v7084 = vmax.f32 %v7020, 0.0
    %v7085 = vmax.f32 %v7021, 0.0
    %v7086 = vmax.f32 %v7022, 0.0
    %v7087 = vmax.f32 %v7023, 0.0
    %v7088 = vmax.f32 %v7024, 0.0
    %v7089 = vmax.f32 %v7025, 0.0
    %v7090 = vmax.f32 %v7026, 0.0
    %v7091 = vmax.f32 %v7027, 0.0
    %v7092 = vmax.f32 %v7028, 0.0
    %v7093 = vmax.f32 %v7029, 0.0
    %v7094 = vld [vmem:[%s5] sm:$0xff]
    %s7095 = scalar_lea.vmem %s5, 8
    %v7096 = vld [vmem:[%s7095] sm:$0xff]
    %s7097 = scalar_lea.vmem %s5, 16
    %v7098 = vld [vmem:[%s7097] sm:$0xff]
    %v7099 = vld [vmem:[%s6] sm:$0xff]
    %7100 = vrot.lane.b32.xlu0 %v7030, 1
    %v7101 = vpop.permute.xlu0 %7100
    %7102 = vrot.lane.b32.xlu0 %v7034, 1
    %v7103 = vpop.permute.xlu0 %7102
    %7104 = vrot.lane.b32.xlu0 %v7038, 1
    %v7105 = vpop.permute.xlu0 %7104
    %7106 = vrot.lane.b32.xlu0 %v7042, 1
    %v7107 = vpop.permute.xlu0 %7106
    %7108 = vrot.lane.b32.xlu0 %v7046, 1
    %v7109 = vpop.permute.xlu0 %7108
    %7110 = vrot.lane.b32.xlu0 %v7050, 1
    %v7111 = vpop.permute.xlu0 %7110
    %7112 = vrot.lane.b32.xlu0 %v7054, 1
    %v7113 = vpop.permute.xlu0 %7112
    %7114 = vrot.lane.b32.xlu0 %v7058, 1
    %v7115 = vpop.permute.xlu0 %7114
    %7116 = vrot.lane.b32.xlu0 %v7062, 1
    %v7117 = vpop.permute.xlu0 %7116
    %7118 = vrot.lane.b32.xlu0 %v7066, 1
    %v7119 = vpop.permute.xlu0 %7118
    %7120 = vrot.lane.b32.xlu0 %v7070, 1
    %v7121 = vpop.permute.xlu0 %7120
    %7122 = vrot.lane.b32.xlu0 %v7074, 1
    %v7123 = vpop.permute.xlu0 %7122
    %7124 = vrot.lane.b32.xlu0 %v7078, 1
    %v7125 = vpop.permute.xlu0 %7124
    %7126 = vrot.lane.b32.xlu0 %v7082, 1
    %v7127 = vpop.permute.xlu0 %7126
    %7128 = vrot.lane.b32.xlu0 %v7086, 1
    %v7129 = vpop.permute.xlu0 %7128
    %7130 = vrot.lane.b32.xlu0 %v7090, 1
    %v7131 = vpop.permute.xlu0 %7130
    %7132 = vrot.lane.b32.xlu0 %v7031, 1
    %v7133 = vpop.permute.xlu0 %7132
    %7134 = vrot.lane.b32.xlu0 %v7035, 1
    %v7135 = vpop.permute.xlu0 %7134
    %7136 = vrot.lane.b32.xlu0 %v7039, 1
    %v7137 = vpop.permute.xlu0 %7136
    %7138 = vrot.lane.b32.xlu0 %v7043, 1
    %v7139 = vpop.permute.xlu0 %7138
    %7140 = vrot.lane.b32.xlu0 %v7047, 1
    %v7141 = vpop.permute.xlu0 %7140
    %7142 = vrot.lane.b32.xlu0 %v7051, 1
    %v7143 = vpop.permute.xlu0 %7142
    %7144 = vrot.lane.b32.xlu0 %v7055, 1
    %v7145 = vpop.permute.xlu0 %7144
    %7146 = vrot.lane.b32.xlu0 %v7059, 1
    %v7147 = vpop.permute.xlu0 %7146
    %7148 = vrot.lane.b32.xlu0 %v7063, 1
    %v7149 = vpop.permute.xlu0 %7148
    %7150 = vrot.lane.b32.xlu0 %v7067, 1
    %v7151 = vpop.permute.xlu0 %7150
    %7152 = vrot.lane.b32.xlu0 %v7071, 1
    %v7153 = vpop.permute.xlu0 %7152
    %7154 = vrot.lane.b32.xlu0 %v7075, 1
    %v7155 = vpop.permute.xlu0 %7154
    %7156 = vrot.lane.b32.xlu0 %v7079, 1
    %v7157 = vpop.permute.xlu0 %7156
    %7158 = vrot.lane.b32.xlu0 %v7083, 1
    %v7159 = vpop.permute.xlu0 %7158
    %7160 = vrot.lane.b32.xlu0 %v7087, 1
    %v7161 = vpop.permute.xlu0 %7160
    %7162 = vrot.lane.b32.xlu0 %v7091, 1
    %v7163 = vpop.permute.xlu0 %7162
    %7164 = vrot.lane.b32.xlu0 %v7032, 1
    %v7165 = vpop.permute.xlu0 %7164
    %7166 = vrot.lane.b32.xlu0 %v7036, 1
    %v7167 = vpop.permute.xlu0 %7166
    %7168 = vrot.lane.b32.xlu0 %v7040, 1
    %v7169 = vpop.permute.xlu0 %7168
    %7170 = vrot.lane.b32.xlu0 %v7044, 1
    %v7171 = vpop.permute.xlu0 %7170
    %7172 = vrot.lane.b32.xlu0 %v7048, 1
    %v7173 = vpop.permute.xlu0 %7172
    %7174 = vrot.lane.b32.xlu0 %v7052, 1
    %v7175 = vpop.permute.xlu0 %7174
    %7176 = vrot.lane.b32.xlu0 %v7056, 1
    %v7177 = vpop.permute.xlu0 %7176
    %7178 = vrot.lane.b32.xlu0 %v7060, 1
    %v7179 = vpop.permute.xlu0 %7178
    %7180 = vrot.lane.b32.xlu0 %v7064, 1
    %v7181 = vpop.permute.xlu0 %7180
    %7182 = vrot.lane.b32.xlu0 %v7068, 1
    %v7183 = vpop.permute.xlu0 %7182
    %7184 = vrot.lane.b32.xlu0 %v7072, 1
    %v7185 = vpop.permute.xlu0 %7184
    %7186 = vrot.lane.b32.xlu0 %v7076, 1
    %v7187 = vpop.permute.xlu0 %7186
    %7188 = vrot.lane.b32.xlu0 %v7080, 1
    %v7189 = vpop.permute.xlu0 %7188
    %7190 = vrot.lane.b32.xlu0 %v7084, 1
    %v7191 = vpop.permute.xlu0 %7190
    %7192 = vrot.lane.b32.xlu0 %v7088, 1
    %v7193 = vpop.permute.xlu0 %7192
    %7194 = vrot.lane.b32.xlu0 %v7092, 1
    %v7195 = vpop.permute.xlu0 %7194
    %7196 = vrot.lane.b32.xlu0 %v7033, 1
    %v7197 = vpop.permute.xlu0 %7196
    %7198 = vrot.lane.b32.xlu0 %v7037, 1
    %v7199 = vpop.permute.xlu0 %7198
    %7200 = vrot.lane.b32.xlu0 %v7041, 1
    %v7201 = vpop.permute.xlu0 %7200
    %7202 = vrot.lane.b32.xlu0 %v7045, 1
    %v7203 = vpop.permute.xlu0 %7202
    %7204 = vrot.lane.b32.xlu0 %v7049, 1
    %v7205 = vpop.permute.xlu0 %7204
    %7206 = vrot.lane.b32.xlu0 %v7053, 1
    %v7207 = vpop.permute.xlu0 %7206
    %7208 = vrot.lane.b32.xlu0 %v7057, 1
    %v7209 = vpop.permute.xlu0 %7208
    %7210 = vrot.lane.b32.xlu0 %v7061, 1
    %v7211 = vpop.permute.xlu0 %7210
    %7212 = vrot.lane.b32.xlu0 %v7065, 1
    %v7213 = vpop.permute.xlu0 %7212
    %7214 = vrot.lane.b32.xlu0 %v7069, 1
    %v7215 = vpop.permute.xlu0 %7214
    %7216 = vrot.lane.b32.xlu0 %v7073, 1
    %v7217 = vpop.permute.xlu0 %7216
    %7218 = vrot.lane.b32.xlu0 %v7077, 1
    %v7219 = vpop.permute.xlu0 %7218
    %7220 = vrot.lane.b32.xlu0 %v7081, 1
    %v7221 = vpop.permute.xlu0 %7220
    %7222 = vrot.lane.b32.xlu0 %v7085, 1
    %v7223 = vpop.permute.xlu0 %7222
    %7224 = vrot.lane.b32.xlu0 %v7089, 1
    %v7225 = vpop.permute.xlu0 %7224
    %7226 = vrot.lane.b32.xlu0 %v7093, 1
    %v7227 = vpop.permute.xlu0 %7226
    %v7228 = vsel %vm200, %v7165, %v7197
    %v7229 = vsel %vm200, %v7167, %v7199
    %v7230 = vsel %vm200, %v7169, %v7201
    %v7231 = vsel %vm200, %v7171, %v7203
    %v7232 = vsel %vm200, %v7173, %v7205
    %v7233 = vsel %vm200, %v7175, %v7207
    %v7234 = vsel %vm200, %v7177, %v7209
    %v7235 = vsel %vm200, %v7179, %v7211
    %v7236 = vsel %vm200, %v7181, %v7213
    %v7237 = vsel %vm200, %v7183, %v7215
    %v7238 = vsel %vm200, %v7185, %v7217
    %v7239 = vsel %vm200, %v7187, %v7219
    %v7240 = vsel %vm200, %v7189, %v7221
    %v7241 = vsel %vm200, %v7191, %v7223
    %v7242 = vsel %vm200, %v7193, %v7225
    %v7243 = vsel %vm200, %v7195, %v7227
    %v7244 = vsel %vm200, %v7133, %v7165
    %v7245 = vsel %vm200, %v7135, %v7167
    %v7246 = vsel %vm200, %v7137, %v7169
    %v7247 = vsel %vm200, %v7139, %v7171
    %v7248 = vsel %vm200, %v7141, %v7173
    %v7249 = vsel %vm200, %v7143, %v7175
    %v7250 = vsel %vm200, %v7145, %v7177
    %v7251 = vsel %vm200, %v7147, %v7179
    %v7252 = vsel %vm200, %v7149, %v7181
    %v7253 = vsel %vm200, %v7151, %v7183
    %v7254 = vsel %vm200, %v7153, %v7185
    %v7255 = vsel %vm200, %v7155, %v7187
    %v7256 = vsel %vm200, %v7157, %v7189
    %v7257 = vsel %vm200, %v7159, %v7191
    %v7258 = vsel %vm200, %v7161, %v7193
    %v7259 = vsel %vm200, %v7163, %v7195
    %v7260 = vsel %vm200, %v7101, %v7133
    %v7261 = vsel %vm200, %v7103, %v7135
    %v7262 = vsel %vm200, %v7105, %v7137
    %v7263 = vsel %vm200, %v7107, %v7139
    %v7264 = vsel %vm200, %v7109, %v7141
    %v7265 = vsel %vm200, %v7111, %v7143
    %v7266 = vsel %vm200, %v7113, %v7145
    %v7267 = vsel %vm200, %v7115, %v7147
    %v7268 = vsel %vm200, %v7117, %v7149
    %v7269 = vsel %vm200, %v7119, %v7151
    %v7270 = vsel %vm200, %v7121, %v7153
    %v7271 = vsel %vm200, %v7123, %v7155
    %v7272 = vsel %vm200, %v7125, %v7157
    %v7273 = vsel %vm200, %v7127, %v7159
    %v7274 = vsel %vm200, %v7129, %v7161
    %v7275 = vsel %vm200, %v7131, %v7163
    %v7276 = vsel %vm200, %v7197, %v7101
    %v7277 = vsel %vm200, %v7199, %v7103
    %v7278 = vsel %vm200, %v7201, %v7105
    %v7279 = vsel %vm200, %v7203, %v7107
    %v7280 = vsel %vm200, %v7205, %v7109
    %v7281 = vsel %vm200, %v7207, %v7111
    %v7282 = vsel %vm200, %v7209, %v7113
    %v7283 = vsel %vm200, %v7211, %v7115
    %v7284 = vsel %vm200, %v7213, %v7117
    %v7285 = vsel %vm200, %v7215, %v7119
    %v7286 = vsel %vm200, %v7217, %v7121
    %v7287 = vsel %vm200, %v7219, %v7123
    %v7288 = vsel %vm200, %v7221, %v7125
    %v7289 = vsel %vm200, %v7223, %v7127
    %v7290 = vsel %vm200, %v7225, %v7129
    %v7291 = vsel %vm200, %v7227, %v7131
    %v7292 = vmul.f32 %v7276, %v104
    %v7293 = vmul.f32 %v7260, %v105
    %v7294 = vmul.f32 %v7244, %v106
    %v7295 = vmul.f32 %v7228, %v107
    %v7296 = vmul.f32 %v7277, %v104
    %v7297 = vmul.f32 %v7261, %v105
    %v7298 = vmul.f32 %v7245, %v106
    %v7299 = vmul.f32 %v7229, %v107
    %v7300 = vmul.f32 %v7278, %v104
    %v7301 = vmul.f32 %v7262, %v105
    %v7302 = vmul.f32 %v7246, %v106
    %v7303 = vmul.f32 %v7230, %v107
    %v7304 = vmul.f32 %v7279, %v104
    %v7305 = vmul.f32 %v7263, %v105
    %v7306 = vmul.f32 %v7247, %v106
    %v7307 = vmul.f32 %v7231, %v107
    %v7308 = vmul.f32 %v7280, %v104
    %v7309 = vmul.f32 %v7264, %v105
    %v7310 = vmul.f32 %v7248, %v106
    %v7311 = vmul.f32 %v7232, %v107
    %v7312 = vmul.f32 %v7281, %v104
    %v7313 = vmul.f32 %v7265, %v105
    %v7314 = vmul.f32 %v7249, %v106
    %v7315 = vmul.f32 %v7233, %v107
    %v7316 = vmul.f32 %v7282, %v104
    %v7317 = vmul.f32 %v7266, %v105
    %v7318 = vmul.f32 %v7250, %v106
    %v7319 = vmul.f32 %v7234, %v107
    %v7320 = vmul.f32 %v7283, %v104
    %v7321 = vmul.f32 %v7267, %v105
    %v7322 = vmul.f32 %v7251, %v106
    %v7323 = vmul.f32 %v7235, %v107
    %v7324 = vmul.f32 %v7284, %v104
    %v7325 = vmul.f32 %v7268, %v105
    %v7326 = vmul.f32 %v7252, %v106
    %v7327 = vmul.f32 %v7236, %v107
    %v7328 = vmul.f32 %v7285, %v104
    %v7329 = vmul.f32 %v7269, %v105
    %v7330 = vmul.f32 %v7253, %v106
    %v7331 = vmul.f32 %v7237, %v107
    %v7332 = vmul.f32 %v7286, %v104
    %v7333 = vmul.f32 %v7270, %v105
    %v7334 = vmul.f32 %v7254, %v106
    %v7335 = vmul.f32 %v7238, %v107
    %v7336 = vmul.f32 %v7287, %v104
    %v7337 = vmul.f32 %v7271, %v105
    %v7338 = vmul.f32 %v7255, %v106
    %v7339 = vmul.f32 %v7239, %v107
    %v7340 = vmul.f32 %v7288, %v104
    %v7341 = vmul.f32 %v7272, %v105
    %v7342 = vmul.f32 %v7256, %v106
    %v7343 = vmul.f32 %v7240, %v107
    %v7344 = vmul.f32 %v7289, %v104
    %v7345 = vmul.f32 %v7273, %v105
    %v7346 = vmul.f32 %v7257, %v106
    %v7347 = vmul.f32 %v7241, %v107
    %v7348 = vmul.f32 %v7290, %v104
    %v7349 = vmul.f32 %v7274, %v105
    %v7350 = vmul.f32 %v7258, %v106
    %v7351 = vmul.f32 %v7242, %v107
    %v7352 = vmul.f32 %v7291, %v104
    %v7353 = vmul.f32 %v7275, %v105
    %v7354 = vmul.f32 %v7259, %v106
    %v7355 = vmul.f32 %v7243, %v107
    %7356 = vrot.lane.b32.xlu0 %v7030, 127
    %v7357 = vpop.permute.xlu0 %7356
    %7358 = vrot.lane.b32.xlu0 %v7034, 127
    %v7359 = vpop.permute.xlu0 %7358
    %7360 = vrot.lane.b32.xlu0 %v7038, 127
    %v7361 = vpop.permute.xlu0 %7360
    %7362 = vrot.lane.b32.xlu0 %v7042, 127
    %v7363 = vpop.permute.xlu0 %7362
    %7364 = vrot.lane.b32.xlu0 %v7046, 127
    %v7365 = vpop.permute.xlu0 %7364
    %7366 = vrot.lane.b32.xlu0 %v7050, 127
    %v7367 = vpop.permute.xlu0 %7366
    %7368 = vrot.lane.b32.xlu0 %v7054, 127
    %v7369 = vpop.permute.xlu0 %7368
    %7370 = vrot.lane.b32.xlu0 %v7058, 127
    %v7371 = vpop.permute.xlu0 %7370
    %7372 = vrot.lane.b32.xlu0 %v7062, 127
    %v7373 = vpop.permute.xlu0 %7372
    %7374 = vrot.lane.b32.xlu0 %v7066, 127
    %v7375 = vpop.permute.xlu0 %7374
    %7376 = vrot.lane.b32.xlu0 %v7070, 127
    %v7377 = vpop.permute.xlu0 %7376
    %7378 = vrot.lane.b32.xlu0 %v7074, 127
    %v7379 = vpop.permute.xlu0 %7378
    %7380 = vrot.lane.b32.xlu0 %v7078, 127
    %v7381 = vpop.permute.xlu0 %7380
    %7382 = vrot.lane.b32.xlu0 %v7082, 127
    %v7383 = vpop.permute.xlu0 %7382
    %7384 = vrot.lane.b32.xlu0 %v7086, 127
    %v7385 = vpop.permute.xlu0 %7384
    %7386 = vrot.lane.b32.xlu0 %v7090, 127
    %v7387 = vpop.permute.xlu0 %7386
    %7388 = vrot.lane.b32.xlu0 %v7031, 127
    %v7389 = vpop.permute.xlu0 %7388
    %7390 = vrot.lane.b32.xlu0 %v7035, 127
    %v7391 = vpop.permute.xlu0 %7390
    %7392 = vrot.lane.b32.xlu0 %v7039, 127
    %v7393 = vpop.permute.xlu0 %7392
    %7394 = vrot.lane.b32.xlu0 %v7043, 127
    %v7395 = vpop.permute.xlu0 %7394
    %7396 = vrot.lane.b32.xlu0 %v7047, 127
    %v7397 = vpop.permute.xlu0 %7396
    %7398 = vrot.lane.b32.xlu0 %v7051, 127
    %v7399 = vpop.permute.xlu0 %7398
    %7400 = vrot.lane.b32.xlu0 %v7055, 127
    %v7401 = vpop.permute.xlu0 %7400
    %7402 = vrot.lane.b32.xlu0 %v7059, 127
    %v7403 = vpop.permute.xlu0 %7402
    %7404 = vrot.lane.b32.xlu0 %v7063, 127
    %v7405 = vpop.permute.xlu0 %7404
    %7406 = vrot.lane.b32.xlu0 %v7067, 127
    %v7407 = vpop.permute.xlu0 %7406
    %7408 = vrot.lane.b32.xlu0 %v7071, 127
    %v7409 = vpop.permute.xlu0 %7408
    %7410 = vrot.lane.b32.xlu0 %v7075, 127
    %v7411 = vpop.permute.xlu0 %7410
    %7412 = vrot.lane.b32.xlu0 %v7079, 127
    %v7413 = vpop.permute.xlu0 %7412
    %7414 = vrot.lane.b32.xlu0 %v7083, 127
    %v7415 = vpop.permute.xlu0 %7414
    %7416 = vrot.lane.b32.xlu0 %v7087, 127
    %v7417 = vpop.permute.xlu0 %7416
    %7418 = vrot.lane.b32.xlu0 %v7091, 127
    %v7419 = vpop.permute.xlu0 %7418
    %7420 = vrot.lane.b32.xlu0 %v7032, 127
    %v7421 = vpop.permute.xlu0 %7420
    %7422 = vrot.lane.b32.xlu0 %v7036, 127
    %v7423 = vpop.permute.xlu0 %7422
    %7424 = vrot.lane.b32.xlu0 %v7040, 127
    %v7425 = vpop.permute.xlu0 %7424
    %7426 = vrot.lane.b32.xlu0 %v7044, 127
    %v7427 = vpop.permute.xlu0 %7426
    %7428 = vrot.lane.b32.xlu0 %v7048, 127
    %v7429 = vpop.permute.xlu0 %7428
    %7430 = vrot.lane.b32.xlu0 %v7052, 127
    %v7431 = vpop.permute.xlu0 %7430
    %7432 = vrot.lane.b32.xlu0 %v7056, 127
    %v7433 = vpop.permute.xlu0 %7432
    %7434 = vrot.lane.b32.xlu0 %v7060, 127
    %v7435 = vpop.permute.xlu0 %7434
    %7436 = vrot.lane.b32.xlu0 %v7064, 127
    %v7437 = vpop.permute.xlu0 %7436
    %7438 = vrot.lane.b32.xlu0 %v7068, 127
    %v7439 = vpop.permute.xlu0 %7438
    %7440 = vrot.lane.b32.xlu0 %v7072, 127
    %v7441 = vpop.permute.xlu0 %7440
    %7442 = vrot.lane.b32.xlu0 %v7076, 127
    %v7443 = vpop.permute.xlu0 %7442
    %7444 = vrot.lane.b32.xlu0 %v7080, 127
    %v7445 = vpop.permute.xlu0 %7444
    %7446 = vrot.lane.b32.xlu0 %v7084, 127
    %v7447 = vpop.permute.xlu0 %7446
    %7448 = vrot.lane.b32.xlu0 %v7088, 127
    %v7449 = vpop.permute.xlu0 %7448
    %7450 = vrot.lane.b32.xlu0 %v7092, 127
    %v7451 = vpop.permute.xlu0 %7450
    %7452 = vrot.lane.b32.xlu0 %v7033, 127
    %v7453 = vpop.permute.xlu0 %7452
    %7454 = vrot.lane.b32.xlu0 %v7037, 127
    %v7455 = vpop.permute.xlu0 %7454
    %7456 = vrot.lane.b32.xlu0 %v7041, 127
    %v7457 = vpop.permute.xlu0 %7456
    %7458 = vrot.lane.b32.xlu0 %v7045, 127
    %v7459 = vpop.permute.xlu0 %7458
    %7460 = vrot.lane.b32.xlu0 %v7049, 127
    %v7461 = vpop.permute.xlu0 %7460
    %7462 = vrot.lane.b32.xlu0 %v7053, 127
    %v7463 = vpop.permute.xlu0 %7462
    %7464 = vrot.lane.b32.xlu0 %v7057, 127
    %v7465 = vpop.permute.xlu0 %7464
    %7466 = vrot.lane.b32.xlu0 %v7061, 127
    %v7467 = vpop.permute.xlu0 %7466
    %7468 = vrot.lane.b32.xlu0 %v7065, 127
    %v7469 = vpop.permute.xlu0 %7468
    %7470 = vrot.lane.b32.xlu0 %v7069, 127
    %v7471 = vpop.permute.xlu0 %7470
    %7472 = vrot.lane.b32.xlu0 %v7073, 127
    %v7473 = vpop.permute.xlu0 %7472
    %7474 = vrot.lane.b32.xlu0 %v7077, 127
    %v7475 = vpop.permute.xlu0 %7474
    %7476 = vrot.lane.b32.xlu0 %v7081, 127
    %v7477 = vpop.permute.xlu0 %7476
    %7478 = vrot.lane.b32.xlu0 %v7085, 127
    %v7479 = vpop.permute.xlu0 %7478
    %7480 = vrot.lane.b32.xlu0 %v7089, 127
    %v7481 = vpop.permute.xlu0 %7480
    %7482 = vrot.lane.b32.xlu0 %v7093, 127
    %v7483 = vpop.permute.xlu0 %7482
    %v7484 = vsel %vm217, %v7421, %v7453
    %v7485 = vsel %vm217, %v7423, %v7455
    %v7486 = vsel %vm217, %v7425, %v7457
    %v7487 = vsel %vm217, %v7427, %v7459
    %v7488 = vsel %vm217, %v7429, %v7461
    %v7489 = vsel %vm217, %v7431, %v7463
    %v7490 = vsel %vm217, %v7433, %v7465
    %v7491 = vsel %vm217, %v7435, %v7467
    %v7492 = vsel %vm217, %v7437, %v7469
    %v7493 = vsel %vm217, %v7439, %v7471
    %v7494 = vsel %vm217, %v7441, %v7473
    %v7495 = vsel %vm217, %v7443, %v7475
    %v7496 = vsel %vm217, %v7445, %v7477
    %v7497 = vsel %vm217, %v7447, %v7479
    %v7498 = vsel %vm217, %v7449, %v7481
    %v7499 = vsel %vm217, %v7451, %v7483
    %v7500 = vsel %vm217, %v7389, %v7421
    %v7501 = vsel %vm217, %v7391, %v7423
    %v7502 = vsel %vm217, %v7393, %v7425
    %v7503 = vsel %vm217, %v7395, %v7427
    %v7504 = vsel %vm217, %v7397, %v7429
    %v7505 = vsel %vm217, %v7399, %v7431
    %v7506 = vsel %vm217, %v7401, %v7433
    %v7507 = vsel %vm217, %v7403, %v7435
    %v7508 = vsel %vm217, %v7405, %v7437
    %v7509 = vsel %vm217, %v7407, %v7439
    %v7510 = vsel %vm217, %v7409, %v7441
    %v7511 = vsel %vm217, %v7411, %v7443
    %v7512 = vsel %vm217, %v7413, %v7445
    %v7513 = vsel %vm217, %v7415, %v7447
    %v7514 = vsel %vm217, %v7417, %v7449
    %v7515 = vsel %vm217, %v7419, %v7451
    %v7516 = vsel %vm217, %v7357, %v7389
    %v7517 = vsel %vm217, %v7359, %v7391
    %v7518 = vsel %vm217, %v7361, %v7393
    %v7519 = vsel %vm217, %v7363, %v7395
    %v7520 = vsel %vm217, %v7365, %v7397
    %v7521 = vsel %vm217, %v7367, %v7399
    %v7522 = vsel %vm217, %v7369, %v7401
    %v7523 = vsel %vm217, %v7371, %v7403
    %v7524 = vsel %vm217, %v7373, %v7405
    %v7525 = vsel %vm217, %v7375, %v7407
    %v7526 = vsel %vm217, %v7377, %v7409
    %v7527 = vsel %vm217, %v7379, %v7411
    %v7528 = vsel %vm217, %v7381, %v7413
    %v7529 = vsel %vm217, %v7383, %v7415
    %v7530 = vsel %vm217, %v7385, %v7417
    %v7531 = vsel %vm217, %v7387, %v7419
    %v7532 = vsel %vm217, %v7453, %v7357
    %v7533 = vsel %vm217, %v7455, %v7359
    %v7534 = vsel %vm217, %v7457, %v7361
    %v7535 = vsel %vm217, %v7459, %v7363
    %v7536 = vsel %vm217, %v7461, %v7365
    %v7537 = vsel %vm217, %v7463, %v7367
    %v7538 = vsel %vm217, %v7465, %v7369
    %v7539 = vsel %vm217, %v7467, %v7371
    %v7540 = vsel %vm217, %v7469, %v7373
    %v7541 = vsel %vm217, %v7471, %v7375
    %v7542 = vsel %vm217, %v7473, %v7377
    %v7543 = vsel %vm217, %v7475, %v7379
    %v7544 = vsel %vm217, %v7477, %v7381
    %v7545 = vsel %vm217, %v7479, %v7383
    %v7546 = vsel %vm217, %v7481, %v7385
    %v7547 = vsel %vm217, %v7483, %v7387
    %v7548 = vmul.f32 %v7516, %v116
    %v7549 = vmul.f32 %v7500, %v117
    %v7550 = vmul.f32 %v7484, %v118
    %v7551 = vmul.f32 %v7532, %v119
    %v7552 = vmul.f32 %v7517, %v116
    %v7553 = vmul.f32 %v7501, %v117
    %v7554 = vmul.f32 %v7485, %v118
    %v7555 = vmul.f32 %v7533, %v119
    %v7556 = vmul.f32 %v7518, %v116
    %v7557 = vmul.f32 %v7502, %v117
    %v7558 = vmul.f32 %v7486, %v118
    %v7559 = vmul.f32 %v7534, %v119
    %v7560 = vmul.f32 %v7519, %v116
    %v7561 = vmul.f32 %v7503, %v117
    %v7562 = vmul.f32 %v7487, %v118
    %v7563 = vmul.f32 %v7535, %v119
    %v7564 = vmul.f32 %v7520, %v116
    %v7565 = vmul.f32 %v7504, %v117
    %v7566 = vmul.f32 %v7488, %v118
    %v7567 = vmul.f32 %v7536, %v119
    %v7568 = vmul.f32 %v7521, %v116
    %v7569 = vmul.f32 %v7505, %v117
    %v7570 = vmul.f32 %v7489, %v118
    %v7571 = vmul.f32 %v7537, %v119
    %v7572 = vmul.f32 %v7522, %v116
    %v7573 = vmul.f32 %v7506, %v117
    %v7574 = vmul.f32 %v7490, %v118
    %v7575 = vmul.f32 %v7538, %v119
    %v7576 = vmul.f32 %v7523, %v116
    %v7577 = vmul.f32 %v7507, %v117
    %v7578 = vmul.f32 %v7491, %v118
    %v7579 = vmul.f32 %v7539, %v119
    %v7580 = vmul.f32 %v7524, %v116
    %v7581 = vmul.f32 %v7508, %v117
    %v7582 = vmul.f32 %v7492, %v118
    %v7583 = vmul.f32 %v7540, %v119
    %v7584 = vmul.f32 %v7525, %v116
    %v7585 = vmul.f32 %v7509, %v117
    %v7586 = vmul.f32 %v7493, %v118
    %v7587 = vmul.f32 %v7541, %v119
    %v7588 = vmul.f32 %v7526, %v116
    %v7589 = vmul.f32 %v7510, %v117
    %v7590 = vmul.f32 %v7494, %v118
    %v7591 = vmul.f32 %v7542, %v119
    %v7592 = vmul.f32 %v7527, %v116
    %v7593 = vmul.f32 %v7511, %v117
    %v7594 = vmul.f32 %v7495, %v118
    %v7595 = vmul.f32 %v7543, %v119
    %v7596 = vmul.f32 %v7528, %v116
    %v7597 = vmul.f32 %v7512, %v117
    %v7598 = vmul.f32 %v7496, %v118
    %v7599 = vmul.f32 %v7544, %v119
    %v7600 = vmul.f32 %v7529, %v116
    %v7601 = vmul.f32 %v7513, %v117
    %v7602 = vmul.f32 %v7497, %v118
    %v7603 = vmul.f32 %v7545, %v119
    %v7604 = vmul.f32 %v7530, %v116
    %v7605 = vmul.f32 %v7514, %v117
    %v7606 = vmul.f32 %v7498, %v118
    %v7607 = vmul.f32 %v7546, %v119
    %v7608 = vmul.f32 %v7531, %v116
    %v7609 = vmul.f32 %v7515, %v117
    %v7610 = vmul.f32 %v7499, %v118
    %v7611 = vmul.f32 %v7547, %v119
    %7612 = vmatprep.subr.mxu0 %v7031
    %7613 = vmatpush1.msra.mxu0 %v7030
    %7614 = vmatprep.subr.mxu0 %v7035
    %7615 = vmatpush1.msra.mxu0 %v7034
    %7616 = vmatprep.subr.mxu0 %v7039
    %7617 = vmatpush1.msra.mxu0 %v7038
    %7618 = vmatprep.subr.mxu0 %v7043
    %7619 = vmatpush1.msra.mxu0 %v7042
    %7620 = vmatprep.subr.mxu0 %v7047
    %7621 = vmatpush1.msra.mxu0 %v7046
    %7622 = vmatprep.subr.mxu0 %v7051
    %7623 = vmatpush1.msra.mxu0 %v7050
    %7624 = vmatprep.subr.mxu0 %v7055
    %7625 = vmatpush1.msra.mxu0 %v7054
    %7626 = vmatprep.subr.mxu0 %v7059
    %7627 = vmatpush1.msra.mxu0 %v7058
    %7628 = vmatprep.subr.mxu0 %v7063
    %7629 = vmatpush1.msra.mxu0 %v7062
    %7630 = vmatprep.subr.mxu0 %v7067
    %7631 = vmatpush1.msra.mxu0 %v7066
    %7632 = vmatprep.subr.mxu0 %v7071
    %7633 = vmatpush1.msra.mxu0 %v7070
    %7634 = vmatprep.subr.mxu0 %v7075
    %7635 = vmatpush1.msra.mxu0 %v7074
    %7636 = vmatprep.subr.mxu0 %v7079
    %7637 = vmatpush1.msra.mxu0 %v7078
    %7638 = vmatprep.subr.mxu0 %v7083
    %7639 = vmatpush1.msra.mxu0 %v7082
    %7640 = vmatprep.subr.mxu0 %v7087
    %7641 = vmatpush1.msra.mxu0 %v7086
    %7642 = vmatprep.subr.mxu0 %v7091
    %7643 = vmatpush1.msra.mxu0 %v7090
    %7644 = vmatprep.subr.mxu0 0.0
    %7645 = vmatpush1.msra.mxu0 0.0
    %7646 = vmatprep.subr.mxu0 0.0
    %7647 = vmatpush1.msra.mxu0 0.0
    %7648 = vmatprep.subr.mxu0 0.0
    %7649 = vmatpush1.msra.mxu0 0.0
    %7650 = vmatprep.subr.mxu0 0.0
    %7651 = vmatpush1.msra.mxu0 0.0
    %7652 = vmatprep.subr.mxu0 0.0
    %7653 = vmatpush1.msra.mxu0 0.0
    %7654 = vmatprep.subr.mxu0 0.0
    %7655 = vmatpush1.msra.mxu0 0.0
    %7656 = vmatprep.subr.mxu0 0.0
    %7657 = vmatpush1.msra.mxu0 0.0
    %7658 = vmatprep.subr.mxu0 0.0
    %7659 = vmatpush1.msra.mxu0 0.0
    %7660 = vmatprep.subr.mxu0 0.0
    %7661 = vmatpush1.msra.mxu0 0.0
    %7662 = vmatprep.subr.mxu0 0.0
    %7663 = vmatpush1.msra.mxu0 0.0
    %7664 = vmatprep.subr.mxu0 0.0
    %7665 = vmatpush1.msra.mxu0 0.0
    %7666 = vmatprep.subr.mxu0 0.0
    %7667 = vmatpush1.msra.mxu0 0.0
    %7668 = vmatprep.subr.mxu0 0.0
    %7669 = vmatpush1.msra.mxu0 0.0
    %7670 = vmatprep.subr.mxu0 0.0
    %7671 = vmatpush1.msra.mxu0 0.0
    %7672 = vmatprep.subr.mxu0 0.0
    %7673 = vmatpush1.msra.mxu0 0.0
    %7674 = vmatprep.subr.mxu0 0.0
    %7675 = vmatpush1.msra.mxu0 0.0
    %7676 = vmatprep.mubr.f32.mxu0 0.0
    %7677 = vmatmul.mubr.f32.gmra.mrb[0].mxu0 %v7096
    %v7678 = vpop.f32.mrb[0].mxu0
    %v7679 = vadd.f32 0.0, %v7678
    %v7680 = vpop.f32.mrb[0].mxu0
    %v7681 = vadd.f32 0.0, %v7680
    %7682 = vdwg.mxu0
    %7683 = vmatprep.subr.mxu0 %v7033
    %7684 = vmatpush1.msra.mxu0 %v7032
    %7685 = vmatprep.subr.mxu0 %v7037
    %7686 = vmatpush1.msra.mxu0 %v7036
    %7687 = vmatprep.subr.mxu0 %v7041
    %7688 = vmatpush1.msra.mxu0 %v7040
    %7689 = vmatprep.subr.mxu0 %v7045
    %7690 = vmatpush1.msra.mxu0 %v7044
    %7691 = vmatprep.subr.mxu0 %v7049
    %7692 = vmatpush1.msra.mxu0 %v7048
    %7693 = vmatprep.subr.mxu0 %v7053
    %7694 = vmatpush1.msra.mxu0 %v7052
    %7695 = vmatprep.subr.mxu0 %v7057
    %7696 = vmatpush1.msra.mxu0 %v7056
    %7697 = vmatprep.subr.mxu0 %v7061
    %7698 = vmatpush1.msra.mxu0 %v7060
    %7699 = vmatprep.subr.mxu0 %v7065
    %7700 = vmatpush1.msra.mxu0 %v7064
    %7701 = vmatprep.subr.mxu0 %v7069
    %7702 = vmatpush1.msra.mxu0 %v7068
    %7703 = vmatprep.subr.mxu0 %v7073
    %7704 = vmatpush1.msra.mxu0 %v7072
    %7705 = vmatprep.subr.mxu0 %v7077
    %7706 = vmatpush1.msra.mxu0 %v7076
    %7707 = vmatprep.subr.mxu0 %v7081
    %7708 = vmatpush1.msra.mxu0 %v7080
    %7709 = vmatprep.subr.mxu0 %v7085
    %7710 = vmatpush1.msra.mxu0 %v7084
    %7711 = vmatprep.subr.mxu0 %v7089
    %7712 = vmatpush1.msra.mxu0 %v7088
    %7713 = vmatprep.subr.mxu0 %v7093
    %7714 = vmatpush1.msra.mxu0 %v7092
    %7715 = vmatprep.subr.mxu0 0.0
    %7716 = vmatpush1.msra.mxu0 0.0
    %7717 = vmatprep.subr.mxu0 0.0
    %7718 = vmatpush1.msra.mxu0 0.0
    %7719 = vmatprep.subr.mxu0 0.0
    %7720 = vmatpush1.msra.mxu0 0.0
    %7721 = vmatprep.subr.mxu0 0.0
    %7722 = vmatpush1.msra.mxu0 0.0
    %7723 = vmatprep.subr.mxu0 0.0
    %7724 = vmatpush1.msra.mxu0 0.0
    %7725 = vmatprep.subr.mxu0 0.0
    %7726 = vmatpush1.msra.mxu0 0.0
    %7727 = vmatprep.subr.mxu0 0.0
    %7728 = vmatpush1.msra.mxu0 0.0
    %7729 = vmatprep.subr.mxu0 0.0
    %7730 = vmatpush1.msra.mxu0 0.0
    %7731 = vmatprep.subr.mxu0 0.0
    %7732 = vmatpush1.msra.mxu0 0.0
    %7733 = vmatprep.subr.mxu0 0.0
    %7734 = vmatpush1.msra.mxu0 0.0
    %7735 = vmatprep.subr.mxu0 0.0
    %7736 = vmatpush1.msra.mxu0 0.0
    %7737 = vmatprep.subr.mxu0 0.0
    %7738 = vmatpush1.msra.mxu0 0.0
    %7739 = vmatprep.subr.mxu0 0.0
    %7740 = vmatpush1.msra.mxu0 0.0
    %7741 = vmatprep.subr.mxu0 0.0
    %7742 = vmatpush1.msra.mxu0 0.0
    %7743 = vmatprep.subr.mxu0 0.0
    %7744 = vmatpush1.msra.mxu0 0.0
    %7745 = vmatprep.subr.mxu0 0.0
    %7746 = vmatpush1.msra.mxu0 0.0
    %7747 = vmatprep.mubr.f32.mxu0 0.0
    %7748 = vmatmul.mubr.f32.gmra.mrb[0].mxu0 %v7096
    %v7749 = vpop.f32.mrb[0].mxu0
    %v7750 = vadd.f32 0.0, %v7749
    %v7751 = vpop.f32.mrb[0].mxu0
    %v7752 = vadd.f32 0.0, %v7751
    %7753 = vdwg.mxu0
    %7754 = vmatprep.subr.mxu0 %v7293
    %7755 = vmatpush1.msra.mxu0 %v7292
    %7756 = vmatprep.subr.mxu0 %v7297
    %7757 = vmatpush1.msra.mxu0 %v7296
    %7758 = vmatprep.subr.mxu0 %v7301
    %7759 = vmatpush1.msra.mxu0 %v7300
    %7760 = vmatprep.subr.mxu0 %v7305
    %7761 = vmatpush1.msra.mxu0 %v7304
    %7762 = vmatprep.subr.mxu0 %v7309
    %7763 = vmatpush1.msra.mxu0 %v7308
    %7764 = vmatprep.subr.mxu0 %v7313
    %7765 = vmatpush1.msra.mxu0 %v7312
    %7766 = vmatprep.subr.mxu0 %v7317
    %7767 = vmatpush1.msra.mxu0 %v7316
    %7768 = vmatprep.subr.mxu0 %v7321
    %7769 = vmatpush1.msra.mxu0 %v7320
    %7770 = vmatprep.subr.mxu0 %v7325
    %7771 = vmatpush1.msra.mxu0 %v7324
    %7772 = vmatprep.subr.mxu0 %v7329
    %7773 = vmatpush1.msra.mxu0 %v7328
    %7774 = vmatprep.subr.mxu0 %v7333
    %7775 = vmatpush1.msra.mxu0 %v7332
    %7776 = vmatprep.subr.mxu0 %v7337
    %7777 = vmatpush1.msra.mxu0 %v7336
    %7778 = vmatprep.subr.mxu0 %v7341
    %7779 = vmatpush1.msra.mxu0 %v7340
    %7780 = vmatprep.subr.mxu0 %v7345
    %7781 = vmatpush1.msra.mxu0 %v7344
    %7782 = vmatprep.subr.mxu0 %v7349
    %7783 = vmatpush1.msra.mxu0 %v7348
    %7784 = vmatprep.subr.mxu0 %v7353
    %7785 = vmatpush1.msra.mxu0 %v7352
    %7786 = vmatprep.subr.mxu0 0.0
    %7787 = vmatpush1.msra.mxu0 0.0
    %7788 = vmatprep.subr.mxu0 0.0
    %7789 = vmatpush1.msra.mxu0 0.0
    %7790 = vmatprep.subr.mxu0 0.0
    %7791 = vmatpush1.msra.mxu0 0.0
    %7792 = vmatprep.subr.mxu0 0.0
    %7793 = vmatpush1.msra.mxu0 0.0
    %7794 = vmatprep.subr.mxu0 0.0
    %7795 = vmatpush1.msra.mxu0 0.0
    %7796 = vmatprep.subr.mxu0 0.0
    %7797 = vmatpush1.msra.mxu0 0.0
    %7798 = vmatprep.subr.mxu0 0.0
    %7799 = vmatpush1.msra.mxu0 0.0
    %7800 = vmatprep.subr.mxu0 0.0
    %7801 = vmatpush1.msra.mxu0 0.0
    %7802 = vmatprep.subr.mxu0 0.0
    %7803 = vmatpush1.msra.mxu0 0.0
    %7804 = vmatprep.subr.mxu0 0.0
    %7805 = vmatpush1.msra.mxu0 0.0
    %7806 = vmatprep.subr.mxu0 0.0
    %7807 = vmatpush1.msra.mxu0 0.0
    %7808 = vmatprep.subr.mxu0 0.0
    %7809 = vmatpush1.msra.mxu0 0.0
    %7810 = vmatprep.subr.mxu0 0.0
    %7811 = vmatpush1.msra.mxu0 0.0
    %7812 = vmatprep.subr.mxu0 0.0
    %7813 = vmatpush1.msra.mxu0 0.0
    %7814 = vmatprep.subr.mxu0 0.0
    %7815 = vmatpush1.msra.mxu0 0.0
    %7816 = vmatprep.subr.mxu0 0.0
    %7817 = vmatpush1.msra.mxu0 0.0
    %7818 = vmatprep.mubr.f32.mxu0 0.0
    %7819 = vmatmul.mubr.f32.gmra.mrb[0].mxu0 %v7094
    %v7820 = vpop.f32.mrb[0].mxu0
    %v7821 = vadd.f32 %v7679, %v7820
    %v7822 = vpop.f32.mrb[0].mxu0
    %v7823 = vadd.f32 %v7681, %v7822
    %7824 = vdwg.mxu0
    %7825 = vmatprep.subr.mxu0 %v7295
    %7826 = vmatpush1.msra.mxu0 %v7294
    %7827 = vmatprep.subr.mxu0 %v7299
    %7828 = vmatpush1.msra.mxu0 %v7298
    %7829 = vmatprep.subr.mxu0 %v7303
    %7830 = vmatpush1.msra.mxu0 %v7302
    %7831 = vmatprep.subr.mxu0 %v7307
    %7832 = vmatpush1.msra.mxu0 %v7306
    %7833 = vmatprep.subr.mxu0 %v7311
    %7834 = vmatpush1.msra.mxu0 %v7310
    %7835 = vmatprep.subr.mxu0 %v7315
    %7836 = vmatpush1.msra.mxu0 %v7314
    %7837 = vmatprep.subr.mxu0 %v7319
    %7838 = vmatpush1.msra.mxu0 %v7318
    %7839 = vmatprep.subr.mxu0 %v7323
    %7840 = vmatpush1.msra.mxu0 %v7322
    %7841 = vmatprep.subr.mxu0 %v7327
    %7842 = vmatpush1.msra.mxu0 %v7326
    %7843 = vmatprep.subr.mxu0 %v7331
    %7844 = vmatpush1.msra.mxu0 %v7330
    %7845 = vmatprep.subr.mxu0 %v7335
    %7846 = vmatpush1.msra.mxu0 %v7334
    %7847 = vmatprep.subr.mxu0 %v7339
    %7848 = vmatpush1.msra.mxu0 %v7338
    %7849 = vmatprep.subr.mxu0 %v7343
    %7850 = vmatpush1.msra.mxu0 %v7342
    %7851 = vmatprep.subr.mxu0 %v7347
    %7852 = vmatpush1.msra.mxu0 %v7346
    %7853 = vmatprep.subr.mxu0 %v7351
    %7854 = vmatpush1.msra.mxu0 %v7350
    %7855 = vmatprep.subr.mxu0 %v7355
    %7856 = vmatpush1.msra.mxu0 %v7354
    %7857 = vmatprep.subr.mxu0 0.0
    %7858 = vmatpush1.msra.mxu0 0.0
    %7859 = vmatprep.subr.mxu0 0.0
    %7860 = vmatpush1.msra.mxu0 0.0
    %7861 = vmatprep.subr.mxu0 0.0
    %7862 = vmatpush1.msra.mxu0 0.0
    %7863 = vmatprep.subr.mxu0 0.0
    %7864 = vmatpush1.msra.mxu0 0.0
    %7865 = vmatprep.subr.mxu0 0.0
    %7866 = vmatpush1.msra.mxu0 0.0
    %7867 = vmatprep.subr.mxu0 0.0
    %7868 = vmatpush1.msra.mxu0 0.0
    %7869 = vmatprep.subr.mxu0 0.0
    %7870 = vmatpush1.msra.mxu0 0.0
    %7871 = vmatprep.subr.mxu0 0.0
    %7872 = vmatpush1.msra.mxu0 0.0
    %7873 = vmatprep.subr.mxu0 0.0
    %7874 = vmatpush1.msra.mxu0 0.0
    %7875 = vmatprep.subr.mxu0 0.0
    %7876 = vmatpush1.msra.mxu0 0.0
    %7877 = vmatprep.subr.mxu0 0.0
    %7878 = vmatpush1.msra.mxu0 0.0
    %7879 = vmatprep.subr.mxu0 0.0
    %7880 = vmatpush1.msra.mxu0 0.0
    %7881 = vmatprep.subr.mxu0 0.0
    %7882 = vmatpush1.msra.mxu0 0.0
    %7883 = vmatprep.subr.mxu0 0.0
    %7884 = vmatpush1.msra.mxu0 0.0
    %7885 = vmatprep.subr.mxu0 0.0
    %7886 = vmatpush1.msra.mxu0 0.0
    %7887 = vmatprep.subr.mxu0 0.0
    %7888 = vmatpush1.msra.mxu0 0.0
    %7889 = vmatprep.mubr.f32.mxu0 0.0
    %7890 = vmatmul.mubr.f32.gmra.mrb[0].mxu0 %v7094
    %v7891 = vpop.f32.mrb[0].mxu0
    %v7892 = vadd.f32 %v7750, %v7891
    %v7893 = vpop.f32.mrb[0].mxu0
    %v7894 = vadd.f32 %v7752, %v7893
    %7895 = vdwg.mxu0
    %7896 = vmatprep.subr.mxu0 %v7549
    %7897 = vmatpush1.msra.mxu0 %v7548
    %7898 = vmatprep.subr.mxu0 %v7553
    %7899 = vmatpush1.msra.mxu0 %v7552
    %7900 = vmatprep.subr.mxu0 %v7557
    %7901 = vmatpush1.msra.mxu0 %v7556
    %7902 = vmatprep.subr.mxu0 %v7561
    %7903 = vmatpush1.msra.mxu0 %v7560
    %7904 = vmatprep.subr.mxu0 %v7565
    %7905 = vmatpush1.msra.mxu0 %v7564
    %7906 = vmatprep.subr.mxu0 %v7569
    %7907 = vmatpush1.msra.mxu0 %v7568
    %7908 = vmatprep.subr.mxu0 %v7573
    %7909 = vmatpush1.msra.mxu0 %v7572
    %7910 = vmatprep.subr.mxu0 %v7577
    %7911 = vmatpush1.msra.mxu0 %v7576
    %7912 = vmatprep.subr.mxu0 %v7581
    %7913 = vmatpush1.msra.mxu0 %v7580
    %7914 = vmatprep.subr.mxu0 %v7585
    %7915 = vmatpush1.msra.mxu0 %v7584
    %7916 = vmatprep.subr.mxu0 %v7589
    %7917 = vmatpush1.msra.mxu0 %v7588
    %7918 = vmatprep.subr.mxu0 %v7593
    %7919 = vmatpush1.msra.mxu0 %v7592
    %7920 = vmatprep.subr.mxu0 %v7597
    %7921 = vmatpush1.msra.mxu0 %v7596
    %7922 = vmatprep.subr.mxu0 %v7601
    %7923 = vmatpush1.msra.mxu0 %v7600
    %7924 = vmatprep.subr.mxu0 %v7605
    %7925 = vmatpush1.msra.mxu0 %v7604
    %7926 = vmatprep.subr.mxu0 %v7609
    %7927 = vmatpush1.msra.mxu0 %v7608
    %7928 = vmatprep.subr.mxu0 0.0
    %7929 = vmatpush1.msra.mxu0 0.0
    %7930 = vmatprep.subr.mxu0 0.0
    %7931 = vmatpush1.msra.mxu0 0.0
    %7932 = vmatprep.subr.mxu0 0.0
    %7933 = vmatpush1.msra.mxu0 0.0
    %7934 = vmatprep.subr.mxu0 0.0
    %7935 = vmatpush1.msra.mxu0 0.0
    %7936 = vmatprep.subr.mxu0 0.0
    %7937 = vmatpush1.msra.mxu0 0.0
    %7938 = vmatprep.subr.mxu0 0.0
    %7939 = vmatpush1.msra.mxu0 0.0
    %7940 = vmatprep.subr.mxu0 0.0
    %7941 = vmatpush1.msra.mxu0 0.0
    %7942 = vmatprep.subr.mxu0 0.0
    %7943 = vmatpush1.msra.mxu0 0.0
    %7944 = vmatprep.subr.mxu0 0.0
    %7945 = vmatpush1.msra.mxu0 0.0
    %7946 = vmatprep.subr.mxu0 0.0
    %7947 = vmatpush1.msra.mxu0 0.0
    %7948 = vmatprep.subr.mxu0 0.0
    %7949 = vmatpush1.msra.mxu0 0.0
    %7950 = vmatprep.subr.mxu0 0.0
    %7951 = vmatpush1.msra.mxu0 0.0
    %7952 = vmatprep.subr.mxu0 0.0
    %7953 = vmatpush1.msra.mxu0 0.0
    %7954 = vmatprep.subr.mxu0 0.0
    %7955 = vmatpush1.msra.mxu0 0.0
    %7956 = vmatprep.subr.mxu0 0.0
    %7957 = vmatpush1.msra.mxu0 0.0
    %7958 = vmatprep.subr.mxu0 0.0
    %7959 = vmatpush1.msra.mxu0 0.0
    %7960 = vmatprep.mubr.f32.mxu0 0.0
    %7961 = vmatmul.mubr.f32.gmra.mrb[0].mxu0 %v7098
    %v7962 = vpop.f32.mrb[0].mxu0
    %v7963 = vadd.f32 0.0, %v7962
    %v7964 = vpop.f32.mrb[0].mxu0
    %v7965 = vadd.f32 0.0, %v7964
    %7966 = vdwg.mxu0
    %7967 = vmatprep.subr.mxu0 %v7551
    %7968 = vmatpush1.msra.mxu0 %v7550
    %7969 = vmatprep.subr.mxu0 %v7555
    %7970 = vmatpush1.msra.mxu0 %v7554
    %7971 = vmatprep.subr.mxu0 %v7559
    %7972 = vmatpush1.msra.mxu0 %v7558
    %7973 = vmatprep.subr.mxu0 %v7563
    %7974 = vmatpush1.msra.mxu0 %v7562
    %7975 = vmatprep.subr.mxu0 %v7567
    %7976 = vmatpush1.msra.mxu0 %v7566
    %7977 = vmatprep.subr.mxu0 %v7571
    %7978 = vmatpush1.msra.mxu0 %v7570
    %7979 = vmatprep.subr.mxu0 %v7575
    %7980 = vmatpush1.msra.mxu0 %v7574
    %7981 = vmatprep.subr.mxu0 %v7579
    %7982 = vmatpush1.msra.mxu0 %v7578
    %7983 = vmatprep.subr.mxu0 %v7583
    %7984 = vmatpush1.msra.mxu0 %v7582
    %7985 = vmatprep.subr.mxu0 %v7587
    %7986 = vmatpush1.msra.mxu0 %v7586
    %7987 = vmatprep.subr.mxu0 %v7591
    %7988 = vmatpush1.msra.mxu0 %v7590
    %7989 = vmatprep.subr.mxu0 %v7595
    %7990 = vmatpush1.msra.mxu0 %v7594
    %7991 = vmatprep.subr.mxu0 %v7599
    %7992 = vmatpush1.msra.mxu0 %v7598
    %7993 = vmatprep.subr.mxu0 %v7603
    %7994 = vmatpush1.msra.mxu0 %v7602
    %7995 = vmatprep.subr.mxu0 %v7607
    %7996 = vmatpush1.msra.mxu0 %v7606
    %7997 = vmatprep.subr.mxu0 %v7611
    %7998 = vmatpush1.msra.mxu0 %v7610
    %7999 = vmatprep.subr.mxu0 0.0
    %8000 = vmatpush1.msra.mxu0 0.0
    %8001 = vmatprep.subr.mxu0 0.0
    %8002 = vmatpush1.msra.mxu0 0.0
    %8003 = vmatprep.subr.mxu0 0.0
    %8004 = vmatpush1.msra.mxu0 0.0
    %8005 = vmatprep.subr.mxu0 0.0
    %8006 = vmatpush1.msra.mxu0 0.0
    %8007 = vmatprep.subr.mxu0 0.0
    %8008 = vmatpush1.msra.mxu0 0.0
    %8009 = vmatprep.subr.mxu0 0.0
    %8010 = vmatpush1.msra.mxu0 0.0
    %8011 = vmatprep.subr.mxu0 0.0
    %8012 = vmatpush1.msra.mxu0 0.0
    %8013 = vmatprep.subr.mxu0 0.0
    %8014 = vmatpush1.msra.mxu0 0.0
    %8015 = vmatprep.subr.mxu0 0.0
    %8016 = vmatpush1.msra.mxu0 0.0
    %8017 = vmatprep.subr.mxu0 0.0
    %8018 = vmatpush1.msra.mxu0 0.0
    %8019 = vmatprep.subr.mxu0 0.0
    %8020 = vmatpush1.msra.mxu0 0.0
    %8021 = vmatprep.subr.mxu0 0.0
    %8022 = vmatpush1.msra.mxu0 0.0
    %8023 = vmatprep.subr.mxu0 0.0
    %8024 = vmatpush1.msra.mxu0 0.0
    %8025 = vmatprep.subr.mxu0 0.0
    %8026 = vmatpush1.msra.mxu0 0.0
    %8027 = vmatprep.subr.mxu0 0.0
    %8028 = vmatpush1.msra.mxu0 0.0
    %8029 = vmatprep.subr.mxu0 0.0
    %8030 = vmatpush1.msra.mxu0 0.0
    %8031 = vmatprep.mubr.f32.mxu0 0.0
    %8032 = vmatmul.mubr.f32.gmra.mrb[0].mxu0 %v7098
    %v8033 = vpop.f32.mrb[0].mxu0
    %v8034 = vadd.f32 0.0, %v8033
    %v8035 = vpop.f32.mrb[0].mxu0
    %v8036 = vadd.f32 0.0, %v8035
    %8037 = vdwg.mxu0
    %v8038 = vadd.f32 %v7821, %v7963
    %v8039 = vadd.f32 %v7823, %v7965
    %v8040 = vadd.f32 %v7892, %v8034
    %v8041 = vadd.f32 %v7894, %v8036
    %8043 = vset.pattern.permute.xlu0 0
    %8044 = vperm.xlu0 %8043, %v7099
    %v8045 = vpop.permute.xlu0 %8044
    %v8047 = vadd.f32 %v8038, %v8045
    %v8048 = vadd.f32 %v8039, %v8045
    %v8049 = vadd.f32 %v8040, %v8045
    %v8050 = vadd.f32 %v8041, %v8045
    %8051 = vst [vmem:[#allocation5] sm:$0xff] %v8047
    %8052 = vst [vmem:[#allocation5 + $0x8] sm:$0xff] %v8048
    %8053 = vst [vmem:[#allocation5 + $0x10] sm:$0xff] %v8049
    %8054 = vst [vmem:[#allocation5 + $0x18] sm:$0xff] %v8050
    // Predicated region
    $region34: #{tpu_custom_call.1} parent=1 // pred_check
      _
    $region35: #{tpu_custom_call.1} parent=1 // pred_check_branch
      %8056 = sbr.rel (0) target = $region37
    $region36: #{tpu_custom_call.1} parent=1 // pred_region
      %s8058 = ssub.s32 512, 512
      %8059 = vsyncadd [#allocation4], %s8058
      %s8061 = sshll.u32 [#allocation5], 4
      %s8062 = int_to_ptr.vmem [resolvable:$true] %s8061
      %8064 = dma.vmem_to_hbm [thread:$0]  %s8062, 512, %s7, [#allocation4]
    $region37: #{tpu_custom_call.1} parent=1 // pred_fallthru
      _
    // Predicated region
    $region38: #{tpu_custom_call.1} parent=1 // pred_check
      _
    $region39: #{tpu_custom_call.1} parent=1 // pred_check_branch
      %8066 = sbr.rel (0) target = $region41
    $region40: #{tpu_custom_call.1} parent=1 // pred_region
      %8067 = dma.done [#allocation4], 512
    $region41: #{tpu_custom_call.1} parent=1 // pred_fallthru
      _
    %8068 = vsyncpa [#allocation3], 1
    %8069 = vsyncpa [#allocation4], 1

</llo_original>
